<compile_context>
chip_gen: v6e
topology: v6e:2x2x1
jax: 0.10.0
libtpu: 0.0.40
codegen_flags: <defaults>
</compile_context>

<pallas_src>
import jax
import jax.numpy as jnp
from jax.experimental import pallas as pl
from jax.experimental.pallas import tpu as pltpu

# ----------------------- configuration (small, synthetic) -----------------------
HIDDEN = 32
HEADS = 4
HEAD_DIM = HIDDEN // HEADS
INTER = 64
BERT_LN_EPS = 1e-12        # config.layer_norm_eps
TORCH_LN_EPS = 1e-5        # nn.LayerNorm default (EntitySelfAttention.entity_norm)
T_LEN = 16                 # token sequence length
E_LEN = 8                  # entity / query sequence length
S_TOT = T_LEN + E_LEN
BATCH = 2
NUM_LAYERS = 2             # num_selfcrosslayer
USE_TOKEN_LEVEL_ENCODER = True
USE_ENTITY_ATTENTION = True
ATTN_SCALE = 1.0 / (HEAD_DIM ** 0.5)


# ------------------------------ fused layer kernel -------------------------------

def _layer_norm(x, g, b, eps):
    mu = jnp.mean(x, axis=-1, keepdims=True)
    xc = x - mu
    var = jnp.mean(xc * xc, axis=-1, keepdims=True)
    return xc * jax.lax.rsqrt(var + eps) * g + b


def _softmax_rows(s):
    s = s - jnp.max(s, axis=-1, keepdims=True)
    p = jnp.exp(s)
    return p * pl.reciprocal(jnp.sum(p, axis=-1, keepdims=True), approx=True)


def _fused_layer_kernel(
    # activations (one batch element per grid step)
    h_tok_ref,            # [1, T, H]
    h_ent_ref,            # [1, E, H]
    qpos_ref,             # [1, E, H]
    mask_ref,             # [1, 1, T+E] additive mask
    # EntityAwareBertSelfAttention per-head projections
    w_qkv_c_ref,          # [6, HEADS, H, D]: query,key,value, e2w_query,e2w_key,e2w_value
    b_qkv_c_ref,          # [6, HEADS, 1, D]
    # head-output denses split per head (self_out.dense, self_out.entity_dense, MHA out_proj)
    w_head_out_ref,       # [3, HEADS, D, H]
    b_head_out_ref,       # [3, 1, H]
    # FFN
    w_ffn1_ref,           # [2, H, INTER]   (token, entity) intermediate dense
    b_ffn1_ref,           # [2, 1, INTER]
    w_ffn2_ref,           # [2, INTER, H]   (token, entity) output dense
    b_ffn2_ref,           # [2, 1, H]
    # layer norms: selfout-tok, selfout-ent, out-tok, out-ent, entity-norm
    ln_g_ref,             # [5, 1, H]
    ln_b_ref,             # [5, 1, H]
    # EntitySelfAttention (nn.MultiheadAttention) per-head projections
    w_qkv_s_ref,          # [3, HEADS, H, D]: q, k, v
    b_qkv_s_ref,          # [3, HEADS, 1, D]
    # outputs
    tok_out_ref,          # [1, T, H]
    ent_out_ref,          # [1, E, H]
):
    f32 = jnp.float32
    h_tok = h_tok_ref[0]                 # [T, H]
    h_ent = h_ent_ref[0]                 # [E, H]
    qpos = qpos_ref[0]                   # [E, H]
    mask = mask_ref[0]                   # [1, T+E]

    def _mm(a, b):
        return jnp.dot(a, b, preferred_element_type=f32)

    def _nt(a, b):                       # a [m,d] . b[n,d]^T -> [m,n]
        return jax.lax.dot_general(a, b, (((1,), (1,)), ((), ())),
                                   preferred_element_type=f32)

    # ---------------- EntityAwareBertSelfAttention (+ SelfOutput dense) -----------
    pos_ent = (h_ent + qpos) * 0.5

    tok_acc = jnp.zeros((T_LEN, HIDDEN), f32)
    ent_acc = jnp.zeros((E_LEN, HIDDEN), f32)
    for h in range(HEADS):               # static unroll: 4 heads, head_dim=8
        qw = _mm(h_tok, w_qkv_c_ref[0, h]) + b_qkv_c_ref[0, h]     # [T, D]
        kw = _mm(h_tok, w_qkv_c_ref[1, h]) + b_qkv_c_ref[1, h]
        vw = _mm(h_tok, w_qkv_c_ref[2, h]) + b_qkv_c_ref[2, h]
        qe = _mm(pos_ent, w_qkv_c_ref[3, h]) + b_qkv_c_ref[3, h]   # [E, D]
        ke = _mm(pos_ent, w_qkv_c_ref[4, h]) + b_qkv_c_ref[4, h]
        ve = _mm(h_ent, w_qkv_c_ref[5, h]) + b_qkv_c_ref[5, h]

        q = jnp.concatenate([qw, qe], axis=0)                      # [T+E, D]
        k = jnp.concatenate([kw, ke], axis=0)
        v = jnp.concatenate([vw, ve], axis=0)

        p = _softmax_rows(_nt(q, k) * ATTN_SCALE + mask)           # [T+E, T+E]
        ctx = _mm(p, v)                                            # [T+E, D]

        # head-merge fused into the self-output dense (per-head accumulation)
        tok_acc = tok_acc + _mm(ctx[:T_LEN], w_head_out_ref[0, h])  # [T, H]
        ent_acc = ent_acc + _mm(ctx[T_LEN:], w_head_out_ref[1, h])  # [E, H]

    tok_so = _layer_norm(tok_acc + b_head_out_ref[0] + h_tok,
                         ln_g_ref[0], ln_b_ref[0], BERT_LN_EPS)
    ent_so = _layer_norm(ent_acc + b_head_out_ref[1] + h_ent,
                         ln_g_ref[1], ln_b_ref[1], BERT_LN_EPS)

    # ------------------- Intermediate (GELU) + Output (+ LayerNorm) ---------------
    tok_i = jax.nn.gelu(_mm(tok_so, w_ffn1_ref[0]) + b_ffn1_ref[0], approximate=True)
    ent_i = jax.nn.gelu(_mm(ent_so, w_ffn1_ref[1]) + b_ffn1_ref[1], approximate=True)

    tok_new = _layer_norm(_mm(tok_i, w_ffn2_ref[0]) + b_ffn2_ref[0] + tok_so,
                          ln_g_ref[2], ln_b_ref[2], BERT_LN_EPS)
    ent_new = _layer_norm(_mm(ent_i, w_ffn2_ref[1]) + b_ffn2_ref[1] + ent_so,
                          ln_g_ref[3], ln_b_ref[3], BERT_LN_EPS)

    # -------------------- EntitySelfAttention (torch MHA, eval mode) --------------
    qk_in = ent_new + qpos
    sa_acc = jnp.zeros((E_LEN, HIDDEN), f32)
    for h in range(HEADS):
        q2 = _mm(qk_in, w_qkv_s_ref[0, h]) + b_qkv_s_ref[0, h]
        k2 = _mm(qk_in, w_qkv_s_ref[1, h]) + b_qkv_s_ref[1, h]
        v2 = _mm(ent_new, w_qkv_s_ref[2, h]) + b_qkv_s_ref[2, h]
        p2 = _softmax_rows(_nt(q2, k2) * ATTN_SCALE)
        sa_acc = sa_acc + _mm(_mm(p2, v2), w_head_out_ref[2, h])
    ent_sa = sa_acc + b_head_out_ref[2]
    ent_final = _layer_norm(ent_new + ent_sa, ln_g_ref[4], ln_b_ref[4], TORCH_LN_EPS)

    tok_out_ref[0] = tok_new.astype(tok_out_ref.dtype)
    ent_out_ref[0] = ent_final.astype(ent_out_ref.dtype)


# ------------------------------ parameter packing ---------------------------------

def _per_head_cols(w):
    """[H, H] (x @ w) -> [HEADS, H, D]: split output columns per head."""
    return jnp.transpose(w.reshape(HIDDEN, HEADS, HEAD_DIM), (1, 0, 2))


def _per_head_cols_bias(b):
    """[H] -> [HEADS, 1, D]."""
    return b.reshape(HEADS, 1, HEAD_DIM)


def _per_head_rows(w):
    """[H, H] (concat-heads @ w) -> [HEADS, D, H]: split input rows per head."""
    return w.reshape(HEADS, HEAD_DIM, HIDDEN)


def _pack_layer(pc, ps):
    a, so, it, ot = pc["attn"], pc["self_out"], pc["inter"], pc["out"]
    qkv_names = ("query", "key", "value", "e2w_query", "e2w_key", "e2w_value")
    w_qkv_c = jnp.stack([_per_head_cols(a[n]["w"]) for n in qkv_names])
    b_qkv_c = jnp.stack([_per_head_cols_bias(a[n]["b"]) for n in qkv_names])
    w_head_out = jnp.stack([_per_head_rows(so["dense"]["w"]),
                            _per_head_rows(so["entity_dense"]["w"]),
                            _per_head_rows(ps["out"]["w"])])
    b_head_out = jnp.stack([so["dense"]["b"].reshape(1, HIDDEN),
                            so["entity_dense"]["b"].reshape(1, HIDDEN),
                            ps["out"]["b"].reshape(1, HIDDEN)])
    w_ffn1 = jnp.stack([it["dense"]["w"], it["entity_dense"]["w"]])
    b_ffn1 = jnp.stack([it["dense"]["b"].reshape(1, INTER),
                        it["entity_dense"]["b"].reshape(1, INTER)])
    w_ffn2 = jnp.stack([ot["dense"]["w"], ot["entity_dense"]["w"]])
    b_ffn2 = jnp.stack([ot["dense"]["b"].reshape(1, HIDDEN),
                        ot["entity_dense"]["b"].reshape(1, HIDDEN)])
    ln_g = jnp.stack([so["ln"]["g"], so["entity_ln"]["g"], ot["ln"]["g"],
                      ot["entity_ln"]["g"], ps["norm"]["g"]]).reshape(5, 1, HIDDEN)
    ln_b = jnp.stack([so["ln"]["b"], so["entity_ln"]["b"], ot["ln"]["b"],
                      ot["entity_ln"]["b"], ps["norm"]["b"]]).reshape(5, 1, HIDDEN)
    w_qkv_s = jnp.stack([_per_head_cols(ps[n]["w"]) for n in ("wq", "wk", "wv")])
    b_qkv_s = jnp.stack([_per_head_cols_bias(ps[n]["b"]) for n in ("wq", "wk", "wv")])
    return (w_qkv_c, b_qkv_c, w_head_out, b_head_out, w_ffn1, b_ffn1,
            w_ffn2, b_ffn2, ln_g, ln_b, w_qkv_s, b_qkv_s)


# --------------------------------- layer wrapper -----------------------------------

def _full_spec(x):
    zeros = (0,) * x.ndim
    return pl.BlockSpec(x.shape, lambda bi, _z=zeros: _z)


def fused_layer(pc, ps, h_tok, h_ent, attn_mask, query_pos):
    """One EntityAwareBertLayer + one EntitySelfAttention, fused into one pallas_call."""
    b = h_tok.shape[0]
    mask3 = attn_mask.reshape(b, 1, S_TOT)
    packed = _pack_layer(pc, ps)

    in_specs = [
        pl.BlockSpec((1, T_LEN, HIDDEN), lambda bi: (bi, 0, 0)),
        pl.BlockSpec((1, E_LEN, HIDDEN), lambda bi: (bi, 0, 0)),
        pl.BlockSpec((1, E_LEN, HIDDEN), lambda bi: (bi, 0, 0)),
        pl.BlockSpec((1, 1, S_TOT), lambda bi: (bi, 0, 0)),
    ] + [_full_spec(x) for x in packed]

    out_specs = (
        pl.BlockSpec((1, T_LEN, HIDDEN), lambda bi: (bi, 0, 0)),
        pl.BlockSpec((1, E_LEN, HIDDEN), lambda bi: (bi, 0, 0)),
    )
    out_shape = (
        jax.ShapeDtypeStruct((b, T_LEN, HIDDEN), h_tok.dtype),
        jax.ShapeDtypeStruct((b, E_LEN, HIDDEN), h_ent.dtype),
    )

    tok_new, ent_new = pl.pallas_call(
        _fused_layer_kernel,
        grid=(b,),
        in_specs=in_specs,
        out_specs=out_specs,
        out_shape=out_shape,
        compiler_params=pltpu.CompilerParams(
            dimension_semantics=("parallel",),          # batch-split only (v7x megacore)
            vmem_limit_bytes=32 * 1024 * 1024),
    )(h_tok, h_ent, query_pos, mask3, *packed)
    return tok_new, ent_new


def self_cross_attention(params, h_token, h_entity, attn_mask, query_pos):
    # Fused kernel implements the configuration used here:
    # use_token_level_encoder=True and use_entity_attention=True.
    intermediate = []
    for i in range(NUM_LAYERS):
        h_token, h_entity = fused_layer(params["cross"][i], params["self"][i],
                                        h_token, h_entity, attn_mask, query_pos)
        intermediate.append({"h_token": h_token, "h_query": h_entity})
    return h_token, h_entity, intermediate


# ----------------------------- parameter init ------------------------------------

def init_linear(key, din, dout):
    kw, kb = jax.random.split(key)
    return {"w": 0.02 * jax.random.normal(kw, (din, dout), jnp.float32),
            "b": 0.02 * jax.random.normal(kb, (dout,), jnp.float32)}


def init_ln(dim):
    return {"g": jnp.ones((dim,), jnp.float32), "b": jnp.zeros((dim,), jnp.float32)}


def init_cross_layer(key):
    ks = jax.random.split(key, 12)
    return {
        "attn": {
            "query": init_linear(ks[0], HIDDEN, HIDDEN),
            "key": init_linear(ks[1], HIDDEN, HIDDEN),
            "value": init_linear(ks[2], HIDDEN, HIDDEN),
            "e2w_query": init_linear(ks[3], HIDDEN, HIDDEN),
            "e2w_key": init_linear(ks[4], HIDDEN, HIDDEN),
            "e2w_value": init_linear(ks[5], HIDDEN, HIDDEN),
        },
        "self_out": {
            "dense": init_linear(ks[6], HIDDEN, HIDDEN), "ln": init_ln(HIDDEN),
            "entity_dense": init_linear(ks[7], HIDDEN, HIDDEN), "entity_ln": init_ln(HIDDEN),
        },
        "inter": {
            "dense": init_linear(ks[8], HIDDEN, INTER),
            "entity_dense": init_linear(ks[9], HIDDEN, INTER),
        },
        "out": {
            "dense": init_linear(ks[10], INTER, HIDDEN), "ln": init_ln(HIDDEN),
            "entity_dense": init_linear(ks[11], INTER, HIDDEN), "entity_ln": init_ln(HIDDEN),
        },
    }


def init_self_layer(key):
    ks = jax.random.split(key, 4)
    return {
        "wq": init_linear(ks[0], HIDDEN, HIDDEN),
        "wk": init_linear(ks[1], HIDDEN, HIDDEN),
        "wv": init_linear(ks[2], HIDDEN, HIDDEN),
        "out": init_linear(ks[3], HIDDEN, HIDDEN),
        "norm": init_ln(HIDDEN),
    }


def init_params(key):
    kc, ks = jax.random.split(key)
    return {
        "cross": [init_cross_layer(k) for k in jax.random.split(kc, NUM_LAYERS)],
        "self": [init_self_layer(k) for k in jax.random.split(ks, NUM_LAYERS)],
    }


# ----------------------------------- main -----------------------------------------

if __name__ == "__main__":
    assert USE_TOKEN_LEVEL_ENCODER and USE_ENTITY_ATTENTION

    root = jax.random.PRNGKey(0)
    k_params, k_tok, k_ent, k_pos = jax.random.split(root, 4)

    params = init_params(k_params)
    h_token = jax.random.normal(k_tok, (BATCH, T_LEN, HIDDEN), jnp.float32)
    h_entity = jax.random.normal(k_ent, (BATCH, E_LEN, HIDDEN), jnp.float32)
    query_pos = jax.random.normal(k_pos, (BATCH, E_LEN, HIDDEN), jnp.float32)

    # BERT-style extended additive mask over the concatenated [token; entity] keys.
    valid = jnp.ones((BATCH, S_TOT), jnp.float32).at[1, -2:].set(0.0)
    attn_mask = ((1.0 - valid) * -10000.0).reshape(BATCH, 1, 1, S_TOT)

    fwd = jax.jit(self_cross_attention)
    h_tok_out, h_ent_out, intermediate = fwd(params, h_token, h_entity,
                                             attn_mask, query_pos)
    jax.block_until_ready((h_tok_out, h_ent_out))
    assert h_tok_out.shape == (BATCH, T_LEN, HIDDEN)
    assert h_ent_out.shape == (BATCH, E_LEN, HIDDEN)
    assert len(intermediate) == NUM_LAYERS
    print("KERNEL_OK")
</pallas_src>

<mosaic_0001>
module attributes {stable_mosaic.version = 11 : i64} {
  func.func @_fused_layer_kernel(%arg0: i32, %arg1: memref<1x16x32xf32, #tpu.memory_space<vmem>>, %arg2: memref<1x8x32xf32, #tpu.memory_space<vmem>>, %arg3: memref<1x8x32xf32, #tpu.memory_space<vmem>>, %arg4: memref<1x1x24xf32, #tpu.memory_space<vmem>>, %arg5: memref<6x4x32x8xf32, #tpu.memory_space<vmem>>, %arg6: memref<6x4x1x8xf32, #tpu.memory_space<vmem>>, %arg7: memref<3x4x8x32xf32, #tpu.memory_space<vmem>>, %arg8: memref<3x1x32xf32, #tpu.memory_space<vmem>>, %arg9: memref<2x32x64xf32, #tpu.memory_space<vmem>>, %arg10: memref<2x1x64xf32, #tpu.memory_space<vmem>>, %arg11: memref<2x64x32xf32, #tpu.memory_space<vmem>>, %arg12: memref<2x1x32xf32, #tpu.memory_space<vmem>>, %arg13: memref<5x1x32xf32, #tpu.memory_space<vmem>>, %arg14: memref<5x1x32xf32, #tpu.memory_space<vmem>>, %arg15: memref<3x4x32x8xf32, #tpu.memory_space<vmem>>, %arg16: memref<3x4x1x8xf32, #tpu.memory_space<vmem>>, %arg17: memref<1x16x32xf32, #tpu.memory_space<vmem>>, %arg18: memref<1x8x32xf32, #tpu.memory_space<vmem>>) attributes {dimension_semantics = [#tpu.dimension_semantics<parallel>], iteration_bounds = array<i64: 2>, scalar_prefetch = 0 : i64, scratch_operands = 0 : i64, tpu.core_type = #tpu.core_type<tc>, window_params = [{transform_indices = @transform_0, window_bounds = array<i64: 1, 16, 32>}, {transform_indices = @transform_1, window_bounds = array<i64: 1, 8, 32>}, {transform_indices = @transform_2, window_bounds = array<i64: 1, 8, 32>}, {transform_indices = @transform_3, window_bounds = array<i64: 1, 1, 24>}, {pipeline_mode = #tpu.pipeline_mode<synchronous>, transform_indices = @transform_4, window_bounds = array<i64: 6, 4, 32, 8>}, {pipeline_mode = #tpu.pipeline_mode<synchronous>, transform_indices = @transform_5, window_bounds = array<i64: 6, 4, 1, 8>}, {pipeline_mode = #tpu.pipeline_mode<synchronous>, transform_indices = @transform_6, window_bounds = array<i64: 3, 4, 8, 32>}, {pipeline_mode = #tpu.pipeline_mode<synchronous>, transform_indices = @transform_7, window_bounds = array<i64: 3, 1, 32>}, {pipeline_mode = #tpu.pipeline_mode<synchronous>, transform_indices = @transform_8, window_bounds = array<i64: 2, 32, 64>}, {pipeline_mode = #tpu.pipeline_mode<synchronous>, transform_indices = @transform_9, window_bounds = array<i64: 2, 1, 64>}, {pipeline_mode = #tpu.pipeline_mode<synchronous>, transform_indices = @transform_10, window_bounds = array<i64: 2, 64, 32>}, {pipeline_mode = #tpu.pipeline_mode<synchronous>, transform_indices = @transform_11, window_bounds = array<i64: 2, 1, 32>}, {pipeline_mode = #tpu.pipeline_mode<synchronous>, transform_indices = @transform_12, window_bounds = array<i64: 5, 1, 32>}, {pipeline_mode = #tpu.pipeline_mode<synchronous>, transform_indices = @transform_13, window_bounds = array<i64: 5, 1, 32>}, {pipeline_mode = #tpu.pipeline_mode<synchronous>, transform_indices = @transform_14, window_bounds = array<i64: 3, 4, 32, 8>}, {pipeline_mode = #tpu.pipeline_mode<synchronous>, transform_indices = @transform_15, window_bounds = array<i64: 3, 4, 1, 8>}, {transform_indices = @transform_16, window_bounds = array<i64: 1, 16, 32>}, {transform_indices = @transform_17, window_bounds = array<i64: 1, 8, 32>}]} {
    %c0 = arith.constant 0 : index
    %c0_0 = arith.constant 0 : index
    %c0_1 = arith.constant 0 : index
    %0 = vector.load %arg1[%c0, %c0_0, %c0_1] : memref<1x16x32xf32, #tpu.memory_space<vmem>>, vector<1x16x32xf32>
    %1 = vector.shape_cast %0 : vector<1x16x32xf32> to vector<16x32xf32>
    %c0_2 = arith.constant 0 : index
    %c0_3 = arith.constant 0 : index
    %c0_4 = arith.constant 0 : index
    %2 = vector.load %arg2[%c0_2, %c0_3, %c0_4] : memref<1x8x32xf32, #tpu.memory_space<vmem>>, vector<1x8x32xf32>
    %3 = vector.shape_cast %2 : vector<1x8x32xf32> to vector<8x32xf32>
    %c0_5 = arith.constant 0 : index
    %c0_6 = arith.constant 0 : index
    %c0_7 = arith.constant 0 : index
    %4 = vector.load %arg3[%c0_5, %c0_6, %c0_7] : memref<1x8x32xf32, #tpu.memory_space<vmem>>, vector<1x8x32xf32>
    %5 = vector.shape_cast %4 : vector<1x8x32xf32> to vector<8x32xf32>
    %c0_8 = arith.constant 0 : index
    %c0_9 = arith.constant 0 : index
    %c0_10 = arith.constant 0 : index
    %6 = vector.load %arg4[%c0_8, %c0_9, %c0_10] : memref<1x1x24xf32, #tpu.memory_space<vmem>>, vector<1x1x24xf32>
    %7 = vector.shape_cast %6 : vector<1x1x24xf32> to vector<1x24xf32>
    %8 = arith.addf %3, %5 : vector<8x32xf32>
    %cst = arith.constant 5.000000e-01 : f32
    %9 = vector.broadcast %cst : f32 to vector<8x32xf32>
    %10 = arith.mulf %8, %9 : vector<8x32xf32>
    %cst_11 = arith.constant 0.000000e+00 : f32
    %11 = vector.broadcast %cst_11 : f32 to vector<16x32xf32>
    %cst_12 = arith.constant 0.000000e+00 : f32
    %12 = vector.broadcast %cst_12 : f32 to vector<8x32xf32>
    %c0_13 = arith.constant 0 : index
    %c0_14 = arith.constant 0 : index
    %c0_15 = arith.constant 0 : index
    %c0_16 = arith.constant 0 : index
    %13 = vector.load %arg5[%c0_13, %c0_14, %c0_15, %c0_16] : memref<6x4x32x8xf32, #tpu.memory_space<vmem>>, vector<1x1x32x8xf32>
    %14 = vector.shape_cast %13 : vector<1x1x32x8xf32> to vector<32x8xf32>
    %cst_17 = arith.constant dense<0.000000e+00> : vector<16x8xf32>
    %15 = tpu.matmul %1, %14, %cst_17 {dimension_numbers = #tpu.dot_dimension_numbers<[1], [0], [0], [1], [0, 0, 1, 1], [], []>} : vector<16x32xf32>, vector<32x8xf32>, vector<16x8xf32> -> vector<16x8xf32>
    %c0_18 = arith.constant 0 : index
    %c0_19 = arith.constant 0 : index
    %c0_20 = arith.constant 0 : index
    %c0_21 = arith.constant 0 : index
    %16 = vector.load %arg6[%c0_18, %c0_19, %c0_20, %c0_21] : memref<6x4x1x8xf32, #tpu.memory_space<vmem>>, vector<1x1x1x8xf32>
    %17 = vector.shape_cast %16 : vector<1x1x1x8xf32> to vector<1x8xf32>
    %18 = vector.broadcast %17 : vector<1x8xf32> to vector<16x8xf32>
    %19 = arith.addf %15, %18 : vector<16x8xf32>
    %c1 = arith.constant 1 : index
    %c0_22 = arith.constant 0 : index
    %c0_23 = arith.constant 0 : index
    %c0_24 = arith.constant 0 : index
    %20 = vector.load %arg5[%c1, %c0_22, %c0_23, %c0_24] : memref<6x4x32x8xf32, #tpu.memory_space<vmem>>, vector<1x1x32x8xf32>
    %21 = vector.shape_cast %20 : vector<1x1x32x8xf32> to vector<32x8xf32>
    %cst_25 = arith.constant dense<0.000000e+00> : vector<16x8xf32>
    %22 = tpu.matmul %1, %21, %cst_25 {dimension_numbers = #tpu.dot_dimension_numbers<[1], [0], [0], [1], [0, 0, 1, 1], [], []>} : vector<16x32xf32>, vector<32x8xf32>, vector<16x8xf32> -> vector<16x8xf32>
    %c1_26 = arith.constant 1 : index
    %c0_27 = arith.constant 0 : index
    %c0_28 = arith.constant 0 : index
    %c0_29 = arith.constant 0 : index
    %23 = vector.load %arg6[%c1_26, %c0_27, %c0_28, %c0_29] : memref<6x4x1x8xf32, #tpu.memory_space<vmem>>, vector<1x1x1x8xf32>
    %24 = vector.shape_cast %23 : vector<1x1x1x8xf32> to vector<1x8xf32>
    %25 = vector.broadcast %24 : vector<1x8xf32> to vector<16x8xf32>
    %26 = arith.addf %22, %25 : vector<16x8xf32>
    %c2 = arith.constant 2 : index
    %c0_30 = arith.constant 0 : index
    %c0_31 = arith.constant 0 : index
    %c0_32 = arith.constant 0 : index
    %27 = vector.load %arg5[%c2, %c0_30, %c0_31, %c0_32] : memref<6x4x32x8xf32, #tpu.memory_space<vmem>>, vector<1x1x32x8xf32>
    %28 = vector.shape_cast %27 : vector<1x1x32x8xf32> to vector<32x8xf32>
    %cst_33 = arith.constant dense<0.000000e+00> : vector<16x8xf32>
    %29 = tpu.matmul %1, %28, %cst_33 {dimension_numbers = #tpu.dot_dimension_numbers<[1], [0], [0], [1], [0, 0, 1, 1], [], []>} : vector<16x32xf32>, vector<32x8xf32>, vector<16x8xf32> -> vector<16x8xf32>
    %c2_34 = arith.constant 2 : index
    %c0_35 = arith.constant 0 : index
    %c0_36 = arith.constant 0 : index
    %c0_37 = arith.constant 0 : index
    %30 = vector.load %arg6[%c2_34, %c0_35, %c0_36, %c0_37] : memref<6x4x1x8xf32, #tpu.memory_space<vmem>>, vector<1x1x1x8xf32>
    %31 = vector.shape_cast %30 : vector<1x1x1x8xf32> to vector<1x8xf32>
    %32 = vector.broadcast %31 : vector<1x8xf32> to vector<16x8xf32>
    %33 = arith.addf %29, %32 : vector<16x8xf32>
    %c3 = arith.constant 3 : index
    %c0_38 = arith.constant 0 : index
    %c0_39 = arith.constant 0 : index
    %c0_40 = arith.constant 0 : index
    %34 = vector.load %arg5[%c3, %c0_38, %c0_39, %c0_40] : memref<6x4x32x8xf32, #tpu.memory_space<vmem>>, vector<1x1x32x8xf32>
    %35 = vector.shape_cast %34 : vector<1x1x32x8xf32> to vector<32x8xf32>
    %cst_41 = arith.constant dense<0.000000e+00> : vector<8x8xf32>
    %36 = tpu.matmul %10, %35, %cst_41 {dimension_numbers = #tpu.dot_dimension_numbers<[1], [0], [0], [1], [0, 0, 1, 1], [], []>} : vector<8x32xf32>, vector<32x8xf32>, vector<8x8xf32> -> vector<8x8xf32>
    %c3_42 = arith.constant 3 : index
    %c0_43 = arith.constant 0 : index
    %c0_44 = arith.constant 0 : index
    %c0_45 = arith.constant 0 : index
    %37 = vector.load %arg6[%c3_42, %c0_43, %c0_44, %c0_45] : memref<6x4x1x8xf32, #tpu.memory_space<vmem>>, vector<1x1x1x8xf32>
    %38 = vector.shape_cast %37 : vector<1x1x1x8xf32> to vector<1x8xf32>
    %39 = vector.broadcast %38 : vector<1x8xf32> to vector<8x8xf32>
    %40 = arith.addf %36, %39 : vector<8x8xf32>
    %c4 = arith.constant 4 : index
    %c0_46 = arith.constant 0 : index
    %c0_47 = arith.constant 0 : index
    %c0_48 = arith.constant 0 : index
    %41 = vector.load %arg5[%c4, %c0_46, %c0_47, %c0_48] : memref<6x4x32x8xf32, #tpu.memory_space<vmem>>, vector<1x1x32x8xf32>
    %42 = vector.shape_cast %41 : vector<1x1x32x8xf32> to vector<32x8xf32>
    %cst_49 = arith.constant dense<0.000000e+00> : vector<8x8xf32>
    %43 = tpu.matmul %10, %42, %cst_49 {dimension_numbers = #tpu.dot_dimension_numbers<[1], [0], [0], [1], [0, 0, 1, 1], [], []>} : vector<8x32xf32>, vector<32x8xf32>, vector<8x8xf32> -> vector<8x8xf32>
    %c4_50 = arith.constant 4 : index
    %c0_51 = arith.constant 0 : index
    %c0_52 = arith.constant 0 : index
    %c0_53 = arith.constant 0 : index
    %44 = vector.load %arg6[%c4_50, %c0_51, %c0_52, %c0_53] : memref<6x4x1x8xf32, #tpu.memory_space<vmem>>, vector<1x1x1x8xf32>
    %45 = vector.shape_cast %44 : vector<1x1x1x8xf32> to vector<1x8xf32>
    %46 = vector.broadcast %45 : vector<1x8xf32> to vector<8x8xf32>
    %47 = arith.addf %43, %46 : vector<8x8xf32>
    %c5 = arith.constant 5 : index
    %c0_54 = arith.constant 0 : index
    %c0_55 = arith.constant 0 : index
    %c0_56 = arith.constant 0 : index
    %48 = vector.load %arg5[%c5, %c0_54, %c0_55, %c0_56] : memref<6x4x32x8xf32, #tpu.memory_space<vmem>>, vector<1x1x32x8xf32>
    %49 = vector.shape_cast %48 : vector<1x1x32x8xf32> to vector<32x8xf32>
    %cst_57 = arith.constant dense<0.000000e+00> : vector<8x8xf32>
    %50 = tpu.matmul %3, %49, %cst_57 {dimension_numbers = #tpu.dot_dimension_numbers<[1], [0], [0], [1], [0, 0, 1, 1], [], []>} : vector<8x32xf32>, vector<32x8xf32>, vector<8x8xf32> -> vector<8x8xf32>
    %c5_58 = arith.constant 5 : index
    %c0_59 = arith.constant 0 : index
    %c0_60 = arith.constant 0 : index
    %c0_61 = arith.constant 0 : index
    %51 = vector.load %arg6[%c5_58, %c0_59, %c0_60, %c0_61] : memref<6x4x1x8xf32, #tpu.memory_space<vmem>>, vector<1x1x1x8xf32>
    %52 = vector.shape_cast %51 : vector<1x1x1x8xf32> to vector<1x8xf32>
    %53 = vector.broadcast %52 : vector<1x8xf32> to vector<8x8xf32>
    %54 = arith.addf %50, %53 : vector<8x8xf32>
    %55 = tpu.concatenate %19, %40 in 0 : vector<16x8xf32>, vector<8x8xf32> -> vector<24x8xf32>
    %56 = tpu.concatenate %26, %47 in 0 : vector<16x8xf32>, vector<8x8xf32> -> vector<24x8xf32>
    %57 = tpu.concatenate %33, %54 in 0 : vector<16x8xf32>, vector<8x8xf32> -> vector<24x8xf32>
    %cst_62 = arith.constant dense<0.000000e+00> : vector<24x24xf32>
    %58 = tpu.matmul %55, %56, %cst_62 {dimension_numbers = #tpu.dot_dimension_numbers<[1], [1], [0], [0], [0, 0, 1, 0], [], []>} : vector<24x8xf32>, vector<24x8xf32>, vector<24x24xf32> -> vector<24x24xf32>
    %cst_63 = arith.constant 0.353553385 : f32
    %59 = vector.broadcast %cst_63 : f32 to vector<24x24xf32>
    %60 = arith.mulf %58, %59 : vector<24x24xf32>
    %61 = vector.broadcast %7 : vector<1x24xf32> to vector<24x24xf32>
    %62 = arith.addf %60, %61 : vector<24x24xf32>
    %cst_64 = arith.constant dense<0xFF800000> : vector<24xf32>
    %63 = vector.multi_reduction <maximumf>, %62, %cst_64 [1] : vector<24x24xf32> to vector<24xf32>
    %64 = vector.shape_cast %63 : vector<24xf32> to vector<24x1xf32>
    %65 = vector.broadcast %64 : vector<24x1xf32> to vector<24x24xf32>
    %66 = arith.subf %62, %65 : vector<24x24xf32>
    %67 = math.exp %66 : vector<24x24xf32>
    %cst_65 = arith.constant dense<0.000000e+00> : vector<24xf32>
    %68 = vector.multi_reduction <add>, %67, %cst_65 [1] : vector<24x24xf32> to vector<24xf32>
    %69 = vector.shape_cast %68 : vector<24xf32> to vector<24x1xf32>
    %70 = tpu.reciprocal %69 {approx = true} : vector<24x1xf32> -> vector<24x1xf32>
    %71 = vector.broadcast %70 : vector<24x1xf32> to vector<24x24xf32>
    %72 = arith.mulf %67, %71 : vector<24x24xf32>
    %cst_66 = arith.constant dense<0.000000e+00> : vector<24x8xf32>
    %73 = tpu.matmul %72, %57, %cst_66 {dimension_numbers = #tpu.dot_dimension_numbers<[1], [0], [0], [1], [0, 0, 1, 1], [], []>} : vector<24x24xf32>, vector<24x8xf32>, vector<24x8xf32> -> vector<24x8xf32>
    %74 = vector.extract_strided_slice %73 {offsets = [0, 0], sizes = [16, 8], strides = [1, 1]} : vector<24x8xf32> to vector<16x8xf32>
    %c0_67 = arith.constant 0 : index
    %c0_68 = arith.constant 0 : index
    %c0_69 = arith.constant 0 : index
    %c0_70 = arith.constant 0 : index
    %75 = vector.load %arg7[%c0_67, %c0_68, %c0_69, %c0_70] : memref<3x4x8x32xf32, #tpu.memory_space<vmem>>, vector<1x1x8x32xf32>
    %76 = vector.shape_cast %75 : vector<1x1x8x32xf32> to vector<8x32xf32>
    %cst_71 = arith.constant dense<0.000000e+00> : vector<16x32xf32>
    %77 = tpu.matmul %74, %76, %cst_71 {dimension_numbers = #tpu.dot_dimension_numbers<[1], [0], [0], [1], [0, 0, 1, 1], [], []>} : vector<16x8xf32>, vector<8x32xf32>, vector<16x32xf32> -> vector<16x32xf32>
    %78 = arith.addf %11, %77 : vector<16x32xf32>
    %79 = vector.extract_strided_slice %73 {offsets = [16, 0], sizes = [8, 8], strides = [1, 1]} : vector<24x8xf32> to vector<8x8xf32>
    %c1_72 = arith.constant 1 : index
    %c0_73 = arith.constant 0 : index
    %c0_74 = arith.constant 0 : index
    %c0_75 = arith.constant 0 : index
    %80 = vector.load %arg7[%c1_72, %c0_73, %c0_74, %c0_75] : memref<3x4x8x32xf32, #tpu.memory_space<vmem>>, vector<1x1x8x32xf32>
    %81 = vector.shape_cast %80 : vector<1x1x8x32xf32> to vector<8x32xf32>
    %cst_76 = arith.constant dense<0.000000e+00> : vector<8x32xf32>
    %82 = tpu.matmul %79, %81, %cst_76 {dimension_numbers = #tpu.dot_dimension_numbers<[1], [0], [0], [1], [0, 0, 1, 1], [], []>} : vector<8x8xf32>, vector<8x32xf32>, vector<8x32xf32> -> vector<8x32xf32>
    %83 = arith.addf %12, %82 : vector<8x32xf32>
    %c0_77 = arith.constant 0 : index
    %c1_78 = arith.constant 1 : index
    %c0_79 = arith.constant 0 : index
    %c0_80 = arith.constant 0 : index
    %84 = vector.load %arg5[%c0_77, %c1_78, %c0_79, %c0_80] : memref<6x4x32x8xf32, #tpu.memory_space<vmem>>, vector<1x1x32x8xf32>
    %85 = vector.shape_cast %84 : vector<1x1x32x8xf32> to vector<32x8xf32>
    %cst_81 = arith.constant dense<0.000000e+00> : vector<16x8xf32>
    %86 = tpu.matmul %1, %85, %cst_81 {dimension_numbers = #tpu.dot_dimension_numbers<[1], [0], [0], [1], [0, 0, 1, 1], [], []>} : vector<16x32xf32>, vector<32x8xf32>, vector<16x8xf32> -> vector<16x8xf32>
    %c0_82 = arith.constant 0 : index
    %c1_83 = arith.constant 1 : index
    %c0_84 = arith.constant 0 : index
    %c0_85 = arith.constant 0 : index
    %87 = vector.load %arg6[%c0_82, %c1_83, %c0_84, %c0_85] : memref<6x4x1x8xf32, #tpu.memory_space<vmem>>, vector<1x1x1x8xf32>
    %88 = vector.shape_cast %87 : vector<1x1x1x8xf32> to vector<1x8xf32>
    %89 = vector.broadcast %88 : vector<1x8xf32> to vector<16x8xf32>
    %90 = arith.addf %86, %89 : vector<16x8xf32>
    %c1_86 = arith.constant 1 : index
    %c1_87 = arith.constant 1 : index
    %c0_88 = arith.constant 0 : index
    %c0_89 = arith.constant 0 : index
    %91 = vector.load %arg5[%c1_86, %c1_87, %c0_88, %c0_89] : memref<6x4x32x8xf32, #tpu.memory_space<vmem>>, vector<1x1x32x8xf32>
    %92 = vector.shape_cast %91 : vector<1x1x32x8xf32> to vector<32x8xf32>
    %cst_90 = arith.constant dense<0.000000e+00> : vector<16x8xf32>
    %93 = tpu.matmul %1, %92, %cst_90 {dimension_numbers = #tpu.dot_dimension_numbers<[1], [0], [0], [1], [0, 0, 1, 1], [], []>} : vector<16x32xf32>, vector<32x8xf32>, vector<16x8xf32> -> vector<16x8xf32>
    %c1_91 = arith.constant 1 : index
    %c1_92 = arith.constant 1 : index
    %c0_93 = arith.constant 0 : index
    %c0_94 = arith.constant 0 : index
    %94 = vector.load %arg6[%c1_91, %c1_92, %c0_93, %c0_94] : memref<6x4x1x8xf32, #tpu.memory_space<vmem>>, vector<1x1x1x8xf32>
    %95 = vector.shape_cast %94 : vector<1x1x1x8xf32> to vector<1x8xf32>
    %96 = vector.broadcast %95 : vector<1x8xf32> to vector<16x8xf32>
    %97 = arith.addf %93, %96 : vector<16x8xf32>
    %c2_95 = arith.constant 2 : index
    %c1_96 = arith.constant 1 : index
    %c0_97 = arith.constant 0 : index
    %c0_98 = arith.constant 0 : index
    %98 = vector.load %arg5[%c2_95, %c1_96, %c0_97, %c0_98] : memref<6x4x32x8xf32, #tpu.memory_space<vmem>>, vector<1x1x32x8xf32>
    %99 = vector.shape_cast %98 : vector<1x1x32x8xf32> to vector<32x8xf32>
    %cst_99 = arith.constant dense<0.000000e+00> : vector<16x8xf32>
    %100 = tpu.matmul %1, %99, %cst_99 {dimension_numbers = #tpu.dot_dimension_numbers<[1], [0], [0], [1], [0, 0, 1, 1], [], []>} : vector<16x32xf32>, vector<32x8xf32>, vector<16x8xf32> -> vector<16x8xf32>
    %c2_100 = arith.constant 2 : index
    %c1_101 = arith.constant 1 : index
    %c0_102 = arith.constant 0 : index
    %c0_103 = arith.constant 0 : index
    %101 = vector.load %arg6[%c2_100, %c1_101, %c0_102, %c0_103] : memref<6x4x1x8xf32, #tpu.memory_space<vmem>>, vector<1x1x1x8xf32>
    %102 = vector.shape_cast %101 : vector<1x1x1x8xf32> to vector<1x8xf32>
    %103 = vector.broadcast %102 : vector<1x8xf32> to vector<16x8xf32>
    %104 = arith.addf %100, %103 : vector<16x8xf32>
    %c3_104 = arith.constant 3 : index
    %c1_105 = arith.constant 1 : index
    %c0_106 = arith.constant 0 : index
    %c0_107 = arith.constant 0 : index
    %105 = vector.load %arg5[%c3_104, %c1_105, %c0_106, %c0_107] : memref<6x4x32x8xf32, #tpu.memory_space<vmem>>, vector<1x1x32x8xf32>
    %106 = vector.shape_cast %105 : vector<1x1x32x8xf32> to vector<32x8xf32>
    %cst_108 = arith.constant dense<0.000000e+00> : vector<8x8xf32>
    %107 = tpu.matmul %10, %106, %cst_108 {dimension_numbers = #tpu.dot_dimension_numbers<[1], [0], [0], [1], [0, 0, 1, 1], [], []>} : vector<8x32xf32>, vector<32x8xf32>, vector<8x8xf32> -> vector<8x8xf32>
    %c3_109 = arith.constant 3 : index
    %c1_110 = arith.constant 1 : index
    %c0_111 = arith.constant 0 : index
    %c0_112 = arith.constant 0 : index
    %108 = vector.load %arg6[%c3_109, %c1_110, %c0_111, %c0_112] : memref<6x4x1x8xf32, #tpu.memory_space<vmem>>, vector<1x1x1x8xf32>
    %109 = vector.shape_cast %108 : vector<1x1x1x8xf32> to vector<1x8xf32>
    %110 = vector.broadcast %109 : vector<1x8xf32> to vector<8x8xf32>
    %111 = arith.addf %107, %110 : vector<8x8xf32>
    %c4_113 = arith.constant 4 : index
    %c1_114 = arith.constant 1 : index
    %c0_115 = arith.constant 0 : index
    %c0_116 = arith.constant 0 : index
    %112 = vector.load %arg5[%c4_113, %c1_114, %c0_115, %c0_116] : memref<6x4x32x8xf32, #tpu.memory_space<vmem>>, vector<1x1x32x8xf32>
    %113 = vector.shape_cast %112 : vector<1x1x32x8xf32> to vector<32x8xf32>
    %cst_117 = arith.constant dense<0.000000e+00> : vector<8x8xf32>
    %114 = tpu.matmul %10, %113, %cst_117 {dimension_numbers = #tpu.dot_dimension_numbers<[1], [0], [0], [1], [0, 0, 1, 1], [], []>} : vector<8x32xf32>, vector<32x8xf32>, vector<8x8xf32> -> vector<8x8xf32>
    %c4_118 = arith.constant 4 : index
    %c1_119 = arith.constant 1 : index
    %c0_120 = arith.constant 0 : index
    %c0_121 = arith.constant 0 : index
    %115 = vector.load %arg6[%c4_118, %c1_119, %c0_120, %c0_121] : memref<6x4x1x8xf32, #tpu.memory_space<vmem>>, vector<1x1x1x8xf32>
    %116 = vector.shape_cast %115 : vector<1x1x1x8xf32> to vector<1x8xf32>
    %117 = vector.broadcast %116 : vector<1x8xf32> to vector<8x8xf32>
    %118 = arith.addf %114, %117 : vector<8x8xf32>
    %c5_122 = arith.constant 5 : index
    %c1_123 = arith.constant 1 : index
    %c0_124 = arith.constant 0 : index
    %c0_125 = arith.constant 0 : index
    %119 = vector.load %arg5[%c5_122, %c1_123, %c0_124, %c0_125] : memref<6x4x32x8xf32, #tpu.memory_space<vmem>>, vector<1x1x32x8xf32>
    %120 = vector.shape_cast %119 : vector<1x1x32x8xf32> to vector<32x8xf32>
    %cst_126 = arith.constant dense<0.000000e+00> : vector<8x8xf32>
    %121 = tpu.matmul %3, %120, %cst_126 {dimension_numbers = #tpu.dot_dimension_numbers<[1], [0], [0], [1], [0, 0, 1, 1], [], []>} : vector<8x32xf32>, vector<32x8xf32>, vector<8x8xf32> -> vector<8x8xf32>
    %c5_127 = arith.constant 5 : index
    %c1_128 = arith.constant 1 : index
    %c0_129 = arith.constant 0 : index
    %c0_130 = arith.constant 0 : index
    %122 = vector.load %arg6[%c5_127, %c1_128, %c0_129, %c0_130] : memref<6x4x1x8xf32, #tpu.memory_space<vmem>>, vector<1x1x1x8xf32>
    %123 = vector.shape_cast %122 : vector<1x1x1x8xf32> to vector<1x8xf32>
    %124 = vector.broadcast %123 : vector<1x8xf32> to vector<8x8xf32>
    %125 = arith.addf %121, %124 : vector<8x8xf32>
    %126 = tpu.concatenate %90, %111 in 0 : vector<16x8xf32>, vector<8x8xf32> -> vector<24x8xf32>
    %127 = tpu.concatenate %97, %118 in 0 : vector<16x8xf32>, vector<8x8xf32> -> vector<24x8xf32>
    %128 = tpu.concatenate %104, %125 in 0 : vector<16x8xf32>, vector<8x8xf32> -> vector<24x8xf32>
    %cst_131 = arith.constant dense<0.000000e+00> : vector<24x24xf32>
    %129 = tpu.matmul %126, %127, %cst_131 {dimension_numbers = #tpu.dot_dimension_numbers<[1], [1], [0], [0], [0, 0, 1, 0], [], []>} : vector<24x8xf32>, vector<24x8xf32>, vector<24x24xf32> -> vector<24x24xf32>
    %cst_132 = arith.constant 0.353553385 : f32
    %130 = vector.broadcast %cst_132 : f32 to vector<24x24xf32>
    %131 = arith.mulf %129, %130 : vector<24x24xf32>
    %132 = vector.broadcast %7 : vector<1x24xf32> to vector<24x24xf32>
    %133 = arith.addf %131, %132 : vector<24x24xf32>
    %cst_133 = arith.constant dense<0xFF800000> : vector<24xf32>
    %134 = vector.multi_reduction <maximumf>, %133, %cst_133 [1] : vector<24x24xf32> to vector<24xf32>
    %135 = vector.shape_cast %134 : vector<24xf32> to vector<24x1xf32>
    %136 = vector.broadcast %135 : vector<24x1xf32> to vector<24x24xf32>
    %137 = arith.subf %133, %136 : vector<24x24xf32>
    %138 = math.exp %137 : vector<24x24xf32>
    %cst_134 = arith.constant dense<0.000000e+00> : vector<24xf32>
    %139 = vector.multi_reduction <add>, %138, %cst_134 [1] : vector<24x24xf32> to vector<24xf32>
    %140 = vector.shape_cast %139 : vector<24xf32> to vector<24x1xf32>
    %141 = tpu.reciprocal %140 {approx = true} : vector<24x1xf32> -> vector<24x1xf32>
    %142 = vector.broadcast %141 : vector<24x1xf32> to vector<24x24xf32>
    %143 = arith.mulf %138, %142 : vector<24x24xf32>
    %cst_135 = arith.constant dense<0.000000e+00> : vector<24x8xf32>
    %144 = tpu.matmul %143, %128, %cst_135 {dimension_numbers = #tpu.dot_dimension_numbers<[1], [0], [0], [1], [0, 0, 1, 1], [], []>} : vector<24x24xf32>, vector<24x8xf32>, vector<24x8xf32> -> vector<24x8xf32>
    %145 = vector.extract_strided_slice %144 {offsets = [0, 0], sizes = [16, 8], strides = [1, 1]} : vector<24x8xf32> to vector<16x8xf32>
    %c0_136 = arith.constant 0 : index
    %c1_137 = arith.constant 1 : index
    %c0_138 = arith.constant 0 : index
    %c0_139 = arith.constant 0 : index
    %146 = vector.load %arg7[%c0_136, %c1_137, %c0_138, %c0_139] : memref<3x4x8x32xf32, #tpu.memory_space<vmem>>, vector<1x1x8x32xf32>
    %147 = vector.shape_cast %146 : vector<1x1x8x32xf32> to vector<8x32xf32>
    %cst_140 = arith.constant dense<0.000000e+00> : vector<16x32xf32>
    %148 = tpu.matmul %145, %147, %cst_140 {dimension_numbers = #tpu.dot_dimension_numbers<[1], [0], [0], [1], [0, 0, 1, 1], [], []>} : vector<16x8xf32>, vector<8x32xf32>, vector<16x32xf32> -> vector<16x32xf32>
    %149 = arith.addf %78, %148 : vector<16x32xf32>
    %150 = vector.extract_strided_slice %144 {offsets = [16, 0], sizes = [8, 8], strides = [1, 1]} : vector<24x8xf32> to vector<8x8xf32>
    %c1_141 = arith.constant 1 : index
    %c1_142 = arith.constant 1 : index
    %c0_143 = arith.constant 0 : index
    %c0_144 = arith.constant 0 : index
    %151 = vector.load %arg7[%c1_141, %c1_142, %c0_143, %c0_144] : memref<3x4x8x32xf32, #tpu.memory_space<vmem>>, vector<1x1x8x32xf32>
    %152 = vector.shape_cast %151 : vector<1x1x8x32xf32> to vector<8x32xf32>
    %cst_145 = arith.constant dense<0.000000e+00> : vector<8x32xf32>
    %153 = tpu.matmul %150, %152, %cst_145 {dimension_numbers = #tpu.dot_dimension_numbers<[1], [0], [0], [1], [0, 0, 1, 1], [], []>} : vector<8x8xf32>, vector<8x32xf32>, vector<8x32xf32> -> vector<8x32xf32>
    %154 = arith.addf %83, %153 : vector<8x32xf32>
    %c0_146 = arith.constant 0 : index
    %c2_147 = arith.constant 2 : index
    %c0_148 = arith.constant 0 : index
    %c0_149 = arith.constant 0 : index
    %155 = vector.load %arg5[%c0_146, %c2_147, %c0_148, %c0_149] : memref<6x4x32x8xf32, #tpu.memory_space<vmem>>, vector<1x1x32x8xf32>
    %156 = vector.shape_cast %155 : vector<1x1x32x8xf32> to vector<32x8xf32>
    %cst_150 = arith.constant dense<0.000000e+00> : vector<16x8xf32>
    %157 = tpu.matmul %1, %156, %cst_150 {dimension_numbers = #tpu.dot_dimension_numbers<[1], [0], [0], [1], [0, 0, 1, 1], [], []>} : vector<16x32xf32>, vector<32x8xf32>, vector<16x8xf32> -> vector<16x8xf32>
    %c0_151 = arith.constant 0 : index
    %c2_152 = arith.constant 2 : index
    %c0_153 = arith.constant 0 : index
    %c0_154 = arith.constant 0 : index
    %158 = vector.load %arg6[%c0_151, %c2_152, %c0_153, %c0_154] : memref<6x4x1x8xf32, #tpu.memory_space<vmem>>, vector<1x1x1x8xf32>
    %159 = vector.shape_cast %158 : vector<1x1x1x8xf32> to vector<1x8xf32>
    %160 = vector.broadcast %159 : vector<1x8xf32> to vector<16x8xf32>
    %161 = arith.addf %157, %160 : vector<16x8xf32>
    %c1_155 = arith.constant 1 : index
    %c2_156 = arith.constant 2 : index
    %c0_157 = arith.constant 0 : index
    %c0_158 = arith.constant 0 : index
    %162 = vector.load %arg5[%c1_155, %c2_156, %c0_157, %c0_158] : memref<6x4x32x8xf32, #tpu.memory_space<vmem>>, vector<1x1x32x8xf32>
    %163 = vector.shape_cast %162 : vector<1x1x32x8xf32> to vector<32x8xf32>
    %cst_159 = arith.constant dense<0.000000e+00> : vector<16x8xf32>
    %164 = tpu.matmul %1, %163, %cst_159 {dimension_numbers = #tpu.dot_dimension_numbers<[1], [0], [0], [1], [0, 0, 1, 1], [], []>} : vector<16x32xf32>, vector<32x8xf32>, vector<16x8xf32> -> vector<16x8xf32>
    %c1_160 = arith.constant 1 : index
    %c2_161 = arith.constant 2 : index
    %c0_162 = arith.constant 0 : index
    %c0_163 = arith.constant 0 : index
    %165 = vector.load %arg6[%c1_160, %c2_161, %c0_162, %c0_163] : memref<6x4x1x8xf32, #tpu.memory_space<vmem>>, vector<1x1x1x8xf32>
    %166 = vector.shape_cast %165 : vector<1x1x1x8xf32> to vector<1x8xf32>
    %167 = vector.broadcast %166 : vector<1x8xf32> to vector<16x8xf32>
    %168 = arith.addf %164, %167 : vector<16x8xf32>
    %c2_164 = arith.constant 2 : index
    %c2_165 = arith.constant 2 : index
    %c0_166 = arith.constant 0 : index
    %c0_167 = arith.constant 0 : index
    %169 = vector.load %arg5[%c2_164, %c2_165, %c0_166, %c0_167] : memref<6x4x32x8xf32, #tpu.memory_space<vmem>>, vector<1x1x32x8xf32>
    %170 = vector.shape_cast %169 : vector<1x1x32x8xf32> to vector<32x8xf32>
    %cst_168 = arith.constant dense<0.000000e+00> : vector<16x8xf32>
    %171 = tpu.matmul %1, %170, %cst_168 {dimension_numbers = #tpu.dot_dimension_numbers<[1], [0], [0], [1], [0, 0, 1, 1], [], []>} : vector<16x32xf32>, vector<32x8xf32>, vector<16x8xf32> -> vector<16x8xf32>
    %c2_169 = arith.constant 2 : index
    %c2_170 = arith.constant 2 : index
    %c0_171 = arith.constant 0 : index
    %c0_172 = arith.constant 0 : index
    %172 = vector.load %arg6[%c2_169, %c2_170, %c0_171, %c0_172] : memref<6x4x1x8xf32, #tpu.memory_space<vmem>>, vector<1x1x1x8xf32>
    %173 = vector.shape_cast %172 : vector<1x1x1x8xf32> to vector<1x8xf32>
    %174 = vector.broadcast %173 : vector<1x8xf32> to vector<16x8xf32>
    %175 = arith.addf %171, %174 : vector<16x8xf32>
    %c3_173 = arith.constant 3 : index
    %c2_174 = arith.constant 2 : index
    %c0_175 = arith.constant 0 : index
    %c0_176 = arith.constant 0 : index
    %176 = vector.load %arg5[%c3_173, %c2_174, %c0_175, %c0_176] : memref<6x4x32x8xf32, #tpu.memory_space<vmem>>, vector<1x1x32x8xf32>
    %177 = vector.shape_cast %176 : vector<1x1x32x8xf32> to vector<32x8xf32>
    %cst_177 = arith.constant dense<0.000000e+00> : vector<8x8xf32>
    %178 = tpu.matmul %10, %177, %cst_177 {dimension_numbers = #tpu.dot_dimension_numbers<[1], [0], [0], [1], [0, 0, 1, 1], [], []>} : vector<8x32xf32>, vector<32x8xf32>, vector<8x8xf32> -> vector<8x8xf32>
    %c3_178 = arith.constant 3 : index
    %c2_179 = arith.constant 2 : index
    %c0_180 = arith.constant 0 : index
    %c0_181 = arith.constant 0 : index
    %179 = vector.load %arg6[%c3_178, %c2_179, %c0_180, %c0_181] : memref<6x4x1x8xf32, #tpu.memory_space<vmem>>, vector<1x1x1x8xf32>
    %180 = vector.shape_cast %179 : vector<1x1x1x8xf32> to vector<1x8xf32>
    %181 = vector.broadcast %180 : vector<1x8xf32> to vector<8x8xf32>
    %182 = arith.addf %178, %181 : vector<8x8xf32>
    %c4_182 = arith.constant 4 : index
    %c2_183 = arith.constant 2 : index
    %c0_184 = arith.constant 0 : index
    %c0_185 = arith.constant 0 : index
    %183 = vector.load %arg5[%c4_182, %c2_183, %c0_184, %c0_185] : memref<6x4x32x8xf32, #tpu.memory_space<vmem>>, vector<1x1x32x8xf32>
    %184 = vector.shape_cast %183 : vector<1x1x32x8xf32> to vector<32x8xf32>
    %cst_186 = arith.constant dense<0.000000e+00> : vector<8x8xf32>
    %185 = tpu.matmul %10, %184, %cst_186 {dimension_numbers = #tpu.dot_dimension_numbers<[1], [0], [0], [1], [0, 0, 1, 1], [], []>} : vector<8x32xf32>, vector<32x8xf32>, vector<8x8xf32> -> vector<8x8xf32>
    %c4_187 = arith.constant 4 : index
    %c2_188 = arith.constant 2 : index
    %c0_189 = arith.constant 0 : index
    %c0_190 = arith.constant 0 : index
    %186 = vector.load %arg6[%c4_187, %c2_188, %c0_189, %c0_190] : memref<6x4x1x8xf32, #tpu.memory_space<vmem>>, vector<1x1x1x8xf32>
    %187 = vector.shape_cast %186 : vector<1x1x1x8xf32> to vector<1x8xf32>
    %188 = vector.broadcast %187 : vector<1x8xf32> to vector<8x8xf32>
    %189 = arith.addf %185, %188 : vector<8x8xf32>
    %c5_191 = arith.constant 5 : index
    %c2_192 = arith.constant 2 : index
    %c0_193 = arith.constant 0 : index
    %c0_194 = arith.constant 0 : index
    %190 = vector.load %arg5[%c5_191, %c2_192, %c0_193, %c0_194] : memref<6x4x32x8xf32, #tpu.memory_space<vmem>>, vector<1x1x32x8xf32>
    %191 = vector.shape_cast %190 : vector<1x1x32x8xf32> to vector<32x8xf32>
    %cst_195 = arith.constant dense<0.000000e+00> : vector<8x8xf32>
    %192 = tpu.matmul %3, %191, %cst_195 {dimension_numbers = #tpu.dot_dimension_numbers<[1], [0], [0], [1], [0, 0, 1, 1], [], []>} : vector<8x32xf32>, vector<32x8xf32>, vector<8x8xf32> -> vector<8x8xf32>
    %c5_196 = arith.constant 5 : index
    %c2_197 = arith.constant 2 : index
    %c0_198 = arith.constant 0 : index
    %c0_199 = arith.constant 0 : index
    %193 = vector.load %arg6[%c5_196, %c2_197, %c0_198, %c0_199] : memref<6x4x1x8xf32, #tpu.memory_space<vmem>>, vector<1x1x1x8xf32>
    %194 = vector.shape_cast %193 : vector<1x1x1x8xf32> to vector<1x8xf32>
    %195 = vector.broadcast %194 : vector<1x8xf32> to vector<8x8xf32>
    %196 = arith.addf %192, %195 : vector<8x8xf32>
    %197 = tpu.concatenate %161, %182 in 0 : vector<16x8xf32>, vector<8x8xf32> -> vector<24x8xf32>
    %198 = tpu.concatenate %168, %189 in 0 : vector<16x8xf32>, vector<8x8xf32> -> vector<24x8xf32>
    %199 = tpu.concatenate %175, %196 in 0 : vector<16x8xf32>, vector<8x8xf32> -> vector<24x8xf32>
    %cst_200 = arith.constant dense<0.000000e+00> : vector<24x24xf32>
    %200 = tpu.matmul %197, %198, %cst_200 {dimension_numbers = #tpu.dot_dimension_numbers<[1], [1], [0], [0], [0, 0, 1, 0], [], []>} : vector<24x8xf32>, vector<24x8xf32>, vector<24x24xf32> -> vector<24x24xf32>
    %cst_201 = arith.constant 0.353553385 : f32
    %201 = vector.broadcast %cst_201 : f32 to vector<24x24xf32>
    %202 = arith.mulf %200, %201 : vector<24x24xf32>
    %203 = vector.broadcast %7 : vector<1x24xf32> to vector<24x24xf32>
    %204 = arith.addf %202, %203 : vector<24x24xf32>
    %cst_202 = arith.constant dense<0xFF800000> : vector<24xf32>
    %205 = vector.multi_reduction <maximumf>, %204, %cst_202 [1] : vector<24x24xf32> to vector<24xf32>
    %206 = vector.shape_cast %205 : vector<24xf32> to vector<24x1xf32>
    %207 = vector.broadcast %206 : vector<24x1xf32> to vector<24x24xf32>
    %208 = arith.subf %204, %207 : vector<24x24xf32>
    %209 = math.exp %208 : vector<24x24xf32>
    %cst_203 = arith.constant dense<0.000000e+00> : vector<24xf32>
    %210 = vector.multi_reduction <add>, %209, %cst_203 [1] : vector<24x24xf32> to vector<24xf32>
    %211 = vector.shape_cast %210 : vector<24xf32> to vector<24x1xf32>
    %212 = tpu.reciprocal %211 {approx = true} : vector<24x1xf32> -> vector<24x1xf32>
    %213 = vector.broadcast %212 : vector<24x1xf32> to vector<24x24xf32>
    %214 = arith.mulf %209, %213 : vector<24x24xf32>
    %cst_204 = arith.constant dense<0.000000e+00> : vector<24x8xf32>
    %215 = tpu.matmul %214, %199, %cst_204 {dimension_numbers = #tpu.dot_dimension_numbers<[1], [0], [0], [1], [0, 0, 1, 1], [], []>} : vector<24x24xf32>, vector<24x8xf32>, vector<24x8xf32> -> vector<24x8xf32>
    %216 = vector.extract_strided_slice %215 {offsets = [0, 0], sizes = [16, 8], strides = [1, 1]} : vector<24x8xf32> to vector<16x8xf32>
    %c0_205 = arith.constant 0 : index
    %c2_206 = arith.constant 2 : index
    %c0_207 = arith.constant 0 : index
    %c0_208 = arith.constant 0 : index
    %217 = vector.load %arg7[%c0_205, %c2_206, %c0_207, %c0_208] : memref<3x4x8x32xf32, #tpu.memory_space<vmem>>, vector<1x1x8x32xf32>
    %218 = vector.shape_cast %217 : vector<1x1x8x32xf32> to vector<8x32xf32>
    %cst_209 = arith.constant dense<0.000000e+00> : vector<16x32xf32>
    %219 = tpu.matmul %216, %218, %cst_209 {dimension_numbers = #tpu.dot_dimension_numbers<[1], [0], [0], [1], [0, 0, 1, 1], [], []>} : vector<16x8xf32>, vector<8x32xf32>, vector<16x32xf32> -> vector<16x32xf32>
    %220 = arith.addf %149, %219 : vector<16x32xf32>
    %221 = vector.extract_strided_slice %215 {offsets = [16, 0], sizes = [8, 8], strides = [1, 1]} : vector<24x8xf32> to vector<8x8xf32>
    %c1_210 = arith.constant 1 : index
    %c2_211 = arith.constant 2 : index
    %c0_212 = arith.constant 0 : index
    %c0_213 = arith.constant 0 : index
    %222 = vector.load %arg7[%c1_210, %c2_211, %c0_212, %c0_213] : memref<3x4x8x32xf32, #tpu.memory_space<vmem>>, vector<1x1x8x32xf32>
    %223 = vector.shape_cast %222 : vector<1x1x8x32xf32> to vector<8x32xf32>
    %cst_214 = arith.constant dense<0.000000e+00> : vector<8x32xf32>
    %224 = tpu.matmul %221, %223, %cst_214 {dimension_numbers = #tpu.dot_dimension_numbers<[1], [0], [0], [1], [0, 0, 1, 1], [], []>} : vector<8x8xf32>, vector<8x32xf32>, vector<8x32xf32> -> vector<8x32xf32>
    %225 = arith.addf %154, %224 : vector<8x32xf32>
    %c0_215 = arith.constant 0 : index
    %c3_216 = arith.constant 3 : index
    %c0_217 = arith.constant 0 : index
    %c0_218 = arith.constant 0 : index
    %226 = vector.load %arg5[%c0_215, %c3_216, %c0_217, %c0_218] : memref<6x4x32x8xf32, #tpu.memory_space<vmem>>, vector<1x1x32x8xf32>
    %227 = vector.shape_cast %226 : vector<1x1x32x8xf32> to vector<32x8xf32>
    %cst_219 = arith.constant dense<0.000000e+00> : vector<16x8xf32>
    %228 = tpu.matmul %1, %227, %cst_219 {dimension_numbers = #tpu.dot_dimension_numbers<[1], [0], [0], [1], [0, 0, 1, 1], [], []>} : vector<16x32xf32>, vector<32x8xf32>, vector<16x8xf32> -> vector<16x8xf32>
    %c0_220 = arith.constant 0 : index
    %c3_221 = arith.constant 3 : index
    %c0_222 = arith.constant 0 : index
    %c0_223 = arith.constant 0 : index
    %229 = vector.load %arg6[%c0_220, %c3_221, %c0_222, %c0_223] : memref<6x4x1x8xf32, #tpu.memory_space<vmem>>, vector<1x1x1x8xf32>
    %230 = vector.shape_cast %229 : vector<1x1x1x8xf32> to vector<1x8xf32>
    %231 = vector.broadcast %230 : vector<1x8xf32> to vector<16x8xf32>
    %232 = arith.addf %228, %231 : vector<16x8xf32>
    %c1_224 = arith.constant 1 : index
    %c3_225 = arith.constant 3 : index
    %c0_226 = arith.constant 0 : index
    %c0_227 = arith.constant 0 : index
    %233 = vector.load %arg5[%c1_224, %c3_225, %c0_226, %c0_227] : memref<6x4x32x8xf32, #tpu.memory_space<vmem>>, vector<1x1x32x8xf32>
    %234 = vector.shape_cast %233 : vector<1x1x32x8xf32> to vector<32x8xf32>
    %cst_228 = arith.constant dense<0.000000e+00> : vector<16x8xf32>
    %235 = tpu.matmul %1, %234, %cst_228 {dimension_numbers = #tpu.dot_dimension_numbers<[1], [0], [0], [1], [0, 0, 1, 1], [], []>} : vector<16x32xf32>, vector<32x8xf32>, vector<16x8xf32> -> vector<16x8xf32>
    %c1_229 = arith.constant 1 : index
    %c3_230 = arith.constant 3 : index
    %c0_231 = arith.constant 0 : index
    %c0_232 = arith.constant 0 : index
    %236 = vector.load %arg6[%c1_229, %c3_230, %c0_231, %c0_232] : memref<6x4x1x8xf32, #tpu.memory_space<vmem>>, vector<1x1x1x8xf32>
    %237 = vector.shape_cast %236 : vector<1x1x1x8xf32> to vector<1x8xf32>
    %238 = vector.broadcast %237 : vector<1x8xf32> to vector<16x8xf32>
    %239 = arith.addf %235, %238 : vector<16x8xf32>
    %c2_233 = arith.constant 2 : index
    %c3_234 = arith.constant 3 : index
    %c0_235 = arith.constant 0 : index
    %c0_236 = arith.constant 0 : index
    %240 = vector.load %arg5[%c2_233, %c3_234, %c0_235, %c0_236] : memref<6x4x32x8xf32, #tpu.memory_space<vmem>>, vector<1x1x32x8xf32>
    %241 = vector.shape_cast %240 : vector<1x1x32x8xf32> to vector<32x8xf32>
    %cst_237 = arith.constant dense<0.000000e+00> : vector<16x8xf32>
    %242 = tpu.matmul %1, %241, %cst_237 {dimension_numbers = #tpu.dot_dimension_numbers<[1], [0], [0], [1], [0, 0, 1, 1], [], []>} : vector<16x32xf32>, vector<32x8xf32>, vector<16x8xf32> -> vector<16x8xf32>
    %c2_238 = arith.constant 2 : index
    %c3_239 = arith.constant 3 : index
    %c0_240 = arith.constant 0 : index
    %c0_241 = arith.constant 0 : index
    %243 = vector.load %arg6[%c2_238, %c3_239, %c0_240, %c0_241] : memref<6x4x1x8xf32, #tpu.memory_space<vmem>>, vector<1x1x1x8xf32>
    %244 = vector.shape_cast %243 : vector<1x1x1x8xf32> to vector<1x8xf32>
    %245 = vector.broadcast %244 : vector<1x8xf32> to vector<16x8xf32>
    %246 = arith.addf %242, %245 : vector<16x8xf32>
    %c3_242 = arith.constant 3 : index
    %c3_243 = arith.constant 3 : index
    %c0_244 = arith.constant 0 : index
    %c0_245 = arith.constant 0 : index
    %247 = vector.load %arg5[%c3_242, %c3_243, %c0_244, %c0_245] : memref<6x4x32x8xf32, #tpu.memory_space<vmem>>, vector<1x1x32x8xf32>
    %248 = vector.shape_cast %247 : vector<1x1x32x8xf32> to vector<32x8xf32>
    %cst_246 = arith.constant dense<0.000000e+00> : vector<8x8xf32>
    %249 = tpu.matmul %10, %248, %cst_246 {dimension_numbers = #tpu.dot_dimension_numbers<[1], [0], [0], [1], [0, 0, 1, 1], [], []>} : vector<8x32xf32>, vector<32x8xf32>, vector<8x8xf32> -> vector<8x8xf32>
    %c3_247 = arith.constant 3 : index
    %c3_248 = arith.constant 3 : index
    %c0_249 = arith.constant 0 : index
    %c0_250 = arith.constant 0 : index
    %250 = vector.load %arg6[%c3_247, %c3_248, %c0_249, %c0_250] : memref<6x4x1x8xf32, #tpu.memory_space<vmem>>, vector<1x1x1x8xf32>
    %251 = vector.shape_cast %250 : vector<1x1x1x8xf32> to vector<1x8xf32>
    %252 = vector.broadcast %251 : vector<1x8xf32> to vector<8x8xf32>
    %253 = arith.addf %249, %252 : vector<8x8xf32>
    %c4_251 = arith.constant 4 : index
    %c3_252 = arith.constant 3 : index
    %c0_253 = arith.constant 0 : index
    %c0_254 = arith.constant 0 : index
    %254 = vector.load %arg5[%c4_251, %c3_252, %c0_253, %c0_254] : memref<6x4x32x8xf32, #tpu.memory_space<vmem>>, vector<1x1x32x8xf32>
    %255 = vector.shape_cast %254 : vector<1x1x32x8xf32> to vector<32x8xf32>
    %cst_255 = arith.constant dense<0.000000e+00> : vector<8x8xf32>
    %256 = tpu.matmul %10, %255, %cst_255 {dimension_numbers = #tpu.dot_dimension_numbers<[1], [0], [0], [1], [0, 0, 1, 1], [], []>} : vector<8x32xf32>, vector<32x8xf32>, vector<8x8xf32> -> vector<8x8xf32>
    %c4_256 = arith.constant 4 : index
    %c3_257 = arith.constant 3 : index
    %c0_258 = arith.constant 0 : index
    %c0_259 = arith.constant 0 : index
    %257 = vector.load %arg6[%c4_256, %c3_257, %c0_258, %c0_259] : memref<6x4x1x8xf32, #tpu.memory_space<vmem>>, vector<1x1x1x8xf32>
    %258 = vector.shape_cast %257 : vector<1x1x1x8xf32> to vector<1x8xf32>
    %259 = vector.broadcast %258 : vector<1x8xf32> to vector<8x8xf32>
    %260 = arith.addf %256, %259 : vector<8x8xf32>
    %c5_260 = arith.constant 5 : index
    %c3_261 = arith.constant 3 : index
    %c0_262 = arith.constant 0 : index
    %c0_263 = arith.constant 0 : index
    %261 = vector.load %arg5[%c5_260, %c3_261, %c0_262, %c0_263] : memref<6x4x32x8xf32, #tpu.memory_space<vmem>>, vector<1x1x32x8xf32>
    %262 = vector.shape_cast %261 : vector<1x1x32x8xf32> to vector<32x8xf32>
    %cst_264 = arith.constant dense<0.000000e+00> : vector<8x8xf32>
    %263 = tpu.matmul %3, %262, %cst_264 {dimension_numbers = #tpu.dot_dimension_numbers<[1], [0], [0], [1], [0, 0, 1, 1], [], []>} : vector<8x32xf32>, vector<32x8xf32>, vector<8x8xf32> -> vector<8x8xf32>
    %c5_265 = arith.constant 5 : index
    %c3_266 = arith.constant 3 : index
    %c0_267 = arith.constant 0 : index
    %c0_268 = arith.constant 0 : index
    %264 = vector.load %arg6[%c5_265, %c3_266, %c0_267, %c0_268] : memref<6x4x1x8xf32, #tpu.memory_space<vmem>>, vector<1x1x1x8xf32>
    %265 = vector.shape_cast %264 : vector<1x1x1x8xf32> to vector<1x8xf32>
    %266 = vector.broadcast %265 : vector<1x8xf32> to vector<8x8xf32>
    %267 = arith.addf %263, %266 : vector<8x8xf32>
    %268 = tpu.concatenate %232, %253 in 0 : vector<16x8xf32>, vector<8x8xf32> -> vector<24x8xf32>
    %269 = tpu.concatenate %239, %260 in 0 : vector<16x8xf32>, vector<8x8xf32> -> vector<24x8xf32>
    %270 = tpu.concatenate %246, %267 in 0 : vector<16x8xf32>, vector<8x8xf32> -> vector<24x8xf32>
    %cst_269 = arith.constant dense<0.000000e+00> : vector<24x24xf32>
    %271 = tpu.matmul %268, %269, %cst_269 {dimension_numbers = #tpu.dot_dimension_numbers<[1], [1], [0], [0], [0, 0, 1, 0], [], []>} : vector<24x8xf32>, vector<24x8xf32>, vector<24x24xf32> -> vector<24x24xf32>
    %cst_270 = arith.constant 0.353553385 : f32
    %272 = vector.broadcast %cst_270 : f32 to vector<24x24xf32>
    %273 = arith.mulf %271, %272 : vector<24x24xf32>
    %274 = vector.broadcast %7 : vector<1x24xf32> to vector<24x24xf32>
    %275 = arith.addf %273, %274 : vector<24x24xf32>
    %cst_271 = arith.constant dense<0xFF800000> : vector<24xf32>
    %276 = vector.multi_reduction <maximumf>, %275, %cst_271 [1] : vector<24x24xf32> to vector<24xf32>
    %277 = vector.shape_cast %276 : vector<24xf32> to vector<24x1xf32>
    %278 = vector.broadcast %277 : vector<24x1xf32> to vector<24x24xf32>
    %279 = arith.subf %275, %278 : vector<24x24xf32>
    %280 = math.exp %279 : vector<24x24xf32>
    %cst_272 = arith.constant dense<0.000000e+00> : vector<24xf32>
    %281 = vector.multi_reduction <add>, %280, %cst_272 [1] : vector<24x24xf32> to vector<24xf32>
    %282 = vector.shape_cast %281 : vector<24xf32> to vector<24x1xf32>
    %283 = tpu.reciprocal %282 {approx = true} : vector<24x1xf32> -> vector<24x1xf32>
    %284 = vector.broadcast %283 : vector<24x1xf32> to vector<24x24xf32>
    %285 = arith.mulf %280, %284 : vector<24x24xf32>
    %cst_273 = arith.constant dense<0.000000e+00> : vector<24x8xf32>
    %286 = tpu.matmul %285, %270, %cst_273 {dimension_numbers = #tpu.dot_dimension_numbers<[1], [0], [0], [1], [0, 0, 1, 1], [], []>} : vector<24x24xf32>, vector<24x8xf32>, vector<24x8xf32> -> vector<24x8xf32>
    %287 = vector.extract_strided_slice %286 {offsets = [0, 0], sizes = [16, 8], strides = [1, 1]} : vector<24x8xf32> to vector<16x8xf32>
    %c0_274 = arith.constant 0 : index
    %c3_275 = arith.constant 3 : index
    %c0_276 = arith.constant 0 : index
    %c0_277 = arith.constant 0 : index
    %288 = vector.load %arg7[%c0_274, %c3_275, %c0_276, %c0_277] : memref<3x4x8x32xf32, #tpu.memory_space<vmem>>, vector<1x1x8x32xf32>
    %289 = vector.shape_cast %288 : vector<1x1x8x32xf32> to vector<8x32xf32>
    %cst_278 = arith.constant dense<0.000000e+00> : vector<16x32xf32>
    %290 = tpu.matmul %287, %289, %cst_278 {dimension_numbers = #tpu.dot_dimension_numbers<[1], [0], [0], [1], [0, 0, 1, 1], [], []>} : vector<16x8xf32>, vector<8x32xf32>, vector<16x32xf32> -> vector<16x32xf32>
    %291 = arith.addf %220, %290 : vector<16x32xf32>
    %292 = vector.extract_strided_slice %286 {offsets = [16, 0], sizes = [8, 8], strides = [1, 1]} : vector<24x8xf32> to vector<8x8xf32>
    %c1_279 = arith.constant 1 : index
    %c3_280 = arith.constant 3 : index
    %c0_281 = arith.constant 0 : index
    %c0_282 = arith.constant 0 : index
    %293 = vector.load %arg7[%c1_279, %c3_280, %c0_281, %c0_282] : memref<3x4x8x32xf32, #tpu.memory_space<vmem>>, vector<1x1x8x32xf32>
    %294 = vector.shape_cast %293 : vector<1x1x8x32xf32> to vector<8x32xf32>
    %cst_283 = arith.constant dense<0.000000e+00> : vector<8x32xf32>
    %295 = tpu.matmul %292, %294, %cst_283 {dimension_numbers = #tpu.dot_dimension_numbers<[1], [0], [0], [1], [0, 0, 1, 1], [], []>} : vector<8x8xf32>, vector<8x32xf32>, vector<8x32xf32> -> vector<8x32xf32>
    %296 = arith.addf %225, %295 : vector<8x32xf32>
    %c0_284 = arith.constant 0 : index
    %c0_285 = arith.constant 0 : index
    %c0_286 = arith.constant 0 : index
    %297 = vector.load %arg8[%c0_284, %c0_285, %c0_286] : memref<3x1x32xf32, #tpu.memory_space<vmem>>, vector<1x1x32xf32>
    %298 = vector.shape_cast %297 : vector<1x1x32xf32> to vector<1x32xf32>
    %299 = vector.broadcast %298 : vector<1x32xf32> to vector<16x32xf32>
    %300 = arith.addf %291, %299 : vector<16x32xf32>
    %301 = arith.addf %300, %1 : vector<16x32xf32>
    %c0_287 = arith.constant 0 : index
    %c0_288 = arith.constant 0 : index
    %c0_289 = arith.constant 0 : index
    %302 = vector.load %arg13[%c0_287, %c0_288, %c0_289] : memref<5x1x32xf32, #tpu.memory_space<vmem>>, vector<1x1x32xf32>
    %303 = vector.shape_cast %302 : vector<1x1x32xf32> to vector<1x32xf32>
    %c0_290 = arith.constant 0 : index
    %c0_291 = arith.constant 0 : index
    %c0_292 = arith.constant 0 : index
    %304 = vector.load %arg14[%c0_290, %c0_291, %c0_292] : memref<5x1x32xf32, #tpu.memory_space<vmem>>, vector<1x1x32xf32>
    %305 = vector.shape_cast %304 : vector<1x1x32xf32> to vector<1x32xf32>
    %cst_293 = arith.constant dense<0.000000e+00> : vector<16xf32>
    %306 = vector.multi_reduction <add>, %301, %cst_293 [1] : vector<16x32xf32> to vector<16xf32>
    %307 = vector.shape_cast %306 : vector<16xf32> to vector<16x1xf32>
    %cst_294 = arith.constant 3.200000e+01 : f32
    %308 = vector.broadcast %cst_294 : f32 to vector<16x1xf32>
    %309 = arith.divf %307, %308 : vector<16x1xf32>
    %310 = vector.broadcast %309 : vector<16x1xf32> to vector<16x32xf32>
    %311 = arith.subf %301, %310 : vector<16x32xf32>
    %312 = arith.mulf %311, %311 : vector<16x32xf32>
    %cst_295 = arith.constant dense<0.000000e+00> : vector<16xf32>
    %313 = vector.multi_reduction <add>, %312, %cst_295 [1] : vector<16x32xf32> to vector<16xf32>
    %314 = vector.shape_cast %313 : vector<16xf32> to vector<16x1xf32>
    %cst_296 = arith.constant 3.200000e+01 : f32
    %315 = vector.broadcast %cst_296 : f32 to vector<16x1xf32>
    %316 = arith.divf %314, %315 : vector<16x1xf32>
    %cst_297 = arith.constant 9.99999996E-13 : f32
    %317 = vector.broadcast %cst_297 : f32 to vector<16x1xf32>
    %318 = arith.addf %316, %317 : vector<16x1xf32>
    %319 = math.rsqrt %318 : vector<16x1xf32>
    %320 = vector.broadcast %319 : vector<16x1xf32> to vector<16x32xf32>
    %321 = arith.mulf %311, %320 : vector<16x32xf32>
    %322 = vector.broadcast %303 : vector<1x32xf32> to vector<16x32xf32>
    %323 = arith.mulf %321, %322 : vector<16x32xf32>
    %324 = vector.broadcast %305 : vector<1x32xf32> to vector<16x32xf32>
    %325 = arith.addf %323, %324 : vector<16x32xf32>
    %c1_298 = arith.constant 1 : index
    %c0_299 = arith.constant 0 : index
    %c0_300 = arith.constant 0 : index
    %326 = vector.load %arg8[%c1_298, %c0_299, %c0_300] : memref<3x1x32xf32, #tpu.memory_space<vmem>>, vector<1x1x32xf32>
    %327 = vector.shape_cast %326 : vector<1x1x32xf32> to vector<1x32xf32>
    %328 = vector.broadcast %327 : vector<1x32xf32> to vector<8x32xf32>
    %329 = arith.addf %296, %328 : vector<8x32xf32>
    %330 = arith.addf %329, %3 : vector<8x32xf32>
    %c1_301 = arith.constant 1 : index
    %c0_302 = arith.constant 0 : index
    %c0_303 = arith.constant 0 : index
    %331 = vector.load %arg13[%c1_301, %c0_302, %c0_303] : memref<5x1x32xf32, #tpu.memory_space<vmem>>, vector<1x1x32xf32>
    %332 = vector.shape_cast %331 : vector<1x1x32xf32> to vector<1x32xf32>
    %c1_304 = arith.constant 1 : index
    %c0_305 = arith.constant 0 : index
    %c0_306 = arith.constant 0 : index
    %333 = vector.load %arg14[%c1_304, %c0_305, %c0_306] : memref<5x1x32xf32, #tpu.memory_space<vmem>>, vector<1x1x32xf32>
    %334 = vector.shape_cast %333 : vector<1x1x32xf32> to vector<1x32xf32>
    %cst_307 = arith.constant dense<0.000000e+00> : vector<8xf32>
    %335 = vector.multi_reduction <add>, %330, %cst_307 [1] : vector<8x32xf32> to vector<8xf32>
    %336 = vector.shape_cast %335 : vector<8xf32> to vector<8x1xf32>
    %cst_308 = arith.constant 3.200000e+01 : f32
    %337 = vector.broadcast %cst_308 : f32 to vector<8x1xf32>
    %338 = arith.divf %336, %337 : vector<8x1xf32>
    %339 = vector.broadcast %338 : vector<8x1xf32> to vector<8x32xf32>
    %340 = arith.subf %330, %339 : vector<8x32xf32>
    %341 = arith.mulf %340, %340 : vector<8x32xf32>
    %cst_309 = arith.constant dense<0.000000e+00> : vector<8xf32>
    %342 = vector.multi_reduction <add>, %341, %cst_309 [1] : vector<8x32xf32> to vector<8xf32>
    %343 = vector.shape_cast %342 : vector<8xf32> to vector<8x1xf32>
    %cst_310 = arith.constant 3.200000e+01 : f32
    %344 = vector.broadcast %cst_310 : f32 to vector<8x1xf32>
    %345 = arith.divf %343, %344 : vector<8x1xf32>
    %cst_311 = arith.constant 9.99999996E-13 : f32
    %346 = vector.broadcast %cst_311 : f32 to vector<8x1xf32>
    %347 = arith.addf %345, %346 : vector<8x1xf32>
    %348 = math.rsqrt %347 : vector<8x1xf32>
    %349 = vector.broadcast %348 : vector<8x1xf32> to vector<8x32xf32>
    %350 = arith.mulf %340, %349 : vector<8x32xf32>
    %351 = vector.broadcast %332 : vector<1x32xf32> to vector<8x32xf32>
    %352 = arith.mulf %350, %351 : vector<8x32xf32>
    %353 = vector.broadcast %334 : vector<1x32xf32> to vector<8x32xf32>
    %354 = arith.addf %352, %353 : vector<8x32xf32>
    %c0_312 = arith.constant 0 : index
    %c0_313 = arith.constant 0 : index
    %c0_314 = arith.constant 0 : index
    %355 = vector.load %arg9[%c0_312, %c0_313, %c0_314] : memref<2x32x64xf32, #tpu.memory_space<vmem>>, vector<1x32x64xf32>
    %356 = vector.shape_cast %355 : vector<1x32x64xf32> to vector<32x64xf32>
    %cst_315 = arith.constant dense<0.000000e+00> : vector<16x64xf32>
    %357 = tpu.matmul %325, %356, %cst_315 {dimension_numbers = #tpu.dot_dimension_numbers<[1], [0], [0], [1], [0, 0, 1, 1], [], []>} : vector<16x32xf32>, vector<32x64xf32>, vector<16x64xf32> -> vector<16x64xf32>
    %c0_316 = arith.constant 0 : index
    %c0_317 = arith.constant 0 : index
    %c0_318 = arith.constant 0 : index
    %358 = vector.load %arg10[%c0_316, %c0_317, %c0_318] : memref<2x1x64xf32, #tpu.memory_space<vmem>>, vector<1x1x64xf32>
    %359 = vector.shape_cast %358 : vector<1x1x64xf32> to vector<1x64xf32>
    %360 = vector.broadcast %359 : vector<1x64xf32> to vector<16x64xf32>
    %361 = arith.addf %357, %360 : vector<16x64xf32>
    %362 = arith.mulf %361, %361 : vector<16x64xf32>
    %363 = arith.mulf %361, %362 : vector<16x64xf32>
    %cst_319 = arith.constant 4.471500e-02 : f32
    %364 = vector.broadcast %cst_319 : f32 to vector<16x64xf32>
    %365 = arith.mulf %364, %363 : vector<16x64xf32>
    %366 = arith.addf %361, %365 : vector<16x64xf32>
    %cst_320 = arith.constant 0.797884583 : f32
    %367 = vector.broadcast %cst_320 : f32 to vector<16x64xf32>
    %368 = arith.mulf %367, %366 : vector<16x64xf32>
    %369 = math.tanh %368 : vector<16x64xf32>
    %cst_321 = arith.constant 1.000000e+00 : f32
    %370 = vector.broadcast %cst_321 : f32 to vector<16x64xf32>
    %371 = arith.addf %370, %369 : vector<16x64xf32>
    %cst_322 = arith.constant 5.000000e-01 : f32
    %372 = vector.broadcast %cst_322 : f32 to vector<16x64xf32>
    %373 = arith.mulf %372, %371 : vector<16x64xf32>
    %374 = arith.mulf %361, %373 : vector<16x64xf32>
    %c1_323 = arith.constant 1 : index
    %c0_324 = arith.constant 0 : index
    %c0_325 = arith.constant 0 : index
    %375 = vector.load %arg9[%c1_323, %c0_324, %c0_325] : memref<2x32x64xf32, #tpu.memory_space<vmem>>, vector<1x32x64xf32>
    %376 = vector.shape_cast %375 : vector<1x32x64xf32> to vector<32x64xf32>
    %cst_326 = arith.constant dense<0.000000e+00> : vector<8x64xf32>
    %377 = tpu.matmul %354, %376, %cst_326 {dimension_numbers = #tpu.dot_dimension_numbers<[1], [0], [0], [1], [0, 0, 1, 1], [], []>} : vector<8x32xf32>, vector<32x64xf32>, vector<8x64xf32> -> vector<8x64xf32>
    %c1_327 = arith.constant 1 : index
    %c0_328 = arith.constant 0 : index
    %c0_329 = arith.constant 0 : index
    %378 = vector.load %arg10[%c1_327, %c0_328, %c0_329] : memref<2x1x64xf32, #tpu.memory_space<vmem>>, vector<1x1x64xf32>
    %379 = vector.shape_cast %378 : vector<1x1x64xf32> to vector<1x64xf32>
    %380 = vector.broadcast %379 : vector<1x64xf32> to vector<8x64xf32>
    %381 = arith.addf %377, %380 : vector<8x64xf32>
    %382 = arith.mulf %381, %381 : vector<8x64xf32>
    %383 = arith.mulf %381, %382 : vector<8x64xf32>
    %cst_330 = arith.constant 4.471500e-02 : f32
    %384 = vector.broadcast %cst_330 : f32 to vector<8x64xf32>
    %385 = arith.mulf %384, %383 : vector<8x64xf32>
    %386 = arith.addf %381, %385 : vector<8x64xf32>
    %cst_331 = arith.constant 0.797884583 : f32
    %387 = vector.broadcast %cst_331 : f32 to vector<8x64xf32>
    %388 = arith.mulf %387, %386 : vector<8x64xf32>
    %389 = math.tanh %388 : vector<8x64xf32>
    %cst_332 = arith.constant 1.000000e+00 : f32
    %390 = vector.broadcast %cst_332 : f32 to vector<8x64xf32>
    %391 = arith.addf %390, %389 : vector<8x64xf32>
    %cst_333 = arith.constant 5.000000e-01 : f32
    %392 = vector.broadcast %cst_333 : f32 to vector<8x64xf32>
    %393 = arith.mulf %392, %391 : vector<8x64xf32>
    %394 = arith.mulf %381, %393 : vector<8x64xf32>
    %c0_334 = arith.constant 0 : index
    %c0_335 = arith.constant 0 : index
    %c0_336 = arith.constant 0 : index
    %395 = vector.load %arg11[%c0_334, %c0_335, %c0_336] : memref<2x64x32xf32, #tpu.memory_space<vmem>>, vector<1x64x32xf32>
    %396 = vector.shape_cast %395 : vector<1x64x32xf32> to vector<64x32xf32>
    %cst_337 = arith.constant dense<0.000000e+00> : vector<16x32xf32>
    %397 = tpu.matmul %374, %396, %cst_337 {dimension_numbers = #tpu.dot_dimension_numbers<[1], [0], [0], [1], [0, 0, 1, 1], [], []>} : vector<16x64xf32>, vector<64x32xf32>, vector<16x32xf32> -> vector<16x32xf32>
    %c0_338 = arith.constant 0 : index
    %c0_339 = arith.constant 0 : index
    %c0_340 = arith.constant 0 : index
    %398 = vector.load %arg12[%c0_338, %c0_339, %c0_340] : memref<2x1x32xf32, #tpu.memory_space<vmem>>, vector<1x1x32xf32>
    %399 = vector.shape_cast %398 : vector<1x1x32xf32> to vector<1x32xf32>
    %400 = vector.broadcast %399 : vector<1x32xf32> to vector<16x32xf32>
    %401 = arith.addf %397, %400 : vector<16x32xf32>
    %402 = arith.addf %401, %325 : vector<16x32xf32>
    %c2_341 = arith.constant 2 : index
    %c0_342 = arith.constant 0 : index
    %c0_343 = arith.constant 0 : index
    %403 = vector.load %arg13[%c2_341, %c0_342, %c0_343] : memref<5x1x32xf32, #tpu.memory_space<vmem>>, vector<1x1x32xf32>
    %404 = vector.shape_cast %403 : vector<1x1x32xf32> to vector<1x32xf32>
    %c2_344 = arith.constant 2 : index
    %c0_345 = arith.constant 0 : index
    %c0_346 = arith.constant 0 : index
    %405 = vector.load %arg14[%c2_344, %c0_345, %c0_346] : memref<5x1x32xf32, #tpu.memory_space<vmem>>, vector<1x1x32xf32>
    %406 = vector.shape_cast %405 : vector<1x1x32xf32> to vector<1x32xf32>
    %cst_347 = arith.constant dense<0.000000e+00> : vector<16xf32>
    %407 = vector.multi_reduction <add>, %402, %cst_347 [1] : vector<16x32xf32> to vector<16xf32>
    %408 = vector.shape_cast %407 : vector<16xf32> to vector<16x1xf32>
    %cst_348 = arith.constant 3.200000e+01 : f32
    %409 = vector.broadcast %cst_348 : f32 to vector<16x1xf32>
    %410 = arith.divf %408, %409 : vector<16x1xf32>
    %411 = vector.broadcast %410 : vector<16x1xf32> to vector<16x32xf32>
    %412 = arith.subf %402, %411 : vector<16x32xf32>
    %413 = arith.mulf %412, %412 : vector<16x32xf32>
    %cst_349 = arith.constant dense<0.000000e+00> : vector<16xf32>
    %414 = vector.multi_reduction <add>, %413, %cst_349 [1] : vector<16x32xf32> to vector<16xf32>
    %415 = vector.shape_cast %414 : vector<16xf32> to vector<16x1xf32>
    %cst_350 = arith.constant 3.200000e+01 : f32
    %416 = vector.broadcast %cst_350 : f32 to vector<16x1xf32>
    %417 = arith.divf %415, %416 : vector<16x1xf32>
    %cst_351 = arith.constant 9.99999996E-13 : f32
    %418 = vector.broadcast %cst_351 : f32 to vector<16x1xf32>
    %419 = arith.addf %417, %418 : vector<16x1xf32>
    %420 = math.rsqrt %419 : vector<16x1xf32>
    %421 = vector.broadcast %420 : vector<16x1xf32> to vector<16x32xf32>
    %422 = arith.mulf %412, %421 : vector<16x32xf32>
    %423 = vector.broadcast %404 : vector<1x32xf32> to vector<16x32xf32>
    %424 = arith.mulf %422, %423 : vector<16x32xf32>
    %425 = vector.broadcast %406 : vector<1x32xf32> to vector<16x32xf32>
    %426 = arith.addf %424, %425 : vector<16x32xf32>
    %c1_352 = arith.constant 1 : index
    %c0_353 = arith.constant 0 : index
    %c0_354 = arith.constant 0 : index
    %427 = vector.load %arg11[%c1_352, %c0_353, %c0_354] : memref<2x64x32xf32, #tpu.memory_space<vmem>>, vector<1x64x32xf32>
    %428 = vector.shape_cast %427 : vector<1x64x32xf32> to vector<64x32xf32>
    %cst_355 = arith.constant dense<0.000000e+00> : vector<8x32xf32>
    %429 = tpu.matmul %394, %428, %cst_355 {dimension_numbers = #tpu.dot_dimension_numbers<[1], [0], [0], [1], [0, 0, 1, 1], [], []>} : vector<8x64xf32>, vector<64x32xf32>, vector<8x32xf32> -> vector<8x32xf32>
    %c1_356 = arith.constant 1 : index
    %c0_357 = arith.constant 0 : index
    %c0_358 = arith.constant 0 : index
    %430 = vector.load %arg12[%c1_356, %c0_357, %c0_358] : memref<2x1x32xf32, #tpu.memory_space<vmem>>, vector<1x1x32xf32>
    %431 = vector.shape_cast %430 : vector<1x1x32xf32> to vector<1x32xf32>
    %432 = vector.broadcast %431 : vector<1x32xf32> to vector<8x32xf32>
    %433 = arith.addf %429, %432 : vector<8x32xf32>
    %434 = arith.addf %433, %354 : vector<8x32xf32>
    %c3_359 = arith.constant 3 : index
    %c0_360 = arith.constant 0 : index
    %c0_361 = arith.constant 0 : index
    %435 = vector.load %arg13[%c3_359, %c0_360, %c0_361] : memref<5x1x32xf32, #tpu.memory_space<vmem>>, vector<1x1x32xf32>
    %436 = vector.shape_cast %435 : vector<1x1x32xf32> to vector<1x32xf32>
    %c3_362 = arith.constant 3 : index
    %c0_363 = arith.constant 0 : index
    %c0_364 = arith.constant 0 : index
    %437 = vector.load %arg14[%c3_362, %c0_363, %c0_364] : memref<5x1x32xf32, #tpu.memory_space<vmem>>, vector<1x1x32xf32>
    %438 = vector.shape_cast %437 : vector<1x1x32xf32> to vector<1x32xf32>
    %cst_365 = arith.constant dense<0.000000e+00> : vector<8xf32>
    %439 = vector.multi_reduction <add>, %434, %cst_365 [1] : vector<8x32xf32> to vector<8xf32>
    %440 = vector.shape_cast %439 : vector<8xf32> to vector<8x1xf32>
    %cst_366 = arith.constant 3.200000e+01 : f32
    %441 = vector.broadcast %cst_366 : f32 to vector<8x1xf32>
    %442 = arith.divf %440, %441 : vector<8x1xf32>
    %443 = vector.broadcast %442 : vector<8x1xf32> to vector<8x32xf32>
    %444 = arith.subf %434, %443 : vector<8x32xf32>
    %445 = arith.mulf %444, %444 : vector<8x32xf32>
    %cst_367 = arith.constant dense<0.000000e+00> : vector<8xf32>
    %446 = vector.multi_reduction <add>, %445, %cst_367 [1] : vector<8x32xf32> to vector<8xf32>
    %447 = vector.shape_cast %446 : vector<8xf32> to vector<8x1xf32>
    %cst_368 = arith.constant 3.200000e+01 : f32
    %448 = vector.broadcast %cst_368 : f32 to vector<8x1xf32>
    %449 = arith.divf %447, %448 : vector<8x1xf32>
    %cst_369 = arith.constant 9.99999996E-13 : f32
    %450 = vector.broadcast %cst_369 : f32 to vector<8x1xf32>
    %451 = arith.addf %449, %450 : vector<8x1xf32>
    %452 = math.rsqrt %451 : vector<8x1xf32>
    %453 = vector.broadcast %452 : vector<8x1xf32> to vector<8x32xf32>
    %454 = arith.mulf %444, %453 : vector<8x32xf32>
    %455 = vector.broadcast %436 : vector<1x32xf32> to vector<8x32xf32>
    %456 = arith.mulf %454, %455 : vector<8x32xf32>
    %457 = vector.broadcast %438 : vector<1x32xf32> to vector<8x32xf32>
    %458 = arith.addf %456, %457 : vector<8x32xf32>
    %459 = arith.addf %458, %5 : vector<8x32xf32>
    %cst_370 = arith.constant 0.000000e+00 : f32
    %460 = vector.broadcast %cst_370 : f32 to vector<8x32xf32>
    %c0_371 = arith.constant 0 : index
    %c0_372 = arith.constant 0 : index
    %c0_373 = arith.constant 0 : index
    %c0_374 = arith.constant 0 : index
    %461 = vector.load %arg15[%c0_371, %c0_372, %c0_373, %c0_374] : memref<3x4x32x8xf32, #tpu.memory_space<vmem>>, vector<1x1x32x8xf32>
    %462 = vector.shape_cast %461 : vector<1x1x32x8xf32> to vector<32x8xf32>
    %cst_375 = arith.constant dense<0.000000e+00> : vector<8x8xf32>
    %463 = tpu.matmul %459, %462, %cst_375 {dimension_numbers = #tpu.dot_dimension_numbers<[1], [0], [0], [1], [0, 0, 1, 1], [], []>} : vector<8x32xf32>, vector<32x8xf32>, vector<8x8xf32> -> vector<8x8xf32>
    %c0_376 = arith.constant 0 : index
    %c0_377 = arith.constant 0 : index
    %c0_378 = arith.constant 0 : index
    %c0_379 = arith.constant 0 : index
    %464 = vector.load %arg16[%c0_376, %c0_377, %c0_378, %c0_379] : memref<3x4x1x8xf32, #tpu.memory_space<vmem>>, vector<1x1x1x8xf32>
    %465 = vector.shape_cast %464 : vector<1x1x1x8xf32> to vector<1x8xf32>
    %466 = vector.broadcast %465 : vector<1x8xf32> to vector<8x8xf32>
    %467 = arith.addf %463, %466 : vector<8x8xf32>
    %c1_380 = arith.constant 1 : index
    %c0_381 = arith.constant 0 : index
    %c0_382 = arith.constant 0 : index
    %c0_383 = arith.constant 0 : index
    %468 = vector.load %arg15[%c1_380, %c0_381, %c0_382, %c0_383] : memref<3x4x32x8xf32, #tpu.memory_space<vmem>>, vector<1x1x32x8xf32>
    %469 = vector.shape_cast %468 : vector<1x1x32x8xf32> to vector<32x8xf32>
    %cst_384 = arith.constant dense<0.000000e+00> : vector<8x8xf32>
    %470 = tpu.matmul %459, %469, %cst_384 {dimension_numbers = #tpu.dot_dimension_numbers<[1], [0], [0], [1], [0, 0, 1, 1], [], []>} : vector<8x32xf32>, vector<32x8xf32>, vector<8x8xf32> -> vector<8x8xf32>
    %c1_385 = arith.constant 1 : index
    %c0_386 = arith.constant 0 : index
    %c0_387 = arith.constant 0 : index
    %c0_388 = arith.constant 0 : index
    %471 = vector.load %arg16[%c1_385, %c0_386, %c0_387, %c0_388] : memref<3x4x1x8xf32, #tpu.memory_space<vmem>>, vector<1x1x1x8xf32>
    %472 = vector.shape_cast %471 : vector<1x1x1x8xf32> to vector<1x8xf32>
    %473 = vector.broadcast %472 : vector<1x8xf32> to vector<8x8xf32>
    %474 = arith.addf %470, %473 : vector<8x8xf32>
    %c2_389 = arith.constant 2 : index
    %c0_390 = arith.constant 0 : index
    %c0_391 = arith.constant 0 : index
    %c0_392 = arith.constant 0 : index
    %475 = vector.load %arg15[%c2_389, %c0_390, %c0_391, %c0_392] : memref<3x4x32x8xf32, #tpu.memory_space<vmem>>, vector<1x1x32x8xf32>
    %476 = vector.shape_cast %475 : vector<1x1x32x8xf32> to vector<32x8xf32>
    %cst_393 = arith.constant dense<0.000000e+00> : vector<8x8xf32>
    %477 = tpu.matmul %458, %476, %cst_393 {dimension_numbers = #tpu.dot_dimension_numbers<[1], [0], [0], [1], [0, 0, 1, 1], [], []>} : vector<8x32xf32>, vector<32x8xf32>, vector<8x8xf32> -> vector<8x8xf32>
    %c2_394 = arith.constant 2 : index
    %c0_395 = arith.constant 0 : index
    %c0_396 = arith.constant 0 : index
    %c0_397 = arith.constant 0 : index
    %478 = vector.load %arg16[%c2_394, %c0_395, %c0_396, %c0_397] : memref<3x4x1x8xf32, #tpu.memory_space<vmem>>, vector<1x1x1x8xf32>
    %479 = vector.shape_cast %478 : vector<1x1x1x8xf32> to vector<1x8xf32>
    %480 = vector.broadcast %479 : vector<1x8xf32> to vector<8x8xf32>
    %481 = arith.addf %477, %480 : vector<8x8xf32>
    %cst_398 = arith.constant dense<0.000000e+00> : vector<8x8xf32>
    %482 = tpu.matmul %467, %474, %cst_398 {dimension_numbers = #tpu.dot_dimension_numbers<[1], [1], [0], [0], [0, 0, 1, 0], [], []>} : vector<8x8xf32>, vector<8x8xf32>, vector<8x8xf32> -> vector<8x8xf32>
    %cst_399 = arith.constant 0.353553385 : f32
    %483 = vector.broadcast %cst_399 : f32 to vector<8x8xf32>
    %484 = arith.mulf %482, %483 : vector<8x8xf32>
    %cst_400 = arith.constant dense<0xFF800000> : vector<8xf32>
    %485 = vector.multi_reduction <maximumf>, %484, %cst_400 [1] : vector<8x8xf32> to vector<8xf32>
    %486 = vector.shape_cast %485 : vector<8xf32> to vector<8x1xf32>
    %487 = vector.broadcast %486 : vector<8x1xf32> to vector<8x8xf32>
    %488 = arith.subf %484, %487 : vector<8x8xf32>
    %489 = math.exp %488 : vector<8x8xf32>
    %cst_401 = arith.constant dense<0.000000e+00> : vector<8xf32>
    %490 = vector.multi_reduction <add>, %489, %cst_401 [1] : vector<8x8xf32> to vector<8xf32>
    %491 = vector.shape_cast %490 : vector<8xf32> to vector<8x1xf32>
    %492 = tpu.reciprocal %491 {approx = true} : vector<8x1xf32> -> vector<8x1xf32>
    %493 = vector.broadcast %492 : vector<8x1xf32> to vector<8x8xf32>
    %494 = arith.mulf %489, %493 : vector<8x8xf32>
    %cst_402 = arith.constant dense<0.000000e+00> : vector<8x8xf32>
    %495 = tpu.matmul %494, %481, %cst_402 {dimension_numbers = #tpu.dot_dimension_numbers<[1], [0], [0], [1], [0, 0, 1, 1], [], []>} : vector<8x8xf32>, vector<8x8xf32>, vector<8x8xf32> -> vector<8x8xf32>
    %c2_403 = arith.constant 2 : index
    %c0_404 = arith.constant 0 : index
    %c0_405 = arith.constant 0 : index
    %c0_406 = arith.constant 0 : index
    %496 = vector.load %arg7[%c2_403, %c0_404, %c0_405, %c0_406] : memref<3x4x8x32xf32, #tpu.memory_space<vmem>>, vector<1x1x8x32xf32>
    %497 = vector.shape_cast %496 : vector<1x1x8x32xf32> to vector<8x32xf32>
    %cst_407 = arith.constant dense<0.000000e+00> : vector<8x32xf32>
    %498 = tpu.matmul %495, %497, %cst_407 {dimension_numbers = #tpu.dot_dimension_numbers<[1], [0], [0], [1], [0, 0, 1, 1], [], []>} : vector<8x8xf32>, vector<8x32xf32>, vector<8x32xf32> -> vector<8x32xf32>
    %499 = arith.addf %460, %498 : vector<8x32xf32>
    %c0_408 = arith.constant 0 : index
    %c1_409 = arith.constant 1 : index
    %c0_410 = arith.constant 0 : index
    %c0_411 = arith.constant 0 : index
    %500 = vector.load %arg15[%c0_408, %c1_409, %c0_410, %c0_411] : memref<3x4x32x8xf32, #tpu.memory_space<vmem>>, vector<1x1x32x8xf32>
    %501 = vector.shape_cast %500 : vector<1x1x32x8xf32> to vector<32x8xf32>
    %cst_412 = arith.constant dense<0.000000e+00> : vector<8x8xf32>
    %502 = tpu.matmul %459, %501, %cst_412 {dimension_numbers = #tpu.dot_dimension_numbers<[1], [0], [0], [1], [0, 0, 1, 1], [], []>} : vector<8x32xf32>, vector<32x8xf32>, vector<8x8xf32> -> vector<8x8xf32>
    %c0_413 = arith.constant 0 : index
    %c1_414 = arith.constant 1 : index
    %c0_415 = arith.constant 0 : index
    %c0_416 = arith.constant 0 : index
    %503 = vector.load %arg16[%c0_413, %c1_414, %c0_415, %c0_416] : memref<3x4x1x8xf32, #tpu.memory_space<vmem>>, vector<1x1x1x8xf32>
    %504 = vector.shape_cast %503 : vector<1x1x1x8xf32> to vector<1x8xf32>
    %505 = vector.broadcast %504 : vector<1x8xf32> to vector<8x8xf32>
    %506 = arith.addf %502, %505 : vector<8x8xf32>
    %c1_417 = arith.constant 1 : index
    %c1_418 = arith.constant 1 : index
    %c0_419 = arith.constant 0 : index
    %c0_420 = arith.constant 0 : index
    %507 = vector.load %arg15[%c1_417, %c1_418, %c0_419, %c0_420] : memref<3x4x32x8xf32, #tpu.memory_space<vmem>>, vector<1x1x32x8xf32>
    %508 = vector.shape_cast %507 : vector<1x1x32x8xf32> to vector<32x8xf32>
    %cst_421 = arith.constant dense<0.000000e+00> : vector<8x8xf32>
    %509 = tpu.matmul %459, %508, %cst_421 {dimension_numbers = #tpu.dot_dimension_numbers<[1], [0], [0], [1], [0, 0, 1, 1], [], []>} : vector<8x32xf32>, vector<32x8xf32>, vector<8x8xf32> -> vector<8x8xf32>
    %c1_422 = arith.constant 1 : index
    %c1_423 = arith.constant 1 : index
    %c0_424 = arith.constant 0 : index
    %c0_425 = arith.constant 0 : index
    %510 = vector.load %arg16[%c1_422, %c1_423, %c0_424, %c0_425] : memref<3x4x1x8xf32, #tpu.memory_space<vmem>>, vector<1x1x1x8xf32>
    %511 = vector.shape_cast %510 : vector<1x1x1x8xf32> to vector<1x8xf32>
    %512 = vector.broadcast %511 : vector<1x8xf32> to vector<8x8xf32>
    %513 = arith.addf %509, %512 : vector<8x8xf32>
    %c2_426 = arith.constant 2 : index
    %c1_427 = arith.constant 1 : index
    %c0_428 = arith.constant 0 : index
    %c0_429 = arith.constant 0 : index
    %514 = vector.load %arg15[%c2_426, %c1_427, %c0_428, %c0_429] : memref<3x4x32x8xf32, #tpu.memory_space<vmem>>, vector<1x1x32x8xf32>
    %515 = vector.shape_cast %514 : vector<1x1x32x8xf32> to vector<32x8xf32>
    %cst_430 = arith.constant dense<0.000000e+00> : vector<8x8xf32>
    %516 = tpu.matmul %458, %515, %cst_430 {dimension_numbers = #tpu.dot_dimension_numbers<[1], [0], [0], [1], [0, 0, 1, 1], [], []>} : vector<8x32xf32>, vector<32x8xf32>, vector<8x8xf32> -> vector<8x8xf32>
    %c2_431 = arith.constant 2 : index
    %c1_432 = arith.constant 1 : index
    %c0_433 = arith.constant 0 : index
    %c0_434 = arith.constant 0 : index
    %517 = vector.load %arg16[%c2_431, %c1_432, %c0_433, %c0_434] : memref<3x4x1x8xf32, #tpu.memory_space<vmem>>, vector<1x1x1x8xf32>
    %518 = vector.shape_cast %517 : vector<1x1x1x8xf32> to vector<1x8xf32>
    %519 = vector.broadcast %518 : vector<1x8xf32> to vector<8x8xf32>
    %520 = arith.addf %516, %519 : vector<8x8xf32>
    %cst_435 = arith.constant dense<0.000000e+00> : vector<8x8xf32>
    %521 = tpu.matmul %506, %513, %cst_435 {dimension_numbers = #tpu.dot_dimension_numbers<[1], [1], [0], [0], [0, 0, 1, 0], [], []>} : vector<8x8xf32>, vector<8x8xf32>, vector<8x8xf32> -> vector<8x8xf32>
    %cst_436 = arith.constant 0.353553385 : f32
    %522 = vector.broadcast %cst_436 : f32 to vector<8x8xf32>
    %523 = arith.mulf %521, %522 : vector<8x8xf32>
    %cst_437 = arith.constant dense<0xFF800000> : vector<8xf32>
    %524 = vector.multi_reduction <maximumf>, %523, %cst_437 [1] : vector<8x8xf32> to vector<8xf32>
    %525 = vector.shape_cast %524 : vector<8xf32> to vector<8x1xf32>
    %526 = vector.broadcast %525 : vector<8x1xf32> to vector<8x8xf32>
    %527 = arith.subf %523, %526 : vector<8x8xf32>
    %528 = math.exp %527 : vector<8x8xf32>
    %cst_438 = arith.constant dense<0.000000e+00> : vector<8xf32>
    %529 = vector.multi_reduction <add>, %528, %cst_438 [1] : vector<8x8xf32> to vector<8xf32>
    %530 = vector.shape_cast %529 : vector<8xf32> to vector<8x1xf32>
    %531 = tpu.reciprocal %530 {approx = true} : vector<8x1xf32> -> vector<8x1xf32>
    %532 = vector.broadcast %531 : vector<8x1xf32> to vector<8x8xf32>
    %533 = arith.mulf %528, %532 : vector<8x8xf32>
    %cst_439 = arith.constant dense<0.000000e+00> : vector<8x8xf32>
    %534 = tpu.matmul %533, %520, %cst_439 {dimension_numbers = #tpu.dot_dimension_numbers<[1], [0], [0], [1], [0, 0, 1, 1], [], []>} : vector<8x8xf32>, vector<8x8xf32>, vector<8x8xf32> -> vector<8x8xf32>
    %c2_440 = arith.constant 2 : index
    %c1_441 = arith.constant 1 : index
    %c0_442 = arith.constant 0 : index
    %c0_443 = arith.constant 0 : index
    %535 = vector.load %arg7[%c2_440, %c1_441, %c0_442, %c0_443] : memref<3x4x8x32xf32, #tpu.memory_space<vmem>>, vector<1x1x8x32xf32>
    %536 = vector.shape_cast %535 : vector<1x1x8x32xf32> to vector<8x32xf32>
    %cst_444 = arith.constant dense<0.000000e+00> : vector<8x32xf32>
    %537 = tpu.matmul %534, %536, %cst_444 {dimension_numbers = #tpu.dot_dimension_numbers<[1], [0], [0], [1], [0, 0, 1, 1], [], []>} : vector<8x8xf32>, vector<8x32xf32>, vector<8x32xf32> -> vector<8x32xf32>
    %538 = arith.addf %499, %537 : vector<8x32xf32>
    %c0_445 = arith.constant 0 : index
    %c2_446 = arith.constant 2 : index
    %c0_447 = arith.constant 0 : index
    %c0_448 = arith.constant 0 : index
    %539 = vector.load %arg15[%c0_445, %c2_446, %c0_447, %c0_448] : memref<3x4x32x8xf32, #tpu.memory_space<vmem>>, vector<1x1x32x8xf32>
    %540 = vector.shape_cast %539 : vector<1x1x32x8xf32> to vector<32x8xf32>
    %cst_449 = arith.constant dense<0.000000e+00> : vector<8x8xf32>
    %541 = tpu.matmul %459, %540, %cst_449 {dimension_numbers = #tpu.dot_dimension_numbers<[1], [0], [0], [1], [0, 0, 1, 1], [], []>} : vector<8x32xf32>, vector<32x8xf32>, vector<8x8xf32> -> vector<8x8xf32>
    %c0_450 = arith.constant 0 : index
    %c2_451 = arith.constant 2 : index
    %c0_452 = arith.constant 0 : index
    %c0_453 = arith.constant 0 : index
    %542 = vector.load %arg16[%c0_450, %c2_451, %c0_452, %c0_453] : memref<3x4x1x8xf32, #tpu.memory_space<vmem>>, vector<1x1x1x8xf32>
    %543 = vector.shape_cast %542 : vector<1x1x1x8xf32> to vector<1x8xf32>
    %544 = vector.broadcast %543 : vector<1x8xf32> to vector<8x8xf32>
    %545 = arith.addf %541, %544 : vector<8x8xf32>
    %c1_454 = arith.constant 1 : index
    %c2_455 = arith.constant 2 : index
    %c0_456 = arith.constant 0 : index
    %c0_457 = arith.constant 0 : index
    %546 = vector.load %arg15[%c1_454, %c2_455, %c0_456, %c0_457] : memref<3x4x32x8xf32, #tpu.memory_space<vmem>>, vector<1x1x32x8xf32>
    %547 = vector.shape_cast %546 : vector<1x1x32x8xf32> to vector<32x8xf32>
    %cst_458 = arith.constant dense<0.000000e+00> : vector<8x8xf32>
    %548 = tpu.matmul %459, %547, %cst_458 {dimension_numbers = #tpu.dot_dimension_numbers<[1], [0], [0], [1], [0, 0, 1, 1], [], []>} : vector<8x32xf32>, vector<32x8xf32>, vector<8x8xf32> -> vector<8x8xf32>
    %c1_459 = arith.constant 1 : index
    %c2_460 = arith.constant 2 : index
    %c0_461 = arith.constant 0 : index
    %c0_462 = arith.constant 0 : index
    %549 = vector.load %arg16[%c1_459, %c2_460, %c0_461, %c0_462] : memref<3x4x1x8xf32, #tpu.memory_space<vmem>>, vector<1x1x1x8xf32>
    %550 = vector.shape_cast %549 : vector<1x1x1x8xf32> to vector<1x8xf32>
    %551 = vector.broadcast %550 : vector<1x8xf32> to vector<8x8xf32>
    %552 = arith.addf %548, %551 : vector<8x8xf32>
    %c2_463 = arith.constant 2 : index
    %c2_464 = arith.constant 2 : index
    %c0_465 = arith.constant 0 : index
    %c0_466 = arith.constant 0 : index
    %553 = vector.load %arg15[%c2_463, %c2_464, %c0_465, %c0_466] : memref<3x4x32x8xf32, #tpu.memory_space<vmem>>, vector<1x1x32x8xf32>
    %554 = vector.shape_cast %553 : vector<1x1x32x8xf32> to vector<32x8xf32>
    %cst_467 = arith.constant dense<0.000000e+00> : vector<8x8xf32>
    %555 = tpu.matmul %458, %554, %cst_467 {dimension_numbers = #tpu.dot_dimension_numbers<[1], [0], [0], [1], [0, 0, 1, 1], [], []>} : vector<8x32xf32>, vector<32x8xf32>, vector<8x8xf32> -> vector<8x8xf32>
    %c2_468 = arith.constant 2 : index
    %c2_469 = arith.constant 2 : index
    %c0_470 = arith.constant 0 : index
    %c0_471 = arith.constant 0 : index
    %556 = vector.load %arg16[%c2_468, %c2_469, %c0_470, %c0_471] : memref<3x4x1x8xf32, #tpu.memory_space<vmem>>, vector<1x1x1x8xf32>
    %557 = vector.shape_cast %556 : vector<1x1x1x8xf32> to vector<1x8xf32>
    %558 = vector.broadcast %557 : vector<1x8xf32> to vector<8x8xf32>
    %559 = arith.addf %555, %558 : vector<8x8xf32>
    %cst_472 = arith.constant dense<0.000000e+00> : vector<8x8xf32>
    %560 = tpu.matmul %545, %552, %cst_472 {dimension_numbers = #tpu.dot_dimension_numbers<[1], [1], [0], [0], [0, 0, 1, 0], [], []>} : vector<8x8xf32>, vector<8x8xf32>, vector<8x8xf32> -> vector<8x8xf32>
    %cst_473 = arith.constant 0.353553385 : f32
    %561 = vector.broadcast %cst_473 : f32 to vector<8x8xf32>
    %562 = arith.mulf %560, %561 : vector<8x8xf32>
    %cst_474 = arith.constant dense<0xFF800000> : vector<8xf32>
    %563 = vector.multi_reduction <maximumf>, %562, %cst_474 [1] : vector<8x8xf32> to vector<8xf32>
    %564 = vector.shape_cast %563 : vector<8xf32> to vector<8x1xf32>
    %565 = vector.broadcast %564 : vector<8x1xf32> to vector<8x8xf32>
    %566 = arith.subf %562, %565 : vector<8x8xf32>
    %567 = math.exp %566 : vector<8x8xf32>
    %cst_475 = arith.constant dense<0.000000e+00> : vector<8xf32>
    %568 = vector.multi_reduction <add>, %567, %cst_475 [1] : vector<8x8xf32> to vector<8xf32>
    %569 = vector.shape_cast %568 : vector<8xf32> to vector<8x1xf32>
    %570 = tpu.reciprocal %569 {approx = true} : vector<8x1xf32> -> vector<8x1xf32>
    %571 = vector.broadcast %570 : vector<8x1xf32> to vector<8x8xf32>
    %572 = arith.mulf %567, %571 : vector<8x8xf32>
    %cst_476 = arith.constant dense<0.000000e+00> : vector<8x8xf32>
    %573 = tpu.matmul %572, %559, %cst_476 {dimension_numbers = #tpu.dot_dimension_numbers<[1], [0], [0], [1], [0, 0, 1, 1], [], []>} : vector<8x8xf32>, vector<8x8xf32>, vector<8x8xf32> -> vector<8x8xf32>
    %c2_477 = arith.constant 2 : index
    %c2_478 = arith.constant 2 : index
    %c0_479 = arith.constant 0 : index
    %c0_480 = arith.constant 0 : index
    %574 = vector.load %arg7[%c2_477, %c2_478, %c0_479, %c0_480] : memref<3x4x8x32xf32, #tpu.memory_space<vmem>>, vector<1x1x8x32xf32>
    %575 = vector.shape_cast %574 : vector<1x1x8x32xf32> to vector<8x32xf32>
    %cst_481 = arith.constant dense<0.000000e+00> : vector<8x32xf32>
    %576 = tpu.matmul %573, %575, %cst_481 {dimension_numbers = #tpu.dot_dimension_numbers<[1], [0], [0], [1], [0, 0, 1, 1], [], []>} : vector<8x8xf32>, vector<8x32xf32>, vector<8x32xf32> -> vector<8x32xf32>
    %577 = arith.addf %538, %576 : vector<8x32xf32>
    %c0_482 = arith.constant 0 : index
    %c3_483 = arith.constant 3 : index
    %c0_484 = arith.constant 0 : index
    %c0_485 = arith.constant 0 : index
    %578 = vector.load %arg15[%c0_482, %c3_483, %c0_484, %c0_485] : memref<3x4x32x8xf32, #tpu.memory_space<vmem>>, vector<1x1x32x8xf32>
    %579 = vector.shape_cast %578 : vector<1x1x32x8xf32> to vector<32x8xf32>
    %cst_486 = arith.constant dense<0.000000e+00> : vector<8x8xf32>
    %580 = tpu.matmul %459, %579, %cst_486 {dimension_numbers = #tpu.dot_dimension_numbers<[1], [0], [0], [1], [0, 0, 1, 1], [], []>} : vector<8x32xf32>, vector<32x8xf32>, vector<8x8xf32> -> vector<8x8xf32>
    %c0_487 = arith.constant 0 : index
    %c3_488 = arith.constant 3 : index
    %c0_489 = arith.constant 0 : index
    %c0_490 = arith.constant 0 : index
    %581 = vector.load %arg16[%c0_487, %c3_488, %c0_489, %c0_490] : memref<3x4x1x8xf32, #tpu.memory_space<vmem>>, vector<1x1x1x8xf32>
    %582 = vector.shape_cast %581 : vector<1x1x1x8xf32> to vector<1x8xf32>
    %583 = vector.broadcast %582 : vector<1x8xf32> to vector<8x8xf32>
    %584 = arith.addf %580, %583 : vector<8x8xf32>
    %c1_491 = arith.constant 1 : index
    %c3_492 = arith.constant 3 : index
    %c0_493 = arith.constant 0 : index
    %c0_494 = arith.constant 0 : index
    %585 = vector.load %arg15[%c1_491, %c3_492, %c0_493, %c0_494] : memref<3x4x32x8xf32, #tpu.memory_space<vmem>>, vector<1x1x32x8xf32>
    %586 = vector.shape_cast %585 : vector<1x1x32x8xf32> to vector<32x8xf32>
    %cst_495 = arith.constant dense<0.000000e+00> : vector<8x8xf32>
    %587 = tpu.matmul %459, %586, %cst_495 {dimension_numbers = #tpu.dot_dimension_numbers<[1], [0], [0], [1], [0, 0, 1, 1], [], []>} : vector<8x32xf32>, vector<32x8xf32>, vector<8x8xf32> -> vector<8x8xf32>
    %c1_496 = arith.constant 1 : index
    %c3_497 = arith.constant 3 : index
    %c0_498 = arith.constant 0 : index
    %c0_499 = arith.constant 0 : index
    %588 = vector.load %arg16[%c1_496, %c3_497, %c0_498, %c0_499] : memref<3x4x1x8xf32, #tpu.memory_space<vmem>>, vector<1x1x1x8xf32>
    %589 = vector.shape_cast %588 : vector<1x1x1x8xf32> to vector<1x8xf32>
    %590 = vector.broadcast %589 : vector<1x8xf32> to vector<8x8xf32>
    %591 = arith.addf %587, %590 : vector<8x8xf32>
    %c2_500 = arith.constant 2 : index
    %c3_501 = arith.constant 3 : index
    %c0_502 = arith.constant 0 : index
    %c0_503 = arith.constant 0 : index
    %592 = vector.load %arg15[%c2_500, %c3_501, %c0_502, %c0_503] : memref<3x4x32x8xf32, #tpu.memory_space<vmem>>, vector<1x1x32x8xf32>
    %593 = vector.shape_cast %592 : vector<1x1x32x8xf32> to vector<32x8xf32>
    %cst_504 = arith.constant dense<0.000000e+00> : vector<8x8xf32>
    %594 = tpu.matmul %458, %593, %cst_504 {dimension_numbers = #tpu.dot_dimension_numbers<[1], [0], [0], [1], [0, 0, 1, 1], [], []>} : vector<8x32xf32>, vector<32x8xf32>, vector<8x8xf32> -> vector<8x8xf32>
    %c2_505 = arith.constant 2 : index
    %c3_506 = arith.constant 3 : index
    %c0_507 = arith.constant 0 : index
    %c0_508 = arith.constant 0 : index
    %595 = vector.load %arg16[%c2_505, %c3_506, %c0_507, %c0_508] : memref<3x4x1x8xf32, #tpu.memory_space<vmem>>, vector<1x1x1x8xf32>
    %596 = vector.shape_cast %595 : vector<1x1x1x8xf32> to vector<1x8xf32>
    %597 = vector.broadcast %596 : vector<1x8xf32> to vector<8x8xf32>
    %598 = arith.addf %594, %597 : vector<8x8xf32>
    %cst_509 = arith.constant dense<0.000000e+00> : vector<8x8xf32>
    %599 = tpu.matmul %584, %591, %cst_509 {dimension_numbers = #tpu.dot_dimension_numbers<[1], [1], [0], [0], [0, 0, 1, 0], [], []>} : vector<8x8xf32>, vector<8x8xf32>, vector<8x8xf32> -> vector<8x8xf32>
    %cst_510 = arith.constant 0.353553385 : f32
    %600 = vector.broadcast %cst_510 : f32 to vector<8x8xf32>
    %601 = arith.mulf %599, %600 : vector<8x8xf32>
    %cst_511 = arith.constant dense<0xFF800000> : vector<8xf32>
    %602 = vector.multi_reduction <maximumf>, %601, %cst_511 [1] : vector<8x8xf32> to vector<8xf32>
    %603 = vector.shape_cast %602 : vector<8xf32> to vector<8x1xf32>
    %604 = vector.broadcast %603 : vector<8x1xf32> to vector<8x8xf32>
    %605 = arith.subf %601, %604 : vector<8x8xf32>
    %606 = math.exp %605 : vector<8x8xf32>
    %cst_512 = arith.constant dense<0.000000e+00> : vector<8xf32>
    %607 = vector.multi_reduction <add>, %606, %cst_512 [1] : vector<8x8xf32> to vector<8xf32>
    %608 = vector.shape_cast %607 : vector<8xf32> to vector<8x1xf32>
    %609 = tpu.reciprocal %608 {approx = true} : vector<8x1xf32> -> vector<8x1xf32>
    %610 = vector.broadcast %609 : vector<8x1xf32> to vector<8x8xf32>
    %611 = arith.mulf %606, %610 : vector<8x8xf32>
    %cst_513 = arith.constant dense<0.000000e+00> : vector<8x8xf32>
    %612 = tpu.matmul %611, %598, %cst_513 {dimension_numbers = #tpu.dot_dimension_numbers<[1], [0], [0], [1], [0, 0, 1, 1], [], []>} : vector<8x8xf32>, vector<8x8xf32>, vector<8x8xf32> -> vector<8x8xf32>
    %c2_514 = arith.constant 2 : index
    %c3_515 = arith.constant 3 : index
    %c0_516 = arith.constant 0 : index
    %c0_517 = arith.constant 0 : index
    %613 = vector.load %arg7[%c2_514, %c3_515, %c0_516, %c0_517] : memref<3x4x8x32xf32, #tpu.memory_space<vmem>>, vector<1x1x8x32xf32>
    %614 = vector.shape_cast %613 : vector<1x1x8x32xf32> to vector<8x32xf32>
    %cst_518 = arith.constant dense<0.000000e+00> : vector<8x32xf32>
    %615 = tpu.matmul %612, %614, %cst_518 {dimension_numbers = #tpu.dot_dimension_numbers<[1], [0], [0], [1], [0, 0, 1, 1], [], []>} : vector<8x8xf32>, vector<8x32xf32>, vector<8x32xf32> -> vector<8x32xf32>
    %616 = arith.addf %577, %615 : vector<8x32xf32>
    %c2_519 = arith.constant 2 : index
    %c0_520 = arith.constant 0 : index
    %c0_521 = arith.constant 0 : index
    %617 = vector.load %arg8[%c2_519, %c0_520, %c0_521] : memref<3x1x32xf32, #tpu.memory_space<vmem>>, vector<1x1x32xf32>
    %618 = vector.shape_cast %617 : vector<1x1x32xf32> to vector<1x32xf32>
    %619 = vector.broadcast %618 : vector<1x32xf32> to vector<8x32xf32>
    %620 = arith.addf %616, %619 : vector<8x32xf32>
    %621 = arith.addf %458, %620 : vector<8x32xf32>
    %c4_522 = arith.constant 4 : index
    %c0_523 = arith.constant 0 : index
    %c0_524 = arith.constant 0 : index
    %622 = vector.load %arg13[%c4_522, %c0_523, %c0_524] : memref<5x1x32xf32, #tpu.memory_space<vmem>>, vector<1x1x32xf32>
    %623 = vector.shape_cast %622 : vector<1x1x32xf32> to vector<1x32xf32>
    %c4_525 = arith.constant 4 : index
    %c0_526 = arith.constant 0 : index
    %c0_527 = arith.constant 0 : index
    %624 = vector.load %arg14[%c4_525, %c0_526, %c0_527] : memref<5x1x32xf32, #tpu.memory_space<vmem>>, vector<1x1x32xf32>
    %625 = vector.shape_cast %624 : vector<1x1x32xf32> to vector<1x32xf32>
    %cst_528 = arith.constant dense<0.000000e+00> : vector<8xf32>
    %626 = vector.multi_reduction <add>, %621, %cst_528 [1] : vector<8x32xf32> to vector<8xf32>
    %627 = vector.shape_cast %626 : vector<8xf32> to vector<8x1xf32>
    %cst_529 = arith.constant 3.200000e+01 : f32
    %628 = vector.broadcast %cst_529 : f32 to vector<8x1xf32>
    %629 = arith.divf %627, %628 : vector<8x1xf32>
    %630 = vector.broadcast %629 : vector<8x1xf32> to vector<8x32xf32>
    %631 = arith.subf %621, %630 : vector<8x32xf32>
    %632 = arith.mulf %631, %631 : vector<8x32xf32>
    %cst_530 = arith.constant dense<0.000000e+00> : vector<8xf32>
    %633 = vector.multi_reduction <add>, %632, %cst_530 [1] : vector<8x32xf32> to vector<8xf32>
    %634 = vector.shape_cast %633 : vector<8xf32> to vector<8x1xf32>
    %cst_531 = arith.constant 3.200000e+01 : f32
    %635 = vector.broadcast %cst_531 : f32 to vector<8x1xf32>
    %636 = arith.divf %634, %635 : vector<8x1xf32>
    %cst_532 = arith.constant 9.99999974E-6 : f32
    %637 = vector.broadcast %cst_532 : f32 to vector<8x1xf32>
    %638 = arith.addf %636, %637 : vector<8x1xf32>
    %639 = math.rsqrt %638 : vector<8x1xf32>
    %640 = vector.broadcast %639 : vector<8x1xf32> to vector<8x32xf32>
    %641 = arith.mulf %631, %640 : vector<8x32xf32>
    %642 = vector.broadcast %623 : vector<1x32xf32> to vector<8x32xf32>
    %643 = arith.mulf %641, %642 : vector<8x32xf32>
    %644 = vector.broadcast %625 : vector<1x32xf32> to vector<8x32xf32>
    %645 = arith.addf %643, %644 : vector<8x32xf32>
    %c0_533 = arith.constant 0 : index
    %c0_534 = arith.constant 0 : index
    %c0_535 = arith.constant 0 : index
    %646 = vector.load %arg17[%c0_533, %c0_534, %c0_535] : memref<1x16x32xf32, #tpu.memory_space<vmem>>, vector<1x16x32xf32>
    %647 = vector.shape_cast %646 : vector<1x16x32xf32> to vector<16x32xf32>
    %648 = vector.shape_cast %426 : vector<16x32xf32> to vector<1x16x32xf32>
    tpu.vector_store %arg17[%c0_533, %c0_534, %c0_535], %648 {strides = array<i32>} : memref<1x16x32xf32, #tpu.memory_space<vmem>>, vector<1x16x32xf32>,
    %c0_536 = arith.constant 0 : index
    %c0_537 = arith.constant 0 : index
    %c0_538 = arith.constant 0 : index
    %649 = vector.load %arg18[%c0_536, %c0_537, %c0_538] : memref<1x8x32xf32, #tpu.memory_space<vmem>>, vector<1x8x32xf32>
    %650 = vector.shape_cast %649 : vector<1x8x32xf32> to vector<8x32xf32>
    %651 = vector.shape_cast %645 : vector<8x32xf32> to vector<1x8x32xf32>
    tpu.vector_store %arg18[%c0_536, %c0_537, %c0_538], %651 {strides = array<i32>} : memref<1x8x32xf32, #tpu.memory_space<vmem>>, vector<1x8x32xf32>,
    return
  }
  func.func @transform_0(%arg0: i32) -> (i32, i32, i32) {
    %c0_i32 = arith.constant 0 : i32
    %c0_i32_0 = arith.constant 0 : i32
    %c0_i32_1 = arith.constant 0 : i32
    return %arg0, %c0_i32, %c0_i32_0 : i32, i32, i32
  }
  func.func @transform_1(%arg0: i32) -> (i32, i32, i32) {
    %c0_i32 = arith.constant 0 : i32
    %c0_i32_0 = arith.constant 0 : i32
    %c0_i32_1 = arith.constant 0 : i32
    return %arg0, %c0_i32, %c0_i32_0 : i32, i32, i32
  }
  func.func @transform_2(%arg0: i32) -> (i32, i32, i32) {
    %c0_i32 = arith.constant 0 : i32
    %c0_i32_0 = arith.constant 0 : i32
    %c0_i32_1 = arith.constant 0 : i32
    return %arg0, %c0_i32, %c0_i32_0 : i32, i32, i32
  }
  func.func @transform_3(%arg0: i32) -> (i32, i32, i32) {
    %c0_i32 = arith.constant 0 : i32
    %c0_i32_0 = arith.constant 0 : i32
    %c0_i32_1 = arith.constant 0 : i32
    return %arg0, %c0_i32, %c0_i32_0 : i32, i32, i32
  }
  func.func @transform_4(%arg0: i32) -> (i32, i32, i32, i32) {
    %c0_i32 = arith.constant 0 : i32
    %c0_i32_0 = arith.constant 0 : i32
    %c0_i32_1 = arith.constant 0 : i32
    %c0_i32_2 = arith.constant 0 : i32
    %c0_i32_3 = arith.constant 0 : i32
    return %c0_i32, %c0_i32_0, %c0_i32_1, %c0_i32_2 : i32, i32, i32, i32
  }
  func.func @transform_5(%arg0: i32) -> (i32, i32, i32, i32) {
    %c0_i32 = arith.constant 0 : i32
    %c0_i32_0 = arith.constant 0 : i32
    %c0_i32_1 = arith.constant 0 : i32
    %c0_i32_2 = arith.constant 0 : i32
    %c0_i32_3 = arith.constant 0 : i32
    return %c0_i32, %c0_i32_0, %c0_i32_1, %c0_i32_2 : i32, i32, i32, i32
  }
  func.func @transform_6(%arg0: i32) -> (i32, i32, i32, i32) {
    %c0_i32 = arith.constant 0 : i32
    %c0_i32_0 = arith.constant 0 : i32
    %c0_i32_1 = arith.constant 0 : i32
    %c0_i32_2 = arith.constant 0 : i32
    %c0_i32_3 = arith.constant 0 : i32
    return %c0_i32, %c0_i32_0, %c0_i32_1, %c0_i32_2 : i32, i32, i32, i32
  }
  func.func @transform_7(%arg0: i32) -> (i32, i32, i32) {
    %c0_i32 = arith.constant 0 : i32
    %c0_i32_0 = arith.constant 0 : i32
    %c0_i32_1 = arith.constant 0 : i32
    %c0_i32_2 = arith.constant 0 : i32
    return %c0_i32, %c0_i32_0, %c0_i32_1 : i32, i32, i32
  }
  func.func @transform_8(%arg0: i32) -> (i32, i32, i32) {
    %c0_i32 = arith.constant 0 : i32
    %c0_i32_0 = arith.constant 0 : i32
    %c0_i32_1 = arith.constant 0 : i32
    %c0_i32_2 = arith.constant 0 : i32
    return %c0_i32, %c0_i32_0, %c0_i32_1 : i32, i32, i32
  }
  func.func @transform_9(%arg0: i32) -> (i32, i32, i32) {
    %c0_i32 = arith.constant 0 : i32
    %c0_i32_0 = arith.constant 0 : i32
    %c0_i32_1 = arith.constant 0 : i32
    %c0_i32_2 = arith.constant 0 : i32
    return %c0_i32, %c0_i32_0, %c0_i32_1 : i32, i32, i32
  }
  func.func @transform_10(%arg0: i32) -> (i32, i32, i32) {
    %c0_i32 = arith.constant 0 : i32
    %c0_i32_0 = arith.constant 0 : i32
    %c0_i32_1 = arith.constant 0 : i32
    %c0_i32_2 = arith.constant 0 : i32
    return %c0_i32, %c0_i32_0, %c0_i32_1 : i32, i32, i32
  }
  func.func @transform_11(%arg0: i32) -> (i32, i32, i32) {
    %c0_i32 = arith.constant 0 : i32
    %c0_i32_0 = arith.constant 0 : i32
    %c0_i32_1 = arith.constant 0 : i32
    %c0_i32_2 = arith.constant 0 : i32
    return %c0_i32, %c0_i32_0, %c0_i32_1 : i32, i32, i32
  }
  func.func @transform_12(%arg0: i32) -> (i32, i32, i32) {
    %c0_i32 = arith.constant 0 : i32
    %c0_i32_0 = arith.constant 0 : i32
    %c0_i32_1 = arith.constant 0 : i32
    %c0_i32_2 = arith.constant 0 : i32
    return %c0_i32, %c0_i32_0, %c0_i32_1 : i32, i32, i32
  }
  func.func @transform_13(%arg0: i32) -> (i32, i32, i32) {
    %c0_i32 = arith.constant 0 : i32
    %c0_i32_0 = arith.constant 0 : i32
    %c0_i32_1 = arith.constant 0 : i32
    %c0_i32_2 = arith.constant 0 : i32
    return %c0_i32, %c0_i32_0, %c0_i32_1 : i32, i32, i32
  }
  func.func @transform_14(%arg0: i32) -> (i32, i32, i32, i32) {
    %c0_i32 = arith.constant 0 : i32
    %c0_i32_0 = arith.constant 0 : i32
    %c0_i32_1 = arith.constant 0 : i32
    %c0_i32_2 = arith.constant 0 : i32
    %c0_i32_3 = arith.constant 0 : i32
    return %c0_i32, %c0_i32_0, %c0_i32_1, %c0_i32_2 : i32, i32, i32, i32
  }
  func.func @transform_15(%arg0: i32) -> (i32, i32, i32, i32) {
    %c0_i32 = arith.constant 0 : i32
    %c0_i32_0 = arith.constant 0 : i32
    %c0_i32_1 = arith.constant 0 : i32
    %c0_i32_2 = arith.constant 0 : i32
    %c0_i32_3 = arith.constant 0 : i32
    return %c0_i32, %c0_i32_0, %c0_i32_1, %c0_i32_2 : i32, i32, i32, i32
  }
  func.func @transform_16(%arg0: i32) -> (i32, i32, i32) {
    %c0_i32 = arith.constant 0 : i32
    %c0_i32_0 = arith.constant 0 : i32
    %c0_i32_1 = arith.constant 0 : i32
    return %arg0, %c0_i32, %c0_i32_0 : i32, i32, i32
  }
  func.func @transform_17(%arg0: i32) -> (i32, i32, i32) {
    %c0_i32 = arith.constant 0 : i32
    %c0_i32_0 = arith.constant 0 : i32
    %c0_i32_1 = arith.constant 0 : i32
    return %arg0, %c0_i32, %c0_i32_0 : i32, i32, i32
  }
}

</mosaic_0001>

<llo_original>
// kernel: self_cross_attention.2
$region0: #{self_cross_attention.2}
  #allocation0 [shape = 'u32[]', space=smem, size = 0x4, offset = 0x4, fixed_abs, tag = 'smem constant byte address 0x4 - core index']
  #allocation1 [shape = 'u32[144,128]{1,0:T(1,128)}', space=vmem, size = 0x12000, scoped, tag = 'internal scratch']
  %s0 = inlined_call_operand.vmem [shape: f32[2,16,32], index: 0, kind: input, shape index: {}]
  %s1 = inlined_call_operand.vmem [shape: f32[2,8,32], index: 1, kind: input, shape index: {}]
  %s2 = inlined_call_operand.vmem [shape: f32[2,8,32], index: 2, kind: input, shape index: {}]
  %s3 = inlined_call_operand.vmem [shape: f32[2,1,24], index: 3, kind: input, shape index: {}]
  %s4 = inlined_call_operand.vmem [shape: f32[6,4,32,8], index: 4, kind: input, shape index: {}]
  %s5 = inlined_call_operand.vmem [shape: f32[6,4,1,8], index: 5, kind: input, shape index: {}]
  %s6 = inlined_call_operand.vmem [shape: f32[3,4,8,32], index: 6, kind: input, shape index: {}]
  %s7 = inlined_call_operand.vmem [shape: f32[3,1,32], index: 7, kind: input, shape index: {}]
  %s8 = inlined_call_operand.vmem [shape: f32[2,32,64], index: 8, kind: input, shape index: {}]
  %s9 = inlined_call_operand.vmem [shape: f32[2,1,64], index: 9, kind: input, shape index: {}]
  %s10 = inlined_call_operand.vmem [shape: f32[2,64,32], index: 10, kind: input, shape index: {}]
  %s11 = inlined_call_operand.vmem [shape: f32[2,1,32], index: 11, kind: input, shape index: {}]
  %s12 = inlined_call_operand.vmem [shape: f32[5,1,32], index: 12, kind: input, shape index: {}]
  %s13 = inlined_call_operand.vmem [shape: f32[5,1,32], index: 13, kind: input, shape index: {}]
  %s14 = inlined_call_operand.vmem [shape: f32[3,4,32,8], index: 14, kind: input, shape index: {}]
  %s15 = inlined_call_operand.vmem [shape: f32[3,4,1,8], index: 15, kind: input, shape index: {}]
  %s16 = inlined_call_operand.vmem [shape: f32[2,16,32], index: 16, kind: output, shape index: {0}]
  %s17 = inlined_call_operand.vmem [shape: f32[2,8,32], index: 17, kind: output, shape index: {1}]
  %18 = xla_tuple %s16, %s17
  %s19 = sld [smem:[#allocation0]]
  $region105: #{self_cross_attention.2} parent=0
    _
  %s21 = ssub.s32 1, %s19
  %s22 = scalar_select 0, %s21, %s19
  loop: start=0, step=1, limit=4
  $region2: #{self_cross_attention.2} parent=0 // loop_pre_header
    _
  $region3: #{self_cross_attention.2} parent=0 // loop_header
    %s24 = sphi 0, %s28
    %p25 = scmp.ge.s32.totalorder %s24, 4
    %s34 = sphi 0, %s36
    %s37 = sphi 0, %s34
    %s38 = sphi 0, %s37
    %s54 = sphi 0, %s38
    %s60 = sphi 0, %s62
    %s63 = sphi 0, %s60
    %s64 = sphi 0, %s63
    %s80 = sphi 0, %s64
    %s86 = sphi 0, %s88
    %s89 = sphi 0, %s86
    %s90 = sphi 0, %s89
    %s106 = sphi 0, %s90
    %s112 = sphi 0, %s114
    %s115 = sphi 0, %s112
    %s116 = sphi 0, %s115
    %s132 = sphi 0, %s116
    %s136 = sphi 0, %s136
    %s138 = sphi 0, %s136
    %s139 = sphi 0, %s138
    %s153 = sphi 0, %s139
    %s157 = sphi 0, %s157
    %s159 = sphi 0, %s157
    %s160 = sphi 0, %s159
    %s174 = sphi 0, %s160
    %s178 = sphi 0, %s178
    %s180 = sphi 0, %s178
    %s181 = sphi 0, %s180
    %s195 = sphi 0, %s181
    %s199 = sphi 0, %s199
    %s201 = sphi 0, %s199
    %s202 = sphi 0, %s201
    %s216 = sphi 0, %s202
    %s220 = sphi 0, %s220
    %s222 = sphi 0, %s220
    %s223 = sphi 0, %s222
    %s237 = sphi 0, %s223
    %s241 = sphi 0, %s241
    %s243 = sphi 0, %s241
    %s244 = sphi 0, %s243
    %s258 = sphi 0, %s244
    %s262 = sphi 0, %s262
    %s264 = sphi 0, %s262
    %s265 = sphi 0, %s264
    %s279 = sphi 0, %s265
    %s283 = sphi 0, %s283
    %s285 = sphi 0, %s283
    %s286 = sphi 0, %s285
    %s300 = sphi 0, %s286
    %s304 = sphi 0, %s304
    %s306 = sphi 0, %s304
    %s307 = sphi 0, %s306
    %s321 = sphi 0, %s307
    %s325 = sphi 0, %s325
    %s327 = sphi 0, %s325
    %s328 = sphi 0, %s327
    %s342 = sphi 0, %s328
    %s346 = sphi 0, %s346
    %s348 = sphi 0, %s346
    %s349 = sphi 0, %s348
    %s363 = sphi 0, %s349
    %s367 = sphi 0, %s367
    %s369 = sphi 0, %s367
    %s370 = sphi 0, %s369
    %s384 = sphi 0, %s370
    %s390 = sphi 0, %s392
    %s393 = sphi 0, %s390
    %s394 = sphi 0, %s393
    %s410 = sphi 0, %s394
    %s416 = sphi 0, %s418
    %s419 = sphi 0, %s416
    %s420 = sphi 0, %s419
    %s436 = sphi 0, %s420
  $region4: #{self_cross_attention.2} parent=0 // loop_header_branch
    %27 = sbr.rel (%p25) target = $region8
  $region5: #{self_cross_attention.2} parent=0 // loop_body
    %s29 = ssub.s32 %s24, 1
    %s30 = ssub.s32 %s24, 2
    %s31 = sadd.s32 %s24, 1
    %s32 = ssub.s32 %s24, %s31
    %p33 = scmp.eq.s32.totalorder %s32, 0
    %s35 = sadd.s32 %s34, 1
    %s36 = scalar_select %p33, %s34, %s35
    %p39 = pneg %p33
    %p40 = scmp.eq.s32.totalorder %s24, 1
    %p41 = por %p39, %p40
    %p42 = scmp.ne.s32.totalorder %s34, %s37
    %p43 = scmp.eq.s32.totalorder %s24, 0
    %p44 = por %p42, %p43
    %p45 = scmp.ne.s32.totalorder %s34, %s37
    %p46 = scmp.eq.s32.totalorder %s29, 1
    %p47 = por %p45, %p46
    %p48 = scmp.ne.s32.totalorder %s37, %s38
    %p49 = scmp.eq.s32.totalorder %s29, 0
    %p50 = por %p48, %p49
    %p51 = scmp.ne.s32.totalorder %s37, %s38
    %p52 = scmp.eq.s32.totalorder %s30, 1
    %p53 = por %p51, %p52
    %p55 = scmp.ne.s32.totalorder %s38, %s54
    %p56 = scmp.eq.s32.totalorder %s30, 0
    %p57 = por %p55, %p56
    %s58 = ssub.s32 %s24, %s31
    %p59 = scmp.eq.s32.totalorder %s58, 0
    %s61 = sadd.s32 %s60, 1
    %s62 = scalar_select %p59, %s60, %s61
    %p65 = pneg %p59
    %p66 = scmp.eq.s32.totalorder %s24, 1
    %p67 = por %p65, %p66
    %p68 = scmp.ne.s32.totalorder %s60, %s63
    %p69 = scmp.eq.s32.totalorder %s24, 0
    %p70 = por %p68, %p69
    %p71 = scmp.ne.s32.totalorder %s60, %s63
    %p72 = scmp.eq.s32.totalorder %s29, 1
    %p73 = por %p71, %p72
    %p74 = scmp.ne.s32.totalorder %s63, %s64
    %p75 = scmp.eq.s32.totalorder %s29, 0
    %p76 = por %p74, %p75
    %p77 = scmp.ne.s32.totalorder %s63, %s64
    %p78 = scmp.eq.s32.totalorder %s30, 1
    %p79 = por %p77, %p78
    %p81 = scmp.ne.s32.totalorder %s64, %s80
    %p82 = scmp.eq.s32.totalorder %s30, 0
    %p83 = por %p81, %p82
    %s84 = ssub.s32 %s24, %s31
    %p85 = scmp.eq.s32.totalorder %s84, 0
    %s87 = sadd.s32 %s86, 1
    %s88 = scalar_select %p85, %s86, %s87
    %p91 = pneg %p85
    %p92 = scmp.eq.s32.totalorder %s24, 1
    %p93 = por %p91, %p92
    %p94 = scmp.ne.s32.totalorder %s86, %s89
    %p95 = scmp.eq.s32.totalorder %s24, 0
    %p96 = por %p94, %p95
    %p97 = scmp.ne.s32.totalorder %s86, %s89
    %p98 = scmp.eq.s32.totalorder %s29, 1
    %p99 = por %p97, %p98
    %p100 = scmp.ne.s32.totalorder %s89, %s90
    %p101 = scmp.eq.s32.totalorder %s29, 0
    %p102 = por %p100, %p101
    %p103 = scmp.ne.s32.totalorder %s89, %s90
    %p104 = scmp.eq.s32.totalorder %s30, 1
    %p105 = por %p103, %p104
    %p107 = scmp.ne.s32.totalorder %s90, %s106
    %p108 = scmp.eq.s32.totalorder %s30, 0
    %p109 = por %p107, %p108
    %s110 = ssub.s32 %s24, %s31
    %p111 = scmp.eq.s32.totalorder %s110, 0
    %s113 = sadd.s32 %s112, 1
    %s114 = scalar_select %p111, %s112, %s113
    %p117 = pneg %p111
    %p118 = scmp.eq.s32.totalorder %s24, 1
    %p119 = por %p117, %p118
    %p120 = scmp.ne.s32.totalorder %s112, %s115
    %p121 = scmp.eq.s32.totalorder %s24, 0
    %p122 = por %p120, %p121
    %p123 = scmp.ne.s32.totalorder %s112, %s115
    %p124 = scmp.eq.s32.totalorder %s29, 1
    %p125 = por %p123, %p124
    %p126 = scmp.ne.s32.totalorder %s115, %s116
    %p127 = scmp.eq.s32.totalorder %s29, 0
    %p128 = por %p126, %p127
    %p129 = scmp.ne.s32.totalorder %s115, %s116
    %p130 = scmp.eq.s32.totalorder %s30, 1
    %p131 = por %p129, %p130
    %p133 = scmp.ne.s32.totalorder %s116, %s132
    %p134 = scmp.eq.s32.totalorder %s30, 0
    %p135 = por %p133, %p134
    %s137 = sadd.s32 %s136, 1
    %p140 = scmp.eq.s32.totalorder %s24, 1
    %p141 = scmp.ne.s32.totalorder %s136, %s138
    %p142 = scmp.eq.s32.totalorder %s24, 0
    %p143 = por %p141, %p142
    %p144 = scmp.ne.s32.totalorder %s136, %s138
    %p145 = scmp.eq.s32.totalorder %s29, 1
    %p146 = por %p144, %p145
    %p147 = scmp.ne.s32.totalorder %s138, %s139
    %p148 = scmp.eq.s32.totalorder %s29, 0
    %p149 = por %p147, %p148
    %p150 = scmp.ne.s32.totalorder %s138, %s139
    %p151 = scmp.eq.s32.totalorder %s30, 1
    %p152 = por %p150, %p151
    %p154 = scmp.ne.s32.totalorder %s139, %s153
    %p155 = scmp.eq.s32.totalorder %s30, 0
    %p156 = por %p154, %p155
    %s158 = sadd.s32 %s157, 1
    %p161 = scmp.eq.s32.totalorder %s24, 1
    %p162 = scmp.ne.s32.totalorder %s157, %s159
    %p163 = scmp.eq.s32.totalorder %s24, 0
    %p164 = por %p162, %p163
    %p165 = scmp.ne.s32.totalorder %s157, %s159
    %p166 = scmp.eq.s32.totalorder %s29, 1
    %p167 = por %p165, %p166
    %p168 = scmp.ne.s32.totalorder %s159, %s160
    %p169 = scmp.eq.s32.totalorder %s29, 0
    %p170 = por %p168, %p169
    %p171 = scmp.ne.s32.totalorder %s159, %s160
    %p172 = scmp.eq.s32.totalorder %s30, 1
    %p173 = por %p171, %p172
    %p175 = scmp.ne.s32.totalorder %s160, %s174
    %p176 = scmp.eq.s32.totalorder %s30, 0
    %p177 = por %p175, %p176
    %s179 = sadd.s32 %s178, 1
    %p182 = scmp.eq.s32.totalorder %s24, 1
    %p183 = scmp.ne.s32.totalorder %s178, %s180
    %p184 = scmp.eq.s32.totalorder %s24, 0
    %p185 = por %p183, %p184
    %p186 = scmp.ne.s32.totalorder %s178, %s180
    %p187 = scmp.eq.s32.totalorder %s29, 1
    %p188 = por %p186, %p187
    %p189 = scmp.ne.s32.totalorder %s180, %s181
    %p190 = scmp.eq.s32.totalorder %s29, 0
    %p191 = por %p189, %p190
    %p192 = scmp.ne.s32.totalorder %s180, %s181
    %p193 = scmp.eq.s32.totalorder %s30, 1
    %p194 = por %p192, %p193
    %p196 = scmp.ne.s32.totalorder %s181, %s195
    %p197 = scmp.eq.s32.totalorder %s30, 0
    %p198 = por %p196, %p197
    %s200 = sadd.s32 %s199, 1
    %p203 = scmp.eq.s32.totalorder %s24, 1
    %p204 = scmp.ne.s32.totalorder %s199, %s201
    %p205 = scmp.eq.s32.totalorder %s24, 0
    %p206 = por %p204, %p205
    %p207 = scmp.ne.s32.totalorder %s199, %s201
    %p208 = scmp.eq.s32.totalorder %s29, 1
    %p209 = por %p207, %p208
    %p210 = scmp.ne.s32.totalorder %s201, %s202
    %p211 = scmp.eq.s32.totalorder %s29, 0
    %p212 = por %p210, %p211
    %p213 = scmp.ne.s32.totalorder %s201, %s202
    %p214 = scmp.eq.s32.totalorder %s30, 1
    %p215 = por %p213, %p214
    %p217 = scmp.ne.s32.totalorder %s202, %s216
    %p218 = scmp.eq.s32.totalorder %s30, 0
    %p219 = por %p217, %p218
    %s221 = sadd.s32 %s220, 1
    %p224 = scmp.eq.s32.totalorder %s24, 1
    %p225 = scmp.ne.s32.totalorder %s220, %s222
    %p226 = scmp.eq.s32.totalorder %s24, 0
    %p227 = por %p225, %p226
    %p228 = scmp.ne.s32.totalorder %s220, %s222
    %p229 = scmp.eq.s32.totalorder %s29, 1
    %p230 = por %p228, %p229
    %p231 = scmp.ne.s32.totalorder %s222, %s223
    %p232 = scmp.eq.s32.totalorder %s29, 0
    %p233 = por %p231, %p232
    %p234 = scmp.ne.s32.totalorder %s222, %s223
    %p235 = scmp.eq.s32.totalorder %s30, 1
    %p236 = por %p234, %p235
    %p238 = scmp.ne.s32.totalorder %s223, %s237
    %p239 = scmp.eq.s32.totalorder %s30, 0
    %p240 = por %p238, %p239
    %s242 = sadd.s32 %s241, 1
    %p245 = scmp.eq.s32.totalorder %s24, 1
    %p246 = scmp.ne.s32.totalorder %s241, %s243
    %p247 = scmp.eq.s32.totalorder %s24, 0
    %p248 = por %p246, %p247
    %p249 = scmp.ne.s32.totalorder %s241, %s243
    %p250 = scmp.eq.s32.totalorder %s29, 1
    %p251 = por %p249, %p250
    %p252 = scmp.ne.s32.totalorder %s243, %s244
    %p253 = scmp.eq.s32.totalorder %s29, 0
    %p254 = por %p252, %p253
    %p255 = scmp.ne.s32.totalorder %s243, %s244
    %p256 = scmp.eq.s32.totalorder %s30, 1
    %p257 = por %p255, %p256
    %p259 = scmp.ne.s32.totalorder %s244, %s258
    %p260 = scmp.eq.s32.totalorder %s30, 0
    %p261 = por %p259, %p260
    %s263 = sadd.s32 %s262, 1
    %p266 = scmp.eq.s32.totalorder %s24, 1
    %p267 = scmp.ne.s32.totalorder %s262, %s264
    %p268 = scmp.eq.s32.totalorder %s24, 0
    %p269 = por %p267, %p268
    %p270 = scmp.ne.s32.totalorder %s262, %s264
    %p271 = scmp.eq.s32.totalorder %s29, 1
    %p272 = por %p270, %p271
    %p273 = scmp.ne.s32.totalorder %s264, %s265
    %p274 = scmp.eq.s32.totalorder %s29, 0
    %p275 = por %p273, %p274
    %p276 = scmp.ne.s32.totalorder %s264, %s265
    %p277 = scmp.eq.s32.totalorder %s30, 1
    %p278 = por %p276, %p277
    %p280 = scmp.ne.s32.totalorder %s265, %s279
    %p281 = scmp.eq.s32.totalorder %s30, 0
    %p282 = por %p280, %p281
    %s284 = sadd.s32 %s283, 1
    %p287 = scmp.eq.s32.totalorder %s24, 1
    %p288 = scmp.ne.s32.totalorder %s283, %s285
    %p289 = scmp.eq.s32.totalorder %s24, 0
    %p290 = por %p288, %p289
    %p291 = scmp.ne.s32.totalorder %s283, %s285
    %p292 = scmp.eq.s32.totalorder %s29, 1
    %p293 = por %p291, %p292
    %p294 = scmp.ne.s32.totalorder %s285, %s286
    %p295 = scmp.eq.s32.totalorder %s29, 0
    %p296 = por %p294, %p295
    %p297 = scmp.ne.s32.totalorder %s285, %s286
    %p298 = scmp.eq.s32.totalorder %s30, 1
    %p299 = por %p297, %p298
    %p301 = scmp.ne.s32.totalorder %s286, %s300
    %p302 = scmp.eq.s32.totalorder %s30, 0
    %p303 = por %p301, %p302
    %s305 = sadd.s32 %s304, 1
    %p308 = scmp.eq.s32.totalorder %s24, 1
    %p309 = scmp.ne.s32.totalorder %s304, %s306
    %p310 = scmp.eq.s32.totalorder %s24, 0
    %p311 = por %p309, %p310
    %p312 = scmp.ne.s32.totalorder %s304, %s306
    %p313 = scmp.eq.s32.totalorder %s29, 1
    %p314 = por %p312, %p313
    %p315 = scmp.ne.s32.totalorder %s306, %s307
    %p316 = scmp.eq.s32.totalorder %s29, 0
    %p317 = por %p315, %p316
    %p318 = scmp.ne.s32.totalorder %s306, %s307
    %p319 = scmp.eq.s32.totalorder %s30, 1
    %p320 = por %p318, %p319
    %p322 = scmp.ne.s32.totalorder %s307, %s321
    %p323 = scmp.eq.s32.totalorder %s30, 0
    %p324 = por %p322, %p323
    %s326 = sadd.s32 %s325, 1
    %p329 = scmp.eq.s32.totalorder %s24, 1
    %p330 = scmp.ne.s32.totalorder %s325, %s327
    %p331 = scmp.eq.s32.totalorder %s24, 0
    %p332 = por %p330, %p331
    %p333 = scmp.ne.s32.totalorder %s325, %s327
    %p334 = scmp.eq.s32.totalorder %s29, 1
    %p335 = por %p333, %p334
    %p336 = scmp.ne.s32.totalorder %s327, %s328
    %p337 = scmp.eq.s32.totalorder %s29, 0
    %p338 = por %p336, %p337
    %p339 = scmp.ne.s32.totalorder %s327, %s328
    %p340 = scmp.eq.s32.totalorder %s30, 1
    %p341 = por %p339, %p340
    %p343 = scmp.ne.s32.totalorder %s328, %s342
    %p344 = scmp.eq.s32.totalorder %s30, 0
    %p345 = por %p343, %p344
    %s347 = sadd.s32 %s346, 1
    %p350 = scmp.eq.s32.totalorder %s24, 1
    %p351 = scmp.ne.s32.totalorder %s346, %s348
    %p352 = scmp.eq.s32.totalorder %s24, 0
    %p353 = por %p351, %p352
    %p354 = scmp.ne.s32.totalorder %s346, %s348
    %p355 = scmp.eq.s32.totalorder %s29, 1
    %p356 = por %p354, %p355
    %p357 = scmp.ne.s32.totalorder %s348, %s349
    %p358 = scmp.eq.s32.totalorder %s29, 0
    %p359 = por %p357, %p358
    %p360 = scmp.ne.s32.totalorder %s348, %s349
    %p361 = scmp.eq.s32.totalorder %s30, 1
    %p362 = por %p360, %p361
    %p364 = scmp.ne.s32.totalorder %s349, %s363
    %p365 = scmp.eq.s32.totalorder %s30, 0
    %p366 = por %p364, %p365
    %s368 = sadd.s32 %s367, 1
    %p371 = scmp.eq.s32.totalorder %s24, 1
    %p372 = scmp.ne.s32.totalorder %s367, %s369
    %p373 = scmp.eq.s32.totalorder %s24, 0
    %p374 = por %p372, %p373
    %p375 = scmp.ne.s32.totalorder %s367, %s369
    %p376 = scmp.eq.s32.totalorder %s29, 1
    %p377 = por %p375, %p376
    %p378 = scmp.ne.s32.totalorder %s369, %s370
    %p379 = scmp.eq.s32.totalorder %s29, 0
    %p380 = por %p378, %p379
    %p381 = scmp.ne.s32.totalorder %s369, %s370
    %p382 = scmp.eq.s32.totalorder %s30, 1
    %p383 = por %p381, %p382
    %p385 = scmp.ne.s32.totalorder %s370, %s384
    %p386 = scmp.eq.s32.totalorder %s30, 0
    %p387 = por %p385, %p386
    %s388 = ssub.s32 %s24, %s31
    %p389 = scmp.eq.s32.totalorder %s388, 0
    %s391 = sadd.s32 %s390, 1
    %s392 = scalar_select %p389, %s390, %s391
    %p395 = pneg %p389
    %p396 = scmp.eq.s32.totalorder %s24, 1
    %p397 = por %p395, %p396
    %p398 = scmp.ne.s32.totalorder %s390, %s393
    %p399 = scmp.eq.s32.totalorder %s24, 0
    %p400 = por %p398, %p399
    %p401 = scmp.ne.s32.totalorder %s390, %s393
    %p402 = scmp.eq.s32.totalorder %s29, 1
    %p403 = por %p401, %p402
    %p404 = scmp.ne.s32.totalorder %s393, %s394
    %p405 = scmp.eq.s32.totalorder %s29, 0
    %p406 = por %p404, %p405
    %p407 = scmp.ne.s32.totalorder %s393, %s394
    %p408 = scmp.eq.s32.totalorder %s30, 1
    %p409 = por %p407, %p408
    %p411 = scmp.ne.s32.totalorder %s394, %s410
    %p412 = scmp.eq.s32.totalorder %s30, 0
    %p413 = por %p411, %p412
    %s414 = ssub.s32 %s24, %s31
    %p415 = scmp.eq.s32.totalorder %s414, 0
    %s417 = sadd.s32 %s416, 1
    %s418 = scalar_select %p415, %s416, %s417
    %p421 = pneg %p415
    %p422 = scmp.eq.s32.totalorder %s24, 1
    %p423 = por %p421, %p422
    %p424 = scmp.ne.s32.totalorder %s416, %s419
    %p425 = scmp.eq.s32.totalorder %s24, 0
    %p426 = por %p424, %p425
    %p427 = scmp.ne.s32.totalorder %s416, %s419
    %p428 = scmp.eq.s32.totalorder %s29, 1
    %p429 = por %p427, %p428
    %p430 = scmp.ne.s32.totalorder %s419, %s420
    %p431 = scmp.eq.s32.totalorder %s29, 0
    %p432 = por %p430, %p431
    %p433 = scmp.ne.s32.totalorder %s419, %s420
    %p434 = scmp.eq.s32.totalorder %s30, 1
    %p435 = por %p433, %p434
    %p437 = scmp.ne.s32.totalorder %s420, %s436
    %p438 = scmp.eq.s32.totalorder %s30, 0
    %p439 = por %p437, %p438
    %p440 = scmp.le.s32.totalorder 1, %s24
    %p441 = scmp.lt.s32.totalorder %s24, 3
    %p442 = pnand %p440, %p441
    %p443 = pneg %p442
    // Predicated region
    $region9: #{self_cross_attention.2} parent=5 // pred_check
      _
    $region10: #{self_cross_attention.2} parent=5 // pred_check_branch
      %445 = sbr.rel (%p442) target = $region12
    $region11: #{self_cross_attention.2} parent=5 // pred_region
      %s446 = ssub.s32 %s24, 1
      // Predicated region
      $region13: #{self_cross_attention.2} parent=11 // pred_check
        %p447 = pneg %p149
      $region14: #{self_cross_attention.2} parent=11 // pred_check_branch
        %449 = sbr.rel (%p447) target = $region16
      $region15: #{self_cross_attention.2} parent=11 // pred_region
        _
      $region16: #{self_cross_attention.2} parent=11 // pred_fallthru
        _
      // Predicated region
      $region17: #{self_cross_attention.2} parent=11 // pred_check
        %p450 = pneg %p170
      $region18: #{self_cross_attention.2} parent=11 // pred_check_branch
        %452 = sbr.rel (%p450) target = $region20
      $region19: #{self_cross_attention.2} parent=11 // pred_region
        _
      $region20: #{self_cross_attention.2} parent=11 // pred_fallthru
        _
      // Predicated region
      $region21: #{self_cross_attention.2} parent=11 // pred_check
        %p453 = pneg %p191
      $region22: #{self_cross_attention.2} parent=11 // pred_check_branch
        %455 = sbr.rel (%p453) target = $region24
      $region23: #{self_cross_attention.2} parent=11 // pred_region
        _
      $region24: #{self_cross_attention.2} parent=11 // pred_fallthru
        _
      // Predicated region
      $region25: #{self_cross_attention.2} parent=11 // pred_check
        %p456 = pneg %p212
      $region26: #{self_cross_attention.2} parent=11 // pred_check_branch
        %458 = sbr.rel (%p456) target = $region28
      $region27: #{self_cross_attention.2} parent=11 // pred_region
        _
      $region28: #{self_cross_attention.2} parent=11 // pred_fallthru
        _
      // Predicated region
      $region29: #{self_cross_attention.2} parent=11 // pred_check
        %p459 = pneg %p233
      $region30: #{self_cross_attention.2} parent=11 // pred_check_branch
        %461 = sbr.rel (%p459) target = $region32
      $region31: #{self_cross_attention.2} parent=11 // pred_region
        _
      $region32: #{self_cross_attention.2} parent=11 // pred_fallthru
        _
      // Predicated region
      $region33: #{self_cross_attention.2} parent=11 // pred_check
        %p462 = pneg %p254
      $region34: #{self_cross_attention.2} parent=11 // pred_check_branch
        %464 = sbr.rel (%p462) target = $region36
      $region35: #{self_cross_attention.2} parent=11 // pred_region
        _
      $region36: #{self_cross_attention.2} parent=11 // pred_fallthru
        _
      // Predicated region
      $region37: #{self_cross_attention.2} parent=11 // pred_check
        %p465 = pneg %p275
      $region38: #{self_cross_attention.2} parent=11 // pred_check_branch
        %467 = sbr.rel (%p465) target = $region40
      $region39: #{self_cross_attention.2} parent=11 // pred_region
        _
      $region40: #{self_cross_attention.2} parent=11 // pred_fallthru
        _
      // Predicated region
      $region41: #{self_cross_attention.2} parent=11 // pred_check
        %p468 = pneg %p296
      $region42: #{self_cross_attention.2} parent=11 // pred_check_branch
        %470 = sbr.rel (%p468) target = $region44
      $region43: #{self_cross_attention.2} parent=11 // pred_region
        _
      $region44: #{self_cross_attention.2} parent=11 // pred_fallthru
        _
      // Predicated region
      $region45: #{self_cross_attention.2} parent=11 // pred_check
        %p471 = pneg %p317
      $region46: #{self_cross_attention.2} parent=11 // pred_check_branch
        %473 = sbr.rel (%p471) target = $region48
      $region47: #{self_cross_attention.2} parent=11 // pred_region
        _
      $region48: #{self_cross_attention.2} parent=11 // pred_fallthru
        _
      // Predicated region
      $region49: #{self_cross_attention.2} parent=11 // pred_check
        %p474 = pneg %p338
      $region50: #{self_cross_attention.2} parent=11 // pred_check_branch
        %476 = sbr.rel (%p474) target = $region52
      $region51: #{self_cross_attention.2} parent=11 // pred_region
        _
      $region52: #{self_cross_attention.2} parent=11 // pred_fallthru
        _
      // Predicated region
      $region53: #{self_cross_attention.2} parent=11 // pred_check
        %p477 = pneg %p359
      $region54: #{self_cross_attention.2} parent=11 // pred_check_branch
        %479 = sbr.rel (%p477) target = $region56
      $region55: #{self_cross_attention.2} parent=11 // pred_region
        _
      $region56: #{self_cross_attention.2} parent=11 // pred_fallthru
        _
      // Predicated region
      $region57: #{self_cross_attention.2} parent=11 // pred_check
        %p480 = pneg %p380
      $region58: #{self_cross_attention.2} parent=11 // pred_check_branch
        %482 = sbr.rel (%p480) target = $region60
      $region59: #{self_cross_attention.2} parent=11 // pred_region
        _
      $region60: #{self_cross_attention.2} parent=11 // pred_fallthru
        _
    $region12: #{self_cross_attention.2} parent=5 // pred_fallthru
      _
    %p483 = scmp.lt.s32.totalorder %s24, 2
    // Predicated region
    $region61: #{self_cross_attention.2} parent=5 // pred_check
      %p484 = pneg %p483
    $region62: #{self_cross_attention.2} parent=5 // pred_check_branch
      %486 = sbr.rel (%p484) target = $region64
    $region63: #{self_cross_attention.2} parent=5 // pred_region
      // Predicated region
      $region65: #{self_cross_attention.2} parent=63 // pred_check
        %p487 = pneg %p44
      $region66: #{self_cross_attention.2} parent=63 // pred_check_branch
        %489 = sbr.rel (%p487) target = $region68
      $region67: #{self_cross_attention.2} parent=63 // pred_region
        %p490 = scmp.lt.s32.totalorder %s24, 1
        %s491 = scalar_select %p490, %s24, 1
        %s492 = smul.addr %s491, 2
        %s493 = smul.addr %s492, 8
        %s494 = scalar_lea.vmem %s0, %s493
      $region68: #{self_cross_attention.2} parent=63 // pred_fallthru
        _
      // Predicated region
      $region69: #{self_cross_attention.2} parent=63 // pred_check
        %p495 = pneg %p70
      $region70: #{self_cross_attention.2} parent=63 // pred_check_branch
        %497 = sbr.rel (%p495) target = $region72
      $region71: #{self_cross_attention.2} parent=63 // pred_region
        %p498 = scmp.lt.s32.totalorder %s24, 1
        %s499 = scalar_select %p498, %s24, 1
        %s500 = smul.addr %s499, 8
        %s501 = scalar_lea.vmem %s1, %s500
      $region72: #{self_cross_attention.2} parent=63 // pred_fallthru
        _
      // Predicated region
      $region73: #{self_cross_attention.2} parent=63 // pred_check
        %p502 = pneg %p96
      $region74: #{self_cross_attention.2} parent=63 // pred_check_branch
        %504 = sbr.rel (%p502) target = $region76
      $region75: #{self_cross_attention.2} parent=63 // pred_region
        %p505 = scmp.lt.s32.totalorder %s24, 1
        %s506 = scalar_select %p505, %s24, 1
        %s507 = smul.addr %s506, 8
        %s508 = scalar_lea.vmem %s2, %s507
      $region76: #{self_cross_attention.2} parent=63 // pred_fallthru
        _
      // Predicated region
      $region77: #{self_cross_attention.2} parent=63 // pred_check
        %p509 = pneg %p122
      $region78: #{self_cross_attention.2} parent=63 // pred_check_branch
        %511 = sbr.rel (%p509) target = $region80
      $region79: #{self_cross_attention.2} parent=63 // pred_region
        %p512 = scmp.lt.s32.totalorder %s24, 1
        %s513 = scalar_select %p512, %s24, 1
        %s514 = scalar_lea.vmem %s3, %s513
      $region80: #{self_cross_attention.2} parent=63 // pred_fallthru
        _
    $region64: #{self_cross_attention.2} parent=5 // pred_fallthru
      _
    %p515 = scmp.le.s32.totalorder 1, %s24
    %p516 = scmp.lt.s32.totalorder %s24, 3
    %p517 = pnand %p515, %p516
    %p518 = pneg %p517
    // Predicated region
    $region81: #{self_cross_attention.2} parent=5 // pred_check
      _
    $region82: #{self_cross_attention.2} parent=5 // pred_check_branch
      %520 = sbr.rel (%p517) target = $region84
    $region83: #{self_cross_attention.2} parent=5 // pred_region
      %s521 = ssub.s32 %s24, 1
      %p522 = scmp.lt.s32.totalorder %s29, 1
      %s523 = scalar_select %p522, %s29, 1
      %s524 = smul.addr %s523, 2
      %s525 = smul.addr %s524, 8
      %s526 = scalar_lea.vmem %s0, %s525
      %p527 = pneg %p50
      %p528 = pneg %p47
      %p529 = scmp.lt.s32.totalorder %s29, 1
      %s530 = scalar_select %p529, %s29, 1
      %s531 = smul.addr %s530, 8
      %s532 = scalar_lea.vmem %s1, %s531
      %p533 = pneg %p76
      %p534 = pneg %p73
      %p535 = scmp.lt.s32.totalorder %s29, 1
      %s536 = scalar_select %p535, %s29, 1
      %s537 = smul.addr %s536, 8
      %s538 = scalar_lea.vmem %s2, %s537
      %p539 = pneg %p102
      %p540 = pneg %p99
      %p541 = scmp.lt.s32.totalorder %s29, 1
      %s542 = scalar_select %p541, %s29, 1
      %s543 = scalar_lea.vmem %s3, %s542
      %p544 = pneg %p128
      %p545 = pneg %p125
      %p546 = pneg %p149
      %p547 = pneg %p146
      %p548 = pneg %p170
      %p549 = pneg %p167
      %p550 = pneg %p191
      %p551 = pneg %p188
      %p552 = pneg %p212
      %p553 = pneg %p209
      %p554 = pneg %p233
      %p555 = pneg %p230
      %p556 = pneg %p254
      %p557 = pneg %p251
      %p558 = pneg %p275
      %p559 = pneg %p272
      %p560 = pneg %p296
      %p561 = pneg %p293
      %p562 = pneg %p317
      %p563 = pneg %p314
      %p564 = pneg %p338
      %p565 = pneg %p335
      %p566 = pneg %p359
      %p567 = pneg %p356
      %p568 = pneg %p380
      %p569 = pneg %p377
      %p570 = pneg %p406
      %p571 = pneg %p403
      %p572 = scmp.lt.s32.totalorder %s29, 1
      %s573 = scalar_select %p572, %s29, 1
      %s574 = smul.addr %s573, 2
      %s575 = smul.addr %s574, 8
      %s576 = scalar_lea.vmem %s16, %s575
      %p577 = pneg %p432
      %p578 = pneg %p429
      %p579 = scmp.lt.s32.totalorder %s29, 1
      %s580 = scalar_select %p579, %s29, 1
      %s581 = smul.addr %s580, 8
      %s582 = scalar_lea.vmem %s17, %s581
      %p583 = scmp.lt.s32.totalorder %s29, 1
      %s584 = scalar_select %p583, %s29, 1
      %s585 = smul.addr %s584, 2
      %s586 = smul.addr %s585, 8
      %s587 = scalar_lea.vmem %s0, %s586
      %p588 = scmp.lt.s32.totalorder %s29, 1
      %s589 = scalar_select %p588, %s29, 1
      %s590 = smul.addr %s589, 8
      %s591 = scalar_lea.vmem %s1, %s590
      %p592 = scmp.lt.s32.totalorder %s29, 1
      %s593 = scalar_select %p592, %s29, 1
      %s594 = smul.addr %s593, 8
      %s595 = scalar_lea.vmem %s2, %s594
      %p596 = scmp.lt.s32.totalorder %s29, 1
      %s597 = scalar_select %p596, %s29, 1
      %s598 = scalar_lea.vmem %s3, %s597
      %p599 = scmp.lt.s32.totalorder %s29, 1
      %s600 = scalar_select %p599, %s29, 1
      %s601 = smul.addr %s600, 2
      %s602 = smul.addr %s601, 8
      %s603 = scalar_lea.vmem %s16, %s602
      %p604 = scmp.lt.s32.totalorder %s29, 1
      %s605 = scalar_select %p604, %s29, 1
      %s606 = smul.addr %s605, 8
      %s607 = scalar_lea.vmem %s17, %s606
      %v608 = vld [vmem:[%s587] sm:$0xff]
      %v609 = vld [vmem:[%s587 + $0x8] sm:$0xff]
      %v610 = vld [vmem:[%s591] sm:$0xff]
      %v611 = vld [vmem:[%s595] sm:$0xff]
      %v612 = vld [vmem:[%s598] sm:$0x1]
      %v613 = vadd.f32 %v610, %v611
      %v614 = vmul.f32 %v613, 0.5
      %v615 = vld [vmem:[%s4] sm:$0xff]
      %v616 = vld [vmem:[%s4 + $0x8] sm:$0xff]
      %v617 = vld [vmem:[%s4 + $0x10] sm:$0xff]
      %v618 = vld [vmem:[%s4 + $0x18] sm:$0xff]
      %v619 = vld [vmem:[%s5] sm:$0x1]
      %v621 = vlaneseq
      %v622 = vshrl.u32 %v621, 7
      %v623 = vsub.s32 0, %v622
      %v624 = vrot.slane %v619, %v623
      %vm626 = vcmask 261120
      %v628 = vsel %vm626, %v608, 0
      %v631 = vsel %vm626, %v609, 0
      %633 = vmatprep.subr.mxu0 0.0
      %634 = vmatpush1.msra.mxu0 0.0
      %635 = vmatprep.subr.mxu0 0.0
      %636 = vmatpush1.msra.mxu0 0.0
      %637 = vmatprep.subr.mxu0 0.0
      %638 = vmatpush1.msra.mxu0 0.0
      %639 = vmatprep.subr.mxu0 0.0
      %640 = vmatpush1.msra.mxu0 0.0
      %641 = vmatprep.subr.mxu0 0.0
      %642 = vmatpush1.msra.mxu0 0.0
      %643 = vmatprep.subr.mxu0 0.0
      %644 = vmatpush1.msra.mxu0 0.0
      %645 = vmatprep.subr.mxu0 0.0
      %646 = vmatpush1.msra.mxu0 0.0
      %647 = vmatprep.subr.mxu0 0.0
      %648 = vmatpush1.msra.mxu0 0.0
      %649 = vmatprep.subr.mxu0 0.0
      %650 = vmatpush1.msra.mxu0 0.0
      %651 = vmatprep.subr.mxu0 0.0
      %652 = vmatpush1.msra.mxu0 0.0
      %653 = vmatprep.subr.mxu0 0.0
      %654 = vmatpush1.msra.mxu0 0.0
      %655 = vmatprep.subr.mxu0 0.0
      %656 = vmatpush1.msra.mxu0 0.0
      %657 = vmatprep.subr.mxu0 0.0
      %658 = vmatpush1.msra.mxu0 %v618
      %659 = vmatprep.subr.mxu0 0.0
      %660 = vmatpush1.msra.mxu0 %v617
      %661 = vmatprep.subr.mxu0 0.0
      %662 = vmatpush1.msra.mxu0 %v616
      %663 = vmatprep.subr.mxu0 0.0
      %664 = vmatpush1.msra.mxu0 %v615
      %665 = vmatprep.subr.mxu0 0.0
      %666 = vmatpush2.msra.mxu0 0.0
      %667 = vmatprep.subr.mxu0 0.0
      %668 = vmatpush2.msra.mxu0 0.0
      %669 = vmatprep.subr.mxu0 0.0
      %670 = vmatpush2.msra.mxu0 0.0
      %671 = vmatprep.subr.mxu0 0.0
      %672 = vmatpush2.msra.mxu0 0.0
      %673 = vmatprep.subr.mxu0 0.0
      %674 = vmatpush2.msra.mxu0 0.0
      %675 = vmatprep.subr.mxu0 0.0
      %676 = vmatpush2.msra.mxu0 0.0
      %677 = vmatprep.subr.mxu0 0.0
      %678 = vmatpush2.msra.mxu0 0.0
      %679 = vmatprep.subr.mxu0 0.0
      %680 = vmatpush2.msra.mxu0 0.0
      %681 = vmatprep.subr.mxu0 0.0
      %682 = vmatpush2.msra.mxu0 0.0
      %683 = vmatprep.subr.mxu0 0.0
      %684 = vmatpush2.msra.mxu0 0.0
      %685 = vmatprep.subr.mxu0 0.0
      %686 = vmatpush2.msra.mxu0 0.0
      %687 = vmatprep.subr.mxu0 0.0
      %688 = vmatpush2.msra.mxu0 0.0
      %689 = vmatprep.subr.mxu0 0.0
      %690 = vmatpush2.msra.mxu0 0.0
      %691 = vmatprep.subr.mxu0 0.0
      %692 = vmatpush2.msra.mxu0 0.0
      %693 = vmatprep.subr.mxu0 0.0
      %694 = vmatpush2.msra.mxu0 0.0
      %695 = vmatprep.subr.mxu0 0.0
      %696 = vmatpush2.msra.mxu0 0.0
      %697 = vmatprep.mubr.f32.mxu0 0.0
      %698 = vmatmul.mubr.f32.gmra.mxu0 %v628
      %v699 = vpop.f32.mrf.mxu0
      %v700 = vadd.f32 %v624, %v699
      %v701 = vpop.f32.mrf.mxu0
      %702 = vmatprep.mubr.f32.mxu0 0.0
      %703 = vmatmul.mubr.f32.gmra.mxu0 %v631
      %v704 = vpop.f32.mrf.mxu0
      %v705 = vadd.f32 %v624, %v704
      %v706 = vpop.f32.mrf.mxu0
      %707 = vdwg.mxu0
      %s708 = scalar_lea.vmem %s4, 128
      %v709 = vld [vmem:[%s708] sm:$0xff]
      %v710 = vld [vmem:[%s708 + $0x8] sm:$0xff]
      %v711 = vld [vmem:[%s708 + $0x10] sm:$0xff]
      %v712 = vld [vmem:[%s708 + $0x18] sm:$0xff]
      %s713 = scalar_lea.vmem %s5, 4
      %v714 = vld [vmem:[%s713] sm:$0x1]
      %v716 = vlaneseq
      %v717 = vshrl.u32 %v716, 7
      %v718 = vsub.s32 0, %v717
      %v719 = vrot.slane %v714, %v718
      %721 = vmatprep.subr.mxu0 0.0
      %722 = vmatpush1.msra.mxu0 0.0
      %723 = vmatprep.subr.mxu0 0.0
      %724 = vmatpush1.msra.mxu0 0.0
      %725 = vmatprep.subr.mxu0 0.0
      %726 = vmatpush1.msra.mxu0 0.0
      %727 = vmatprep.subr.mxu0 0.0
      %728 = vmatpush1.msra.mxu0 0.0
      %729 = vmatprep.subr.mxu0 0.0
      %730 = vmatpush1.msra.mxu0 0.0
      %731 = vmatprep.subr.mxu0 0.0
      %732 = vmatpush1.msra.mxu0 0.0
      %733 = vmatprep.subr.mxu0 0.0
      %734 = vmatpush1.msra.mxu0 0.0
      %735 = vmatprep.subr.mxu0 0.0
      %736 = vmatpush1.msra.mxu0 0.0
      %737 = vmatprep.subr.mxu0 0.0
      %738 = vmatpush1.msra.mxu0 0.0
      %739 = vmatprep.subr.mxu0 0.0
      %740 = vmatpush1.msra.mxu0 0.0
      %741 = vmatprep.subr.mxu0 0.0
      %742 = vmatpush1.msra.mxu0 0.0
      %743 = vmatprep.subr.mxu0 0.0
      %744 = vmatpush1.msra.mxu0 0.0
      %745 = vmatprep.subr.mxu0 0.0
      %746 = vmatpush1.msra.mxu0 %v712
      %747 = vmatprep.subr.mxu0 0.0
      %748 = vmatpush1.msra.mxu0 %v711
      %749 = vmatprep.subr.mxu0 0.0
      %750 = vmatpush1.msra.mxu0 %v710
      %751 = vmatprep.subr.mxu0 0.0
      %752 = vmatpush1.msra.mxu0 %v709
      %753 = vmatprep.subr.mxu0 0.0
      %754 = vmatpush2.msra.mxu0 0.0
      %755 = vmatprep.subr.mxu0 0.0
      %756 = vmatpush2.msra.mxu0 0.0
      %757 = vmatprep.subr.mxu0 0.0
      %758 = vmatpush2.msra.mxu0 0.0
      %759 = vmatprep.subr.mxu0 0.0
      %760 = vmatpush2.msra.mxu0 0.0
      %761 = vmatprep.subr.mxu0 0.0
      %762 = vmatpush2.msra.mxu0 0.0
      %763 = vmatprep.subr.mxu0 0.0
      %764 = vmatpush2.msra.mxu0 0.0
      %765 = vmatprep.subr.mxu0 0.0
      %766 = vmatpush2.msra.mxu0 0.0
      %767 = vmatprep.subr.mxu0 0.0
      %768 = vmatpush2.msra.mxu0 0.0
      %769 = vmatprep.subr.mxu0 0.0
      %770 = vmatpush2.msra.mxu0 0.0
      %771 = vmatprep.subr.mxu0 0.0
      %772 = vmatpush2.msra.mxu0 0.0
      %773 = vmatprep.subr.mxu0 0.0
      %774 = vmatpush2.msra.mxu0 0.0
      %775 = vmatprep.subr.mxu0 0.0
      %776 = vmatpush2.msra.mxu0 0.0
      %777 = vmatprep.subr.mxu0 0.0
      %778 = vmatpush2.msra.mxu0 0.0
      %779 = vmatprep.subr.mxu0 0.0
      %780 = vmatpush2.msra.mxu0 0.0
      %781 = vmatprep.subr.mxu0 0.0
      %782 = vmatpush2.msra.mxu0 0.0
      %783 = vmatprep.subr.mxu0 0.0
      %784 = vmatpush2.msra.mxu0 0.0
      %785 = vmatprep.mubr.f32.mxu0 0.0
      %786 = vmatmul.mubr.f32.gmra.mxu0 %v628
      %v787 = vpop.f32.mrf.mxu0
      %v788 = vadd.f32 %v719, %v787
      %v789 = vpop.f32.mrf.mxu0
      %790 = vmatprep.mubr.f32.mxu0 0.0
      %791 = vmatmul.mubr.f32.gmra.mxu0 %v631
      %v792 = vpop.f32.mrf.mxu0
      %v793 = vadd.f32 %v719, %v792
      %v794 = vpop.f32.mrf.mxu0
      %795 = vdwg.mxu0
      %s796 = scalar_lea.vmem %s4, 256
      %v797 = vld [vmem:[%s796] sm:$0xff]
      %v798 = vld [vmem:[%s796 + $0x8] sm:$0xff]
      %v799 = vld [vmem:[%s796 + $0x10] sm:$0xff]
      %v800 = vld [vmem:[%s796 + $0x18] sm:$0xff]
      %s801 = scalar_lea.vmem %s5, 8
      %v802 = vld [vmem:[%s801] sm:$0x1]
      %v804 = vlaneseq
      %v805 = vshrl.u32 %v804, 7
      %v806 = vsub.s32 0, %v805
      %v807 = vrot.slane %v802, %v806
      %809 = vmatprep.subr.mxu0 0.0
      %810 = vmatpush1.msra.mxu0 0.0
      %811 = vmatprep.subr.mxu0 0.0
      %812 = vmatpush1.msra.mxu0 0.0
      %813 = vmatprep.subr.mxu0 0.0
      %814 = vmatpush1.msra.mxu0 0.0
      %815 = vmatprep.subr.mxu0 0.0
      %816 = vmatpush1.msra.mxu0 0.0
      %817 = vmatprep.subr.mxu0 0.0
      %818 = vmatpush1.msra.mxu0 0.0
      %819 = vmatprep.subr.mxu0 0.0
      %820 = vmatpush1.msra.mxu0 0.0
      %821 = vmatprep.subr.mxu0 0.0
      %822 = vmatpush1.msra.mxu0 0.0
      %823 = vmatprep.subr.mxu0 0.0
      %824 = vmatpush1.msra.mxu0 0.0
      %825 = vmatprep.subr.mxu0 0.0
      %826 = vmatpush1.msra.mxu0 0.0
      %827 = vmatprep.subr.mxu0 0.0
      %828 = vmatpush1.msra.mxu0 0.0
      %829 = vmatprep.subr.mxu0 0.0
      %830 = vmatpush1.msra.mxu0 0.0
      %831 = vmatprep.subr.mxu0 0.0
      %832 = vmatpush1.msra.mxu0 0.0
      %833 = vmatprep.subr.mxu0 0.0
      %834 = vmatpush1.msra.mxu0 %v800
      %835 = vmatprep.subr.mxu0 0.0
      %836 = vmatpush1.msra.mxu0 %v799
      %837 = vmatprep.subr.mxu0 0.0
      %838 = vmatpush1.msra.mxu0 %v798
      %839 = vmatprep.subr.mxu0 0.0
      %840 = vmatpush1.msra.mxu0 %v797
      %841 = vmatprep.subr.mxu0 0.0
      %842 = vmatpush2.msra.mxu0 0.0
      %843 = vmatprep.subr.mxu0 0.0
      %844 = vmatpush2.msra.mxu0 0.0
      %845 = vmatprep.subr.mxu0 0.0
      %846 = vmatpush2.msra.mxu0 0.0
      %847 = vmatprep.subr.mxu0 0.0
      %848 = vmatpush2.msra.mxu0 0.0
      %849 = vmatprep.subr.mxu0 0.0
      %850 = vmatpush2.msra.mxu0 0.0
      %851 = vmatprep.subr.mxu0 0.0
      %852 = vmatpush2.msra.mxu0 0.0
      %853 = vmatprep.subr.mxu0 0.0
      %854 = vmatpush2.msra.mxu0 0.0
      %855 = vmatprep.subr.mxu0 0.0
      %856 = vmatpush2.msra.mxu0 0.0
      %857 = vmatprep.subr.mxu0 0.0
      %858 = vmatpush2.msra.mxu0 0.0
      %859 = vmatprep.subr.mxu0 0.0
      %860 = vmatpush2.msra.mxu0 0.0
      %861 = vmatprep.subr.mxu0 0.0
      %862 = vmatpush2.msra.mxu0 0.0
      %863 = vmatprep.subr.mxu0 0.0
      %864 = vmatpush2.msra.mxu0 0.0
      %865 = vmatprep.subr.mxu0 0.0
      %866 = vmatpush2.msra.mxu0 0.0
      %867 = vmatprep.subr.mxu0 0.0
      %868 = vmatpush2.msra.mxu0 0.0
      %869 = vmatprep.subr.mxu0 0.0
      %870 = vmatpush2.msra.mxu0 0.0
      %871 = vmatprep.subr.mxu0 0.0
      %872 = vmatpush2.msra.mxu0 0.0
      %873 = vmatprep.mubr.f32.mxu0 0.0
      %874 = vmatmul.mubr.f32.gmra.mxu0 %v628
      %v875 = vpop.f32.mrf.mxu0
      %v876 = vadd.f32 %v807, %v875
      %v877 = vpop.f32.mrf.mxu0
      %878 = vmatprep.mubr.f32.mxu0 0.0
      %879 = vmatmul.mubr.f32.gmra.mxu0 %v631
      %v880 = vpop.f32.mrf.mxu0
      %v881 = vadd.f32 %v807, %v880
      %v882 = vpop.f32.mrf.mxu0
      %883 = vdwg.mxu0
      %s884 = scalar_lea.vmem %s4, 384
      %v885 = vld [vmem:[%s884] sm:$0xff]
      %v886 = vld [vmem:[%s884 + $0x8] sm:$0xff]
      %v887 = vld [vmem:[%s884 + $0x10] sm:$0xff]
      %v888 = vld [vmem:[%s884 + $0x18] sm:$0xff]
      %s889 = scalar_lea.vmem %s5, 12
      %v890 = vld [vmem:[%s889] sm:$0x1]
      %v892 = vlaneseq
      %v893 = vshrl.u32 %v892, 7
      %v894 = vsub.s32 0, %v893
      %v895 = vrot.slane %v890, %v894
      %v898 = vsel %vm626, %v614, 0
      %900 = vmatprep.subr.mxu0 0.0
      %901 = vmatpush1.msra.mxu0 0.0
      %902 = vmatprep.subr.mxu0 0.0
      %903 = vmatpush1.msra.mxu0 0.0
      %904 = vmatprep.subr.mxu0 0.0
      %905 = vmatpush1.msra.mxu0 0.0
      %906 = vmatprep.subr.mxu0 0.0
      %907 = vmatpush1.msra.mxu0 0.0
      %908 = vmatprep.subr.mxu0 0.0
      %909 = vmatpush1.msra.mxu0 0.0
      %910 = vmatprep.subr.mxu0 0.0
      %911 = vmatpush1.msra.mxu0 0.0
      %912 = vmatprep.subr.mxu0 0.0
      %913 = vmatpush1.msra.mxu0 0.0
      %914 = vmatprep.subr.mxu0 0.0
      %915 = vmatpush1.msra.mxu0 0.0
      %916 = vmatprep.subr.mxu0 0.0
      %917 = vmatpush1.msra.mxu0 0.0
      %918 = vmatprep.subr.mxu0 0.0
      %919 = vmatpush1.msra.mxu0 0.0
      %920 = vmatprep.subr.mxu0 0.0
      %921 = vmatpush1.msra.mxu0 0.0
      %922 = vmatprep.subr.mxu0 0.0
      %923 = vmatpush1.msra.mxu0 0.0
      %924 = vmatprep.subr.mxu0 0.0
      %925 = vmatpush1.msra.mxu0 %v888
      %926 = vmatprep.subr.mxu0 0.0
      %927 = vmatpush1.msra.mxu0 %v887
      %928 = vmatprep.subr.mxu0 0.0
      %929 = vmatpush1.msra.mxu0 %v886
      %930 = vmatprep.subr.mxu0 0.0
      %931 = vmatpush1.msra.mxu0 %v885
      %932 = vmatprep.subr.mxu0 0.0
      %933 = vmatpush2.msra.mxu0 0.0
      %934 = vmatprep.subr.mxu0 0.0
      %935 = vmatpush2.msra.mxu0 0.0
      %936 = vmatprep.subr.mxu0 0.0
      %937 = vmatpush2.msra.mxu0 0.0
      %938 = vmatprep.subr.mxu0 0.0
      %939 = vmatpush2.msra.mxu0 0.0
      %940 = vmatprep.subr.mxu0 0.0
      %941 = vmatpush2.msra.mxu0 0.0
      %942 = vmatprep.subr.mxu0 0.0
      %943 = vmatpush2.msra.mxu0 0.0
      %944 = vmatprep.subr.mxu0 0.0
      %945 = vmatpush2.msra.mxu0 0.0
      %946 = vmatprep.subr.mxu0 0.0
      %947 = vmatpush2.msra.mxu0 0.0
      %948 = vmatprep.subr.mxu0 0.0
      %949 = vmatpush2.msra.mxu0 0.0
      %950 = vmatprep.subr.mxu0 0.0
      %951 = vmatpush2.msra.mxu0 0.0
      %952 = vmatprep.subr.mxu0 0.0
      %953 = vmatpush2.msra.mxu0 0.0
      %954 = vmatprep.subr.mxu0 0.0
      %955 = vmatpush2.msra.mxu0 0.0
      %956 = vmatprep.subr.mxu0 0.0
      %957 = vmatpush2.msra.mxu0 0.0
      %958 = vmatprep.subr.mxu0 0.0
      %959 = vmatpush2.msra.mxu0 0.0
      %960 = vmatprep.subr.mxu0 0.0
      %961 = vmatpush2.msra.mxu0 0.0
      %962 = vmatprep.subr.mxu0 0.0
      %963 = vmatpush2.msra.mxu0 0.0
      %964 = vmatprep.mubr.f32.mxu0 0.0
      %965 = vmatmul.mubr.f32.gmra.mxu0 %v898
      %v966 = vpop.f32.mrf.mxu0
      %v967 = vadd.f32 %v895, %v966
      %v968 = vpop.f32.mrf.mxu0
      %969 = vdwg.mxu0
      %s970 = scalar_lea.vmem %s4, 512
      %v971 = vld [vmem:[%s970] sm:$0xff]
      %v972 = vld [vmem:[%s970 + $0x8] sm:$0xff]
      %v973 = vld [vmem:[%s970 + $0x10] sm:$0xff]
      %v974 = vld [vmem:[%s970 + $0x18] sm:$0xff]
      %s975 = scalar_lea.vmem %s5, 16
      %v976 = vld [vmem:[%s975] sm:$0x1]
      %v978 = vlaneseq
      %v979 = vshrl.u32 %v978, 7
      %v980 = vsub.s32 0, %v979
      %v981 = vrot.slane %v976, %v980
      %983 = vmatprep.subr.mxu0 0.0
      %984 = vmatpush1.msra.mxu0 0.0
      %985 = vmatprep.subr.mxu0 0.0
      %986 = vmatpush1.msra.mxu0 0.0
      %987 = vmatprep.subr.mxu0 0.0
      %988 = vmatpush1.msra.mxu0 0.0
      %989 = vmatprep.subr.mxu0 0.0
      %990 = vmatpush1.msra.mxu0 0.0
      %991 = vmatprep.subr.mxu0 0.0
      %992 = vmatpush1.msra.mxu0 0.0
      %993 = vmatprep.subr.mxu0 0.0
      %994 = vmatpush1.msra.mxu0 0.0
      %995 = vmatprep.subr.mxu0 0.0
      %996 = vmatpush1.msra.mxu0 0.0
      %997 = vmatprep.subr.mxu0 0.0
      %998 = vmatpush1.msra.mxu0 0.0
      %999 = vmatprep.subr.mxu0 0.0
      %1000 = vmatpush1.msra.mxu0 0.0
      %1001 = vmatprep.subr.mxu0 0.0
      %1002 = vmatpush1.msra.mxu0 0.0
      %1003 = vmatprep.subr.mxu0 0.0
      %1004 = vmatpush1.msra.mxu0 0.0
      %1005 = vmatprep.subr.mxu0 0.0
      %1006 = vmatpush1.msra.mxu0 0.0
      %1007 = vmatprep.subr.mxu0 0.0
      %1008 = vmatpush1.msra.mxu0 %v974
      %1009 = vmatprep.subr.mxu0 0.0
      %1010 = vmatpush1.msra.mxu0 %v973
      %1011 = vmatprep.subr.mxu0 0.0
      %1012 = vmatpush1.msra.mxu0 %v972
      %1013 = vmatprep.subr.mxu0 0.0
      %1014 = vmatpush1.msra.mxu0 %v971
      %1015 = vmatprep.subr.mxu0 0.0
      %1016 = vmatpush2.msra.mxu0 0.0
      %1017 = vmatprep.subr.mxu0 0.0
      %1018 = vmatpush2.msra.mxu0 0.0
      %1019 = vmatprep.subr.mxu0 0.0
      %1020 = vmatpush2.msra.mxu0 0.0
      %1021 = vmatprep.subr.mxu0 0.0
      %1022 = vmatpush2.msra.mxu0 0.0
      %1023 = vmatprep.subr.mxu0 0.0
      %1024 = vmatpush2.msra.mxu0 0.0
      %1025 = vmatprep.subr.mxu0 0.0
      %1026 = vmatpush2.msra.mxu0 0.0
      %1027 = vmatprep.subr.mxu0 0.0
      %1028 = vmatpush2.msra.mxu0 0.0
      %1029 = vmatprep.subr.mxu0 0.0
      %1030 = vmatpush2.msra.mxu0 0.0
      %1031 = vmatprep.subr.mxu0 0.0
      %1032 = vmatpush2.msra.mxu0 0.0
      %1033 = vmatprep.subr.mxu0 0.0
      %1034 = vmatpush2.msra.mxu0 0.0
      %1035 = vmatprep.subr.mxu0 0.0
      %1036 = vmatpush2.msra.mxu0 0.0
      %1037 = vmatprep.subr.mxu0 0.0
      %1038 = vmatpush2.msra.mxu0 0.0
      %1039 = vmatprep.subr.mxu0 0.0
      %1040 = vmatpush2.msra.mxu0 0.0
      %1041 = vmatprep.subr.mxu0 0.0
      %1042 = vmatpush2.msra.mxu0 0.0
      %1043 = vmatprep.subr.mxu0 0.0
      %1044 = vmatpush2.msra.mxu0 0.0
      %1045 = vmatprep.subr.mxu0 0.0
      %1046 = vmatpush2.msra.mxu0 0.0
      %1047 = vmatprep.mubr.f32.mxu0 0.0
      %1048 = vmatmul.mubr.f32.gmra.mxu0 %v898
      %v1049 = vpop.f32.mrf.mxu0
      %v1050 = vadd.f32 %v981, %v1049
      %v1051 = vpop.f32.mrf.mxu0
      %1052 = vdwg.mxu0
      %s1053 = scalar_lea.vmem %s4, 640
      %v1054 = vld [vmem:[%s1053] sm:$0xff]
      %v1055 = vld [vmem:[%s1053 + $0x8] sm:$0xff]
      %v1056 = vld [vmem:[%s1053 + $0x10] sm:$0xff]
      %v1057 = vld [vmem:[%s1053 + $0x18] sm:$0xff]
      %s1058 = scalar_lea.vmem %s5, 20
      %v1059 = vld [vmem:[%s1058] sm:$0x1]
      %v1061 = vlaneseq
      %v1062 = vshrl.u32 %v1061, 7
      %v1063 = vsub.s32 0, %v1062
      %v1064 = vrot.slane %v1059, %v1063
      %v1067 = vsel %vm626, %v610, 0
      %1069 = vmatprep.subr.mxu0 0.0
      %1070 = vmatpush1.msra.mxu0 0.0
      %1071 = vmatprep.subr.mxu0 0.0
      %1072 = vmatpush1.msra.mxu0 0.0
      %1073 = vmatprep.subr.mxu0 0.0
      %1074 = vmatpush1.msra.mxu0 0.0
      %1075 = vmatprep.subr.mxu0 0.0
      %1076 = vmatpush1.msra.mxu0 0.0
      %1077 = vmatprep.subr.mxu0 0.0
      %1078 = vmatpush1.msra.mxu0 0.0
      %1079 = vmatprep.subr.mxu0 0.0
      %1080 = vmatpush1.msra.mxu0 0.0
      %1081 = vmatprep.subr.mxu0 0.0
      %1082 = vmatpush1.msra.mxu0 0.0
      %1083 = vmatprep.subr.mxu0 0.0
      %1084 = vmatpush1.msra.mxu0 0.0
      %1085 = vmatprep.subr.mxu0 0.0
      %1086 = vmatpush1.msra.mxu0 0.0
      %1087 = vmatprep.subr.mxu0 0.0
      %1088 = vmatpush1.msra.mxu0 0.0
      %1089 = vmatprep.subr.mxu0 0.0
      %1090 = vmatpush1.msra.mxu0 0.0
      %1091 = vmatprep.subr.mxu0 0.0
      %1092 = vmatpush1.msra.mxu0 0.0
      %1093 = vmatprep.subr.mxu0 0.0
      %1094 = vmatpush1.msra.mxu0 %v1057
      %1095 = vmatprep.subr.mxu0 0.0
      %1096 = vmatpush1.msra.mxu0 %v1056
      %1097 = vmatprep.subr.mxu0 0.0
      %1098 = vmatpush1.msra.mxu0 %v1055
      %1099 = vmatprep.subr.mxu0 0.0
      %1100 = vmatpush1.msra.mxu0 %v1054
      %1101 = vmatprep.subr.mxu0 0.0
      %1102 = vmatpush2.msra.mxu0 0.0
      %1103 = vmatprep.subr.mxu0 0.0
      %1104 = vmatpush2.msra.mxu0 0.0
      %1105 = vmatprep.subr.mxu0 0.0
      %1106 = vmatpush2.msra.mxu0 0.0
      %1107 = vmatprep.subr.mxu0 0.0
      %1108 = vmatpush2.msra.mxu0 0.0
      %1109 = vmatprep.subr.mxu0 0.0
      %1110 = vmatpush2.msra.mxu0 0.0
      %1111 = vmatprep.subr.mxu0 0.0
      %1112 = vmatpush2.msra.mxu0 0.0
      %1113 = vmatprep.subr.mxu0 0.0
      %1114 = vmatpush2.msra.mxu0 0.0
      %1115 = vmatprep.subr.mxu0 0.0
      %1116 = vmatpush2.msra.mxu0 0.0
      %1117 = vmatprep.subr.mxu0 0.0
      %1118 = vmatpush2.msra.mxu0 0.0
      %1119 = vmatprep.subr.mxu0 0.0
      %1120 = vmatpush2.msra.mxu0 0.0
      %1121 = vmatprep.subr.mxu0 0.0
      %1122 = vmatpush2.msra.mxu0 0.0
      %1123 = vmatprep.subr.mxu0 0.0
      %1124 = vmatpush2.msra.mxu0 0.0
      %1125 = vmatprep.subr.mxu0 0.0
      %1126 = vmatpush2.msra.mxu0 0.0
      %1127 = vmatprep.subr.mxu0 0.0
      %1128 = vmatpush2.msra.mxu0 0.0
      %1129 = vmatprep.subr.mxu0 0.0
      %1130 = vmatpush2.msra.mxu0 0.0
      %1131 = vmatprep.subr.mxu0 0.0
      %1132 = vmatpush2.msra.mxu0 0.0
      %1133 = vmatprep.mubr.f32.mxu0 0.0
      %1134 = vmatmul.mubr.f32.gmra.mxu0 %v1067
      %v1135 = vpop.f32.mrf.mxu0
      %v1136 = vadd.f32 %v1064, %v1135
      %v1137 = vpop.f32.mrf.mxu0
      %1138 = vdwg.mxu0
      %vm1139 = vcmask 64512
      %v1141 = vsel %vm1139, %v700, 0
      %v1144 = vsel %vm1139, %v705, 0
      %v1147 = vsel %vm1139, %v967, 0
      %v1150 = vsel %vm1139, %v788, 0
      %v1153 = vsel %vm1139, %v793, 0
      %v1156 = vsel %vm1139, %v1050, 0
      %1158 = vmatprep.subr.mxu0 0.0
      %1159 = vmatpush1.xpose.msra.mxu0 0.0
      %1160 = vmatprep.subr.mxu0 0.0
      %1161 = vmatpush1.xpose.msra.mxu0 0.0
      %1162 = vmatprep.subr.mxu0 0.0
      %1163 = vmatpush1.xpose.msra.mxu0 0.0
      %1164 = vmatprep.subr.mxu0 0.0
      %1165 = vmatpush1.xpose.msra.mxu0 0.0
      %1166 = vmatprep.subr.mxu0 0.0
      %1167 = vmatpush1.xpose.msra.mxu0 0.0
      %1168 = vmatprep.subr.mxu0 0.0
      %1169 = vmatpush1.xpose.msra.mxu0 0.0
      %1170 = vmatprep.subr.mxu0 0.0
      %1171 = vmatpush1.xpose.msra.mxu0 0.0
      %1172 = vmatprep.subr.mxu0 0.0
      %1173 = vmatpush1.xpose.msra.mxu0 0.0
      %1174 = vmatprep.subr.mxu0 0.0
      %1175 = vmatpush1.xpose.msra.mxu0 0.0
      %1176 = vmatprep.subr.mxu0 0.0
      %1177 = vmatpush1.xpose.msra.mxu0 0.0
      %1178 = vmatprep.subr.mxu0 0.0
      %1179 = vmatpush1.xpose.msra.mxu0 0.0
      %1180 = vmatprep.subr.mxu0 0.0
      %1181 = vmatpush1.xpose.msra.mxu0 0.0
      %1182 = vmatprep.subr.mxu0 0.0
      %1183 = vmatpush1.xpose.msra.mxu0 0.0
      %1184 = vmatprep.subr.mxu0 0.0
      %1185 = vmatpush1.xpose.msra.mxu0 %v1156
      %1186 = vmatprep.subr.mxu0 0.0
      %1187 = vmatpush1.xpose.msra.mxu0 %v1153
      %1188 = vmatprep.subr.mxu0 0.0
      %1189 = vmatpush1.xpose.msra.mxu0 %v1150
      %1190 = vmatprep.subr.mxu0 0.0
      %1191 = vmatpush2.xpose.msra.mxu0 0.0
      %1192 = vmatprep.subr.mxu0 0.0
      %1193 = vmatpush2.xpose.msra.mxu0 0.0
      %1194 = vmatprep.subr.mxu0 0.0
      %1195 = vmatpush2.xpose.msra.mxu0 0.0
      %1196 = vmatprep.subr.mxu0 0.0
      %1197 = vmatpush2.xpose.msra.mxu0 0.0
      %1198 = vmatprep.subr.mxu0 0.0
      %1199 = vmatpush2.xpose.msra.mxu0 0.0
      %1200 = vmatprep.subr.mxu0 0.0
      %1201 = vmatpush2.xpose.msra.mxu0 0.0
      %1202 = vmatprep.subr.mxu0 0.0
      %1203 = vmatpush2.xpose.msra.mxu0 0.0
      %1204 = vmatprep.subr.mxu0 0.0
      %1205 = vmatpush2.xpose.msra.mxu0 0.0
      %1206 = vmatprep.subr.mxu0 0.0
      %1207 = vmatpush2.xpose.msra.mxu0 0.0
      %1208 = vmatprep.subr.mxu0 0.0
      %1209 = vmatpush2.xpose.msra.mxu0 0.0
      %1210 = vmatprep.subr.mxu0 0.0
      %1211 = vmatpush2.xpose.msra.mxu0 0.0
      %1212 = vmatprep.subr.mxu0 0.0
      %1213 = vmatpush2.xpose.msra.mxu0 0.0
      %1214 = vmatprep.subr.mxu0 0.0
      %1215 = vmatpush2.xpose.msra.mxu0 0.0
      %1216 = vmatprep.subr.mxu0 0.0
      %1217 = vmatpush2.xpose.msra.mxu0 0.0
      %1218 = vmatprep.subr.mxu0 0.0
      %1219 = vmatpush2.xpose.msra.mxu0 0.0
      %1220 = vmatprep.subr.mxu0 0.0
      %1221 = vmatpush2.xpose.msra.mxu0 0.0
      %1222 = vmatprep.mubr.f32.mxu0 0.0
      %1223 = vmatmul.mubr.f32.gmra.mxu0 %v1141
      %v1224 = vpop.f32.mrf.mxu0
      %v1225 = vadd.f32 0.0, %v1224
      %v1226 = vpop.f32.mrf.mxu0
      %1227 = vmatprep.mubr.f32.mxu0 0.0
      %1228 = vmatmul.mubr.f32.gmra.mxu0 %v1144
      %v1229 = vpop.f32.mrf.mxu0
      %v1230 = vadd.f32 0.0, %v1229
      %v1231 = vpop.f32.mrf.mxu0
      %1232 = vmatprep.mubr.f32.mxu0 0.0
      %1233 = vmatmul.mubr.f32.gmra.mxu0 %v1147
      %v1234 = vpop.f32.mrf.mxu0
      %v1235 = vadd.f32 0.0, %v1234
      %v1236 = vpop.f32.mrf.mxu0
      %1237 = vdwg.mxu0
      %v1238 = vmul.f32 %v1225, 0.35355338
      %v1239 = vmul.f32 %v1230, 0.35355338
      %v1240 = vmul.f32 %v1235, 0.35355338
      %v1242 = vlaneseq
      %v1243 = vshrl.u32 %v1242, 7
      %v1244 = vsub.s32 0, %v1243
      %v1245 = vrot.slane %v612, %v1244
      %v1247 = vadd.f32 %v1238, %v1245
      %v1248 = vadd.f32 %v1239, %v1245
      %v1249 = vadd.f32 %v1240, %v1245
      %vm1250 = vcmask 195584
      %v1251 = vsel %vm1250, %v1247, -inf
      %1252 = vmax.xlane.f32.xlu0 %v1251
      %v1253 = vpop.xlane.xlu0 %1252
      %v1254 = vsel %vm1250, %v1248, -inf
      %1255 = vmax.xlane.f32.xlu0 %v1254
      %v1256 = vpop.xlane.xlu0 %1255
      %v1257 = vsel %vm1250, %v1249, -inf
      %1258 = vmax.xlane.f32.xlu0 %v1257
      %v1259 = vpop.xlane.xlu0 %1258
      %v1260 = vsub.f32 %v1247, %v1253
      %v1261 = vsub.f32 %v1248, %v1256
      %v1262 = vsub.f32 %v1249, %v1259
      %v1263 = vmul.f32 %v1260, 1.442695
      %v1264 = vpow.pop %v1263
      %v1265 = vmul.f32 %v1261, 1.442695
      %v1266 = vpow.pop %v1265
      %v1267 = vmul.f32 %v1262, 1.442695
      %v1268 = vpow.pop %v1267
      %v1269 = vsel %vm1250, %v1264, 0.0
      %1270 = vadd.xlane.f32.xlu0 %v1269
      %v1271 = vpop.xlane.xlu0 %1270
      %v1272 = vsel %vm1250, %v1266, 0.0
      %1273 = vadd.xlane.f32.xlu0 %v1272
      %v1274 = vpop.xlane.xlu0 %1273
      %v1275 = vsel %vm1250, %v1268, 0.0
      %1276 = vadd.xlane.f32.xlu0 %v1275
      %v1277 = vpop.xlane.xlu0 %1276
      %v1278 = vrcp.pop %v1271
      %v1279 = vrcp.pop %v1274
      %v1280 = vrcp.pop %v1277
      %v1281 = vmul.f32 %v1264, %v1278
      %v1282 = vmul.f32 %v1266, %v1279
      %v1283 = vmul.f32 %v1268, %v1280
      %v1285 = vsel %vm1250, %v1281, 0
      %v1288 = vsel %vm1250, %v1282, 0
      %v1291 = vsel %vm1250, %v1283, 0
      %1293 = vmatprep.subr.mxu0 0.0
      %1294 = vmatpush1.msra.mxu0 0.0
      %1295 = vmatprep.subr.mxu0 0.0
      %1296 = vmatpush1.msra.mxu0 0.0
      %1297 = vmatprep.subr.mxu0 0.0
      %1298 = vmatpush1.msra.mxu0 0.0
      %1299 = vmatprep.subr.mxu0 0.0
      %1300 = vmatpush1.msra.mxu0 0.0
      %1301 = vmatprep.subr.mxu0 0.0
      %1302 = vmatpush1.msra.mxu0 0.0
      %1303 = vmatprep.subr.mxu0 0.0
      %1304 = vmatpush1.msra.mxu0 0.0
      %1305 = vmatprep.subr.mxu0 0.0
      %1306 = vmatpush1.msra.mxu0 0.0
      %1307 = vmatprep.subr.mxu0 0.0
      %1308 = vmatpush1.msra.mxu0 0.0
      %1309 = vmatprep.subr.mxu0 0.0
      %1310 = vmatpush1.msra.mxu0 0.0
      %1311 = vmatprep.subr.mxu0 0.0
      %1312 = vmatpush1.msra.mxu0 0.0
      %1313 = vmatprep.subr.mxu0 0.0
      %1314 = vmatpush1.msra.mxu0 0.0
      %1315 = vmatprep.subr.mxu0 0.0
      %1316 = vmatpush1.msra.mxu0 0.0
      %1317 = vmatprep.subr.mxu0 0.0
      %1318 = vmatpush1.msra.mxu0 0.0
      %1319 = vmatprep.subr.mxu0 0.0
      %1320 = vmatpush1.msra.mxu0 %v1136
      %1321 = vmatprep.subr.mxu0 0.0
      %1322 = vmatpush1.msra.mxu0 %v881
      %1323 = vmatprep.subr.mxu0 0.0
      %1324 = vmatpush1.msra.mxu0 %v876
      %1325 = vmatprep.subr.mxu0 0.0
      %1326 = vmatpush2.msra.mxu0 0.0
      %1327 = vmatprep.subr.mxu0 0.0
      %1328 = vmatpush2.msra.mxu0 0.0
      %1329 = vmatprep.subr.mxu0 0.0
      %1330 = vmatpush2.msra.mxu0 0.0
      %1331 = vmatprep.subr.mxu0 0.0
      %1332 = vmatpush2.msra.mxu0 0.0
      %1333 = vmatprep.subr.mxu0 0.0
      %1334 = vmatpush2.msra.mxu0 0.0
      %1335 = vmatprep.subr.mxu0 0.0
      %1336 = vmatpush2.msra.mxu0 0.0
      %1337 = vmatprep.subr.mxu0 0.0
      %1338 = vmatpush2.msra.mxu0 0.0
      %1339 = vmatprep.subr.mxu0 0.0
      %1340 = vmatpush2.msra.mxu0 0.0
      %1341 = vmatprep.subr.mxu0 0.0
      %1342 = vmatpush2.msra.mxu0 0.0
      %1343 = vmatprep.subr.mxu0 0.0
      %1344 = vmatpush2.msra.mxu0 0.0
      %1345 = vmatprep.subr.mxu0 0.0
      %1346 = vmatpush2.msra.mxu0 0.0
      %1347 = vmatprep.subr.mxu0 0.0
      %1348 = vmatpush2.msra.mxu0 0.0
      %1349 = vmatprep.subr.mxu0 0.0
      %1350 = vmatpush2.msra.mxu0 0.0
      %1351 = vmatprep.subr.mxu0 0.0
      %1352 = vmatpush2.msra.mxu0 0.0
      %1353 = vmatprep.subr.mxu0 0.0
      %1354 = vmatpush2.msra.mxu0 0.0
      %1355 = vmatprep.subr.mxu0 0.0
      %1356 = vmatpush2.msra.mxu0 0.0
      %1357 = vmatprep.mubr.f32.mxu0 0.0
      %1358 = vmatmul.mubr.f32.gmra.mxu0 %v1285
      %v1359 = vpop.f32.mrf.mxu0
      %v1360 = vadd.f32 0.0, %v1359
      %v1361 = vpop.f32.mrf.mxu0
      %1362 = vmatprep.mubr.f32.mxu0 0.0
      %1363 = vmatmul.mubr.f32.gmra.mxu0 %v1288
      %v1364 = vpop.f32.mrf.mxu0
      %v1365 = vadd.f32 0.0, %v1364
      %v1366 = vpop.f32.mrf.mxu0
      %1367 = vmatprep.mubr.f32.mxu0 0.0
      %1368 = vmatmul.mubr.f32.gmra.mxu0 %v1291
      %v1369 = vpop.f32.mrf.mxu0
      %v1370 = vadd.f32 0.0, %v1369
      %v1371 = vpop.f32.mrf.mxu0
      %1372 = vdwg.mxu0
      %v1373 = vld [vmem:[%s6] sm:$0xff]
      %s1374 = scalar_lea.vmem %s6, 32
      %v1375 = vld [vmem:[%s1374] sm:$0xff]
      %s1376 = scalar_lea.vmem %s4, 32
      %v1377 = vld [vmem:[%s1376] sm:$0xff]
      %v1378 = vld [vmem:[%s1376 + $0x8] sm:$0xff]
      %v1379 = vld [vmem:[%s1376 + $0x10] sm:$0xff]
      %v1380 = vld [vmem:[%s1376 + $0x18] sm:$0xff]
      %s1381 = scalar_lea.vmem %s5, 1
      %v1382 = vld [vmem:[%s1381] sm:$0x1]
      %v1384 = vlaneseq
      %v1385 = vshrl.u32 %v1384, 7
      %v1386 = vsub.s32 0, %v1385
      %v1387 = vrot.slane %v1382, %v1386
      %1389 = vmatprep.subr.mxu0 0.0
      %1390 = vmatpush1.msra.mxu0 0.0
      %1391 = vmatprep.subr.mxu0 0.0
      %1392 = vmatpush1.msra.mxu0 0.0
      %1393 = vmatprep.subr.mxu0 0.0
      %1394 = vmatpush1.msra.mxu0 0.0
      %1395 = vmatprep.subr.mxu0 0.0
      %1396 = vmatpush1.msra.mxu0 0.0
      %1397 = vmatprep.subr.mxu0 0.0
      %1398 = vmatpush1.msra.mxu0 0.0
      %1399 = vmatprep.subr.mxu0 0.0
      %1400 = vmatpush1.msra.mxu0 0.0
      %1401 = vmatprep.subr.mxu0 0.0
      %1402 = vmatpush1.msra.mxu0 0.0
      %1403 = vmatprep.subr.mxu0 0.0
      %1404 = vmatpush1.msra.mxu0 0.0
      %1405 = vmatprep.subr.mxu0 0.0
      %1406 = vmatpush1.msra.mxu0 0.0
      %1407 = vmatprep.subr.mxu0 0.0
      %1408 = vmatpush1.msra.mxu0 0.0
      %1409 = vmatprep.subr.mxu0 0.0
      %1410 = vmatpush1.msra.mxu0 0.0
      %1411 = vmatprep.subr.mxu0 0.0
      %1412 = vmatpush1.msra.mxu0 0.0
      %1413 = vmatprep.subr.mxu0 0.0
      %1414 = vmatpush1.msra.mxu0 %v1380
      %1415 = vmatprep.subr.mxu0 0.0
      %1416 = vmatpush1.msra.mxu0 %v1379
      %1417 = vmatprep.subr.mxu0 0.0
      %1418 = vmatpush1.msra.mxu0 %v1378
      %1419 = vmatprep.subr.mxu0 0.0
      %1420 = vmatpush1.msra.mxu0 %v1377
      %1421 = vmatprep.subr.mxu0 0.0
      %1422 = vmatpush2.msra.mxu0 0.0
      %1423 = vmatprep.subr.mxu0 0.0
      %1424 = vmatpush2.msra.mxu0 0.0
      %1425 = vmatprep.subr.mxu0 0.0
      %1426 = vmatpush2.msra.mxu0 0.0
      %1427 = vmatprep.subr.mxu0 0.0
      %1428 = vmatpush2.msra.mxu0 0.0
      %1429 = vmatprep.subr.mxu0 0.0
      %1430 = vmatpush2.msra.mxu0 0.0
      %1431 = vmatprep.subr.mxu0 0.0
      %1432 = vmatpush2.msra.mxu0 0.0
      %1433 = vmatprep.subr.mxu0 0.0
      %1434 = vmatpush2.msra.mxu0 0.0
      %1435 = vmatprep.subr.mxu0 0.0
      %1436 = vmatpush2.msra.mxu0 0.0
      %1437 = vmatprep.subr.mxu0 0.0
      %1438 = vmatpush2.msra.mxu0 0.0
      %1439 = vmatprep.subr.mxu0 0.0
      %1440 = vmatpush2.msra.mxu0 0.0
      %1441 = vmatprep.subr.mxu0 0.0
      %1442 = vmatpush2.msra.mxu0 0.0
      %1443 = vmatprep.subr.mxu0 0.0
      %1444 = vmatpush2.msra.mxu0 0.0
      %1445 = vmatprep.subr.mxu0 0.0
      %1446 = vmatpush2.msra.mxu0 0.0
      %1447 = vmatprep.subr.mxu0 0.0
      %1448 = vmatpush2.msra.mxu0 0.0
      %1449 = vmatprep.subr.mxu0 0.0
      %1450 = vmatpush2.msra.mxu0 0.0
      %1451 = vmatprep.subr.mxu0 0.0
      %1452 = vmatpush2.msra.mxu0 0.0
      %1453 = vmatprep.mubr.f32.mxu0 0.0
      %1454 = vmatmul.mubr.f32.gmra.mxu0 %v628
      %v1455 = vpop.f32.mrf.mxu0
      %v1456 = vadd.f32 %v1387, %v1455
      %v1457 = vpop.f32.mrf.mxu0
      %1458 = vmatprep.mubr.f32.mxu0 0.0
      %1459 = vmatmul.mubr.f32.gmra.mxu0 %v631
      %v1460 = vpop.f32.mrf.mxu0
      %v1461 = vadd.f32 %v1387, %v1460
      %v1462 = vpop.f32.mrf.mxu0
      %1463 = vdwg.mxu0
      %s1464 = scalar_lea.vmem %s4, 160
      %v1465 = vld [vmem:[%s1464] sm:$0xff]
      %v1466 = vld [vmem:[%s1464 + $0x8] sm:$0xff]
      %v1467 = vld [vmem:[%s1464 + $0x10] sm:$0xff]
      %v1468 = vld [vmem:[%s1464 + $0x18] sm:$0xff]
      %s1469 = scalar_lea.vmem %s5, 5
      %v1470 = vld [vmem:[%s1469] sm:$0x1]
      %v1472 = vlaneseq
      %v1473 = vshrl.u32 %v1472, 7
      %v1474 = vsub.s32 0, %v1473
      %v1475 = vrot.slane %v1470, %v1474
      %1477 = vmatprep.subr.mxu0 0.0
      %1478 = vmatpush1.msra.mxu0 0.0
      %1479 = vmatprep.subr.mxu0 0.0
      %1480 = vmatpush1.msra.mxu0 0.0
      %1481 = vmatprep.subr.mxu0 0.0
      %1482 = vmatpush1.msra.mxu0 0.0
      %1483 = vmatprep.subr.mxu0 0.0
      %1484 = vmatpush1.msra.mxu0 0.0
      %1485 = vmatprep.subr.mxu0 0.0
      %1486 = vmatpush1.msra.mxu0 0.0
      %1487 = vmatprep.subr.mxu0 0.0
      %1488 = vmatpush1.msra.mxu0 0.0
      %1489 = vmatprep.subr.mxu0 0.0
      %1490 = vmatpush1.msra.mxu0 0.0
      %1491 = vmatprep.subr.mxu0 0.0
      %1492 = vmatpush1.msra.mxu0 0.0
      %1493 = vmatprep.subr.mxu0 0.0
      %1494 = vmatpush1.msra.mxu0 0.0
      %1495 = vmatprep.subr.mxu0 0.0
      %1496 = vmatpush1.msra.mxu0 0.0
      %1497 = vmatprep.subr.mxu0 0.0
      %1498 = vmatpush1.msra.mxu0 0.0
      %1499 = vmatprep.subr.mxu0 0.0
      %1500 = vmatpush1.msra.mxu0 0.0
      %1501 = vmatprep.subr.mxu0 0.0
      %1502 = vmatpush1.msra.mxu0 %v1468
      %1503 = vmatprep.subr.mxu0 0.0
      %1504 = vmatpush1.msra.mxu0 %v1467
      %1505 = vmatprep.subr.mxu0 0.0
      %1506 = vmatpush1.msra.mxu0 %v1466
      %1507 = vmatprep.subr.mxu0 0.0
      %1508 = vmatpush1.msra.mxu0 %v1465
      %1509 = vmatprep.subr.mxu0 0.0
      %1510 = vmatpush2.msra.mxu0 0.0
      %1511 = vmatprep.subr.mxu0 0.0
      %1512 = vmatpush2.msra.mxu0 0.0
      %1513 = vmatprep.subr.mxu0 0.0
      %1514 = vmatpush2.msra.mxu0 0.0
      %1515 = vmatprep.subr.mxu0 0.0
      %1516 = vmatpush2.msra.mxu0 0.0
      %1517 = vmatprep.subr.mxu0 0.0
      %1518 = vmatpush2.msra.mxu0 0.0
      %1519 = vmatprep.subr.mxu0 0.0
      %1520 = vmatpush2.msra.mxu0 0.0
      %1521 = vmatprep.subr.mxu0 0.0
      %1522 = vmatpush2.msra.mxu0 0.0
      %1523 = vmatprep.subr.mxu0 0.0
      %1524 = vmatpush2.msra.mxu0 0.0
      %1525 = vmatprep.subr.mxu0 0.0
      %1526 = vmatpush2.msra.mxu0 0.0
      %1527 = vmatprep.subr.mxu0 0.0
      %1528 = vmatpush2.msra.mxu0 0.0
      %1529 = vmatprep.subr.mxu0 0.0
      %1530 = vmatpush2.msra.mxu0 0.0
      %1531 = vmatprep.subr.mxu0 0.0
      %1532 = vmatpush2.msra.mxu0 0.0
      %1533 = vmatprep.subr.mxu0 0.0
      %1534 = vmatpush2.msra.mxu0 0.0
      %1535 = vmatprep.subr.mxu0 0.0
      %1536 = vmatpush2.msra.mxu0 0.0
      %1537 = vmatprep.subr.mxu0 0.0
      %1538 = vmatpush2.msra.mxu0 0.0
      %1539 = vmatprep.subr.mxu0 0.0
      %1540 = vmatpush2.msra.mxu0 0.0
      %1541 = vmatprep.mubr.f32.mxu0 0.0
      %1542 = vmatmul.mubr.f32.gmra.mxu0 %v628
      %v1543 = vpop.f32.mrf.mxu0
      %v1544 = vadd.f32 %v1475, %v1543
      %v1545 = vpop.f32.mrf.mxu0
      %1546 = vmatprep.mubr.f32.mxu0 0.0
      %1547 = vmatmul.mubr.f32.gmra.mxu0 %v631
      %v1548 = vpop.f32.mrf.mxu0
      %v1549 = vadd.f32 %v1475, %v1548
      %v1550 = vpop.f32.mrf.mxu0
      %1551 = vdwg.mxu0
      %s1552 = scalar_lea.vmem %s4, 288
      %v1553 = vld [vmem:[%s1552] sm:$0xff]
      %v1554 = vld [vmem:[%s1552 + $0x8] sm:$0xff]
      %v1555 = vld [vmem:[%s1552 + $0x10] sm:$0xff]
      %v1556 = vld [vmem:[%s1552 + $0x18] sm:$0xff]
      %s1557 = scalar_lea.vmem %s5, 9
      %v1558 = vld [vmem:[%s1557] sm:$0x1]
      %v1560 = vlaneseq
      %v1561 = vshrl.u32 %v1560, 7
      %v1562 = vsub.s32 0, %v1561
      %v1563 = vrot.slane %v1558, %v1562
      %1565 = vmatprep.subr.mxu0 0.0
      %1566 = vmatpush1.msra.mxu0 0.0
      %1567 = vmatprep.subr.mxu0 0.0
      %1568 = vmatpush1.msra.mxu0 0.0
      %1569 = vmatprep.subr.mxu0 0.0
      %1570 = vmatpush1.msra.mxu0 0.0
      %1571 = vmatprep.subr.mxu0 0.0
      %1572 = vmatpush1.msra.mxu0 0.0
      %1573 = vmatprep.subr.mxu0 0.0
      %1574 = vmatpush1.msra.mxu0 0.0
      %1575 = vmatprep.subr.mxu0 0.0
      %1576 = vmatpush1.msra.mxu0 0.0
      %1577 = vmatprep.subr.mxu0 0.0
      %1578 = vmatpush1.msra.mxu0 0.0
      %1579 = vmatprep.subr.mxu0 0.0
      %1580 = vmatpush1.msra.mxu0 0.0
      %1581 = vmatprep.subr.mxu0 0.0
      %1582 = vmatpush1.msra.mxu0 0.0
      %1583 = vmatprep.subr.mxu0 0.0
      %1584 = vmatpush1.msra.mxu0 0.0
      %1585 = vmatprep.subr.mxu0 0.0
      %1586 = vmatpush1.msra.mxu0 0.0
      %1587 = vmatprep.subr.mxu0 0.0
      %1588 = vmatpush1.msra.mxu0 0.0
      %1589 = vmatprep.subr.mxu0 0.0
      %1590 = vmatpush1.msra.mxu0 %v1556
      %1591 = vmatprep.subr.mxu0 0.0
      %1592 = vmatpush1.msra.mxu0 %v1555
      %1593 = vmatprep.subr.mxu0 0.0
      %1594 = vmatpush1.msra.mxu0 %v1554
      %1595 = vmatprep.subr.mxu0 0.0
      %1596 = vmatpush1.msra.mxu0 %v1553
      %1597 = vmatprep.subr.mxu0 0.0
      %1598 = vmatpush2.msra.mxu0 0.0
      %1599 = vmatprep.subr.mxu0 0.0
      %1600 = vmatpush2.msra.mxu0 0.0
      %1601 = vmatprep.subr.mxu0 0.0
      %1602 = vmatpush2.msra.mxu0 0.0
      %1603 = vmatprep.subr.mxu0 0.0
      %1604 = vmatpush2.msra.mxu0 0.0
      %1605 = vmatprep.subr.mxu0 0.0
      %1606 = vmatpush2.msra.mxu0 0.0
      %1607 = vmatprep.subr.mxu0 0.0
      %1608 = vmatpush2.msra.mxu0 0.0
      %1609 = vmatprep.subr.mxu0 0.0
      %1610 = vmatpush2.msra.mxu0 0.0
      %1611 = vmatprep.subr.mxu0 0.0
      %1612 = vmatpush2.msra.mxu0 0.0
      %1613 = vmatprep.subr.mxu0 0.0
      %1614 = vmatpush2.msra.mxu0 0.0
      %1615 = vmatprep.subr.mxu0 0.0
      %1616 = vmatpush2.msra.mxu0 0.0
      %1617 = vmatprep.subr.mxu0 0.0
      %1618 = vmatpush2.msra.mxu0 0.0
      %1619 = vmatprep.subr.mxu0 0.0
      %1620 = vmatpush2.msra.mxu0 0.0
      %1621 = vmatprep.subr.mxu0 0.0
      %1622 = vmatpush2.msra.mxu0 0.0
      %1623 = vmatprep.subr.mxu0 0.0
      %1624 = vmatpush2.msra.mxu0 0.0
      %1625 = vmatprep.subr.mxu0 0.0
      %1626 = vmatpush2.msra.mxu0 0.0
      %1627 = vmatprep.subr.mxu0 0.0
      %1628 = vmatpush2.msra.mxu0 0.0
      %1629 = vmatprep.mubr.f32.mxu0 0.0
      %1630 = vmatmul.mubr.f32.gmra.mxu0 %v628
      %v1631 = vpop.f32.mrf.mxu0
      %v1632 = vadd.f32 %v1563, %v1631
      %v1633 = vpop.f32.mrf.mxu0
      %1634 = vmatprep.mubr.f32.mxu0 0.0
      %1635 = vmatmul.mubr.f32.gmra.mxu0 %v631
      %v1636 = vpop.f32.mrf.mxu0
      %v1637 = vadd.f32 %v1563, %v1636
      %v1638 = vpop.f32.mrf.mxu0
      %1639 = vdwg.mxu0
      %s1640 = scalar_lea.vmem %s4, 416
      %v1641 = vld [vmem:[%s1640] sm:$0xff]
      %v1642 = vld [vmem:[%s1640 + $0x8] sm:$0xff]
      %v1643 = vld [vmem:[%s1640 + $0x10] sm:$0xff]
      %v1644 = vld [vmem:[%s1640 + $0x18] sm:$0xff]
      %s1645 = scalar_lea.vmem %s5, 13
      %v1646 = vld [vmem:[%s1645] sm:$0x1]
      %v1648 = vlaneseq
      %v1649 = vshrl.u32 %v1648, 7
      %v1650 = vsub.s32 0, %v1649
      %v1651 = vrot.slane %v1646, %v1650
      %1653 = vmatprep.subr.mxu0 0.0
      %1654 = vmatpush1.msra.mxu0 0.0
      %1655 = vmatprep.subr.mxu0 0.0
      %1656 = vmatpush1.msra.mxu0 0.0
      %1657 = vmatprep.subr.mxu0 0.0
      %1658 = vmatpush1.msra.mxu0 0.0
      %1659 = vmatprep.subr.mxu0 0.0
      %1660 = vmatpush1.msra.mxu0 0.0
      %1661 = vmatprep.subr.mxu0 0.0
      %1662 = vmatpush1.msra.mxu0 0.0
      %1663 = vmatprep.subr.mxu0 0.0
      %1664 = vmatpush1.msra.mxu0 0.0
      %1665 = vmatprep.subr.mxu0 0.0
      %1666 = vmatpush1.msra.mxu0 0.0
      %1667 = vmatprep.subr.mxu0 0.0
      %1668 = vmatpush1.msra.mxu0 0.0
      %1669 = vmatprep.subr.mxu0 0.0
      %1670 = vmatpush1.msra.mxu0 0.0
      %1671 = vmatprep.subr.mxu0 0.0
      %1672 = vmatpush1.msra.mxu0 0.0
      %1673 = vmatprep.subr.mxu0 0.0
      %1674 = vmatpush1.msra.mxu0 0.0
      %1675 = vmatprep.subr.mxu0 0.0
      %1676 = vmatpush1.msra.mxu0 0.0
      %1677 = vmatprep.subr.mxu0 0.0
      %1678 = vmatpush1.msra.mxu0 %v1644
      %1679 = vmatprep.subr.mxu0 0.0
      %1680 = vmatpush1.msra.mxu0 %v1643
      %1681 = vmatprep.subr.mxu0 0.0
      %1682 = vmatpush1.msra.mxu0 %v1642
      %1683 = vmatprep.subr.mxu0 0.0
      %1684 = vmatpush1.msra.mxu0 %v1641
      %1685 = vmatprep.subr.mxu0 0.0
      %1686 = vmatpush2.msra.mxu0 0.0
      %1687 = vmatprep.subr.mxu0 0.0
      %1688 = vmatpush2.msra.mxu0 0.0
      %1689 = vmatprep.subr.mxu0 0.0
      %1690 = vmatpush2.msra.mxu0 0.0
      %1691 = vmatprep.subr.mxu0 0.0
      %1692 = vmatpush2.msra.mxu0 0.0
      %1693 = vmatprep.subr.mxu0 0.0
      %1694 = vmatpush2.msra.mxu0 0.0
      %1695 = vmatprep.subr.mxu0 0.0
      %1696 = vmatpush2.msra.mxu0 0.0
      %1697 = vmatprep.subr.mxu0 0.0
      %1698 = vmatpush2.msra.mxu0 0.0
      %1699 = vmatprep.subr.mxu0 0.0
      %1700 = vmatpush2.msra.mxu0 0.0
      %1701 = vmatprep.subr.mxu0 0.0
      %1702 = vmatpush2.msra.mxu0 0.0
      %1703 = vmatprep.subr.mxu0 0.0
      %1704 = vmatpush2.msra.mxu0 0.0
      %1705 = vmatprep.subr.mxu0 0.0
      %1706 = vmatpush2.msra.mxu0 0.0
      %1707 = vmatprep.subr.mxu0 0.0
      %1708 = vmatpush2.msra.mxu0 0.0
      %1709 = vmatprep.subr.mxu0 0.0
      %1710 = vmatpush2.msra.mxu0 0.0
      %1711 = vmatprep.subr.mxu0 0.0
      %1712 = vmatpush2.msra.mxu0 0.0
      %1713 = vmatprep.subr.mxu0 0.0
      %1714 = vmatpush2.msra.mxu0 0.0
      %1715 = vmatprep.subr.mxu0 0.0
      %1716 = vmatpush2.msra.mxu0 0.0
      %1717 = vmatprep.mubr.f32.mxu0 0.0
      %1718 = vmatmul.mubr.f32.gmra.mxu0 %v898
      %v1719 = vpop.f32.mrf.mxu0
      %v1720 = vadd.f32 %v1651, %v1719
      %v1721 = vpop.f32.mrf.mxu0
      %1722 = vdwg.mxu0
      %s1723 = scalar_lea.vmem %s4, 544
      %v1724 = vld [vmem:[%s1723] sm:$0xff]
      %v1725 = vld [vmem:[%s1723 + $0x8] sm:$0xff]
      %v1726 = vld [vmem:[%s1723 + $0x10] sm:$0xff]
      %v1727 = vld [vmem:[%s1723 + $0x18] sm:$0xff]
      %s1728 = scalar_lea.vmem %s5, 17
      %v1729 = vld [vmem:[%s1728] sm:$0x1]
      %v1731 = vlaneseq
      %v1732 = vshrl.u32 %v1731, 7
      %v1733 = vsub.s32 0, %v1732
      %v1734 = vrot.slane %v1729, %v1733
      %1736 = vmatprep.subr.mxu0 0.0
      %1737 = vmatpush1.msra.mxu0 0.0
      %1738 = vmatprep.subr.mxu0 0.0
      %1739 = vmatpush1.msra.mxu0 0.0
      %1740 = vmatprep.subr.mxu0 0.0
      %1741 = vmatpush1.msra.mxu0 0.0
      %1742 = vmatprep.subr.mxu0 0.0
      %1743 = vmatpush1.msra.mxu0 0.0
      %1744 = vmatprep.subr.mxu0 0.0
      %1745 = vmatpush1.msra.mxu0 0.0
      %1746 = vmatprep.subr.mxu0 0.0
      %1747 = vmatpush1.msra.mxu0 0.0
      %1748 = vmatprep.subr.mxu0 0.0
      %1749 = vmatpush1.msra.mxu0 0.0
      %1750 = vmatprep.subr.mxu0 0.0
      %1751 = vmatpush1.msra.mxu0 0.0
      %1752 = vmatprep.subr.mxu0 0.0
      %1753 = vmatpush1.msra.mxu0 0.0
      %1754 = vmatprep.subr.mxu0 0.0
      %1755 = vmatpush1.msra.mxu0 0.0
      %1756 = vmatprep.subr.mxu0 0.0
      %1757 = vmatpush1.msra.mxu0 0.0
      %1758 = vmatprep.subr.mxu0 0.0
      %1759 = vmatpush1.msra.mxu0 0.0
      %1760 = vmatprep.subr.mxu0 0.0
      %1761 = vmatpush1.msra.mxu0 %v1727
      %1762 = vmatprep.subr.mxu0 0.0
      %1763 = vmatpush1.msra.mxu0 %v1726
      %1764 = vmatprep.subr.mxu0 0.0
      %1765 = vmatpush1.msra.mxu0 %v1725
      %1766 = vmatprep.subr.mxu0 0.0
      %1767 = vmatpush1.msra.mxu0 %v1724
      %1768 = vmatprep.subr.mxu0 0.0
      %1769 = vmatpush2.msra.mxu0 0.0
      %1770 = vmatprep.subr.mxu0 0.0
      %1771 = vmatpush2.msra.mxu0 0.0
      %1772 = vmatprep.subr.mxu0 0.0
      %1773 = vmatpush2.msra.mxu0 0.0
      %1774 = vmatprep.subr.mxu0 0.0
      %1775 = vmatpush2.msra.mxu0 0.0
      %1776 = vmatprep.subr.mxu0 0.0
      %1777 = vmatpush2.msra.mxu0 0.0
      %1778 = vmatprep.subr.mxu0 0.0
      %1779 = vmatpush2.msra.mxu0 0.0
      %1780 = vmatprep.subr.mxu0 0.0
      %1781 = vmatpush2.msra.mxu0 0.0
      %1782 = vmatprep.subr.mxu0 0.0
      %1783 = vmatpush2.msra.mxu0 0.0
      %1784 = vmatprep.subr.mxu0 0.0
      %1785 = vmatpush2.msra.mxu0 0.0
      %1786 = vmatprep.subr.mxu0 0.0
      %1787 = vmatpush2.msra.mxu0 0.0
      %1788 = vmatprep.subr.mxu0 0.0
      %1789 = vmatpush2.msra.mxu0 0.0
      %1790 = vmatprep.subr.mxu0 0.0
      %1791 = vmatpush2.msra.mxu0 0.0
      %1792 = vmatprep.subr.mxu0 0.0
      %1793 = vmatpush2.msra.mxu0 0.0
      %1794 = vmatprep.subr.mxu0 0.0
      %1795 = vmatpush2.msra.mxu0 0.0
      %1796 = vmatprep.subr.mxu0 0.0
      %1797 = vmatpush2.msra.mxu0 0.0
      %1798 = vmatprep.subr.mxu0 0.0
      %1799 = vmatpush2.msra.mxu0 0.0
      %1800 = vmatprep.mubr.f32.mxu0 0.0
      %1801 = vmatmul.mubr.f32.gmra.mxu0 %v898
      %v1802 = vpop.f32.mrf.mxu0
      %v1803 = vadd.f32 %v1734, %v1802
      %v1804 = vpop.f32.mrf.mxu0
      %1805 = vdwg.mxu0
      %s1806 = scalar_lea.vmem %s4, 672
      %v1807 = vld [vmem:[%s1806] sm:$0xff]
      %v1808 = vld [vmem:[%s1806 + $0x8] sm:$0xff]
      %v1809 = vld [vmem:[%s1806 + $0x10] sm:$0xff]
      %v1810 = vld [vmem:[%s1806 + $0x18] sm:$0xff]
      %s1811 = scalar_lea.vmem %s5, 21
      %v1812 = vld [vmem:[%s1811] sm:$0x1]
      %v1814 = vlaneseq
      %v1815 = vshrl.u32 %v1814, 7
      %v1816 = vsub.s32 0, %v1815
      %v1817 = vrot.slane %v1812, %v1816
      %1819 = vmatprep.subr.mxu0 0.0
      %1820 = vmatpush1.msra.mxu0 0.0
      %1821 = vmatprep.subr.mxu0 0.0
      %1822 = vmatpush1.msra.mxu0 0.0
      %1823 = vmatprep.subr.mxu0 0.0
      %1824 = vmatpush1.msra.mxu0 0.0
      %1825 = vmatprep.subr.mxu0 0.0
      %1826 = vmatpush1.msra.mxu0 0.0
      %1827 = vmatprep.subr.mxu0 0.0
      %1828 = vmatpush1.msra.mxu0 0.0
      %1829 = vmatprep.subr.mxu0 0.0
      %1830 = vmatpush1.msra.mxu0 0.0
      %1831 = vmatprep.subr.mxu0 0.0
      %1832 = vmatpush1.msra.mxu0 0.0
      %1833 = vmatprep.subr.mxu0 0.0
      %1834 = vmatpush1.msra.mxu0 0.0
      %1835 = vmatprep.subr.mxu0 0.0
      %1836 = vmatpush1.msra.mxu0 0.0
      %1837 = vmatprep.subr.mxu0 0.0
      %1838 = vmatpush1.msra.mxu0 0.0
      %1839 = vmatprep.subr.mxu0 0.0
      %1840 = vmatpush1.msra.mxu0 0.0
      %1841 = vmatprep.subr.mxu0 0.0
      %1842 = vmatpush1.msra.mxu0 0.0
      %1843 = vmatprep.subr.mxu0 0.0
      %1844 = vmatpush1.msra.mxu0 %v1810
      %1845 = vmatprep.subr.mxu0 0.0
      %1846 = vmatpush1.msra.mxu0 %v1809
      %1847 = vmatprep.subr.mxu0 0.0
      %1848 = vmatpush1.msra.mxu0 %v1808
      %1849 = vmatprep.subr.mxu0 0.0
      %1850 = vmatpush1.msra.mxu0 %v1807
      %1851 = vmatprep.subr.mxu0 0.0
      %1852 = vmatpush2.msra.mxu0 0.0
      %1853 = vmatprep.subr.mxu0 0.0
      %1854 = vmatpush2.msra.mxu0 0.0
      %1855 = vmatprep.subr.mxu0 0.0
      %1856 = vmatpush2.msra.mxu0 0.0
      %1857 = vmatprep.subr.mxu0 0.0
      %1858 = vmatpush2.msra.mxu0 0.0
      %1859 = vmatprep.subr.mxu0 0.0
      %1860 = vmatpush2.msra.mxu0 0.0
      %1861 = vmatprep.subr.mxu0 0.0
      %1862 = vmatpush2.msra.mxu0 0.0
      %1863 = vmatprep.subr.mxu0 0.0
      %1864 = vmatpush2.msra.mxu0 0.0
      %1865 = vmatprep.subr.mxu0 0.0
      %1866 = vmatpush2.msra.mxu0 0.0
      %1867 = vmatprep.subr.mxu0 0.0
      %1868 = vmatpush2.msra.mxu0 0.0
      %1869 = vmatprep.subr.mxu0 0.0
      %1870 = vmatpush2.msra.mxu0 0.0
      %1871 = vmatprep.subr.mxu0 0.0
      %1872 = vmatpush2.msra.mxu0 0.0
      %1873 = vmatprep.subr.mxu0 0.0
      %1874 = vmatpush2.msra.mxu0 0.0
      %1875 = vmatprep.subr.mxu0 0.0
      %1876 = vmatpush2.msra.mxu0 0.0
      %1877 = vmatprep.subr.mxu0 0.0
      %1878 = vmatpush2.msra.mxu0 0.0
      %1879 = vmatprep.subr.mxu0 0.0
      %1880 = vmatpush2.msra.mxu0 0.0
      %1881 = vmatprep.subr.mxu0 0.0
      %1882 = vmatpush2.msra.mxu0 0.0
      %1883 = vmatprep.mubr.f32.mxu0 0.0
      %1884 = vmatmul.mubr.f32.gmra.mxu0 %v1067
      %v1885 = vpop.f32.mrf.mxu0
      %v1886 = vadd.f32 %v1817, %v1885
      %v1887 = vpop.f32.mrf.mxu0
      %1888 = vdwg.mxu0
      %v1890 = vsel %vm1139, %v1456, 0
      %v1893 = vsel %vm1139, %v1461, 0
      %v1896 = vsel %vm1139, %v1720, 0
      %v1899 = vsel %vm1139, %v1544, 0
      %v1902 = vsel %vm1139, %v1549, 0
      %v1905 = vsel %vm1139, %v1803, 0
      %1907 = vmatprep.subr.mxu0 0.0
      %1908 = vmatpush1.xpose.msra.mxu0 0.0
      %1909 = vmatprep.subr.mxu0 0.0
      %1910 = vmatpush1.xpose.msra.mxu0 0.0
      %1911 = vmatprep.subr.mxu0 0.0
      %1912 = vmatpush1.xpose.msra.mxu0 0.0
      %1913 = vmatprep.subr.mxu0 0.0
      %1914 = vmatpush1.xpose.msra.mxu0 0.0
      %1915 = vmatprep.subr.mxu0 0.0
      %1916 = vmatpush1.xpose.msra.mxu0 0.0
      %1917 = vmatprep.subr.mxu0 0.0
      %1918 = vmatpush1.xpose.msra.mxu0 0.0
      %1919 = vmatprep.subr.mxu0 0.0
      %1920 = vmatpush1.xpose.msra.mxu0 0.0
      %1921 = vmatprep.subr.mxu0 0.0
      %1922 = vmatpush1.xpose.msra.mxu0 0.0
      %1923 = vmatprep.subr.mxu0 0.0
      %1924 = vmatpush1.xpose.msra.mxu0 0.0
      %1925 = vmatprep.subr.mxu0 0.0
      %1926 = vmatpush1.xpose.msra.mxu0 0.0
      %1927 = vmatprep.subr.mxu0 0.0
      %1928 = vmatpush1.xpose.msra.mxu0 0.0
      %1929 = vmatprep.subr.mxu0 0.0
      %1930 = vmatpush1.xpose.msra.mxu0 0.0
      %1931 = vmatprep.subr.mxu0 0.0
      %1932 = vmatpush1.xpose.msra.mxu0 0.0
      %1933 = vmatprep.subr.mxu0 0.0
      %1934 = vmatpush1.xpose.msra.mxu0 %v1905
      %1935 = vmatprep.subr.mxu0 0.0
      %1936 = vmatpush1.xpose.msra.mxu0 %v1902
      %1937 = vmatprep.subr.mxu0 0.0
      %1938 = vmatpush1.xpose.msra.mxu0 %v1899
      %1939 = vmatprep.subr.mxu0 0.0
      %1940 = vmatpush2.xpose.msra.mxu0 0.0
      %1941 = vmatprep.subr.mxu0 0.0
      %1942 = vmatpush2.xpose.msra.mxu0 0.0
      %1943 = vmatprep.subr.mxu0 0.0
      %1944 = vmatpush2.xpose.msra.mxu0 0.0
      %1945 = vmatprep.subr.mxu0 0.0
      %1946 = vmatpush2.xpose.msra.mxu0 0.0
      %1947 = vmatprep.subr.mxu0 0.0
      %1948 = vmatpush2.xpose.msra.mxu0 0.0
      %1949 = vmatprep.subr.mxu0 0.0
      %1950 = vmatpush2.xpose.msra.mxu0 0.0
      %1951 = vmatprep.subr.mxu0 0.0
      %1952 = vmatpush2.xpose.msra.mxu0 0.0
      %1953 = vmatprep.subr.mxu0 0.0
      %1954 = vmatpush2.xpose.msra.mxu0 0.0
      %1955 = vmatprep.subr.mxu0 0.0
      %1956 = vmatpush2.xpose.msra.mxu0 0.0
      %1957 = vmatprep.subr.mxu0 0.0
      %1958 = vmatpush2.xpose.msra.mxu0 0.0
      %1959 = vmatprep.subr.mxu0 0.0
      %1960 = vmatpush2.xpose.msra.mxu0 0.0
      %1961 = vmatprep.subr.mxu0 0.0
      %1962 = vmatpush2.xpose.msra.mxu0 0.0
      %1963 = vmatprep.subr.mxu0 0.0
      %1964 = vmatpush2.xpose.msra.mxu0 0.0
      %1965 = vmatprep.subr.mxu0 0.0
      %1966 = vmatpush2.xpose.msra.mxu0 0.0
      %1967 = vmatprep.subr.mxu0 0.0
      %1968 = vmatpush2.xpose.msra.mxu0 0.0
      %1969 = vmatprep.subr.mxu0 0.0
      %1970 = vmatpush2.xpose.msra.mxu0 0.0
      %1971 = vmatprep.mubr.f32.mxu0 0.0
      %1972 = vmatmul.mubr.f32.gmra.mxu0 %v1890
      %v1973 = vpop.f32.mrf.mxu0
      %v1974 = vadd.f32 0.0, %v1973
      %v1975 = vpop.f32.mrf.mxu0
      %1976 = vmatprep.mubr.f32.mxu0 0.0
      %1977 = vmatmul.mubr.f32.gmra.mxu0 %v1893
      %v1978 = vpop.f32.mrf.mxu0
      %v1979 = vadd.f32 0.0, %v1978
      %v1980 = vpop.f32.mrf.mxu0
      %1981 = vmatprep.mubr.f32.mxu0 0.0
      %1982 = vmatmul.mubr.f32.gmra.mxu0 %v1896
      %v1983 = vpop.f32.mrf.mxu0
      %v1984 = vadd.f32 0.0, %v1983
      %v1985 = vpop.f32.mrf.mxu0
      %1986 = vdwg.mxu0
      %v1987 = vmul.f32 %v1974, 0.35355338
      %v1988 = vmul.f32 %v1979, 0.35355338
      %v1989 = vmul.f32 %v1984, 0.35355338
      %v1990 = vadd.f32 %v1987, %v1245
      %v1991 = vadd.f32 %v1988, %v1245
      %v1992 = vadd.f32 %v1989, %v1245
      %v1993 = vsel %vm1250, %v1990, -inf
      %1994 = vmax.xlane.f32.xlu0 %v1993
      %v1995 = vpop.xlane.xlu0 %1994
      %v1996 = vsel %vm1250, %v1991, -inf
      %1997 = vmax.xlane.f32.xlu0 %v1996
      %v1998 = vpop.xlane.xlu0 %1997
      %v1999 = vsel %vm1250, %v1992, -inf
      %2000 = vmax.xlane.f32.xlu0 %v1999
      %v2001 = vpop.xlane.xlu0 %2000
      %v2002 = vsub.f32 %v1990, %v1995
      %v2003 = vsub.f32 %v1991, %v1998
      %v2004 = vsub.f32 %v1992, %v2001
      %v2005 = vmul.f32 %v2002, 1.442695
      %v2006 = vpow.pop %v2005
      %v2007 = vmul.f32 %v2003, 1.442695
      %v2008 = vpow.pop %v2007
      %v2009 = vmul.f32 %v2004, 1.442695
      %v2010 = vpow.pop %v2009
      %v2011 = vsel %vm1250, %v2006, 0.0
      %2012 = vadd.xlane.f32.xlu0 %v2011
      %v2013 = vpop.xlane.xlu0 %2012
      %v2014 = vsel %vm1250, %v2008, 0.0
      %2015 = vadd.xlane.f32.xlu0 %v2014
      %v2016 = vpop.xlane.xlu0 %2015
      %v2017 = vsel %vm1250, %v2010, 0.0
      %2018 = vadd.xlane.f32.xlu0 %v2017
      %v2019 = vpop.xlane.xlu0 %2018
      %v2020 = vrcp.pop %v2013
      %v2021 = vrcp.pop %v2016
      %v2022 = vrcp.pop %v2019
      %v2023 = vmul.f32 %v2006, %v2020
      %v2024 = vmul.f32 %v2008, %v2021
      %v2025 = vmul.f32 %v2010, %v2022
      %v2027 = vsel %vm1250, %v2023, 0
      %v2030 = vsel %vm1250, %v2024, 0
      %v2033 = vsel %vm1250, %v2025, 0
      %2035 = vmatprep.subr.mxu0 0.0
      %2036 = vmatpush1.msra.mxu0 0.0
      %2037 = vmatprep.subr.mxu0 0.0
      %2038 = vmatpush1.msra.mxu0 0.0
      %2039 = vmatprep.subr.mxu0 0.0
      %2040 = vmatpush1.msra.mxu0 0.0
      %2041 = vmatprep.subr.mxu0 0.0
      %2042 = vmatpush1.msra.mxu0 0.0
      %2043 = vmatprep.subr.mxu0 0.0
      %2044 = vmatpush1.msra.mxu0 0.0
      %2045 = vmatprep.subr.mxu0 0.0
      %2046 = vmatpush1.msra.mxu0 0.0
      %2047 = vmatprep.subr.mxu0 0.0
      %2048 = vmatpush1.msra.mxu0 0.0
      %2049 = vmatprep.subr.mxu0 0.0
      %2050 = vmatpush1.msra.mxu0 0.0
      %2051 = vmatprep.subr.mxu0 0.0
      %2052 = vmatpush1.msra.mxu0 0.0
      %2053 = vmatprep.subr.mxu0 0.0
      %2054 = vmatpush1.msra.mxu0 0.0
      %2055 = vmatprep.subr.mxu0 0.0
      %2056 = vmatpush1.msra.mxu0 0.0
      %2057 = vmatprep.subr.mxu0 0.0
      %2058 = vmatpush1.msra.mxu0 0.0
      %2059 = vmatprep.subr.mxu0 0.0
      %2060 = vmatpush1.msra.mxu0 0.0
      %2061 = vmatprep.subr.mxu0 0.0
      %2062 = vmatpush1.msra.mxu0 %v1886
      %2063 = vmatprep.subr.mxu0 0.0
      %2064 = vmatpush1.msra.mxu0 %v1637
      %2065 = vmatprep.subr.mxu0 0.0
      %2066 = vmatpush1.msra.mxu0 %v1632
      %2067 = vmatprep.subr.mxu0 0.0
      %2068 = vmatpush2.msra.mxu0 0.0
      %2069 = vmatprep.subr.mxu0 0.0
      %2070 = vmatpush2.msra.mxu0 0.0
      %2071 = vmatprep.subr.mxu0 0.0
      %2072 = vmatpush2.msra.mxu0 0.0
      %2073 = vmatprep.subr.mxu0 0.0
      %2074 = vmatpush2.msra.mxu0 0.0
      %2075 = vmatprep.subr.mxu0 0.0
      %2076 = vmatpush2.msra.mxu0 0.0
      %2077 = vmatprep.subr.mxu0 0.0
      %2078 = vmatpush2.msra.mxu0 0.0
      %2079 = vmatprep.subr.mxu0 0.0
      %2080 = vmatpush2.msra.mxu0 0.0
      %2081 = vmatprep.subr.mxu0 0.0
      %2082 = vmatpush2.msra.mxu0 0.0
      %2083 = vmatprep.subr.mxu0 0.0
      %2084 = vmatpush2.msra.mxu0 0.0
      %2085 = vmatprep.subr.mxu0 0.0
      %2086 = vmatpush2.msra.mxu0 0.0
      %2087 = vmatprep.subr.mxu0 0.0
      %2088 = vmatpush2.msra.mxu0 0.0
      %2089 = vmatprep.subr.mxu0 0.0
      %2090 = vmatpush2.msra.mxu0 0.0
      %2091 = vmatprep.subr.mxu0 0.0
      %2092 = vmatpush2.msra.mxu0 0.0
      %2093 = vmatprep.subr.mxu0 0.0
      %2094 = vmatpush2.msra.mxu0 0.0
      %2095 = vmatprep.subr.mxu0 0.0
      %2096 = vmatpush2.msra.mxu0 0.0
      %2097 = vmatprep.subr.mxu0 0.0
      %2098 = vmatpush2.msra.mxu0 0.0
      %2099 = vmatprep.mubr.f32.mxu0 0.0
      %2100 = vmatmul.mubr.f32.gmra.mxu0 %v2027
      %v2101 = vpop.f32.mrf.mxu0
      %v2102 = vadd.f32 0.0, %v2101
      %v2103 = vpop.f32.mrf.mxu0
      %2104 = vmatprep.mubr.f32.mxu0 0.0
      %2105 = vmatmul.mubr.f32.gmra.mxu0 %v2030
      %v2106 = vpop.f32.mrf.mxu0
      %v2107 = vadd.f32 0.0, %v2106
      %v2108 = vpop.f32.mrf.mxu0
      %2109 = vmatprep.mubr.f32.mxu0 0.0
      %2110 = vmatmul.mubr.f32.gmra.mxu0 %v2033
      %v2111 = vpop.f32.mrf.mxu0
      %v2112 = vadd.f32 0.0, %v2111
      %v2113 = vpop.f32.mrf.mxu0
      %2114 = vdwg.mxu0
      %s2115 = scalar_lea.vmem %s6, 8
      %v2116 = vld [vmem:[%s2115] sm:$0xff]
      %v2118 = vsel %vm1139, %v2102, 0
      %v2121 = vsel %vm1139, %v2107, 0
      %2123 = vmatprep.subr.mxu0 0.0
      %2124 = vmatpush1.msra.mxu0 0.0
      %2125 = vmatprep.subr.mxu0 0.0
      %2126 = vmatpush1.msra.mxu0 0.0
      %2127 = vmatprep.subr.mxu0 0.0
      %2128 = vmatpush1.msra.mxu0 0.0
      %2129 = vmatprep.subr.mxu0 0.0
      %2130 = vmatpush1.msra.mxu0 0.0
      %2131 = vmatprep.subr.mxu0 0.0
      %2132 = vmatpush1.msra.mxu0 0.0
      %2133 = vmatprep.subr.mxu0 0.0
      %2134 = vmatpush1.msra.mxu0 0.0
      %2135 = vmatprep.subr.mxu0 0.0
      %2136 = vmatpush1.msra.mxu0 0.0
      %2137 = vmatprep.subr.mxu0 0.0
      %2138 = vmatpush1.msra.mxu0 0.0
      %2139 = vmatprep.subr.mxu0 0.0
      %2140 = vmatpush1.msra.mxu0 0.0
      %2141 = vmatprep.subr.mxu0 0.0
      %2142 = vmatpush1.msra.mxu0 0.0
      %2143 = vmatprep.subr.mxu0 0.0
      %2144 = vmatpush1.msra.mxu0 0.0
      %2145 = vmatprep.subr.mxu0 0.0
      %2146 = vmatpush1.msra.mxu0 0.0
      %2147 = vmatprep.subr.mxu0 0.0
      %2148 = vmatpush1.msra.mxu0 0.0
      %2149 = vmatprep.subr.mxu0 0.0
      %2150 = vmatpush1.msra.mxu0 0.0
      %2151 = vmatprep.subr.mxu0 0.0
      %2152 = vmatpush1.msra.mxu0 0.0
      %2153 = vmatprep.subr.mxu0 0.0
      %2154 = vmatpush1.msra.mxu0 %v2116
      %2155 = vmatprep.subr.mxu0 0.0
      %2156 = vmatpush2.msra.mxu0 0.0
      %2157 = vmatprep.subr.mxu0 0.0
      %2158 = vmatpush2.msra.mxu0 0.0
      %2159 = vmatprep.subr.mxu0 0.0
      %2160 = vmatpush2.msra.mxu0 0.0
      %2161 = vmatprep.subr.mxu0 0.0
      %2162 = vmatpush2.msra.mxu0 0.0
      %2163 = vmatprep.subr.mxu0 0.0
      %2164 = vmatpush2.msra.mxu0 0.0
      %2165 = vmatprep.subr.mxu0 0.0
      %2166 = vmatpush2.msra.mxu0 0.0
      %2167 = vmatprep.subr.mxu0 0.0
      %2168 = vmatpush2.msra.mxu0 0.0
      %2169 = vmatprep.subr.mxu0 0.0
      %2170 = vmatpush2.msra.mxu0 0.0
      %2171 = vmatprep.subr.mxu0 0.0
      %2172 = vmatpush2.msra.mxu0 0.0
      %2173 = vmatprep.subr.mxu0 0.0
      %2174 = vmatpush2.msra.mxu0 0.0
      %2175 = vmatprep.subr.mxu0 0.0
      %2176 = vmatpush2.msra.mxu0 0.0
      %2177 = vmatprep.subr.mxu0 0.0
      %2178 = vmatpush2.msra.mxu0 0.0
      %2179 = vmatprep.subr.mxu0 0.0
      %2180 = vmatpush2.msra.mxu0 0.0
      %2181 = vmatprep.subr.mxu0 0.0
      %2182 = vmatpush2.msra.mxu0 0.0
      %2183 = vmatprep.subr.mxu0 0.0
      %2184 = vmatpush2.msra.mxu0 0.0
      %2185 = vmatprep.subr.mxu0 0.0
      %2186 = vmatpush2.msra.mxu0 0.0
      %2187 = vmatprep.mubr.f32.mxu0 0.0
      %2188 = vmatmul.mubr.f32.gmra.mxu0 %v2118
      %v2189 = vpop.f32.mrf.mxu0
      %v2190 = vadd.f32 0.0, %v2189
      %v2191 = vpop.f32.mrf.mxu0
      %2192 = vmatprep.mubr.f32.mxu0 0.0
      %2193 = vmatmul.mubr.f32.gmra.mxu0 %v2121
      %v2194 = vpop.f32.mrf.mxu0
      %v2195 = vadd.f32 0.0, %v2194
      %v2196 = vpop.f32.mrf.mxu0
      %2197 = vdwg.mxu0
      %v2199 = vsel %vm1139, %v1360, 0
      %v2202 = vsel %vm1139, %v1365, 0
      %2204 = vmatprep.subr.mxu0 0.0
      %2205 = vmatpush1.msra.mxu0 0.0
      %2206 = vmatprep.subr.mxu0 0.0
      %2207 = vmatpush1.msra.mxu0 0.0
      %2208 = vmatprep.subr.mxu0 0.0
      %2209 = vmatpush1.msra.mxu0 0.0
      %2210 = vmatprep.subr.mxu0 0.0
      %2211 = vmatpush1.msra.mxu0 0.0
      %2212 = vmatprep.subr.mxu0 0.0
      %2213 = vmatpush1.msra.mxu0 0.0
      %2214 = vmatprep.subr.mxu0 0.0
      %2215 = vmatpush1.msra.mxu0 0.0
      %2216 = vmatprep.subr.mxu0 0.0
      %2217 = vmatpush1.msra.mxu0 0.0
      %2218 = vmatprep.subr.mxu0 0.0
      %2219 = vmatpush1.msra.mxu0 0.0
      %2220 = vmatprep.subr.mxu0 0.0
      %2221 = vmatpush1.msra.mxu0 0.0
      %2222 = vmatprep.subr.mxu0 0.0
      %2223 = vmatpush1.msra.mxu0 0.0
      %2224 = vmatprep.subr.mxu0 0.0
      %2225 = vmatpush1.msra.mxu0 0.0
      %2226 = vmatprep.subr.mxu0 0.0
      %2227 = vmatpush1.msra.mxu0 0.0
      %2228 = vmatprep.subr.mxu0 0.0
      %2229 = vmatpush1.msra.mxu0 0.0
      %2230 = vmatprep.subr.mxu0 0.0
      %2231 = vmatpush1.msra.mxu0 0.0
      %2232 = vmatprep.subr.mxu0 0.0
      %2233 = vmatpush1.msra.mxu0 0.0
      %2234 = vmatprep.subr.mxu0 0.0
      %2235 = vmatpush1.msra.mxu0 %v1373
      %2236 = vmatprep.subr.mxu0 0.0
      %2237 = vmatpush2.msra.mxu0 0.0
      %2238 = vmatprep.subr.mxu0 0.0
      %2239 = vmatpush2.msra.mxu0 0.0
      %2240 = vmatprep.subr.mxu0 0.0
      %2241 = vmatpush2.msra.mxu0 0.0
      %2242 = vmatprep.subr.mxu0 0.0
      %2243 = vmatpush2.msra.mxu0 0.0
      %2244 = vmatprep.subr.mxu0 0.0
      %2245 = vmatpush2.msra.mxu0 0.0
      %2246 = vmatprep.subr.mxu0 0.0
      %2247 = vmatpush2.msra.mxu0 0.0
      %2248 = vmatprep.subr.mxu0 0.0
      %2249 = vmatpush2.msra.mxu0 0.0
      %2250 = vmatprep.subr.mxu0 0.0
      %2251 = vmatpush2.msra.mxu0 0.0
      %2252 = vmatprep.subr.mxu0 0.0
      %2253 = vmatpush2.msra.mxu0 0.0
      %2254 = vmatprep.subr.mxu0 0.0
      %2255 = vmatpush2.msra.mxu0 0.0
      %2256 = vmatprep.subr.mxu0 0.0
      %2257 = vmatpush2.msra.mxu0 0.0
      %2258 = vmatprep.subr.mxu0 0.0
      %2259 = vmatpush2.msra.mxu0 0.0
      %2260 = vmatprep.subr.mxu0 0.0
      %2261 = vmatpush2.msra.mxu0 0.0
      %2262 = vmatprep.subr.mxu0 0.0
      %2263 = vmatpush2.msra.mxu0 0.0
      %2264 = vmatprep.subr.mxu0 0.0
      %2265 = vmatpush2.msra.mxu0 0.0
      %2266 = vmatprep.subr.mxu0 0.0
      %2267 = vmatpush2.msra.mxu0 0.0
      %2268 = vmatprep.mubr.f32.mxu0 0.0
      %2269 = vmatmul.mubr.f32.gmra.mxu0 %v2199
      %v2270 = vpop.f32.mrf.mxu0
      %v2271 = vadd.f32 %v2190, %v2270
      %v2272 = vpop.f32.mrf.mxu0
      %2273 = vmatprep.mubr.f32.mxu0 0.0
      %2274 = vmatmul.mubr.f32.gmra.mxu0 %v2202
      %v2275 = vpop.f32.mrf.mxu0
      %v2276 = vadd.f32 %v2195, %v2275
      %v2277 = vpop.f32.mrf.mxu0
      %2278 = vdwg.mxu0
      %s2279 = scalar_lea.vmem %s6, 40
      %v2280 = vld [vmem:[%s2279] sm:$0xff]
      %v2282 = vsel %vm1139, %v2112, 0
      %2284 = vmatprep.subr.mxu0 0.0
      %2285 = vmatpush1.msra.mxu0 0.0
      %2286 = vmatprep.subr.mxu0 0.0
      %2287 = vmatpush1.msra.mxu0 0.0
      %2288 = vmatprep.subr.mxu0 0.0
      %2289 = vmatpush1.msra.mxu0 0.0
      %2290 = vmatprep.subr.mxu0 0.0
      %2291 = vmatpush1.msra.mxu0 0.0
      %2292 = vmatprep.subr.mxu0 0.0
      %2293 = vmatpush1.msra.mxu0 0.0
      %2294 = vmatprep.subr.mxu0 0.0
      %2295 = vmatpush1.msra.mxu0 0.0
      %2296 = vmatprep.subr.mxu0 0.0
      %2297 = vmatpush1.msra.mxu0 0.0
      %2298 = vmatprep.subr.mxu0 0.0
      %2299 = vmatpush1.msra.mxu0 0.0
      %2300 = vmatprep.subr.mxu0 0.0
      %2301 = vmatpush1.msra.mxu0 0.0
      %2302 = vmatprep.subr.mxu0 0.0
      %2303 = vmatpush1.msra.mxu0 0.0
      %2304 = vmatprep.subr.mxu0 0.0
      %2305 = vmatpush1.msra.mxu0 0.0
      %2306 = vmatprep.subr.mxu0 0.0
      %2307 = vmatpush1.msra.mxu0 0.0
      %2308 = vmatprep.subr.mxu0 0.0
      %2309 = vmatpush1.msra.mxu0 0.0
      %2310 = vmatprep.subr.mxu0 0.0
      %2311 = vmatpush1.msra.mxu0 0.0
      %2312 = vmatprep.subr.mxu0 0.0
      %2313 = vmatpush1.msra.mxu0 0.0
      %2314 = vmatprep.subr.mxu0 0.0
      %2315 = vmatpush1.msra.mxu0 %v2280
      %2316 = vmatprep.subr.mxu0 0.0
      %2317 = vmatpush2.msra.mxu0 0.0
      %2318 = vmatprep.subr.mxu0 0.0
      %2319 = vmatpush2.msra.mxu0 0.0
      %2320 = vmatprep.subr.mxu0 0.0
      %2321 = vmatpush2.msra.mxu0 0.0
      %2322 = vmatprep.subr.mxu0 0.0
      %2323 = vmatpush2.msra.mxu0 0.0
      %2324 = vmatprep.subr.mxu0 0.0
      %2325 = vmatpush2.msra.mxu0 0.0
      %2326 = vmatprep.subr.mxu0 0.0
      %2327 = vmatpush2.msra.mxu0 0.0
      %2328 = vmatprep.subr.mxu0 0.0
      %2329 = vmatpush2.msra.mxu0 0.0
      %2330 = vmatprep.subr.mxu0 0.0
      %2331 = vmatpush2.msra.mxu0 0.0
      %2332 = vmatprep.subr.mxu0 0.0
      %2333 = vmatpush2.msra.mxu0 0.0
      %2334 = vmatprep.subr.mxu0 0.0
      %2335 = vmatpush2.msra.mxu0 0.0
      %2336 = vmatprep.subr.mxu0 0.0
      %2337 = vmatpush2.msra.mxu0 0.0
      %2338 = vmatprep.subr.mxu0 0.0
      %2339 = vmatpush2.msra.mxu0 0.0
      %2340 = vmatprep.subr.mxu0 0.0
      %2341 = vmatpush2.msra.mxu0 0.0
      %2342 = vmatprep.subr.mxu0 0.0
      %2343 = vmatpush2.msra.mxu0 0.0
      %2344 = vmatprep.subr.mxu0 0.0
      %2345 = vmatpush2.msra.mxu0 0.0
      %2346 = vmatprep.subr.mxu0 0.0
      %2347 = vmatpush2.msra.mxu0 0.0
      %2348 = vmatprep.mubr.f32.mxu0 0.0
      %2349 = vmatmul.mubr.f32.gmra.mxu0 %v2282
      %v2350 = vpop.f32.mrf.mxu0
      %v2351 = vadd.f32 0.0, %v2350
      %v2352 = vpop.f32.mrf.mxu0
      %2353 = vdwg.mxu0
      %v2355 = vsel %vm1139, %v1370, 0
      %2357 = vmatprep.subr.mxu0 0.0
      %2358 = vmatpush1.msra.mxu0 0.0
      %2359 = vmatprep.subr.mxu0 0.0
      %2360 = vmatpush1.msra.mxu0 0.0
      %2361 = vmatprep.subr.mxu0 0.0
      %2362 = vmatpush1.msra.mxu0 0.0
      %2363 = vmatprep.subr.mxu0 0.0
      %2364 = vmatpush1.msra.mxu0 0.0
      %2365 = vmatprep.subr.mxu0 0.0
      %2366 = vmatpush1.msra.mxu0 0.0
      %2367 = vmatprep.subr.mxu0 0.0
      %2368 = vmatpush1.msra.mxu0 0.0
      %2369 = vmatprep.subr.mxu0 0.0
      %2370 = vmatpush1.msra.mxu0 0.0
      %2371 = vmatprep.subr.mxu0 0.0
      %2372 = vmatpush1.msra.mxu0 0.0
      %2373 = vmatprep.subr.mxu0 0.0
      %2374 = vmatpush1.msra.mxu0 0.0
      %2375 = vmatprep.subr.mxu0 0.0
      %2376 = vmatpush1.msra.mxu0 0.0
      %2377 = vmatprep.subr.mxu0 0.0
      %2378 = vmatpush1.msra.mxu0 0.0
      %2379 = vmatprep.subr.mxu0 0.0
      %2380 = vmatpush1.msra.mxu0 0.0
      %2381 = vmatprep.subr.mxu0 0.0
      %2382 = vmatpush1.msra.mxu0 0.0
      %2383 = vmatprep.subr.mxu0 0.0
      %2384 = vmatpush1.msra.mxu0 0.0
      %2385 = vmatprep.subr.mxu0 0.0
      %2386 = vmatpush1.msra.mxu0 0.0
      %2387 = vmatprep.subr.mxu0 0.0
      %2388 = vmatpush1.msra.mxu0 %v1375
      %2389 = vmatprep.subr.mxu0 0.0
      %2390 = vmatpush2.msra.mxu0 0.0
      %2391 = vmatprep.subr.mxu0 0.0
      %2392 = vmatpush2.msra.mxu0 0.0
      %2393 = vmatprep.subr.mxu0 0.0
      %2394 = vmatpush2.msra.mxu0 0.0
      %2395 = vmatprep.subr.mxu0 0.0
      %2396 = vmatpush2.msra.mxu0 0.0
      %2397 = vmatprep.subr.mxu0 0.0
      %2398 = vmatpush2.msra.mxu0 0.0
      %2399 = vmatprep.subr.mxu0 0.0
      %2400 = vmatpush2.msra.mxu0 0.0
      %2401 = vmatprep.subr.mxu0 0.0
      %2402 = vmatpush2.msra.mxu0 0.0
      %2403 = vmatprep.subr.mxu0 0.0
      %2404 = vmatpush2.msra.mxu0 0.0
      %2405 = vmatprep.subr.mxu0 0.0
      %2406 = vmatpush2.msra.mxu0 0.0
      %2407 = vmatprep.subr.mxu0 0.0
      %2408 = vmatpush2.msra.mxu0 0.0
      %2409 = vmatprep.subr.mxu0 0.0
      %2410 = vmatpush2.msra.mxu0 0.0
      %2411 = vmatprep.subr.mxu0 0.0
      %2412 = vmatpush2.msra.mxu0 0.0
      %2413 = vmatprep.subr.mxu0 0.0
      %2414 = vmatpush2.msra.mxu0 0.0
      %2415 = vmatprep.subr.mxu0 0.0
      %2416 = vmatpush2.msra.mxu0 0.0
      %2417 = vmatprep.subr.mxu0 0.0
      %2418 = vmatpush2.msra.mxu0 0.0
      %2419 = vmatprep.subr.mxu0 0.0
      %2420 = vmatpush2.msra.mxu0 0.0
      %2421 = vmatprep.mubr.f32.mxu0 0.0
      %2422 = vmatmul.mubr.f32.gmra.mxu0 %v2355
      %v2423 = vpop.f32.mrf.mxu0
      %v2424 = vadd.f32 %v2351, %v2423
      %v2425 = vpop.f32.mrf.mxu0
      %2426 = vdwg.mxu0
      %s2427 = scalar_lea.vmem %s4, 64
      %v2428 = vld [vmem:[%s2427] sm:$0xff]
      %v2429 = vld [vmem:[%s2427 + $0x8] sm:$0xff]
      %v2430 = vld [vmem:[%s2427 + $0x10] sm:$0xff]
      %v2431 = vld [vmem:[%s2427 + $0x18] sm:$0xff]
      %s2432 = scalar_lea.vmem %s5, 2
      %v2433 = vld [vmem:[%s2432] sm:$0x1]
      %v2435 = vlaneseq
      %v2436 = vshrl.u32 %v2435, 7
      %v2437 = vsub.s32 0, %v2436
      %v2438 = vrot.slane %v2433, %v2437
      %2440 = vmatprep.subr.mxu0 0.0
      %2441 = vmatpush1.msra.mxu0 0.0
      %2442 = vmatprep.subr.mxu0 0.0
      %2443 = vmatpush1.msra.mxu0 0.0
      %2444 = vmatprep.subr.mxu0 0.0
      %2445 = vmatpush1.msra.mxu0 0.0
      %2446 = vmatprep.subr.mxu0 0.0
      %2447 = vmatpush1.msra.mxu0 0.0
      %2448 = vmatprep.subr.mxu0 0.0
      %2449 = vmatpush1.msra.mxu0 0.0
      %2450 = vmatprep.subr.mxu0 0.0
      %2451 = vmatpush1.msra.mxu0 0.0
      %2452 = vmatprep.subr.mxu0 0.0
      %2453 = vmatpush1.msra.mxu0 0.0
      %2454 = vmatprep.subr.mxu0 0.0
      %2455 = vmatpush1.msra.mxu0 0.0
      %2456 = vmatprep.subr.mxu0 0.0
      %2457 = vmatpush1.msra.mxu0 0.0
      %2458 = vmatprep.subr.mxu0 0.0
      %2459 = vmatpush1.msra.mxu0 0.0
      %2460 = vmatprep.subr.mxu0 0.0
      %2461 = vmatpush1.msra.mxu0 0.0
      %2462 = vmatprep.subr.mxu0 0.0
      %2463 = vmatpush1.msra.mxu0 0.0
      %2464 = vmatprep.subr.mxu0 0.0
      %2465 = vmatpush1.msra.mxu0 %v2431
      %2466 = vmatprep.subr.mxu0 0.0
      %2467 = vmatpush1.msra.mxu0 %v2430
      %2468 = vmatprep.subr.mxu0 0.0
      %2469 = vmatpush1.msra.mxu0 %v2429
      %2470 = vmatprep.subr.mxu0 0.0
      %2471 = vmatpush1.msra.mxu0 %v2428
      %2472 = vmatprep.subr.mxu0 0.0
      %2473 = vmatpush2.msra.mxu0 0.0
      %2474 = vmatprep.subr.mxu0 0.0
      %2475 = vmatpush2.msra.mxu0 0.0
      %2476 = vmatprep.subr.mxu0 0.0
      %2477 = vmatpush2.msra.mxu0 0.0
      %2478 = vmatprep.subr.mxu0 0.0
      %2479 = vmatpush2.msra.mxu0 0.0
      %2480 = vmatprep.subr.mxu0 0.0
      %2481 = vmatpush2.msra.mxu0 0.0
      %2482 = vmatprep.subr.mxu0 0.0
      %2483 = vmatpush2.msra.mxu0 0.0
      %2484 = vmatprep.subr.mxu0 0.0
      %2485 = vmatpush2.msra.mxu0 0.0
      %2486 = vmatprep.subr.mxu0 0.0
      %2487 = vmatpush2.msra.mxu0 0.0
      %2488 = vmatprep.subr.mxu0 0.0
      %2489 = vmatpush2.msra.mxu0 0.0
      %2490 = vmatprep.subr.mxu0 0.0
      %2491 = vmatpush2.msra.mxu0 0.0
      %2492 = vmatprep.subr.mxu0 0.0
      %2493 = vmatpush2.msra.mxu0 0.0
      %2494 = vmatprep.subr.mxu0 0.0
      %2495 = vmatpush2.msra.mxu0 0.0
      %2496 = vmatprep.subr.mxu0 0.0
      %2497 = vmatpush2.msra.mxu0 0.0
      %2498 = vmatprep.subr.mxu0 0.0
      %2499 = vmatpush2.msra.mxu0 0.0
      %2500 = vmatprep.subr.mxu0 0.0
      %2501 = vmatpush2.msra.mxu0 0.0
      %2502 = vmatprep.subr.mxu0 0.0
      %2503 = vmatpush2.msra.mxu0 0.0
      %2504 = vmatprep.mubr.f32.mxu0 0.0
      %2505 = vmatmul.mubr.f32.gmra.mxu0 %v628
      %v2506 = vpop.f32.mrf.mxu0
      %v2507 = vadd.f32 %v2438, %v2506
      %v2508 = vpop.f32.mrf.mxu0
      %2509 = vmatprep.mubr.f32.mxu0 0.0
      %2510 = vmatmul.mubr.f32.gmra.mxu0 %v631
      %v2511 = vpop.f32.mrf.mxu0
      %v2512 = vadd.f32 %v2438, %v2511
      %v2513 = vpop.f32.mrf.mxu0
      %2514 = vdwg.mxu0
      %s2515 = scalar_lea.vmem %s4, 192
      %v2516 = vld [vmem:[%s2515] sm:$0xff]
      %v2517 = vld [vmem:[%s2515 + $0x8] sm:$0xff]
      %v2518 = vld [vmem:[%s2515 + $0x10] sm:$0xff]
      %v2519 = vld [vmem:[%s2515 + $0x18] sm:$0xff]
      %s2520 = scalar_lea.vmem %s5, 6
      %v2521 = vld [vmem:[%s2520] sm:$0x1]
      %v2523 = vlaneseq
      %v2524 = vshrl.u32 %v2523, 7
      %v2525 = vsub.s32 0, %v2524
      %v2526 = vrot.slane %v2521, %v2525
      %2528 = vmatprep.subr.mxu0 0.0
      %2529 = vmatpush1.msra.mxu0 0.0
      %2530 = vmatprep.subr.mxu0 0.0
      %2531 = vmatpush1.msra.mxu0 0.0
      %2532 = vmatprep.subr.mxu0 0.0
      %2533 = vmatpush1.msra.mxu0 0.0
      %2534 = vmatprep.subr.mxu0 0.0
      %2535 = vmatpush1.msra.mxu0 0.0
      %2536 = vmatprep.subr.mxu0 0.0
      %2537 = vmatpush1.msra.mxu0 0.0
      %2538 = vmatprep.subr.mxu0 0.0
      %2539 = vmatpush1.msra.mxu0 0.0
      %2540 = vmatprep.subr.mxu0 0.0
      %2541 = vmatpush1.msra.mxu0 0.0
      %2542 = vmatprep.subr.mxu0 0.0
      %2543 = vmatpush1.msra.mxu0 0.0
      %2544 = vmatprep.subr.mxu0 0.0
      %2545 = vmatpush1.msra.mxu0 0.0
      %2546 = vmatprep.subr.mxu0 0.0
      %2547 = vmatpush1.msra.mxu0 0.0
      %2548 = vmatprep.subr.mxu0 0.0
      %2549 = vmatpush1.msra.mxu0 0.0
      %2550 = vmatprep.subr.mxu0 0.0
      %2551 = vmatpush1.msra.mxu0 0.0
      %2552 = vmatprep.subr.mxu0 0.0
      %2553 = vmatpush1.msra.mxu0 %v2519
      %2554 = vmatprep.subr.mxu0 0.0
      %2555 = vmatpush1.msra.mxu0 %v2518
      %2556 = vmatprep.subr.mxu0 0.0
      %2557 = vmatpush1.msra.mxu0 %v2517
      %2558 = vmatprep.subr.mxu0 0.0
      %2559 = vmatpush1.msra.mxu0 %v2516
      %2560 = vmatprep.subr.mxu0 0.0
      %2561 = vmatpush2.msra.mxu0 0.0
      %2562 = vmatprep.subr.mxu0 0.0
      %2563 = vmatpush2.msra.mxu0 0.0
      %2564 = vmatprep.subr.mxu0 0.0
      %2565 = vmatpush2.msra.mxu0 0.0
      %2566 = vmatprep.subr.mxu0 0.0
      %2567 = vmatpush2.msra.mxu0 0.0
      %2568 = vmatprep.subr.mxu0 0.0
      %2569 = vmatpush2.msra.mxu0 0.0
      %2570 = vmatprep.subr.mxu0 0.0
      %2571 = vmatpush2.msra.mxu0 0.0
      %2572 = vmatprep.subr.mxu0 0.0
      %2573 = vmatpush2.msra.mxu0 0.0
      %2574 = vmatprep.subr.mxu0 0.0
      %2575 = vmatpush2.msra.mxu0 0.0
      %2576 = vmatprep.subr.mxu0 0.0
      %2577 = vmatpush2.msra.mxu0 0.0
      %2578 = vmatprep.subr.mxu0 0.0
      %2579 = vmatpush2.msra.mxu0 0.0
      %2580 = vmatprep.subr.mxu0 0.0
      %2581 = vmatpush2.msra.mxu0 0.0
      %2582 = vmatprep.subr.mxu0 0.0
      %2583 = vmatpush2.msra.mxu0 0.0
      %2584 = vmatprep.subr.mxu0 0.0
      %2585 = vmatpush2.msra.mxu0 0.0
      %2586 = vmatprep.subr.mxu0 0.0
      %2587 = vmatpush2.msra.mxu0 0.0
      %2588 = vmatprep.subr.mxu0 0.0
      %2589 = vmatpush2.msra.mxu0 0.0
      %2590 = vmatprep.subr.mxu0 0.0
      %2591 = vmatpush2.msra.mxu0 0.0
      %2592 = vmatprep.mubr.f32.mxu0 0.0
      %2593 = vmatmul.mubr.f32.gmra.mxu0 %v628
      %v2594 = vpop.f32.mrf.mxu0
      %v2595 = vadd.f32 %v2526, %v2594
      %v2596 = vpop.f32.mrf.mxu0
      %2597 = vmatprep.mubr.f32.mxu0 0.0
      %2598 = vmatmul.mubr.f32.gmra.mxu0 %v631
      %v2599 = vpop.f32.mrf.mxu0
      %v2600 = vadd.f32 %v2526, %v2599
      %v2601 = vpop.f32.mrf.mxu0
      %2602 = vdwg.mxu0
      %s2603 = scalar_lea.vmem %s4, 320
      %v2604 = vld [vmem:[%s2603] sm:$0xff]
      %v2605 = vld [vmem:[%s2603 + $0x8] sm:$0xff]
      %v2606 = vld [vmem:[%s2603 + $0x10] sm:$0xff]
      %v2607 = vld [vmem:[%s2603 + $0x18] sm:$0xff]
      %s2608 = scalar_lea.vmem %s5, 10
      %v2609 = vld [vmem:[%s2608] sm:$0x1]
      %v2611 = vlaneseq
      %v2612 = vshrl.u32 %v2611, 7
      %v2613 = vsub.s32 0, %v2612
      %v2614 = vrot.slane %v2609, %v2613
      %2616 = vmatprep.subr.mxu0 0.0
      %2617 = vmatpush1.msra.mxu0 0.0
      %2618 = vmatprep.subr.mxu0 0.0
      %2619 = vmatpush1.msra.mxu0 0.0
      %2620 = vmatprep.subr.mxu0 0.0
      %2621 = vmatpush1.msra.mxu0 0.0
      %2622 = vmatprep.subr.mxu0 0.0
      %2623 = vmatpush1.msra.mxu0 0.0
      %2624 = vmatprep.subr.mxu0 0.0
      %2625 = vmatpush1.msra.mxu0 0.0
      %2626 = vmatprep.subr.mxu0 0.0
      %2627 = vmatpush1.msra.mxu0 0.0
      %2628 = vmatprep.subr.mxu0 0.0
      %2629 = vmatpush1.msra.mxu0 0.0
      %2630 = vmatprep.subr.mxu0 0.0
      %2631 = vmatpush1.msra.mxu0 0.0
      %2632 = vmatprep.subr.mxu0 0.0
      %2633 = vmatpush1.msra.mxu0 0.0
      %2634 = vmatprep.subr.mxu0 0.0
      %2635 = vmatpush1.msra.mxu0 0.0
      %2636 = vmatprep.subr.mxu0 0.0
      %2637 = vmatpush1.msra.mxu0 0.0
      %2638 = vmatprep.subr.mxu0 0.0
      %2639 = vmatpush1.msra.mxu0 0.0
      %2640 = vmatprep.subr.mxu0 0.0
      %2641 = vmatpush1.msra.mxu0 %v2607
      %2642 = vmatprep.subr.mxu0 0.0
      %2643 = vmatpush1.msra.mxu0 %v2606
      %2644 = vmatprep.subr.mxu0 0.0
      %2645 = vmatpush1.msra.mxu0 %v2605
      %2646 = vmatprep.subr.mxu0 0.0
      %2647 = vmatpush1.msra.mxu0 %v2604
      %2648 = vmatprep.subr.mxu0 0.0
      %2649 = vmatpush2.msra.mxu0 0.0
      %2650 = vmatprep.subr.mxu0 0.0
      %2651 = vmatpush2.msra.mxu0 0.0
      %2652 = vmatprep.subr.mxu0 0.0
      %2653 = vmatpush2.msra.mxu0 0.0
      %2654 = vmatprep.subr.mxu0 0.0
      %2655 = vmatpush2.msra.mxu0 0.0
      %2656 = vmatprep.subr.mxu0 0.0
      %2657 = vmatpush2.msra.mxu0 0.0
      %2658 = vmatprep.subr.mxu0 0.0
      %2659 = vmatpush2.msra.mxu0 0.0
      %2660 = vmatprep.subr.mxu0 0.0
      %2661 = vmatpush2.msra.mxu0 0.0
      %2662 = vmatprep.subr.mxu0 0.0
      %2663 = vmatpush2.msra.mxu0 0.0
      %2664 = vmatprep.subr.mxu0 0.0
      %2665 = vmatpush2.msra.mxu0 0.0
      %2666 = vmatprep.subr.mxu0 0.0
      %2667 = vmatpush2.msra.mxu0 0.0
      %2668 = vmatprep.subr.mxu0 0.0
      %2669 = vmatpush2.msra.mxu0 0.0
      %2670 = vmatprep.subr.mxu0 0.0
      %2671 = vmatpush2.msra.mxu0 0.0
      %2672 = vmatprep.subr.mxu0 0.0
      %2673 = vmatpush2.msra.mxu0 0.0
      %2674 = vmatprep.subr.mxu0 0.0
      %2675 = vmatpush2.msra.mxu0 0.0
      %2676 = vmatprep.subr.mxu0 0.0
      %2677 = vmatpush2.msra.mxu0 0.0
      %2678 = vmatprep.subr.mxu0 0.0
      %2679 = vmatpush2.msra.mxu0 0.0
      %2680 = vmatprep.mubr.f32.mxu0 0.0
      %2681 = vmatmul.mubr.f32.gmra.mxu0 %v628
      %v2682 = vpop.f32.mrf.mxu0
      %v2683 = vadd.f32 %v2614, %v2682
      %v2684 = vpop.f32.mrf.mxu0
      %2685 = vmatprep.mubr.f32.mxu0 0.0
      %2686 = vmatmul.mubr.f32.gmra.mxu0 %v631
      %v2687 = vpop.f32.mrf.mxu0
      %v2688 = vadd.f32 %v2614, %v2687
      %v2689 = vpop.f32.mrf.mxu0
      %2690 = vdwg.mxu0
      %s2691 = scalar_lea.vmem %s4, 448
      %v2692 = vld [vmem:[%s2691] sm:$0xff]
      %v2693 = vld [vmem:[%s2691 + $0x8] sm:$0xff]
      %v2694 = vld [vmem:[%s2691 + $0x10] sm:$0xff]
      %v2695 = vld [vmem:[%s2691 + $0x18] sm:$0xff]
      %s2696 = scalar_lea.vmem %s5, 14
      %v2697 = vld [vmem:[%s2696] sm:$0x1]
      %v2699 = vlaneseq
      %v2700 = vshrl.u32 %v2699, 7
      %v2701 = vsub.s32 0, %v2700
      %v2702 = vrot.slane %v2697, %v2701
      %2704 = vmatprep.subr.mxu0 0.0
      %2705 = vmatpush1.msra.mxu0 0.0
      %2706 = vmatprep.subr.mxu0 0.0
      %2707 = vmatpush1.msra.mxu0 0.0
      %2708 = vmatprep.subr.mxu0 0.0
      %2709 = vmatpush1.msra.mxu0 0.0
      %2710 = vmatprep.subr.mxu0 0.0
      %2711 = vmatpush1.msra.mxu0 0.0
      %2712 = vmatprep.subr.mxu0 0.0
      %2713 = vmatpush1.msra.mxu0 0.0
      %2714 = vmatprep.subr.mxu0 0.0
      %2715 = vmatpush1.msra.mxu0 0.0
      %2716 = vmatprep.subr.mxu0 0.0
      %2717 = vmatpush1.msra.mxu0 0.0
      %2718 = vmatprep.subr.mxu0 0.0
      %2719 = vmatpush1.msra.mxu0 0.0
      %2720 = vmatprep.subr.mxu0 0.0
      %2721 = vmatpush1.msra.mxu0 0.0
      %2722 = vmatprep.subr.mxu0 0.0
      %2723 = vmatpush1.msra.mxu0 0.0
      %2724 = vmatprep.subr.mxu0 0.0
      %2725 = vmatpush1.msra.mxu0 0.0
      %2726 = vmatprep.subr.mxu0 0.0
      %2727 = vmatpush1.msra.mxu0 0.0
      %2728 = vmatprep.subr.mxu0 0.0
      %2729 = vmatpush1.msra.mxu0 %v2695
      %2730 = vmatprep.subr.mxu0 0.0
      %2731 = vmatpush1.msra.mxu0 %v2694
      %2732 = vmatprep.subr.mxu0 0.0
      %2733 = vmatpush1.msra.mxu0 %v2693
      %2734 = vmatprep.subr.mxu0 0.0
      %2735 = vmatpush1.msra.mxu0 %v2692
      %2736 = vmatprep.subr.mxu0 0.0
      %2737 = vmatpush2.msra.mxu0 0.0
      %2738 = vmatprep.subr.mxu0 0.0
      %2739 = vmatpush2.msra.mxu0 0.0
      %2740 = vmatprep.subr.mxu0 0.0
      %2741 = vmatpush2.msra.mxu0 0.0
      %2742 = vmatprep.subr.mxu0 0.0
      %2743 = vmatpush2.msra.mxu0 0.0
      %2744 = vmatprep.subr.mxu0 0.0
      %2745 = vmatpush2.msra.mxu0 0.0
      %2746 = vmatprep.subr.mxu0 0.0
      %2747 = vmatpush2.msra.mxu0 0.0
      %2748 = vmatprep.subr.mxu0 0.0
      %2749 = vmatpush2.msra.mxu0 0.0
      %2750 = vmatprep.subr.mxu0 0.0
      %2751 = vmatpush2.msra.mxu0 0.0
      %2752 = vmatprep.subr.mxu0 0.0
      %2753 = vmatpush2.msra.mxu0 0.0
      %2754 = vmatprep.subr.mxu0 0.0
      %2755 = vmatpush2.msra.mxu0 0.0
      %2756 = vmatprep.subr.mxu0 0.0
      %2757 = vmatpush2.msra.mxu0 0.0
      %2758 = vmatprep.subr.mxu0 0.0
      %2759 = vmatpush2.msra.mxu0 0.0
      %2760 = vmatprep.subr.mxu0 0.0
      %2761 = vmatpush2.msra.mxu0 0.0
      %2762 = vmatprep.subr.mxu0 0.0
      %2763 = vmatpush2.msra.mxu0 0.0
      %2764 = vmatprep.subr.mxu0 0.0
      %2765 = vmatpush2.msra.mxu0 0.0
      %2766 = vmatprep.subr.mxu0 0.0
      %2767 = vmatpush2.msra.mxu0 0.0
      %2768 = vmatprep.mubr.f32.mxu0 0.0
      %2769 = vmatmul.mubr.f32.gmra.mxu0 %v898
      %v2770 = vpop.f32.mrf.mxu0
      %v2771 = vadd.f32 %v2702, %v2770
      %v2772 = vpop.f32.mrf.mxu0
      %2773 = vdwg.mxu0
      %s2774 = scalar_lea.vmem %s4, 576
      %v2775 = vld [vmem:[%s2774] sm:$0xff]
      %v2776 = vld [vmem:[%s2774 + $0x8] sm:$0xff]
      %v2777 = vld [vmem:[%s2774 + $0x10] sm:$0xff]
      %v2778 = vld [vmem:[%s2774 + $0x18] sm:$0xff]
      %s2779 = scalar_lea.vmem %s5, 18
      %v2780 = vld [vmem:[%s2779] sm:$0x1]
      %v2782 = vlaneseq
      %v2783 = vshrl.u32 %v2782, 7
      %v2784 = vsub.s32 0, %v2783
      %v2785 = vrot.slane %v2780, %v2784
      %2787 = vmatprep.subr.mxu0 0.0
      %2788 = vmatpush1.msra.mxu0 0.0
      %2789 = vmatprep.subr.mxu0 0.0
      %2790 = vmatpush1.msra.mxu0 0.0
      %2791 = vmatprep.subr.mxu0 0.0
      %2792 = vmatpush1.msra.mxu0 0.0
      %2793 = vmatprep.subr.mxu0 0.0
      %2794 = vmatpush1.msra.mxu0 0.0
      %2795 = vmatprep.subr.mxu0 0.0
      %2796 = vmatpush1.msra.mxu0 0.0
      %2797 = vmatprep.subr.mxu0 0.0
      %2798 = vmatpush1.msra.mxu0 0.0
      %2799 = vmatprep.subr.mxu0 0.0
      %2800 = vmatpush1.msra.mxu0 0.0
      %2801 = vmatprep.subr.mxu0 0.0
      %2802 = vmatpush1.msra.mxu0 0.0
      %2803 = vmatprep.subr.mxu0 0.0
      %2804 = vmatpush1.msra.mxu0 0.0
      %2805 = vmatprep.subr.mxu0 0.0
      %2806 = vmatpush1.msra.mxu0 0.0
      %2807 = vmatprep.subr.mxu0 0.0
      %2808 = vmatpush1.msra.mxu0 0.0
      %2809 = vmatprep.subr.mxu0 0.0
      %2810 = vmatpush1.msra.mxu0 0.0
      %2811 = vmatprep.subr.mxu0 0.0
      %2812 = vmatpush1.msra.mxu0 %v2778
      %2813 = vmatprep.subr.mxu0 0.0
      %2814 = vmatpush1.msra.mxu0 %v2777
      %2815 = vmatprep.subr.mxu0 0.0
      %2816 = vmatpush1.msra.mxu0 %v2776
      %2817 = vmatprep.subr.mxu0 0.0
      %2818 = vmatpush1.msra.mxu0 %v2775
      %2819 = vmatprep.subr.mxu0 0.0
      %2820 = vmatpush2.msra.mxu0 0.0
      %2821 = vmatprep.subr.mxu0 0.0
      %2822 = vmatpush2.msra.mxu0 0.0
      %2823 = vmatprep.subr.mxu0 0.0
      %2824 = vmatpush2.msra.mxu0 0.0
      %2825 = vmatprep.subr.mxu0 0.0
      %2826 = vmatpush2.msra.mxu0 0.0
      %2827 = vmatprep.subr.mxu0 0.0
      %2828 = vmatpush2.msra.mxu0 0.0
      %2829 = vmatprep.subr.mxu0 0.0
      %2830 = vmatpush2.msra.mxu0 0.0
      %2831 = vmatprep.subr.mxu0 0.0
      %2832 = vmatpush2.msra.mxu0 0.0
      %2833 = vmatprep.subr.mxu0 0.0
      %2834 = vmatpush2.msra.mxu0 0.0
      %2835 = vmatprep.subr.mxu0 0.0
      %2836 = vmatpush2.msra.mxu0 0.0
      %2837 = vmatprep.subr.mxu0 0.0
      %2838 = vmatpush2.msra.mxu0 0.0
      %2839 = vmatprep.subr.mxu0 0.0
      %2840 = vmatpush2.msra.mxu0 0.0
      %2841 = vmatprep.subr.mxu0 0.0
      %2842 = vmatpush2.msra.mxu0 0.0
      %2843 = vmatprep.subr.mxu0 0.0
      %2844 = vmatpush2.msra.mxu0 0.0
      %2845 = vmatprep.subr.mxu0 0.0
      %2846 = vmatpush2.msra.mxu0 0.0
      %2847 = vmatprep.subr.mxu0 0.0
      %2848 = vmatpush2.msra.mxu0 0.0
      %2849 = vmatprep.subr.mxu0 0.0
      %2850 = vmatpush2.msra.mxu0 0.0
      %2851 = vmatprep.mubr.f32.mxu0 0.0
      %2852 = vmatmul.mubr.f32.gmra.mxu0 %v898
      %v2853 = vpop.f32.mrf.mxu0
      %v2854 = vadd.f32 %v2785, %v2853
      %v2855 = vpop.f32.mrf.mxu0
      %2856 = vdwg.mxu0
      %s2857 = scalar_lea.vmem %s4, 704
      %v2858 = vld [vmem:[%s2857] sm:$0xff]
      %v2859 = vld [vmem:[%s2857 + $0x8] sm:$0xff]
      %v2860 = vld [vmem:[%s2857 + $0x10] sm:$0xff]
      %v2861 = vld [vmem:[%s2857 + $0x18] sm:$0xff]
      %s2862 = scalar_lea.vmem %s5, 22
      %v2863 = vld [vmem:[%s2862] sm:$0x1]
      %v2865 = vlaneseq
      %v2866 = vshrl.u32 %v2865, 7
      %v2867 = vsub.s32 0, %v2866
      %v2868 = vrot.slane %v2863, %v2867
      %2870 = vmatprep.subr.mxu0 0.0
      %2871 = vmatpush1.msra.mxu0 0.0
      %2872 = vmatprep.subr.mxu0 0.0
      %2873 = vmatpush1.msra.mxu0 0.0
      %2874 = vmatprep.subr.mxu0 0.0
      %2875 = vmatpush1.msra.mxu0 0.0
      %2876 = vmatprep.subr.mxu0 0.0
      %2877 = vmatpush1.msra.mxu0 0.0
      %2878 = vmatprep.subr.mxu0 0.0
      %2879 = vmatpush1.msra.mxu0 0.0
      %2880 = vmatprep.subr.mxu0 0.0
      %2881 = vmatpush1.msra.mxu0 0.0
      %2882 = vmatprep.subr.mxu0 0.0
      %2883 = vmatpush1.msra.mxu0 0.0
      %2884 = vmatprep.subr.mxu0 0.0
      %2885 = vmatpush1.msra.mxu0 0.0
      %2886 = vmatprep.subr.mxu0 0.0
      %2887 = vmatpush1.msra.mxu0 0.0
      %2888 = vmatprep.subr.mxu0 0.0
      %2889 = vmatpush1.msra.mxu0 0.0
      %2890 = vmatprep.subr.mxu0 0.0
      %2891 = vmatpush1.msra.mxu0 0.0
      %2892 = vmatprep.subr.mxu0 0.0
      %2893 = vmatpush1.msra.mxu0 0.0
      %2894 = vmatprep.subr.mxu0 0.0
      %2895 = vmatpush1.msra.mxu0 %v2861
      %2896 = vmatprep.subr.mxu0 0.0
      %2897 = vmatpush1.msra.mxu0 %v2860
      %2898 = vmatprep.subr.mxu0 0.0
      %2899 = vmatpush1.msra.mxu0 %v2859
      %2900 = vmatprep.subr.mxu0 0.0
      %2901 = vmatpush1.msra.mxu0 %v2858
      %2902 = vmatprep.subr.mxu0 0.0
      %2903 = vmatpush2.msra.mxu0 0.0
      %2904 = vmatprep.subr.mxu0 0.0
      %2905 = vmatpush2.msra.mxu0 0.0
      %2906 = vmatprep.subr.mxu0 0.0
      %2907 = vmatpush2.msra.mxu0 0.0
      %2908 = vmatprep.subr.mxu0 0.0
      %2909 = vmatpush2.msra.mxu0 0.0
      %2910 = vmatprep.subr.mxu0 0.0
      %2911 = vmatpush2.msra.mxu0 0.0
      %2912 = vmatprep.subr.mxu0 0.0
      %2913 = vmatpush2.msra.mxu0 0.0
      %2914 = vmatprep.subr.mxu0 0.0
      %2915 = vmatpush2.msra.mxu0 0.0
      %2916 = vmatprep.subr.mxu0 0.0
      %2917 = vmatpush2.msra.mxu0 0.0
      %2918 = vmatprep.subr.mxu0 0.0
      %2919 = vmatpush2.msra.mxu0 0.0
      %2920 = vmatprep.subr.mxu0 0.0
      %2921 = vmatpush2.msra.mxu0 0.0
      %2922 = vmatprep.subr.mxu0 0.0
      %2923 = vmatpush2.msra.mxu0 0.0
      %2924 = vmatprep.subr.mxu0 0.0
      %2925 = vmatpush2.msra.mxu0 0.0
      %2926 = vmatprep.subr.mxu0 0.0
      %2927 = vmatpush2.msra.mxu0 0.0
      %2928 = vmatprep.subr.mxu0 0.0
      %2929 = vmatpush2.msra.mxu0 0.0
      %2930 = vmatprep.subr.mxu0 0.0
      %2931 = vmatpush2.msra.mxu0 0.0
      %2932 = vmatprep.subr.mxu0 0.0
      %2933 = vmatpush2.msra.mxu0 0.0
      %2934 = vmatprep.mubr.f32.mxu0 0.0
      %2935 = vmatmul.mubr.f32.gmra.mxu0 %v1067
      %v2936 = vpop.f32.mrf.mxu0
      %v2937 = vadd.f32 %v2868, %v2936
      %v2938 = vpop.f32.mrf.mxu0
      %2939 = vdwg.mxu0
      %v2941 = vsel %vm1139, %v2507, 0
      %v2944 = vsel %vm1139, %v2512, 0
      %v2947 = vsel %vm1139, %v2771, 0
      %v2950 = vsel %vm1139, %v2595, 0
      %v2953 = vsel %vm1139, %v2600, 0
      %v2956 = vsel %vm1139, %v2854, 0
      %2958 = vmatprep.subr.mxu0 0.0
      %2959 = vmatpush1.xpose.msra.mxu0 0.0
      %2960 = vmatprep.subr.mxu0 0.0
      %2961 = vmatpush1.xpose.msra.mxu0 0.0
      %2962 = vmatprep.subr.mxu0 0.0
      %2963 = vmatpush1.xpose.msra.mxu0 0.0
      %2964 = vmatprep.subr.mxu0 0.0
      %2965 = vmatpush1.xpose.msra.mxu0 0.0
      %2966 = vmatprep.subr.mxu0 0.0
      %2967 = vmatpush1.xpose.msra.mxu0 0.0
      %2968 = vmatprep.subr.mxu0 0.0
      %2969 = vmatpush1.xpose.msra.mxu0 0.0
      %2970 = vmatprep.subr.mxu0 0.0
      %2971 = vmatpush1.xpose.msra.mxu0 0.0
      %2972 = vmatprep.subr.mxu0 0.0
      %2973 = vmatpush1.xpose.msra.mxu0 0.0
      %2974 = vmatprep.subr.mxu0 0.0
      %2975 = vmatpush1.xpose.msra.mxu0 0.0
      %2976 = vmatprep.subr.mxu0 0.0
      %2977 = vmatpush1.xpose.msra.mxu0 0.0
      %2978 = vmatprep.subr.mxu0 0.0
      %2979 = vmatpush1.xpose.msra.mxu0 0.0
      %2980 = vmatprep.subr.mxu0 0.0
      %2981 = vmatpush1.xpose.msra.mxu0 0.0
      %2982 = vmatprep.subr.mxu0 0.0
      %2983 = vmatpush1.xpose.msra.mxu0 0.0
      %2984 = vmatprep.subr.mxu0 0.0
      %2985 = vmatpush1.xpose.msra.mxu0 %v2956
      %2986 = vmatprep.subr.mxu0 0.0
      %2987 = vmatpush1.xpose.msra.mxu0 %v2953
      %2988 = vmatprep.subr.mxu0 0.0
      %2989 = vmatpush1.xpose.msra.mxu0 %v2950
      %2990 = vmatprep.subr.mxu0 0.0
      %2991 = vmatpush2.xpose.msra.mxu0 0.0
      %2992 = vmatprep.subr.mxu0 0.0
      %2993 = vmatpush2.xpose.msra.mxu0 0.0
      %2994 = vmatprep.subr.mxu0 0.0
      %2995 = vmatpush2.xpose.msra.mxu0 0.0
      %2996 = vmatprep.subr.mxu0 0.0
      %2997 = vmatpush2.xpose.msra.mxu0 0.0
      %2998 = vmatprep.subr.mxu0 0.0
      %2999 = vmatpush2.xpose.msra.mxu0 0.0
      %3000 = vmatprep.subr.mxu0 0.0
      %3001 = vmatpush2.xpose.msra.mxu0 0.0
      %3002 = vmatprep.subr.mxu0 0.0
      %3003 = vmatpush2.xpose.msra.mxu0 0.0
      %3004 = vmatprep.subr.mxu0 0.0
      %3005 = vmatpush2.xpose.msra.mxu0 0.0
      %3006 = vmatprep.subr.mxu0 0.0
      %3007 = vmatpush2.xpose.msra.mxu0 0.0
      %3008 = vmatprep.subr.mxu0 0.0
      %3009 = vmatpush2.xpose.msra.mxu0 0.0
      %3010 = vmatprep.subr.mxu0 0.0
      %3011 = vmatpush2.xpose.msra.mxu0 0.0
      %3012 = vmatprep.subr.mxu0 0.0
      %3013 = vmatpush2.xpose.msra.mxu0 0.0
      %3014 = vmatprep.subr.mxu0 0.0
      %3015 = vmatpush2.xpose.msra.mxu0 0.0
      %3016 = vmatprep.subr.mxu0 0.0
      %3017 = vmatpush2.xpose.msra.mxu0 0.0
      %3018 = vmatprep.subr.mxu0 0.0
      %3019 = vmatpush2.xpose.msra.mxu0 0.0
      %3020 = vmatprep.subr.mxu0 0.0
      %3021 = vmatpush2.xpose.msra.mxu0 0.0
      %3022 = vmatprep.mubr.f32.mxu0 0.0
      %3023 = vmatmul.mubr.f32.gmra.mxu0 %v2941
      %v3024 = vpop.f32.mrf.mxu0
      %v3025 = vadd.f32 0.0, %v3024
      %v3026 = vpop.f32.mrf.mxu0
      %3027 = vmatprep.mubr.f32.mxu0 0.0
      %3028 = vmatmul.mubr.f32.gmra.mxu0 %v2944
      %v3029 = vpop.f32.mrf.mxu0
      %v3030 = vadd.f32 0.0, %v3029
      %v3031 = vpop.f32.mrf.mxu0
      %3032 = vmatprep.mubr.f32.mxu0 0.0
      %3033 = vmatmul.mubr.f32.gmra.mxu0 %v2947
      %v3034 = vpop.f32.mrf.mxu0
      %v3035 = vadd.f32 0.0, %v3034
      %v3036 = vpop.f32.mrf.mxu0
      %3037 = vdwg.mxu0
      %v3038 = vmul.f32 %v3025, 0.35355338
      %v3039 = vmul.f32 %v3030, 0.35355338
      %v3040 = vmul.f32 %v3035, 0.35355338
      %v3041 = vadd.f32 %v3038, %v1245
      %v3042 = vadd.f32 %v3039, %v1245
      %v3043 = vadd.f32 %v3040, %v1245
      %v3044 = vsel %vm1250, %v3041, -inf
      %3045 = vmax.xlane.f32.xlu0 %v3044
      %v3046 = vpop.xlane.xlu0 %3045
      %v3047 = vsel %vm1250, %v3042, -inf
      %3048 = vmax.xlane.f32.xlu0 %v3047
      %v3049 = vpop.xlane.xlu0 %3048
      %v3050 = vsel %vm1250, %v3043, -inf
      %3051 = vmax.xlane.f32.xlu0 %v3050
      %v3052 = vpop.xlane.xlu0 %3051
      %v3053 = vsub.f32 %v3041, %v3046
      %v3054 = vsub.f32 %v3042, %v3049
      %v3055 = vsub.f32 %v3043, %v3052
      %v3056 = vmul.f32 %v3053, 1.442695
      %v3057 = vpow.pop %v3056
      %v3058 = vmul.f32 %v3054, 1.442695
      %v3059 = vpow.pop %v3058
      %v3060 = vmul.f32 %v3055, 1.442695
      %v3061 = vpow.pop %v3060
      %v3062 = vsel %vm1250, %v3057, 0.0
      %3063 = vadd.xlane.f32.xlu0 %v3062
      %v3064 = vpop.xlane.xlu0 %3063
      %v3065 = vsel %vm1250, %v3059, 0.0
      %3066 = vadd.xlane.f32.xlu0 %v3065
      %v3067 = vpop.xlane.xlu0 %3066
      %v3068 = vsel %vm1250, %v3061, 0.0
      %3069 = vadd.xlane.f32.xlu0 %v3068
      %v3070 = vpop.xlane.xlu0 %3069
      %v3071 = vrcp.pop %v3064
      %v3072 = vrcp.pop %v3067
      %v3073 = vrcp.pop %v3070
      %v3074 = vmul.f32 %v3057, %v3071
      %v3075 = vmul.f32 %v3059, %v3072
      %v3076 = vmul.f32 %v3061, %v3073
      %v3078 = vsel %vm1250, %v3074, 0
      %v3081 = vsel %vm1250, %v3075, 0
      %v3084 = vsel %vm1250, %v3076, 0
      %3086 = vmatprep.subr.mxu0 0.0
      %3087 = vmatpush1.msra.mxu0 0.0
      %3088 = vmatprep.subr.mxu0 0.0
      %3089 = vmatpush1.msra.mxu0 0.0
      %3090 = vmatprep.subr.mxu0 0.0
      %3091 = vmatpush1.msra.mxu0 0.0
      %3092 = vmatprep.subr.mxu0 0.0
      %3093 = vmatpush1.msra.mxu0 0.0
      %3094 = vmatprep.subr.mxu0 0.0
      %3095 = vmatpush1.msra.mxu0 0.0
      %3096 = vmatprep.subr.mxu0 0.0
      %3097 = vmatpush1.msra.mxu0 0.0
      %3098 = vmatprep.subr.mxu0 0.0
      %3099 = vmatpush1.msra.mxu0 0.0
      %3100 = vmatprep.subr.mxu0 0.0
      %3101 = vmatpush1.msra.mxu0 0.0
      %3102 = vmatprep.subr.mxu0 0.0
      %3103 = vmatpush1.msra.mxu0 0.0
      %3104 = vmatprep.subr.mxu0 0.0
      %3105 = vmatpush1.msra.mxu0 0.0
      %3106 = vmatprep.subr.mxu0 0.0
      %3107 = vmatpush1.msra.mxu0 0.0
      %3108 = vmatprep.subr.mxu0 0.0
      %3109 = vmatpush1.msra.mxu0 0.0
      %3110 = vmatprep.subr.mxu0 0.0
      %3111 = vmatpush1.msra.mxu0 0.0
      %3112 = vmatprep.subr.mxu0 0.0
      %3113 = vmatpush1.msra.mxu0 %v2937
      %3114 = vmatprep.subr.mxu0 0.0
      %3115 = vmatpush1.msra.mxu0 %v2688
      %3116 = vmatprep.subr.mxu0 0.0
      %3117 = vmatpush1.msra.mxu0 %v2683
      %3118 = vmatprep.subr.mxu0 0.0
      %3119 = vmatpush2.msra.mxu0 0.0
      %3120 = vmatprep.subr.mxu0 0.0
      %3121 = vmatpush2.msra.mxu0 0.0
      %3122 = vmatprep.subr.mxu0 0.0
      %3123 = vmatpush2.msra.mxu0 0.0
      %3124 = vmatprep.subr.mxu0 0.0
      %3125 = vmatpush2.msra.mxu0 0.0
      %3126 = vmatprep.subr.mxu0 0.0
      %3127 = vmatpush2.msra.mxu0 0.0
      %3128 = vmatprep.subr.mxu0 0.0
      %3129 = vmatpush2.msra.mxu0 0.0
      %3130 = vmatprep.subr.mxu0 0.0
      %3131 = vmatpush2.msra.mxu0 0.0
      %3132 = vmatprep.subr.mxu0 0.0
      %3133 = vmatpush2.msra.mxu0 0.0
      %3134 = vmatprep.subr.mxu0 0.0
      %3135 = vmatpush2.msra.mxu0 0.0
      %3136 = vmatprep.subr.mxu0 0.0
      %3137 = vmatpush2.msra.mxu0 0.0
      %3138 = vmatprep.subr.mxu0 0.0
      %3139 = vmatpush2.msra.mxu0 0.0
      %3140 = vmatprep.subr.mxu0 0.0
      %3141 = vmatpush2.msra.mxu0 0.0
      %3142 = vmatprep.subr.mxu0 0.0
      %3143 = vmatpush2.msra.mxu0 0.0
      %3144 = vmatprep.subr.mxu0 0.0
      %3145 = vmatpush2.msra.mxu0 0.0
      %3146 = vmatprep.subr.mxu0 0.0
      %3147 = vmatpush2.msra.mxu0 0.0
      %3148 = vmatprep.subr.mxu0 0.0
      %3149 = vmatpush2.msra.mxu0 0.0
      %3150 = vmatprep.mubr.f32.mxu0 0.0
      %3151 = vmatmul.mubr.f32.gmra.mxu0 %v3078
      %v3152 = vpop.f32.mrf.mxu0
      %v3153 = vadd.f32 0.0, %v3152
      %v3154 = vpop.f32.mrf.mxu0
      %3155 = vmatprep.mubr.f32.mxu0 0.0
      %3156 = vmatmul.mubr.f32.gmra.mxu0 %v3081
      %v3157 = vpop.f32.mrf.mxu0
      %v3158 = vadd.f32 0.0, %v3157
      %v3159 = vpop.f32.mrf.mxu0
      %3160 = vmatprep.mubr.f32.mxu0 0.0
      %3161 = vmatmul.mubr.f32.gmra.mxu0 %v3084
      %v3162 = vpop.f32.mrf.mxu0
      %v3163 = vadd.f32 0.0, %v3162
      %v3164 = vpop.f32.mrf.mxu0
      %3165 = vdwg.mxu0
      %s3166 = scalar_lea.vmem %s6, 16
      %v3167 = vld [vmem:[%s3166] sm:$0xff]
      %v3169 = vsel %vm1139, %v3153, 0
      %v3172 = vsel %vm1139, %v3158, 0
      %3174 = vmatprep.subr.mxu0 0.0
      %3175 = vmatpush1.msra.mxu0 0.0
      %3176 = vmatprep.subr.mxu0 0.0
      %3177 = vmatpush1.msra.mxu0 0.0
      %3178 = vmatprep.subr.mxu0 0.0
      %3179 = vmatpush1.msra.mxu0 0.0
      %3180 = vmatprep.subr.mxu0 0.0
      %3181 = vmatpush1.msra.mxu0 0.0
      %3182 = vmatprep.subr.mxu0 0.0
      %3183 = vmatpush1.msra.mxu0 0.0
      %3184 = vmatprep.subr.mxu0 0.0
      %3185 = vmatpush1.msra.mxu0 0.0
      %3186 = vmatprep.subr.mxu0 0.0
      %3187 = vmatpush1.msra.mxu0 0.0
      %3188 = vmatprep.subr.mxu0 0.0
      %3189 = vmatpush1.msra.mxu0 0.0
      %3190 = vmatprep.subr.mxu0 0.0
      %3191 = vmatpush1.msra.mxu0 0.0
      %3192 = vmatprep.subr.mxu0 0.0
      %3193 = vmatpush1.msra.mxu0 0.0
      %3194 = vmatprep.subr.mxu0 0.0
      %3195 = vmatpush1.msra.mxu0 0.0
      %3196 = vmatprep.subr.mxu0 0.0
      %3197 = vmatpush1.msra.mxu0 0.0
      %3198 = vmatprep.subr.mxu0 0.0
      %3199 = vmatpush1.msra.mxu0 0.0
      %3200 = vmatprep.subr.mxu0 0.0
      %3201 = vmatpush1.msra.mxu0 0.0
      %3202 = vmatprep.subr.mxu0 0.0
      %3203 = vmatpush1.msra.mxu0 0.0
      %3204 = vmatprep.subr.mxu0 0.0
      %3205 = vmatpush1.msra.mxu0 %v3167
      %3206 = vmatprep.subr.mxu0 0.0
      %3207 = vmatpush2.msra.mxu0 0.0
      %3208 = vmatprep.subr.mxu0 0.0
      %3209 = vmatpush2.msra.mxu0 0.0
      %3210 = vmatprep.subr.mxu0 0.0
      %3211 = vmatpush2.msra.mxu0 0.0
      %3212 = vmatprep.subr.mxu0 0.0
      %3213 = vmatpush2.msra.mxu0 0.0
      %3214 = vmatprep.subr.mxu0 0.0
      %3215 = vmatpush2.msra.mxu0 0.0
      %3216 = vmatprep.subr.mxu0 0.0
      %3217 = vmatpush2.msra.mxu0 0.0
      %3218 = vmatprep.subr.mxu0 0.0
      %3219 = vmatpush2.msra.mxu0 0.0
      %3220 = vmatprep.subr.mxu0 0.0
      %3221 = vmatpush2.msra.mxu0 0.0
      %3222 = vmatprep.subr.mxu0 0.0
      %3223 = vmatpush2.msra.mxu0 0.0
      %3224 = vmatprep.subr.mxu0 0.0
      %3225 = vmatpush2.msra.mxu0 0.0
      %3226 = vmatprep.subr.mxu0 0.0
      %3227 = vmatpush2.msra.mxu0 0.0
      %3228 = vmatprep.subr.mxu0 0.0
      %3229 = vmatpush2.msra.mxu0 0.0
      %3230 = vmatprep.subr.mxu0 0.0
      %3231 = vmatpush2.msra.mxu0 0.0
      %3232 = vmatprep.subr.mxu0 0.0
      %3233 = vmatpush2.msra.mxu0 0.0
      %3234 = vmatprep.subr.mxu0 0.0
      %3235 = vmatpush2.msra.mxu0 0.0
      %3236 = vmatprep.subr.mxu0 0.0
      %3237 = vmatpush2.msra.mxu0 0.0
      %3238 = vmatprep.mubr.f32.mxu0 0.0
      %3239 = vmatmul.mubr.f32.gmra.mxu0 %v3169
      %v3240 = vpop.f32.mrf.mxu0
      %v3241 = vadd.f32 0.0, %v3240
      %v3242 = vpop.f32.mrf.mxu0
      %3243 = vmatprep.mubr.f32.mxu0 0.0
      %3244 = vmatmul.mubr.f32.gmra.mxu0 %v3172
      %v3245 = vpop.f32.mrf.mxu0
      %v3246 = vadd.f32 0.0, %v3245
      %v3247 = vpop.f32.mrf.mxu0
      %3248 = vdwg.mxu0
      %v3249 = vadd.f32 %v2271, %v3241
      %v3250 = vadd.f32 %v2276, %v3246
      %s3251 = scalar_lea.vmem %s6, 48
      %v3252 = vld [vmem:[%s3251] sm:$0xff]
      %v3254 = vsel %vm1139, %v3163, 0
      %3256 = vmatprep.subr.mxu0 0.0
      %3257 = vmatpush1.msra.mxu0 0.0
      %3258 = vmatprep.subr.mxu0 0.0
      %3259 = vmatpush1.msra.mxu0 0.0
      %3260 = vmatprep.subr.mxu0 0.0
      %3261 = vmatpush1.msra.mxu0 0.0
      %3262 = vmatprep.subr.mxu0 0.0
      %3263 = vmatpush1.msra.mxu0 0.0
      %3264 = vmatprep.subr.mxu0 0.0
      %3265 = vmatpush1.msra.mxu0 0.0
      %3266 = vmatprep.subr.mxu0 0.0
      %3267 = vmatpush1.msra.mxu0 0.0
      %3268 = vmatprep.subr.mxu0 0.0
      %3269 = vmatpush1.msra.mxu0 0.0
      %3270 = vmatprep.subr.mxu0 0.0
      %3271 = vmatpush1.msra.mxu0 0.0
      %3272 = vmatprep.subr.mxu0 0.0
      %3273 = vmatpush1.msra.mxu0 0.0
      %3274 = vmatprep.subr.mxu0 0.0
      %3275 = vmatpush1.msra.mxu0 0.0
      %3276 = vmatprep.subr.mxu0 0.0
      %3277 = vmatpush1.msra.mxu0 0.0
      %3278 = vmatprep.subr.mxu0 0.0
      %3279 = vmatpush1.msra.mxu0 0.0
      %3280 = vmatprep.subr.mxu0 0.0
      %3281 = vmatpush1.msra.mxu0 0.0
      %3282 = vmatprep.subr.mxu0 0.0
      %3283 = vmatpush1.msra.mxu0 0.0
      %3284 = vmatprep.subr.mxu0 0.0
      %3285 = vmatpush1.msra.mxu0 0.0
      %3286 = vmatprep.subr.mxu0 0.0
      %3287 = vmatpush1.msra.mxu0 %v3252
      %3288 = vmatprep.subr.mxu0 0.0
      %3289 = vmatpush2.msra.mxu0 0.0
      %3290 = vmatprep.subr.mxu0 0.0
      %3291 = vmatpush2.msra.mxu0 0.0
      %3292 = vmatprep.subr.mxu0 0.0
      %3293 = vmatpush2.msra.mxu0 0.0
      %3294 = vmatprep.subr.mxu0 0.0
      %3295 = vmatpush2.msra.mxu0 0.0
      %3296 = vmatprep.subr.mxu0 0.0
      %3297 = vmatpush2.msra.mxu0 0.0
      %3298 = vmatprep.subr.mxu0 0.0
      %3299 = vmatpush2.msra.mxu0 0.0
      %3300 = vmatprep.subr.mxu0 0.0
      %3301 = vmatpush2.msra.mxu0 0.0
      %3302 = vmatprep.subr.mxu0 0.0
      %3303 = vmatpush2.msra.mxu0 0.0
      %3304 = vmatprep.subr.mxu0 0.0
      %3305 = vmatpush2.msra.mxu0 0.0
      %3306 = vmatprep.subr.mxu0 0.0
      %3307 = vmatpush2.msra.mxu0 0.0
      %3308 = vmatprep.subr.mxu0 0.0
      %3309 = vmatpush2.msra.mxu0 0.0
      %3310 = vmatprep.subr.mxu0 0.0
      %3311 = vmatpush2.msra.mxu0 0.0
      %3312 = vmatprep.subr.mxu0 0.0
      %3313 = vmatpush2.msra.mxu0 0.0
      %3314 = vmatprep.subr.mxu0 0.0
      %3315 = vmatpush2.msra.mxu0 0.0
      %3316 = vmatprep.subr.mxu0 0.0
      %3317 = vmatpush2.msra.mxu0 0.0
      %3318 = vmatprep.subr.mxu0 0.0
      %3319 = vmatpush2.msra.mxu0 0.0
      %3320 = vmatprep.mubr.f32.mxu0 0.0
      %3321 = vmatmul.mubr.f32.gmra.mxu0 %v3254
      %v3322 = vpop.f32.mrf.mxu0
      %v3323 = vadd.f32 0.0, %v3322
      %v3324 = vpop.f32.mrf.mxu0
      %3325 = vdwg.mxu0
      %v3326 = vadd.f32 %v2424, %v3323
      %s3327 = scalar_lea.vmem %s4, 96
      %v3328 = vld [vmem:[%s3327] sm:$0xff]
      %v3329 = vld [vmem:[%s3327 + $0x8] sm:$0xff]
      %v3330 = vld [vmem:[%s3327 + $0x10] sm:$0xff]
      %v3331 = vld [vmem:[%s3327 + $0x18] sm:$0xff]
      %s3332 = scalar_lea.vmem %s5, 3
      %v3333 = vld [vmem:[%s3332] sm:$0x1]
      %v3335 = vlaneseq
      %v3336 = vshrl.u32 %v3335, 7
      %v3337 = vsub.s32 0, %v3336
      %v3338 = vrot.slane %v3333, %v3337
      %3340 = vmatprep.subr.mxu0 0.0
      %3341 = vmatpush1.msra.mxu0 0.0
      %3342 = vmatprep.subr.mxu0 0.0
      %3343 = vmatpush1.msra.mxu0 0.0
      %3344 = vmatprep.subr.mxu0 0.0
      %3345 = vmatpush1.msra.mxu0 0.0
      %3346 = vmatprep.subr.mxu0 0.0
      %3347 = vmatpush1.msra.mxu0 0.0
      %3348 = vmatprep.subr.mxu0 0.0
      %3349 = vmatpush1.msra.mxu0 0.0
      %3350 = vmatprep.subr.mxu0 0.0
      %3351 = vmatpush1.msra.mxu0 0.0
      %3352 = vmatprep.subr.mxu0 0.0
      %3353 = vmatpush1.msra.mxu0 0.0
      %3354 = vmatprep.subr.mxu0 0.0
      %3355 = vmatpush1.msra.mxu0 0.0
      %3356 = vmatprep.subr.mxu0 0.0
      %3357 = vmatpush1.msra.mxu0 0.0
      %3358 = vmatprep.subr.mxu0 0.0
      %3359 = vmatpush1.msra.mxu0 0.0
      %3360 = vmatprep.subr.mxu0 0.0
      %3361 = vmatpush1.msra.mxu0 0.0
      %3362 = vmatprep.subr.mxu0 0.0
      %3363 = vmatpush1.msra.mxu0 0.0
      %3364 = vmatprep.subr.mxu0 0.0
      %3365 = vmatpush1.msra.mxu0 %v3331
      %3366 = vmatprep.subr.mxu0 0.0
      %3367 = vmatpush1.msra.mxu0 %v3330
      %3368 = vmatprep.subr.mxu0 0.0
      %3369 = vmatpush1.msra.mxu0 %v3329
      %3370 = vmatprep.subr.mxu0 0.0
      %3371 = vmatpush1.msra.mxu0 %v3328
      %3372 = vmatprep.subr.mxu0 0.0
      %3373 = vmatpush2.msra.mxu0 0.0
      %3374 = vmatprep.subr.mxu0 0.0
      %3375 = vmatpush2.msra.mxu0 0.0
      %3376 = vmatprep.subr.mxu0 0.0
      %3377 = vmatpush2.msra.mxu0 0.0
      %3378 = vmatprep.subr.mxu0 0.0
      %3379 = vmatpush2.msra.mxu0 0.0
      %3380 = vmatprep.subr.mxu0 0.0
      %3381 = vmatpush2.msra.mxu0 0.0
      %3382 = vmatprep.subr.mxu0 0.0
      %3383 = vmatpush2.msra.mxu0 0.0
      %3384 = vmatprep.subr.mxu0 0.0
      %3385 = vmatpush2.msra.mxu0 0.0
      %3386 = vmatprep.subr.mxu0 0.0
      %3387 = vmatpush2.msra.mxu0 0.0
      %3388 = vmatprep.subr.mxu0 0.0
      %3389 = vmatpush2.msra.mxu0 0.0
      %3390 = vmatprep.subr.mxu0 0.0
      %3391 = vmatpush2.msra.mxu0 0.0
      %3392 = vmatprep.subr.mxu0 0.0
      %3393 = vmatpush2.msra.mxu0 0.0
      %3394 = vmatprep.subr.mxu0 0.0
      %3395 = vmatpush2.msra.mxu0 0.0
      %3396 = vmatprep.subr.mxu0 0.0
      %3397 = vmatpush2.msra.mxu0 0.0
      %3398 = vmatprep.subr.mxu0 0.0
      %3399 = vmatpush2.msra.mxu0 0.0
      %3400 = vmatprep.subr.mxu0 0.0
      %3401 = vmatpush2.msra.mxu0 0.0
      %3402 = vmatprep.subr.mxu0 0.0
      %3403 = vmatpush2.msra.mxu0 0.0
      %3404 = vmatprep.mubr.f32.mxu0 0.0
      %3405 = vmatmul.mubr.f32.gmra.mxu0 %v628
      %v3406 = vpop.f32.mrf.mxu0
      %v3407 = vadd.f32 %v3338, %v3406
      %v3408 = vpop.f32.mrf.mxu0
      %3409 = vmatprep.mubr.f32.mxu0 0.0
      %3410 = vmatmul.mubr.f32.gmra.mxu0 %v631
      %v3411 = vpop.f32.mrf.mxu0
      %v3412 = vadd.f32 %v3338, %v3411
      %v3413 = vpop.f32.mrf.mxu0
      %3414 = vdwg.mxu0
      %s3415 = scalar_lea.vmem %s4, 224
      %v3416 = vld [vmem:[%s3415] sm:$0xff]
      %v3417 = vld [vmem:[%s3415 + $0x8] sm:$0xff]
      %v3418 = vld [vmem:[%s3415 + $0x10] sm:$0xff]
      %v3419 = vld [vmem:[%s3415 + $0x18] sm:$0xff]
      %s3420 = scalar_lea.vmem %s5, 7
      %v3421 = vld [vmem:[%s3420] sm:$0x1]
      %v3423 = vlaneseq
      %v3424 = vshrl.u32 %v3423, 7
      %v3425 = vsub.s32 0, %v3424
      %v3426 = vrot.slane %v3421, %v3425
      %3428 = vmatprep.subr.mxu0 0.0
      %3429 = vmatpush1.msra.mxu0 0.0
      %3430 = vmatprep.subr.mxu0 0.0
      %3431 = vmatpush1.msra.mxu0 0.0
      %3432 = vmatprep.subr.mxu0 0.0
      %3433 = vmatpush1.msra.mxu0 0.0
      %3434 = vmatprep.subr.mxu0 0.0
      %3435 = vmatpush1.msra.mxu0 0.0
      %3436 = vmatprep.subr.mxu0 0.0
      %3437 = vmatpush1.msra.mxu0 0.0
      %3438 = vmatprep.subr.mxu0 0.0
      %3439 = vmatpush1.msra.mxu0 0.0
      %3440 = vmatprep.subr.mxu0 0.0
      %3441 = vmatpush1.msra.mxu0 0.0
      %3442 = vmatprep.subr.mxu0 0.0
      %3443 = vmatpush1.msra.mxu0 0.0
      %3444 = vmatprep.subr.mxu0 0.0
      %3445 = vmatpush1.msra.mxu0 0.0
      %3446 = vmatprep.subr.mxu0 0.0
      %3447 = vmatpush1.msra.mxu0 0.0
      %3448 = vmatprep.subr.mxu0 0.0
      %3449 = vmatpush1.msra.mxu0 0.0
      %3450 = vmatprep.subr.mxu0 0.0
      %3451 = vmatpush1.msra.mxu0 0.0
      %3452 = vmatprep.subr.mxu0 0.0
      %3453 = vmatpush1.msra.mxu0 %v3419
      %3454 = vmatprep.subr.mxu0 0.0
      %3455 = vmatpush1.msra.mxu0 %v3418
      %3456 = vmatprep.subr.mxu0 0.0
      %3457 = vmatpush1.msra.mxu0 %v3417
      %3458 = vmatprep.subr.mxu0 0.0
      %3459 = vmatpush1.msra.mxu0 %v3416
      %3460 = vmatprep.subr.mxu0 0.0
      %3461 = vmatpush2.msra.mxu0 0.0
      %3462 = vmatprep.subr.mxu0 0.0
      %3463 = vmatpush2.msra.mxu0 0.0
      %3464 = vmatprep.subr.mxu0 0.0
      %3465 = vmatpush2.msra.mxu0 0.0
      %3466 = vmatprep.subr.mxu0 0.0
      %3467 = vmatpush2.msra.mxu0 0.0
      %3468 = vmatprep.subr.mxu0 0.0
      %3469 = vmatpush2.msra.mxu0 0.0
      %3470 = vmatprep.subr.mxu0 0.0
      %3471 = vmatpush2.msra.mxu0 0.0
      %3472 = vmatprep.subr.mxu0 0.0
      %3473 = vmatpush2.msra.mxu0 0.0
      %3474 = vmatprep.subr.mxu0 0.0
      %3475 = vmatpush2.msra.mxu0 0.0
      %3476 = vmatprep.subr.mxu0 0.0
      %3477 = vmatpush2.msra.mxu0 0.0
      %3478 = vmatprep.subr.mxu0 0.0
      %3479 = vmatpush2.msra.mxu0 0.0
      %3480 = vmatprep.subr.mxu0 0.0
      %3481 = vmatpush2.msra.mxu0 0.0
      %3482 = vmatprep.subr.mxu0 0.0
      %3483 = vmatpush2.msra.mxu0 0.0
      %3484 = vmatprep.subr.mxu0 0.0
      %3485 = vmatpush2.msra.mxu0 0.0
      %3486 = vmatprep.subr.mxu0 0.0
      %3487 = vmatpush2.msra.mxu0 0.0
      %3488 = vmatprep.subr.mxu0 0.0
      %3489 = vmatpush2.msra.mxu0 0.0
      %3490 = vmatprep.subr.mxu0 0.0
      %3491 = vmatpush2.msra.mxu0 0.0
      %3492 = vmatprep.mubr.f32.mxu0 0.0
      %3493 = vmatmul.mubr.f32.gmra.mxu0 %v628
      %v3494 = vpop.f32.mrf.mxu0
      %v3495 = vadd.f32 %v3426, %v3494
      %v3496 = vpop.f32.mrf.mxu0
      %3497 = vmatprep.mubr.f32.mxu0 0.0
      %3498 = vmatmul.mubr.f32.gmra.mxu0 %v631
      %v3499 = vpop.f32.mrf.mxu0
      %v3500 = vadd.f32 %v3426, %v3499
      %v3501 = vpop.f32.mrf.mxu0
      %3502 = vdwg.mxu0
      %s3503 = scalar_lea.vmem %s4, 352
      %v3504 = vld [vmem:[%s3503] sm:$0xff]
      %v3505 = vld [vmem:[%s3503 + $0x8] sm:$0xff]
      %v3506 = vld [vmem:[%s3503 + $0x10] sm:$0xff]
      %v3507 = vld [vmem:[%s3503 + $0x18] sm:$0xff]
      %s3508 = scalar_lea.vmem %s5, 11
      %v3509 = vld [vmem:[%s3508] sm:$0x1]
      %v3511 = vlaneseq
      %v3512 = vshrl.u32 %v3511, 7
      %v3513 = vsub.s32 0, %v3512
      %v3514 = vrot.slane %v3509, %v3513
      %3516 = vmatprep.subr.mxu0 0.0
      %3517 = vmatpush1.msra.mxu0 0.0
      %3518 = vmatprep.subr.mxu0 0.0
      %3519 = vmatpush1.msra.mxu0 0.0
      %3520 = vmatprep.subr.mxu0 0.0
      %3521 = vmatpush1.msra.mxu0 0.0
      %3522 = vmatprep.subr.mxu0 0.0
      %3523 = vmatpush1.msra.mxu0 0.0
      %3524 = vmatprep.subr.mxu0 0.0
      %3525 = vmatpush1.msra.mxu0 0.0
      %3526 = vmatprep.subr.mxu0 0.0
      %3527 = vmatpush1.msra.mxu0 0.0
      %3528 = vmatprep.subr.mxu0 0.0
      %3529 = vmatpush1.msra.mxu0 0.0
      %3530 = vmatprep.subr.mxu0 0.0
      %3531 = vmatpush1.msra.mxu0 0.0
      %3532 = vmatprep.subr.mxu0 0.0
      %3533 = vmatpush1.msra.mxu0 0.0
      %3534 = vmatprep.subr.mxu0 0.0
      %3535 = vmatpush1.msra.mxu0 0.0
      %3536 = vmatprep.subr.mxu0 0.0
      %3537 = vmatpush1.msra.mxu0 0.0
      %3538 = vmatprep.subr.mxu0 0.0
      %3539 = vmatpush1.msra.mxu0 0.0
      %3540 = vmatprep.subr.mxu0 0.0
      %3541 = vmatpush1.msra.mxu0 %v3507
      %3542 = vmatprep.subr.mxu0 0.0
      %3543 = vmatpush1.msra.mxu0 %v3506
      %3544 = vmatprep.subr.mxu0 0.0
      %3545 = vmatpush1.msra.mxu0 %v3505
      %3546 = vmatprep.subr.mxu0 0.0
      %3547 = vmatpush1.msra.mxu0 %v3504
      %3548 = vmatprep.subr.mxu0 0.0
      %3549 = vmatpush2.msra.mxu0 0.0
      %3550 = vmatprep.subr.mxu0 0.0
      %3551 = vmatpush2.msra.mxu0 0.0
      %3552 = vmatprep.subr.mxu0 0.0
      %3553 = vmatpush2.msra.mxu0 0.0
      %3554 = vmatprep.subr.mxu0 0.0
      %3555 = vmatpush2.msra.mxu0 0.0
      %3556 = vmatprep.subr.mxu0 0.0
      %3557 = vmatpush2.msra.mxu0 0.0
      %3558 = vmatprep.subr.mxu0 0.0
      %3559 = vmatpush2.msra.mxu0 0.0
      %3560 = vmatprep.subr.mxu0 0.0
      %3561 = vmatpush2.msra.mxu0 0.0
      %3562 = vmatprep.subr.mxu0 0.0
      %3563 = vmatpush2.msra.mxu0 0.0
      %3564 = vmatprep.subr.mxu0 0.0
      %3565 = vmatpush2.msra.mxu0 0.0
      %3566 = vmatprep.subr.mxu0 0.0
      %3567 = vmatpush2.msra.mxu0 0.0
      %3568 = vmatprep.subr.mxu0 0.0
      %3569 = vmatpush2.msra.mxu0 0.0
      %3570 = vmatprep.subr.mxu0 0.0
      %3571 = vmatpush2.msra.mxu0 0.0
      %3572 = vmatprep.subr.mxu0 0.0
      %3573 = vmatpush2.msra.mxu0 0.0
      %3574 = vmatprep.subr.mxu0 0.0
      %3575 = vmatpush2.msra.mxu0 0.0
      %3576 = vmatprep.subr.mxu0 0.0
      %3577 = vmatpush2.msra.mxu0 0.0
      %3578 = vmatprep.subr.mxu0 0.0
      %3579 = vmatpush2.msra.mxu0 0.0
      %3580 = vmatprep.mubr.f32.mxu0 0.0
      %3581 = vmatmul.mubr.f32.gmra.mxu0 %v628
      %v3582 = vpop.f32.mrf.mxu0
      %v3583 = vadd.f32 %v3514, %v3582
      %v3584 = vpop.f32.mrf.mxu0
      %3585 = vmatprep.mubr.f32.mxu0 0.0
      %3586 = vmatmul.mubr.f32.gmra.mxu0 %v631
      %v3587 = vpop.f32.mrf.mxu0
      %v3588 = vadd.f32 %v3514, %v3587
      %v3589 = vpop.f32.mrf.mxu0
      %3590 = vdwg.mxu0
      %s3591 = scalar_lea.vmem %s4, 480
      %v3592 = vld [vmem:[%s3591] sm:$0xff]
      %v3593 = vld [vmem:[%s3591 + $0x8] sm:$0xff]
      %v3594 = vld [vmem:[%s3591 + $0x10] sm:$0xff]
      %v3595 = vld [vmem:[%s3591 + $0x18] sm:$0xff]
      %s3596 = scalar_lea.vmem %s5, 15
      %v3597 = vld [vmem:[%s3596] sm:$0x1]
      %v3599 = vlaneseq
      %v3600 = vshrl.u32 %v3599, 7
      %v3601 = vsub.s32 0, %v3600
      %v3602 = vrot.slane %v3597, %v3601
      %3604 = vmatprep.subr.mxu0 0.0
      %3605 = vmatpush1.msra.mxu0 0.0
      %3606 = vmatprep.subr.mxu0 0.0
      %3607 = vmatpush1.msra.mxu0 0.0
      %3608 = vmatprep.subr.mxu0 0.0
      %3609 = vmatpush1.msra.mxu0 0.0
      %3610 = vmatprep.subr.mxu0 0.0
      %3611 = vmatpush1.msra.mxu0 0.0
      %3612 = vmatprep.subr.mxu0 0.0
      %3613 = vmatpush1.msra.mxu0 0.0
      %3614 = vmatprep.subr.mxu0 0.0
      %3615 = vmatpush1.msra.mxu0 0.0
      %3616 = vmatprep.subr.mxu0 0.0
      %3617 = vmatpush1.msra.mxu0 0.0
      %3618 = vmatprep.subr.mxu0 0.0
      %3619 = vmatpush1.msra.mxu0 0.0
      %3620 = vmatprep.subr.mxu0 0.0
      %3621 = vmatpush1.msra.mxu0 0.0
      %3622 = vmatprep.subr.mxu0 0.0
      %3623 = vmatpush1.msra.mxu0 0.0
      %3624 = vmatprep.subr.mxu0 0.0
      %3625 = vmatpush1.msra.mxu0 0.0
      %3626 = vmatprep.subr.mxu0 0.0
      %3627 = vmatpush1.msra.mxu0 0.0
      %3628 = vmatprep.subr.mxu0 0.0
      %3629 = vmatpush1.msra.mxu0 %v3595
      %3630 = vmatprep.subr.mxu0 0.0
      %3631 = vmatpush1.msra.mxu0 %v3594
      %3632 = vmatprep.subr.mxu0 0.0
      %3633 = vmatpush1.msra.mxu0 %v3593
      %3634 = vmatprep.subr.mxu0 0.0
      %3635 = vmatpush1.msra.mxu0 %v3592
      %3636 = vmatprep.subr.mxu0 0.0
      %3637 = vmatpush2.msra.mxu0 0.0
      %3638 = vmatprep.subr.mxu0 0.0
      %3639 = vmatpush2.msra.mxu0 0.0
      %3640 = vmatprep.subr.mxu0 0.0
      %3641 = vmatpush2.msra.mxu0 0.0
      %3642 = vmatprep.subr.mxu0 0.0
      %3643 = vmatpush2.msra.mxu0 0.0
      %3644 = vmatprep.subr.mxu0 0.0
      %3645 = vmatpush2.msra.mxu0 0.0
      %3646 = vmatprep.subr.mxu0 0.0
      %3647 = vmatpush2.msra.mxu0 0.0
      %3648 = vmatprep.subr.mxu0 0.0
      %3649 = vmatpush2.msra.mxu0 0.0
      %3650 = vmatprep.subr.mxu0 0.0
      %3651 = vmatpush2.msra.mxu0 0.0
      %3652 = vmatprep.subr.mxu0 0.0
      %3653 = vmatpush2.msra.mxu0 0.0
      %3654 = vmatprep.subr.mxu0 0.0
      %3655 = vmatpush2.msra.mxu0 0.0
      %3656 = vmatprep.subr.mxu0 0.0
      %3657 = vmatpush2.msra.mxu0 0.0
      %3658 = vmatprep.subr.mxu0 0.0
      %3659 = vmatpush2.msra.mxu0 0.0
      %3660 = vmatprep.subr.mxu0 0.0
      %3661 = vmatpush2.msra.mxu0 0.0
      %3662 = vmatprep.subr.mxu0 0.0
      %3663 = vmatpush2.msra.mxu0 0.0
      %3664 = vmatprep.subr.mxu0 0.0
      %3665 = vmatpush2.msra.mxu0 0.0
      %3666 = vmatprep.subr.mxu0 0.0
      %3667 = vmatpush2.msra.mxu0 0.0
      %3668 = vmatprep.mubr.f32.mxu0 0.0
      %3669 = vmatmul.mubr.f32.gmra.mxu0 %v898
      %v3670 = vpop.f32.mrf.mxu0
      %v3671 = vadd.f32 %v3602, %v3670
      %v3672 = vpop.f32.mrf.mxu0
      %3673 = vdwg.mxu0
      %s3674 = scalar_lea.vmem %s4, 608
      %v3675 = vld [vmem:[%s3674] sm:$0xff]
      %v3676 = vld [vmem:[%s3674 + $0x8] sm:$0xff]
      %v3677 = vld [vmem:[%s3674 + $0x10] sm:$0xff]
      %v3678 = vld [vmem:[%s3674 + $0x18] sm:$0xff]
      %s3679 = scalar_lea.vmem %s5, 19
      %v3680 = vld [vmem:[%s3679] sm:$0x1]
      %v3682 = vlaneseq
      %v3683 = vshrl.u32 %v3682, 7
      %v3684 = vsub.s32 0, %v3683
      %v3685 = vrot.slane %v3680, %v3684
      %3687 = vmatprep.subr.mxu0 0.0
      %3688 = vmatpush1.msra.mxu0 0.0
      %3689 = vmatprep.subr.mxu0 0.0
      %3690 = vmatpush1.msra.mxu0 0.0
      %3691 = vmatprep.subr.mxu0 0.0
      %3692 = vmatpush1.msra.mxu0 0.0
      %3693 = vmatprep.subr.mxu0 0.0
      %3694 = vmatpush1.msra.mxu0 0.0
      %3695 = vmatprep.subr.mxu0 0.0
      %3696 = vmatpush1.msra.mxu0 0.0
      %3697 = vmatprep.subr.mxu0 0.0
      %3698 = vmatpush1.msra.mxu0 0.0
      %3699 = vmatprep.subr.mxu0 0.0
      %3700 = vmatpush1.msra.mxu0 0.0
      %3701 = vmatprep.subr.mxu0 0.0
      %3702 = vmatpush1.msra.mxu0 0.0
      %3703 = vmatprep.subr.mxu0 0.0
      %3704 = vmatpush1.msra.mxu0 0.0
      %3705 = vmatprep.subr.mxu0 0.0
      %3706 = vmatpush1.msra.mxu0 0.0
      %3707 = vmatprep.subr.mxu0 0.0
      %3708 = vmatpush1.msra.mxu0 0.0
      %3709 = vmatprep.subr.mxu0 0.0
      %3710 = vmatpush1.msra.mxu0 0.0
      %3711 = vmatprep.subr.mxu0 0.0
      %3712 = vmatpush1.msra.mxu0 %v3678
      %3713 = vmatprep.subr.mxu0 0.0
      %3714 = vmatpush1.msra.mxu0 %v3677
      %3715 = vmatprep.subr.mxu0 0.0
      %3716 = vmatpush1.msra.mxu0 %v3676
      %3717 = vmatprep.subr.mxu0 0.0
      %3718 = vmatpush1.msra.mxu0 %v3675
      %3719 = vmatprep.subr.mxu0 0.0
      %3720 = vmatpush2.msra.mxu0 0.0
      %3721 = vmatprep.subr.mxu0 0.0
      %3722 = vmatpush2.msra.mxu0 0.0
      %3723 = vmatprep.subr.mxu0 0.0
      %3724 = vmatpush2.msra.mxu0 0.0
      %3725 = vmatprep.subr.mxu0 0.0
      %3726 = vmatpush2.msra.mxu0 0.0
      %3727 = vmatprep.subr.mxu0 0.0
      %3728 = vmatpush2.msra.mxu0 0.0
      %3729 = vmatprep.subr.mxu0 0.0
      %3730 = vmatpush2.msra.mxu0 0.0
      %3731 = vmatprep.subr.mxu0 0.0
      %3732 = vmatpush2.msra.mxu0 0.0
      %3733 = vmatprep.subr.mxu0 0.0
      %3734 = vmatpush2.msra.mxu0 0.0
      %3735 = vmatprep.subr.mxu0 0.0
      %3736 = vmatpush2.msra.mxu0 0.0
      %3737 = vmatprep.subr.mxu0 0.0
      %3738 = vmatpush2.msra.mxu0 0.0
      %3739 = vmatprep.subr.mxu0 0.0
      %3740 = vmatpush2.msra.mxu0 0.0
      %3741 = vmatprep.subr.mxu0 0.0
      %3742 = vmatpush2.msra.mxu0 0.0
      %3743 = vmatprep.subr.mxu0 0.0
      %3744 = vmatpush2.msra.mxu0 0.0
      %3745 = vmatprep.subr.mxu0 0.0
      %3746 = vmatpush2.msra.mxu0 0.0
      %3747 = vmatprep.subr.mxu0 0.0
      %3748 = vmatpush2.msra.mxu0 0.0
      %3749 = vmatprep.subr.mxu0 0.0
      %3750 = vmatpush2.msra.mxu0 0.0
      %3751 = vmatprep.mubr.f32.mxu0 0.0
      %3752 = vmatmul.mubr.f32.gmra.mxu0 %v898
      %v3753 = vpop.f32.mrf.mxu0
      %v3754 = vadd.f32 %v3685, %v3753
      %v3755 = vpop.f32.mrf.mxu0
      %3756 = vdwg.mxu0
      %s3757 = scalar_lea.vmem %s4, 736
      %v3758 = vld [vmem:[%s3757] sm:$0xff]
      %v3759 = vld [vmem:[%s3757 + $0x8] sm:$0xff]
      %v3760 = vld [vmem:[%s3757 + $0x10] sm:$0xff]
      %v3761 = vld [vmem:[%s3757 + $0x18] sm:$0xff]
      %s3762 = scalar_lea.vmem %s5, 23
      %v3763 = vld [vmem:[%s3762] sm:$0x1]
      %v3765 = vlaneseq
      %v3766 = vshrl.u32 %v3765, 7
      %v3767 = vsub.s32 0, %v3766
      %v3768 = vrot.slane %v3763, %v3767
      %3770 = vmatprep.subr.mxu0 0.0
      %3771 = vmatpush1.msra.mxu0 0.0
      %3772 = vmatprep.subr.mxu0 0.0
      %3773 = vmatpush1.msra.mxu0 0.0
      %3774 = vmatprep.subr.mxu0 0.0
      %3775 = vmatpush1.msra.mxu0 0.0
      %3776 = vmatprep.subr.mxu0 0.0
      %3777 = vmatpush1.msra.mxu0 0.0
      %3778 = vmatprep.subr.mxu0 0.0
      %3779 = vmatpush1.msra.mxu0 0.0
      %3780 = vmatprep.subr.mxu0 0.0
      %3781 = vmatpush1.msra.mxu0 0.0
      %3782 = vmatprep.subr.mxu0 0.0
      %3783 = vmatpush1.msra.mxu0 0.0
      %3784 = vmatprep.subr.mxu0 0.0
      %3785 = vmatpush1.msra.mxu0 0.0
      %3786 = vmatprep.subr.mxu0 0.0
      %3787 = vmatpush1.msra.mxu0 0.0
      %3788 = vmatprep.subr.mxu0 0.0
      %3789 = vmatpush1.msra.mxu0 0.0
      %3790 = vmatprep.subr.mxu0 0.0
      %3791 = vmatpush1.msra.mxu0 0.0
      %3792 = vmatprep.subr.mxu0 0.0
      %3793 = vmatpush1.msra.mxu0 0.0
      %3794 = vmatprep.subr.mxu0 0.0
      %3795 = vmatpush1.msra.mxu0 %v3761
      %3796 = vmatprep.subr.mxu0 0.0
      %3797 = vmatpush1.msra.mxu0 %v3760
      %3798 = vmatprep.subr.mxu0 0.0
      %3799 = vmatpush1.msra.mxu0 %v3759
      %3800 = vmatprep.subr.mxu0 0.0
      %3801 = vmatpush1.msra.mxu0 %v3758
      %3802 = vmatprep.subr.mxu0 0.0
      %3803 = vmatpush2.msra.mxu0 0.0
      %3804 = vmatprep.subr.mxu0 0.0
      %3805 = vmatpush2.msra.mxu0 0.0
      %3806 = vmatprep.subr.mxu0 0.0
      %3807 = vmatpush2.msra.mxu0 0.0
      %3808 = vmatprep.subr.mxu0 0.0
      %3809 = vmatpush2.msra.mxu0 0.0
      %3810 = vmatprep.subr.mxu0 0.0
      %3811 = vmatpush2.msra.mxu0 0.0
      %3812 = vmatprep.subr.mxu0 0.0
      %3813 = vmatpush2.msra.mxu0 0.0
      %3814 = vmatprep.subr.mxu0 0.0
      %3815 = vmatpush2.msra.mxu0 0.0
      %3816 = vmatprep.subr.mxu0 0.0
      %3817 = vmatpush2.msra.mxu0 0.0
      %3818 = vmatprep.subr.mxu0 0.0
      %3819 = vmatpush2.msra.mxu0 0.0
      %3820 = vmatprep.subr.mxu0 0.0
      %3821 = vmatpush2.msra.mxu0 0.0
      %3822 = vmatprep.subr.mxu0 0.0
      %3823 = vmatpush2.msra.mxu0 0.0
      %3824 = vmatprep.subr.mxu0 0.0
      %3825 = vmatpush2.msra.mxu0 0.0
      %3826 = vmatprep.subr.mxu0 0.0
      %3827 = vmatpush2.msra.mxu0 0.0
      %3828 = vmatprep.subr.mxu0 0.0
      %3829 = vmatpush2.msra.mxu0 0.0
      %3830 = vmatprep.subr.mxu0 0.0
      %3831 = vmatpush2.msra.mxu0 0.0
      %3832 = vmatprep.subr.mxu0 0.0
      %3833 = vmatpush2.msra.mxu0 0.0
      %3834 = vmatprep.mubr.f32.mxu0 0.0
      %3835 = vmatmul.mubr.f32.gmra.mxu0 %v1067
      %v3836 = vpop.f32.mrf.mxu0
      %v3837 = vadd.f32 %v3768, %v3836
      %v3838 = vpop.f32.mrf.mxu0
      %3839 = vdwg.mxu0
      %v3841 = vsel %vm1139, %v3407, 0
      %v3844 = vsel %vm1139, %v3412, 0
      %v3847 = vsel %vm1139, %v3671, 0
      %v3850 = vsel %vm1139, %v3495, 0
      %v3853 = vsel %vm1139, %v3500, 0
      %v3856 = vsel %vm1139, %v3754, 0
      %3858 = vmatprep.subr.mxu0 0.0
      %3859 = vmatpush1.xpose.msra.mxu0 0.0
      %3860 = vmatprep.subr.mxu0 0.0
      %3861 = vmatpush1.xpose.msra.mxu0 0.0
      %3862 = vmatprep.subr.mxu0 0.0
      %3863 = vmatpush1.xpose.msra.mxu0 0.0
      %3864 = vmatprep.subr.mxu0 0.0
      %3865 = vmatpush1.xpose.msra.mxu0 0.0
      %3866 = vmatprep.subr.mxu0 0.0
      %3867 = vmatpush1.xpose.msra.mxu0 0.0
      %3868 = vmatprep.subr.mxu0 0.0
      %3869 = vmatpush1.xpose.msra.mxu0 0.0
      %3870 = vmatprep.subr.mxu0 0.0
      %3871 = vmatpush1.xpose.msra.mxu0 0.0
      %3872 = vmatprep.subr.mxu0 0.0
      %3873 = vmatpush1.xpose.msra.mxu0 0.0
      %3874 = vmatprep.subr.mxu0 0.0
      %3875 = vmatpush1.xpose.msra.mxu0 0.0
      %3876 = vmatprep.subr.mxu0 0.0
      %3877 = vmatpush1.xpose.msra.mxu0 0.0
      %3878 = vmatprep.subr.mxu0 0.0
      %3879 = vmatpush1.xpose.msra.mxu0 0.0
      %3880 = vmatprep.subr.mxu0 0.0
      %3881 = vmatpush1.xpose.msra.mxu0 0.0
      %3882 = vmatprep.subr.mxu0 0.0
      %3883 = vmatpush1.xpose.msra.mxu0 0.0
      %3884 = vmatprep.subr.mxu0 0.0
      %3885 = vmatpush1.xpose.msra.mxu0 %v3856
      %3886 = vmatprep.subr.mxu0 0.0
      %3887 = vmatpush1.xpose.msra.mxu0 %v3853
      %3888 = vmatprep.subr.mxu0 0.0
      %3889 = vmatpush1.xpose.msra.mxu0 %v3850
      %3890 = vmatprep.subr.mxu0 0.0
      %3891 = vmatpush2.xpose.msra.mxu0 0.0
      %3892 = vmatprep.subr.mxu0 0.0
      %3893 = vmatpush2.xpose.msra.mxu0 0.0
      %3894 = vmatprep.subr.mxu0 0.0
      %3895 = vmatpush2.xpose.msra.mxu0 0.0
      %3896 = vmatprep.subr.mxu0 0.0
      %3897 = vmatpush2.xpose.msra.mxu0 0.0
      %3898 = vmatprep.subr.mxu0 0.0
      %3899 = vmatpush2.xpose.msra.mxu0 0.0
      %3900 = vmatprep.subr.mxu0 0.0
      %3901 = vmatpush2.xpose.msra.mxu0 0.0
      %3902 = vmatprep.subr.mxu0 0.0
      %3903 = vmatpush2.xpose.msra.mxu0 0.0
      %3904 = vmatprep.subr.mxu0 0.0
      %3905 = vmatpush2.xpose.msra.mxu0 0.0
      %3906 = vmatprep.subr.mxu0 0.0
      %3907 = vmatpush2.xpose.msra.mxu0 0.0
      %3908 = vmatprep.subr.mxu0 0.0
      %3909 = vmatpush2.xpose.msra.mxu0 0.0
      %3910 = vmatprep.subr.mxu0 0.0
      %3911 = vmatpush2.xpose.msra.mxu0 0.0
      %3912 = vmatprep.subr.mxu0 0.0
      %3913 = vmatpush2.xpose.msra.mxu0 0.0
      %3914 = vmatprep.subr.mxu0 0.0
      %3915 = vmatpush2.xpose.msra.mxu0 0.0
      %3916 = vmatprep.subr.mxu0 0.0
      %3917 = vmatpush2.xpose.msra.mxu0 0.0
      %3918 = vmatprep.subr.mxu0 0.0
      %3919 = vmatpush2.xpose.msra.mxu0 0.0
      %3920 = vmatprep.subr.mxu0 0.0
      %3921 = vmatpush2.xpose.msra.mxu0 0.0
      %3922 = vmatprep.mubr.f32.mxu0 0.0
      %3923 = vmatmul.mubr.f32.gmra.mxu0 %v3841
      %v3924 = vpop.f32.mrf.mxu0
      %v3925 = vadd.f32 0.0, %v3924
      %v3926 = vpop.f32.mrf.mxu0
      %3927 = vmatprep.mubr.f32.mxu0 0.0
      %3928 = vmatmul.mubr.f32.gmra.mxu0 %v3844
      %v3929 = vpop.f32.mrf.mxu0
      %v3930 = vadd.f32 0.0, %v3929
      %v3931 = vpop.f32.mrf.mxu0
      %3932 = vmatprep.mubr.f32.mxu0 0.0
      %3933 = vmatmul.mubr.f32.gmra.mxu0 %v3847
      %v3934 = vpop.f32.mrf.mxu0
      %v3935 = vadd.f32 0.0, %v3934
      %v3936 = vpop.f32.mrf.mxu0
      %3937 = vdwg.mxu0
      %v3938 = vmul.f32 %v3925, 0.35355338
      %v3939 = vmul.f32 %v3930, 0.35355338
      %v3940 = vmul.f32 %v3935, 0.35355338
      %v3941 = vadd.f32 %v3938, %v1245
      %v3942 = vadd.f32 %v3939, %v1245
      %v3943 = vadd.f32 %v3940, %v1245
      %v3944 = vsel %vm1250, %v3941, -inf
      %3945 = vmax.xlane.f32.xlu0 %v3944
      %v3946 = vpop.xlane.xlu0 %3945
      %v3947 = vsel %vm1250, %v3942, -inf
      %3948 = vmax.xlane.f32.xlu0 %v3947
      %v3949 = vpop.xlane.xlu0 %3948
      %v3950 = vsel %vm1250, %v3943, -inf
      %3951 = vmax.xlane.f32.xlu0 %v3950
      %v3952 = vpop.xlane.xlu0 %3951
      %v3953 = vsub.f32 %v3941, %v3946
      %v3954 = vsub.f32 %v3942, %v3949
      %v3955 = vsub.f32 %v3943, %v3952
      %v3956 = vmul.f32 %v3953, 1.442695
      %v3957 = vpow.pop %v3956
      %v3958 = vmul.f32 %v3954, 1.442695
      %v3959 = vpow.pop %v3958
      %v3960 = vmul.f32 %v3955, 1.442695
      %v3961 = vpow.pop %v3960
      %v3962 = vsel %vm1250, %v3957, 0.0
      %3963 = vadd.xlane.f32.xlu0 %v3962
      %v3964 = vpop.xlane.xlu0 %3963
      %v3965 = vsel %vm1250, %v3959, 0.0
      %3966 = vadd.xlane.f32.xlu0 %v3965
      %v3967 = vpop.xlane.xlu0 %3966
      %v3968 = vsel %vm1250, %v3961, 0.0
      %3969 = vadd.xlane.f32.xlu0 %v3968
      %v3970 = vpop.xlane.xlu0 %3969
      %v3971 = vrcp.pop %v3964
      %v3972 = vrcp.pop %v3967
      %v3973 = vrcp.pop %v3970
      %v3974 = vmul.f32 %v3957, %v3971
      %v3975 = vmul.f32 %v3959, %v3972
      %v3976 = vmul.f32 %v3961, %v3973
      %v3978 = vsel %vm1250, %v3974, 0
      %v3981 = vsel %vm1250, %v3975, 0
      %v3984 = vsel %vm1250, %v3976, 0
      %3986 = vmatprep.subr.mxu0 0.0
      %3987 = vmatpush1.msra.mxu0 0.0
      %3988 = vmatprep.subr.mxu0 0.0
      %3989 = vmatpush1.msra.mxu0 0.0
      %3990 = vmatprep.subr.mxu0 0.0
      %3991 = vmatpush1.msra.mxu0 0.0
      %3992 = vmatprep.subr.mxu0 0.0
      %3993 = vmatpush1.msra.mxu0 0.0
      %3994 = vmatprep.subr.mxu0 0.0
      %3995 = vmatpush1.msra.mxu0 0.0
      %3996 = vmatprep.subr.mxu0 0.0
      %3997 = vmatpush1.msra.mxu0 0.0
      %3998 = vmatprep.subr.mxu0 0.0
      %3999 = vmatpush1.msra.mxu0 0.0
      %4000 = vmatprep.subr.mxu0 0.0
      %4001 = vmatpush1.msra.mxu0 0.0
      %4002 = vmatprep.subr.mxu0 0.0
      %4003 = vmatpush1.msra.mxu0 0.0
      %4004 = vmatprep.subr.mxu0 0.0
      %4005 = vmatpush1.msra.mxu0 0.0
      %4006 = vmatprep.subr.mxu0 0.0
      %4007 = vmatpush1.msra.mxu0 0.0
      %4008 = vmatprep.subr.mxu0 0.0
      %4009 = vmatpush1.msra.mxu0 0.0
      %4010 = vmatprep.subr.mxu0 0.0
      %4011 = vmatpush1.msra.mxu0 0.0
      %4012 = vmatprep.subr.mxu0 0.0
      %4013 = vmatpush1.msra.mxu0 %v3837
      %4014 = vmatprep.subr.mxu0 0.0
      %4015 = vmatpush1.msra.mxu0 %v3588
      %4016 = vmatprep.subr.mxu0 0.0
      %4017 = vmatpush1.msra.mxu0 %v3583
      %4018 = vmatprep.subr.mxu0 0.0
      %4019 = vmatpush2.msra.mxu0 0.0
      %4020 = vmatprep.subr.mxu0 0.0
      %4021 = vmatpush2.msra.mxu0 0.0
      %4022 = vmatprep.subr.mxu0 0.0
      %4023 = vmatpush2.msra.mxu0 0.0
      %4024 = vmatprep.subr.mxu0 0.0
      %4025 = vmatpush2.msra.mxu0 0.0
      %4026 = vmatprep.subr.mxu0 0.0
      %4027 = vmatpush2.msra.mxu0 0.0
      %4028 = vmatprep.subr.mxu0 0.0
      %4029 = vmatpush2.msra.mxu0 0.0
      %4030 = vmatprep.subr.mxu0 0.0
      %4031 = vmatpush2.msra.mxu0 0.0
      %4032 = vmatprep.subr.mxu0 0.0
      %4033 = vmatpush2.msra.mxu0 0.0
      %4034 = vmatprep.subr.mxu0 0.0
      %4035 = vmatpush2.msra.mxu0 0.0
      %4036 = vmatprep.subr.mxu0 0.0
      %4037 = vmatpush2.msra.mxu0 0.0
      %4038 = vmatprep.subr.mxu0 0.0
      %4039 = vmatpush2.msra.mxu0 0.0
      %4040 = vmatprep.subr.mxu0 0.0
      %4041 = vmatpush2.msra.mxu0 0.0
      %4042 = vmatprep.subr.mxu0 0.0
      %4043 = vmatpush2.msra.mxu0 0.0
      %4044 = vmatprep.subr.mxu0 0.0
      %4045 = vmatpush2.msra.mxu0 0.0
      %4046 = vmatprep.subr.mxu0 0.0
      %4047 = vmatpush2.msra.mxu0 0.0
      %4048 = vmatprep.subr.mxu0 0.0
      %4049 = vmatpush2.msra.mxu0 0.0
      %4050 = vmatprep.mubr.f32.mxu0 0.0
      %4051 = vmatmul.mubr.f32.gmra.mxu0 %v3978
      %v4052 = vpop.f32.mrf.mxu0
      %v4053 = vadd.f32 0.0, %v4052
      %v4054 = vpop.f32.mrf.mxu0
      %4055 = vmatprep.mubr.f32.mxu0 0.0
      %4056 = vmatmul.mubr.f32.gmra.mxu0 %v3981
      %v4057 = vpop.f32.mrf.mxu0
      %v4058 = vadd.f32 0.0, %v4057
      %v4059 = vpop.f32.mrf.mxu0
      %4060 = vmatprep.mubr.f32.mxu0 0.0
      %4061 = vmatmul.mubr.f32.gmra.mxu0 %v3984
      %v4062 = vpop.f32.mrf.mxu0
      %v4063 = vadd.f32 0.0, %v4062
      %v4064 = vpop.f32.mrf.mxu0
      %4065 = vdwg.mxu0
      %s4066 = scalar_lea.vmem %s6, 24
      %v4067 = vld [vmem:[%s4066] sm:$0xff]
      %v4069 = vsel %vm1139, %v4053, 0
      %v4072 = vsel %vm1139, %v4058, 0
      %4074 = vmatprep.subr.mxu0 0.0
      %4075 = vmatpush1.msra.mxu0 0.0
      %4076 = vmatprep.subr.mxu0 0.0
      %4077 = vmatpush1.msra.mxu0 0.0
      %4078 = vmatprep.subr.mxu0 0.0
      %4079 = vmatpush1.msra.mxu0 0.0
      %4080 = vmatprep.subr.mxu0 0.0
      %4081 = vmatpush1.msra.mxu0 0.0
      %4082 = vmatprep.subr.mxu0 0.0
      %4083 = vmatpush1.msra.mxu0 0.0
      %4084 = vmatprep.subr.mxu0 0.0
      %4085 = vmatpush1.msra.mxu0 0.0
      %4086 = vmatprep.subr.mxu0 0.0
      %4087 = vmatpush1.msra.mxu0 0.0
      %4088 = vmatprep.subr.mxu0 0.0
      %4089 = vmatpush1.msra.mxu0 0.0
      %4090 = vmatprep.subr.mxu0 0.0
      %4091 = vmatpush1.msra.mxu0 0.0
      %4092 = vmatprep.subr.mxu0 0.0
      %4093 = vmatpush1.msra.mxu0 0.0
      %4094 = vmatprep.subr.mxu0 0.0
      %4095 = vmatpush1.msra.mxu0 0.0
      %4096 = vmatprep.subr.mxu0 0.0
      %4097 = vmatpush1.msra.mxu0 0.0
      %4098 = vmatprep.subr.mxu0 0.0
      %4099 = vmatpush1.msra.mxu0 0.0
      %4100 = vmatprep.subr.mxu0 0.0
      %4101 = vmatpush1.msra.mxu0 0.0
      %4102 = vmatprep.subr.mxu0 0.0
      %4103 = vmatpush1.msra.mxu0 0.0
      %4104 = vmatprep.subr.mxu0 0.0
      %4105 = vmatpush1.msra.mxu0 %v4067
      %4106 = vmatprep.subr.mxu0 0.0
      %4107 = vmatpush2.msra.mxu0 0.0
      %4108 = vmatprep.subr.mxu0 0.0
      %4109 = vmatpush2.msra.mxu0 0.0
      %4110 = vmatprep.subr.mxu0 0.0
      %4111 = vmatpush2.msra.mxu0 0.0
      %4112 = vmatprep.subr.mxu0 0.0
      %4113 = vmatpush2.msra.mxu0 0.0
      %4114 = vmatprep.subr.mxu0 0.0
      %4115 = vmatpush2.msra.mxu0 0.0
      %4116 = vmatprep.subr.mxu0 0.0
      %4117 = vmatpush2.msra.mxu0 0.0
      %4118 = vmatprep.subr.mxu0 0.0
      %4119 = vmatpush2.msra.mxu0 0.0
      %4120 = vmatprep.subr.mxu0 0.0
      %4121 = vmatpush2.msra.mxu0 0.0
      %4122 = vmatprep.subr.mxu0 0.0
      %4123 = vmatpush2.msra.mxu0 0.0
      %4124 = vmatprep.subr.mxu0 0.0
      %4125 = vmatpush2.msra.mxu0 0.0
      %4126 = vmatprep.subr.mxu0 0.0
      %4127 = vmatpush2.msra.mxu0 0.0
      %4128 = vmatprep.subr.mxu0 0.0
      %4129 = vmatpush2.msra.mxu0 0.0
      %4130 = vmatprep.subr.mxu0 0.0
      %4131 = vmatpush2.msra.mxu0 0.0
      %4132 = vmatprep.subr.mxu0 0.0
      %4133 = vmatpush2.msra.mxu0 0.0
      %4134 = vmatprep.subr.mxu0 0.0
      %4135 = vmatpush2.msra.mxu0 0.0
      %4136 = vmatprep.subr.mxu0 0.0
      %4137 = vmatpush2.msra.mxu0 0.0
      %4138 = vmatprep.mubr.f32.mxu0 0.0
      %4139 = vmatmul.mubr.f32.gmra.mxu0 %v4069
      %v4140 = vpop.f32.mrf.mxu0
      %v4141 = vadd.f32 0.0, %v4140
      %v4142 = vpop.f32.mrf.mxu0
      %4143 = vmatprep.mubr.f32.mxu0 0.0
      %4144 = vmatmul.mubr.f32.gmra.mxu0 %v4072
      %v4145 = vpop.f32.mrf.mxu0
      %v4146 = vadd.f32 0.0, %v4145
      %v4147 = vpop.f32.mrf.mxu0
      %4148 = vdwg.mxu0
      %v4149 = vadd.f32 %v3249, %v4141
      %v4150 = vadd.f32 %v3250, %v4146
      %s4151 = scalar_lea.vmem %s6, 56
      %v4152 = vld [vmem:[%s4151] sm:$0xff]
      %v4154 = vsel %vm1139, %v4063, 0
      %4156 = vmatprep.subr.mxu0 0.0
      %4157 = vmatpush1.msra.mxu0 0.0
      %4158 = vmatprep.subr.mxu0 0.0
      %4159 = vmatpush1.msra.mxu0 0.0
      %4160 = vmatprep.subr.mxu0 0.0
      %4161 = vmatpush1.msra.mxu0 0.0
      %4162 = vmatprep.subr.mxu0 0.0
      %4163 = vmatpush1.msra.mxu0 0.0
      %4164 = vmatprep.subr.mxu0 0.0
      %4165 = vmatpush1.msra.mxu0 0.0
      %4166 = vmatprep.subr.mxu0 0.0
      %4167 = vmatpush1.msra.mxu0 0.0
      %4168 = vmatprep.subr.mxu0 0.0
      %4169 = vmatpush1.msra.mxu0 0.0
      %4170 = vmatprep.subr.mxu0 0.0
      %4171 = vmatpush1.msra.mxu0 0.0
      %4172 = vmatprep.subr.mxu0 0.0
      %4173 = vmatpush1.msra.mxu0 0.0
      %4174 = vmatprep.subr.mxu0 0.0
      %4175 = vmatpush1.msra.mxu0 0.0
      %4176 = vmatprep.subr.mxu0 0.0
      %4177 = vmatpush1.msra.mxu0 0.0
      %4178 = vmatprep.subr.mxu0 0.0
      %4179 = vmatpush1.msra.mxu0 0.0
      %4180 = vmatprep.subr.mxu0 0.0
      %4181 = vmatpush1.msra.mxu0 0.0
      %4182 = vmatprep.subr.mxu0 0.0
      %4183 = vmatpush1.msra.mxu0 0.0
      %4184 = vmatprep.subr.mxu0 0.0
      %4185 = vmatpush1.msra.mxu0 0.0
      %4186 = vmatprep.subr.mxu0 0.0
      %4187 = vmatpush1.msra.mxu0 %v4152
      %4188 = vmatprep.subr.mxu0 0.0
      %4189 = vmatpush2.msra.mxu0 0.0
      %4190 = vmatprep.subr.mxu0 0.0
      %4191 = vmatpush2.msra.mxu0 0.0
      %4192 = vmatprep.subr.mxu0 0.0
      %4193 = vmatpush2.msra.mxu0 0.0
      %4194 = vmatprep.subr.mxu0 0.0
      %4195 = vmatpush2.msra.mxu0 0.0
      %4196 = vmatprep.subr.mxu0 0.0
      %4197 = vmatpush2.msra.mxu0 0.0
      %4198 = vmatprep.subr.mxu0 0.0
      %4199 = vmatpush2.msra.mxu0 0.0
      %4200 = vmatprep.subr.mxu0 0.0
      %4201 = vmatpush2.msra.mxu0 0.0
      %4202 = vmatprep.subr.mxu0 0.0
      %4203 = vmatpush2.msra.mxu0 0.0
      %4204 = vmatprep.subr.mxu0 0.0
      %4205 = vmatpush2.msra.mxu0 0.0
      %4206 = vmatprep.subr.mxu0 0.0
      %4207 = vmatpush2.msra.mxu0 0.0
      %4208 = vmatprep.subr.mxu0 0.0
      %4209 = vmatpush2.msra.mxu0 0.0
      %4210 = vmatprep.subr.mxu0 0.0
      %4211 = vmatpush2.msra.mxu0 0.0
      %4212 = vmatprep.subr.mxu0 0.0
      %4213 = vmatpush2.msra.mxu0 0.0
      %4214 = vmatprep.subr.mxu0 0.0
      %4215 = vmatpush2.msra.mxu0 0.0
      %4216 = vmatprep.subr.mxu0 0.0
      %4217 = vmatpush2.msra.mxu0 0.0
      %4218 = vmatprep.subr.mxu0 0.0
      %4219 = vmatpush2.msra.mxu0 0.0
      %4220 = vmatprep.mubr.f32.mxu0 0.0
      %4221 = vmatmul.mubr.f32.gmra.mxu0 %v4154
      %v4222 = vpop.f32.mrf.mxu0
      %v4223 = vadd.f32 0.0, %v4222
      %v4224 = vpop.f32.mrf.mxu0
      %4225 = vdwg.mxu0
      %v4226 = vadd.f32 %v3326, %v4223
      %v4227 = vld [vmem:[%s7] sm:$0x1]
      %v4229 = vlaneseq
      %v4230 = vshrl.u32 %v4229, 7
      %v4231 = vsub.s32 0, %v4230
      %v4232 = vrot.slane %v4227, %v4231
      %v4234 = vadd.f32 %v4149, %v4232
      %v4235 = vadd.f32 %v4150, %v4232
      %v4236 = vadd.f32 %v4234, %v608
      %v4237 = vadd.f32 %v4235, %v609
      %v4238 = vld [vmem:[%s12] sm:$0x1]
      %v4239 = vld [vmem:[%s13] sm:$0x1]
      %v4240 = vsel %vm626, %v4236, 0.0
      %4241 = vadd.xlane.f32.xlu0 %v4240
      %v4242 = vpop.xlane.xlu0 %4241
      %v4243 = vsel %vm626, %v4237, 0.0
      %4244 = vadd.xlane.f32.xlu0 %v4243
      %v4245 = vpop.xlane.xlu0 %4244
      %v4246 = vrcp.pop 32.0
      %v4247 = vmul.f32 %v4242, %v4246
      %v4248 = vmul.f32 %v4245, %v4246
      %v4249 = vsub.f32 %v4236, %v4247
      %v4250 = vsub.f32 %v4237, %v4248
      %v4251 = vmul.f32 %v4249, %v4249
      %v4252 = vmul.f32 %v4250, %v4250
      %v4253 = vsel %vm626, %v4251, 0.0
      %4254 = vadd.xlane.f32.xlu0 %v4253
      %v4255 = vpop.xlane.xlu0 %4254
      %v4256 = vsel %vm626, %v4252, 0.0
      %4257 = vadd.xlane.f32.xlu0 %v4256
      %v4258 = vpop.xlane.xlu0 %4257
      %v4259 = vmul.f32 %v4255, %v4246
      %v4260 = vmul.f32 %v4258, %v4246
      %v4261 = vadd.f32 %v4259, 1e-12
      %v4262 = vadd.f32 %v4260, 1e-12
      %v4263 = vrsqrt.pop %v4261
      %v4264 = vrsqrt.pop %v4262
      %v4265 = vmul.f32 %v4249, %v4263
      %v4266 = vmul.f32 %v4250, %v4264
      %v4268 = vlaneseq
      %v4269 = vshrl.u32 %v4268, 7
      %v4270 = vsub.s32 0, %v4269
      %v4271 = vrot.slane %v4238, %v4270
      %v4273 = vmul.f32 %v4265, %v4271
      %v4274 = vmul.f32 %v4266, %v4271
      %v4276 = vlaneseq
      %v4277 = vshrl.u32 %v4276, 7
      %v4278 = vsub.s32 0, %v4277
      %v4279 = vrot.slane %v4239, %v4278
      %v4281 = vadd.f32 %v4273, %v4279
      %v4282 = vadd.f32 %v4274, %v4279
      %s4283 = scalar_lea.vmem %s7, 1
      %v4284 = vld [vmem:[%s4283] sm:$0x1]
      %v4286 = vlaneseq
      %v4287 = vshrl.u32 %v4286, 7
      %v4288 = vsub.s32 0, %v4287
      %v4289 = vrot.slane %v4284, %v4288
      %v4291 = vadd.f32 %v4226, %v4289
      %v4292 = vadd.f32 %v4291, %v610
      %s4293 = scalar_lea.vmem %s12, 1
      %v4294 = vld [vmem:[%s4293] sm:$0x1]
      %s4295 = scalar_lea.vmem %s13, 1
      %v4296 = vld [vmem:[%s4295] sm:$0x1]
      %v4297 = vsel %vm626, %v4292, 0.0
      %4298 = vadd.xlane.f32.xlu0 %v4297
      %v4299 = vpop.xlane.xlu0 %4298
      %v4300 = vmul.f32 %v4299, %v4246
      %v4301 = vsub.f32 %v4292, %v4300
      %v4302 = vmul.f32 %v4301, %v4301
      %v4303 = vsel %vm626, %v4302, 0.0
      %4304 = vadd.xlane.f32.xlu0 %v4303
      %v4305 = vpop.xlane.xlu0 %4304
      %v4306 = vmul.f32 %v4305, %v4246
      %v4307 = vadd.f32 %v4306, 1e-12
      %v4308 = vrsqrt.pop %v4307
      %v4309 = vmul.f32 %v4301, %v4308
      %v4311 = vlaneseq
      %v4312 = vshrl.u32 %v4311, 7
      %v4313 = vsub.s32 0, %v4312
      %v4314 = vrot.slane %v4294, %v4313
      %v4316 = vmul.f32 %v4309, %v4314
      %v4318 = vlaneseq
      %v4319 = vshrl.u32 %v4318, 7
      %v4320 = vsub.s32 0, %v4319
      %v4321 = vrot.slane %v4296, %v4320
      %v4323 = vadd.f32 %v4316, %v4321
      %v4324 = vld [vmem:[%s8] sm:$0xff]
      %v4325 = vld [vmem:[%s8 + $0x8] sm:$0xff]
      %v4326 = vld [vmem:[%s8 + $0x10] sm:$0xff]
      %v4327 = vld [vmem:[%s8 + $0x18] sm:$0xff]
      %v4328 = vld [vmem:[%s9] sm:$0x1]
      %v4330 = vlaneseq
      %v4331 = vshrl.u32 %v4330, 7
      %v4332 = vsub.s32 0, %v4331
      %v4333 = vrot.slane %v4328, %v4332
      %v4336 = vsel %vm626, %v4281, 0
      %v4339 = vsel %vm626, %v4282, 0
      %4341 = vmatprep.subr.mxu0 0.0
      %4342 = vmatpush1.msra.mxu0 0.0
      %4343 = vmatprep.subr.mxu0 0.0
      %4344 = vmatpush1.msra.mxu0 0.0
      %4345 = vmatprep.subr.mxu0 0.0
      %4346 = vmatpush1.msra.mxu0 0.0
      %4347 = vmatprep.subr.mxu0 0.0
      %4348 = vmatpush1.msra.mxu0 0.0
      %4349 = vmatprep.subr.mxu0 0.0
      %4350 = vmatpush1.msra.mxu0 0.0
      %4351 = vmatprep.subr.mxu0 0.0
      %4352 = vmatpush1.msra.mxu0 0.0
      %4353 = vmatprep.subr.mxu0 0.0
      %4354 = vmatpush1.msra.mxu0 0.0
      %4355 = vmatprep.subr.mxu0 0.0
      %4356 = vmatpush1.msra.mxu0 0.0
      %4357 = vmatprep.subr.mxu0 0.0
      %4358 = vmatpush1.msra.mxu0 0.0
      %4359 = vmatprep.subr.mxu0 0.0
      %4360 = vmatpush1.msra.mxu0 0.0
      %4361 = vmatprep.subr.mxu0 0.0
      %4362 = vmatpush1.msra.mxu0 0.0
      %4363 = vmatprep.subr.mxu0 0.0
      %4364 = vmatpush1.msra.mxu0 0.0
      %4365 = vmatprep.subr.mxu0 0.0
      %4366 = vmatpush1.msra.mxu0 %v4327
      %4367 = vmatprep.subr.mxu0 0.0
      %4368 = vmatpush1.msra.mxu0 %v4326
      %4369 = vmatprep.subr.mxu0 0.0
      %4370 = vmatpush1.msra.mxu0 %v4325
      %4371 = vmatprep.subr.mxu0 0.0
      %4372 = vmatpush1.msra.mxu0 %v4324
      %4373 = vmatprep.subr.mxu0 0.0
      %4374 = vmatpush2.msra.mxu0 0.0
      %4375 = vmatprep.subr.mxu0 0.0
      %4376 = vmatpush2.msra.mxu0 0.0
      %4377 = vmatprep.subr.mxu0 0.0
      %4378 = vmatpush2.msra.mxu0 0.0
      %4379 = vmatprep.subr.mxu0 0.0
      %4380 = vmatpush2.msra.mxu0 0.0
      %4381 = vmatprep.subr.mxu0 0.0
      %4382 = vmatpush2.msra.mxu0 0.0
      %4383 = vmatprep.subr.mxu0 0.0
      %4384 = vmatpush2.msra.mxu0 0.0
      %4385 = vmatprep.subr.mxu0 0.0
      %4386 = vmatpush2.msra.mxu0 0.0
      %4387 = vmatprep.subr.mxu0 0.0
      %4388 = vmatpush2.msra.mxu0 0.0
      %4389 = vmatprep.subr.mxu0 0.0
      %4390 = vmatpush2.msra.mxu0 0.0
      %4391 = vmatprep.subr.mxu0 0.0
      %4392 = vmatpush2.msra.mxu0 0.0
      %4393 = vmatprep.subr.mxu0 0.0
      %4394 = vmatpush2.msra.mxu0 0.0
      %4395 = vmatprep.subr.mxu0 0.0
      %4396 = vmatpush2.msra.mxu0 0.0
      %4397 = vmatprep.subr.mxu0 0.0
      %4398 = vmatpush2.msra.mxu0 0.0
      %4399 = vmatprep.subr.mxu0 0.0
      %4400 = vmatpush2.msra.mxu0 0.0
      %4401 = vmatprep.subr.mxu0 0.0
      %4402 = vmatpush2.msra.mxu0 0.0
      %4403 = vmatprep.subr.mxu0 0.0
      %4404 = vmatpush2.msra.mxu0 0.0
      %4405 = vmatprep.mubr.f32.mxu0 0.0
      %4406 = vmatmul.mubr.f32.gmra.mxu0 %v4336
      %v4407 = vpop.f32.mrf.mxu0
      %v4408 = vadd.f32 %v4333, %v4407
      %v4409 = vpop.f32.mrf.mxu0
      %4410 = vmatprep.mubr.f32.mxu0 0.0
      %4411 = vmatmul.mubr.f32.gmra.mxu0 %v4339
      %v4412 = vpop.f32.mrf.mxu0
      %v4413 = vadd.f32 %v4333, %v4412
      %v4414 = vpop.f32.mrf.mxu0
      %4415 = vdwg.mxu0
      %v4416 = vmul.f32 %v4408, %v4408
      %v4417 = vmul.f32 %v4413, %v4413
      %v4418 = vmul.f32 %v4408, %v4416
      %v4419 = vmul.f32 %v4413, %v4417
      %v4420 = vmul.f32 %v4418, 0.044715
      %v4421 = vmul.f32 %v4419, 0.044715
      %v4422 = vadd.f32 %v4408, %v4420
      %v4423 = vadd.f32 %v4413, %v4421
      %v4424 = vmul.f32 %v4422, 0.7978846
      %v4425 = vmul.f32 %v4423, 0.7978846
      %v4426 = vtanh.pop %v4424
      %v4427 = vtanh.pop %v4425
      %v4428 = vadd.f32 %v4426, 1.0
      %v4429 = vadd.f32 %v4427, 1.0
      %v4430 = vmul.f32 %v4428, 0.5
      %v4431 = vmul.f32 %v4429, 0.5
      %v4432 = vmul.f32 %v4408, %v4430
      %v4433 = vmul.f32 %v4413, %v4431
      %s4434 = scalar_lea.vmem %s8, 32
      %v4435 = vld [vmem:[%s4434] sm:$0xff]
      %v4436 = vld [vmem:[%s4434 + $0x8] sm:$0xff]
      %v4437 = vld [vmem:[%s4434 + $0x10] sm:$0xff]
      %v4438 = vld [vmem:[%s4434 + $0x18] sm:$0xff]
      %s4439 = scalar_lea.vmem %s9, 1
      %v4440 = vld [vmem:[%s4439] sm:$0x1]
      %v4442 = vlaneseq
      %v4443 = vshrl.u32 %v4442, 7
      %v4444 = vsub.s32 0, %v4443
      %v4445 = vrot.slane %v4440, %v4444
      %v4448 = vsel %vm626, %v4323, 0
      %4450 = vmatprep.subr.mxu0 0.0
      %4451 = vmatpush1.msra.mxu0 0.0
      %4452 = vmatprep.subr.mxu0 0.0
      %4453 = vmatpush1.msra.mxu0 0.0
      %4454 = vmatprep.subr.mxu0 0.0
      %4455 = vmatpush1.msra.mxu0 0.0
      %4456 = vmatprep.subr.mxu0 0.0
      %4457 = vmatpush1.msra.mxu0 0.0
      %4458 = vmatprep.subr.mxu0 0.0
      %4459 = vmatpush1.msra.mxu0 0.0
      %4460 = vmatprep.subr.mxu0 0.0
      %4461 = vmatpush1.msra.mxu0 0.0
      %4462 = vmatprep.subr.mxu0 0.0
      %4463 = vmatpush1.msra.mxu0 0.0
      %4464 = vmatprep.subr.mxu0 0.0
      %4465 = vmatpush1.msra.mxu0 0.0
      %4466 = vmatprep.subr.mxu0 0.0
      %4467 = vmatpush1.msra.mxu0 0.0
      %4468 = vmatprep.subr.mxu0 0.0
      %4469 = vmatpush1.msra.mxu0 0.0
      %4470 = vmatprep.subr.mxu0 0.0
      %4471 = vmatpush1.msra.mxu0 0.0
      %4472 = vmatprep.subr.mxu0 0.0
      %4473 = vmatpush1.msra.mxu0 0.0
      %4474 = vmatprep.subr.mxu0 0.0
      %4475 = vmatpush1.msra.mxu0 %v4438
      %4476 = vmatprep.subr.mxu0 0.0
      %4477 = vmatpush1.msra.mxu0 %v4437
      %4478 = vmatprep.subr.mxu0 0.0
      %4479 = vmatpush1.msra.mxu0 %v4436
      %4480 = vmatprep.subr.mxu0 0.0
      %4481 = vmatpush1.msra.mxu0 %v4435
      %4482 = vmatprep.subr.mxu0 0.0
      %4483 = vmatpush2.msra.mxu0 0.0
      %4484 = vmatprep.subr.mxu0 0.0
      %4485 = vmatpush2.msra.mxu0 0.0
      %4486 = vmatprep.subr.mxu0 0.0
      %4487 = vmatpush2.msra.mxu0 0.0
      %4488 = vmatprep.subr.mxu0 0.0
      %4489 = vmatpush2.msra.mxu0 0.0
      %4490 = vmatprep.subr.mxu0 0.0
      %4491 = vmatpush2.msra.mxu0 0.0
      %4492 = vmatprep.subr.mxu0 0.0
      %4493 = vmatpush2.msra.mxu0 0.0
      %4494 = vmatprep.subr.mxu0 0.0
      %4495 = vmatpush2.msra.mxu0 0.0
      %4496 = vmatprep.subr.mxu0 0.0
      %4497 = vmatpush2.msra.mxu0 0.0
      %4498 = vmatprep.subr.mxu0 0.0
      %4499 = vmatpush2.msra.mxu0 0.0
      %4500 = vmatprep.subr.mxu0 0.0
      %4501 = vmatpush2.msra.mxu0 0.0
      %4502 = vmatprep.subr.mxu0 0.0
      %4503 = vmatpush2.msra.mxu0 0.0
      %4504 = vmatprep.subr.mxu0 0.0
      %4505 = vmatpush2.msra.mxu0 0.0
      %4506 = vmatprep.subr.mxu0 0.0
      %4507 = vmatpush2.msra.mxu0 0.0
      %4508 = vmatprep.subr.mxu0 0.0
      %4509 = vmatpush2.msra.mxu0 0.0
      %4510 = vmatprep.subr.mxu0 0.0
      %4511 = vmatpush2.msra.mxu0 0.0
      %4512 = vmatprep.subr.mxu0 0.0
      %4513 = vmatpush2.msra.mxu0 0.0
      %4514 = vmatprep.mubr.f32.mxu0 0.0
      %4515 = vmatmul.mubr.f32.gmra.mxu0 %v4448
      %v4516 = vpop.f32.mrf.mxu0
      %v4517 = vadd.f32 %v4445, %v4516
      %v4518 = vpop.f32.mrf.mxu0
      %4519 = vdwg.mxu0
      %v4520 = vmul.f32 %v4517, %v4517
      %v4521 = vmul.f32 %v4517, %v4520
      %v4522 = vmul.f32 %v4521, 0.044715
      %v4523 = vadd.f32 %v4517, %v4522
      %v4524 = vmul.f32 %v4523, 0.7978846
      %v4525 = vtanh.pop %v4524
      %v4526 = vadd.f32 %v4525, 1.0
      %v4527 = vmul.f32 %v4526, 0.5
      %v4528 = vmul.f32 %v4517, %v4527
      %v4529 = vld [vmem:[%s10] sm:$0xff]
      %v4530 = vld [vmem:[%s10 + $0x8] sm:$0xff]
      %v4531 = vld [vmem:[%s10 + $0x10] sm:$0xff]
      %v4532 = vld [vmem:[%s10 + $0x18] sm:$0xff]
      %v4533 = vld [vmem:[%s10 + $0x20] sm:$0xff]
      %v4534 = vld [vmem:[%s10 + $0x28] sm:$0xff]
      %v4535 = vld [vmem:[%s10 + $0x30] sm:$0xff]
      %v4536 = vld [vmem:[%s10 + $0x38] sm:$0xff]
      %v4537 = vld [vmem:[%s11] sm:$0x1]
      %v4539 = vlaneseq
      %v4540 = vshrl.u32 %v4539, 7
      %v4541 = vsub.s32 0, %v4540
      %v4542 = vrot.slane %v4537, %v4541
      %vm4544 = vcmask 523264
      %v4546 = vsel %vm4544, %v4432, 0
      %v4549 = vsel %vm4544, %v4433, 0
      %4551 = vmatprep.subr.mxu0 0.0
      %4552 = vmatpush1.msra.mxu0 0.0
      %4553 = vmatprep.subr.mxu0 0.0
      %4554 = vmatpush1.msra.mxu0 0.0
      %4555 = vmatprep.subr.mxu0 0.0
      %4556 = vmatpush1.msra.mxu0 0.0
      %4557 = vmatprep.subr.mxu0 0.0
      %4558 = vmatpush1.msra.mxu0 0.0
      %4559 = vmatprep.subr.mxu0 0.0
      %4560 = vmatpush1.msra.mxu0 0.0
      %4561 = vmatprep.subr.mxu0 0.0
      %4562 = vmatpush1.msra.mxu0 0.0
      %4563 = vmatprep.subr.mxu0 0.0
      %4564 = vmatpush1.msra.mxu0 0.0
      %4565 = vmatprep.subr.mxu0 0.0
      %4566 = vmatpush1.msra.mxu0 0.0
      %4567 = vmatprep.subr.mxu0 0.0
      %4568 = vmatpush1.msra.mxu0 %v4536
      %4569 = vmatprep.subr.mxu0 0.0
      %4570 = vmatpush1.msra.mxu0 %v4535
      %4571 = vmatprep.subr.mxu0 0.0
      %4572 = vmatpush1.msra.mxu0 %v4534
      %4573 = vmatprep.subr.mxu0 0.0
      %4574 = vmatpush1.msra.mxu0 %v4533
      %4575 = vmatprep.subr.mxu0 0.0
      %4576 = vmatpush1.msra.mxu0 %v4532
      %4577 = vmatprep.subr.mxu0 0.0
      %4578 = vmatpush1.msra.mxu0 %v4531
      %4579 = vmatprep.subr.mxu0 0.0
      %4580 = vmatpush1.msra.mxu0 %v4530
      %4581 = vmatprep.subr.mxu0 0.0
      %4582 = vmatpush1.msra.mxu0 %v4529
      %4583 = vmatprep.subr.mxu0 0.0
      %4584 = vmatpush2.msra.mxu0 0.0
      %4585 = vmatprep.subr.mxu0 0.0
      %4586 = vmatpush2.msra.mxu0 0.0
      %4587 = vmatprep.subr.mxu0 0.0
      %4588 = vmatpush2.msra.mxu0 0.0
      %4589 = vmatprep.subr.mxu0 0.0
      %4590 = vmatpush2.msra.mxu0 0.0
      %4591 = vmatprep.subr.mxu0 0.0
      %4592 = vmatpush2.msra.mxu0 0.0
      %4593 = vmatprep.subr.mxu0 0.0
      %4594 = vmatpush2.msra.mxu0 0.0
      %4595 = vmatprep.subr.mxu0 0.0
      %4596 = vmatpush2.msra.mxu0 0.0
      %4597 = vmatprep.subr.mxu0 0.0
      %4598 = vmatpush2.msra.mxu0 0.0
      %4599 = vmatprep.subr.mxu0 0.0
      %4600 = vmatpush2.msra.mxu0 0.0
      %4601 = vmatprep.subr.mxu0 0.0
      %4602 = vmatpush2.msra.mxu0 0.0
      %4603 = vmatprep.subr.mxu0 0.0
      %4604 = vmatpush2.msra.mxu0 0.0
      %4605 = vmatprep.subr.mxu0 0.0
      %4606 = vmatpush2.msra.mxu0 0.0
      %4607 = vmatprep.subr.mxu0 0.0
      %4608 = vmatpush2.msra.mxu0 0.0
      %4609 = vmatprep.subr.mxu0 0.0
      %4610 = vmatpush2.msra.mxu0 0.0
      %4611 = vmatprep.subr.mxu0 0.0
      %4612 = vmatpush2.msra.mxu0 0.0
      %4613 = vmatprep.subr.mxu0 0.0
      %4614 = vmatpush2.msra.mxu0 0.0
      %4615 = vmatprep.mubr.f32.mxu0 0.0
      %4616 = vmatmul.mubr.f32.gmra.mxu0 %v4546
      %v4617 = vpop.f32.mrf.mxu0
      %v4618 = vadd.f32 %v4542, %v4617
      %v4619 = vpop.f32.mrf.mxu0
      %4620 = vmatprep.mubr.f32.mxu0 0.0
      %4621 = vmatmul.mubr.f32.gmra.mxu0 %v4549
      %v4622 = vpop.f32.mrf.mxu0
      %v4623 = vadd.f32 %v4542, %v4622
      %v4624 = vpop.f32.mrf.mxu0
      %4625 = vdwg.mxu0
      %v4626 = vadd.f32 %v4618, %v4281
      %v4627 = vadd.f32 %v4623, %v4282
      %s4628 = scalar_lea.vmem %s12, 2
      %v4629 = vld [vmem:[%s4628] sm:$0x1]
      %s4630 = scalar_lea.vmem %s13, 2
      %v4631 = vld [vmem:[%s4630] sm:$0x1]
      %v4632 = vsel %vm626, %v4626, 0.0
      %4633 = vadd.xlane.f32.xlu0 %v4632
      %v4634 = vpop.xlane.xlu0 %4633
      %v4635 = vsel %vm626, %v4627, 0.0
      %4636 = vadd.xlane.f32.xlu0 %v4635
      %v4637 = vpop.xlane.xlu0 %4636
      %v4638 = vmul.f32 %v4634, %v4246
      %v4639 = vmul.f32 %v4637, %v4246
      %v4640 = vsub.f32 %v4626, %v4638
      %v4641 = vsub.f32 %v4627, %v4639
      %v4642 = vmul.f32 %v4640, %v4640
      %v4643 = vmul.f32 %v4641, %v4641
      %v4644 = vsel %vm626, %v4642, 0.0
      %4645 = vadd.xlane.f32.xlu0 %v4644
      %v4646 = vpop.xlane.xlu0 %4645
      %v4647 = vsel %vm626, %v4643, 0.0
      %4648 = vadd.xlane.f32.xlu0 %v4647
      %v4649 = vpop.xlane.xlu0 %4648
      %v4650 = vmul.f32 %v4646, %v4246
      %v4651 = vmul.f32 %v4649, %v4246
      %v4652 = vadd.f32 %v4650, 1e-12
      %v4653 = vadd.f32 %v4651, 1e-12
      %v4654 = vrsqrt.pop %v4652
      %v4655 = vrsqrt.pop %v4653
      %v4656 = vmul.f32 %v4640, %v4654
      %v4657 = vmul.f32 %v4641, %v4655
      %v4659 = vlaneseq
      %v4660 = vshrl.u32 %v4659, 7
      %v4661 = vsub.s32 0, %v4660
      %v4662 = vrot.slane %v4629, %v4661
      %v4664 = vmul.f32 %v4656, %v4662
      %v4665 = vmul.f32 %v4657, %v4662
      %v4667 = vlaneseq
      %v4668 = vshrl.u32 %v4667, 7
      %v4669 = vsub.s32 0, %v4668
      %v4670 = vrot.slane %v4631, %v4669
      %v4672 = vadd.f32 %v4664, %v4670
      %v4673 = vadd.f32 %v4665, %v4670
      %s4674 = scalar_lea.vmem %s10, 64
      %v4675 = vld [vmem:[%s4674] sm:$0xff]
      %v4676 = vld [vmem:[%s4674 + $0x8] sm:$0xff]
      %v4677 = vld [vmem:[%s4674 + $0x10] sm:$0xff]
      %v4678 = vld [vmem:[%s4674 + $0x18] sm:$0xff]
      %v4679 = vld [vmem:[%s4674 + $0x20] sm:$0xff]
      %v4680 = vld [vmem:[%s4674 + $0x28] sm:$0xff]
      %v4681 = vld [vmem:[%s4674 + $0x30] sm:$0xff]
      %v4682 = vld [vmem:[%s4674 + $0x38] sm:$0xff]
      %s4683 = scalar_lea.vmem %s11, 1
      %v4684 = vld [vmem:[%s4683] sm:$0x1]
      %v4686 = vlaneseq
      %v4687 = vshrl.u32 %v4686, 7
      %v4688 = vsub.s32 0, %v4687
      %v4689 = vrot.slane %v4684, %v4688
      %v4692 = vsel %vm4544, %v4528, 0
      %4694 = vmatprep.subr.mxu0 0.0
      %4695 = vmatpush1.msra.mxu0 0.0
      %4696 = vmatprep.subr.mxu0 0.0
      %4697 = vmatpush1.msra.mxu0 0.0
      %4698 = vmatprep.subr.mxu0 0.0
      %4699 = vmatpush1.msra.mxu0 0.0
      %4700 = vmatprep.subr.mxu0 0.0
      %4701 = vmatpush1.msra.mxu0 0.0
      %4702 = vmatprep.subr.mxu0 0.0
      %4703 = vmatpush1.msra.mxu0 0.0
      %4704 = vmatprep.subr.mxu0 0.0
      %4705 = vmatpush1.msra.mxu0 0.0
      %4706 = vmatprep.subr.mxu0 0.0
      %4707 = vmatpush1.msra.mxu0 0.0
      %4708 = vmatprep.subr.mxu0 0.0
      %4709 = vmatpush1.msra.mxu0 0.0
      %4710 = vmatprep.subr.mxu0 0.0
      %4711 = vmatpush1.msra.mxu0 %v4682
      %4712 = vmatprep.subr.mxu0 0.0
      %4713 = vmatpush1.msra.mxu0 %v4681
      %4714 = vmatprep.subr.mxu0 0.0
      %4715 = vmatpush1.msra.mxu0 %v4680
      %4716 = vmatprep.subr.mxu0 0.0
      %4717 = vmatpush1.msra.mxu0 %v4679
      %4718 = vmatprep.subr.mxu0 0.0
      %4719 = vmatpush1.msra.mxu0 %v4678
      %4720 = vmatprep.subr.mxu0 0.0
      %4721 = vmatpush1.msra.mxu0 %v4677
      %4722 = vmatprep.subr.mxu0 0.0
      %4723 = vmatpush1.msra.mxu0 %v4676
      %4724 = vmatprep.subr.mxu0 0.0
      %4725 = vmatpush1.msra.mxu0 %v4675
      %4726 = vmatprep.subr.mxu0 0.0
      %4727 = vmatpush2.msra.mxu0 0.0
      %4728 = vmatprep.subr.mxu0 0.0
      %4729 = vmatpush2.msra.mxu0 0.0
      %4730 = vmatprep.subr.mxu0 0.0
      %4731 = vmatpush2.msra.mxu0 0.0
      %4732 = vmatprep.subr.mxu0 0.0
      %4733 = vmatpush2.msra.mxu0 0.0
      %4734 = vmatprep.subr.mxu0 0.0
      %4735 = vmatpush2.msra.mxu0 0.0
      %4736 = vmatprep.subr.mxu0 0.0
      %4737 = vmatpush2.msra.mxu0 0.0
      %4738 = vmatprep.subr.mxu0 0.0
      %4739 = vmatpush2.msra.mxu0 0.0
      %4740 = vmatprep.subr.mxu0 0.0
      %4741 = vmatpush2.msra.mxu0 0.0
      %4742 = vmatprep.subr.mxu0 0.0
      %4743 = vmatpush2.msra.mxu0 0.0
      %4744 = vmatprep.subr.mxu0 0.0
      %4745 = vmatpush2.msra.mxu0 0.0
      %4746 = vmatprep.subr.mxu0 0.0
      %4747 = vmatpush2.msra.mxu0 0.0
      %4748 = vmatprep.subr.mxu0 0.0
      %4749 = vmatpush2.msra.mxu0 0.0
      %4750 = vmatprep.subr.mxu0 0.0
      %4751 = vmatpush2.msra.mxu0 0.0
      %4752 = vmatprep.subr.mxu0 0.0
      %4753 = vmatpush2.msra.mxu0 0.0
      %4754 = vmatprep.subr.mxu0 0.0
      %4755 = vmatpush2.msra.mxu0 0.0
      %4756 = vmatprep.subr.mxu0 0.0
      %4757 = vmatpush2.msra.mxu0 0.0
      %4758 = vmatprep.mubr.f32.mxu0 0.0
      %4759 = vmatmul.mubr.f32.gmra.mxu0 %v4692
      %v4760 = vpop.f32.mrf.mxu0
      %v4761 = vadd.f32 %v4689, %v4760
      %v4762 = vpop.f32.mrf.mxu0
      %4763 = vdwg.mxu0
      %v4764 = vadd.f32 %v4761, %v4323
      %s4765 = scalar_lea.vmem %s12, 3
      %v4766 = vld [vmem:[%s4765] sm:$0x1]
      %s4767 = scalar_lea.vmem %s13, 3
      %v4768 = vld [vmem:[%s4767] sm:$0x1]
      %v4769 = vsel %vm626, %v4764, 0.0
      %4770 = vadd.xlane.f32.xlu0 %v4769
      %v4771 = vpop.xlane.xlu0 %4770
      %v4772 = vmul.f32 %v4771, %v4246
      %v4773 = vsub.f32 %v4764, %v4772
      %v4774 = vmul.f32 %v4773, %v4773
      %v4775 = vsel %vm626, %v4774, 0.0
      %4776 = vadd.xlane.f32.xlu0 %v4775
      %v4777 = vpop.xlane.xlu0 %4776
      %v4778 = vmul.f32 %v4777, %v4246
      %v4779 = vadd.f32 %v4778, 1e-12
      %v4780 = vrsqrt.pop %v4779
      %v4781 = vmul.f32 %v4773, %v4780
      %v4783 = vlaneseq
      %v4784 = vshrl.u32 %v4783, 7
      %v4785 = vsub.s32 0, %v4784
      %v4786 = vrot.slane %v4766, %v4785
      %v4788 = vmul.f32 %v4781, %v4786
      %v4790 = vlaneseq
      %v4791 = vshrl.u32 %v4790, 7
      %v4792 = vsub.s32 0, %v4791
      %v4793 = vrot.slane %v4768, %v4792
      %v4795 = vadd.f32 %v4788, %v4793
      %v4796 = vadd.f32 %v4795, %v611
      %v4797 = vld [vmem:[%s14] sm:$0xff]
      %v4798 = vld [vmem:[%s14 + $0x8] sm:$0xff]
      %v4799 = vld [vmem:[%s14 + $0x10] sm:$0xff]
      %v4800 = vld [vmem:[%s14 + $0x18] sm:$0xff]
      %v4801 = vld [vmem:[%s15] sm:$0x1]
      %v4803 = vlaneseq
      %v4804 = vshrl.u32 %v4803, 7
      %v4805 = vsub.s32 0, %v4804
      %v4806 = vrot.slane %v4801, %v4805
      %v4809 = vsel %vm626, %v4796, 0
      %4811 = vmatprep.subr.mxu0 0.0
      %4812 = vmatpush1.msra.mxu0 0.0
      %4813 = vmatprep.subr.mxu0 0.0
      %4814 = vmatpush1.msra.mxu0 0.0
      %4815 = vmatprep.subr.mxu0 0.0
      %4816 = vmatpush1.msra.mxu0 0.0
      %4817 = vmatprep.subr.mxu0 0.0
      %4818 = vmatpush1.msra.mxu0 0.0
      %4819 = vmatprep.subr.mxu0 0.0
      %4820 = vmatpush1.msra.mxu0 0.0
      %4821 = vmatprep.subr.mxu0 0.0
      %4822 = vmatpush1.msra.mxu0 0.0
      %4823 = vmatprep.subr.mxu0 0.0
      %4824 = vmatpush1.msra.mxu0 0.0
      %4825 = vmatprep.subr.mxu0 0.0
      %4826 = vmatpush1.msra.mxu0 0.0
      %4827 = vmatprep.subr.mxu0 0.0
      %4828 = vmatpush1.msra.mxu0 0.0
      %4829 = vmatprep.subr.mxu0 0.0
      %4830 = vmatpush1.msra.mxu0 0.0
      %4831 = vmatprep.subr.mxu0 0.0
      %4832 = vmatpush1.msra.mxu0 0.0
      %4833 = vmatprep.subr.mxu0 0.0
      %4834 = vmatpush1.msra.mxu0 0.0
      %4835 = vmatprep.subr.mxu0 0.0
      %4836 = vmatpush1.msra.mxu0 %v4800
      %4837 = vmatprep.subr.mxu0 0.0
      %4838 = vmatpush1.msra.mxu0 %v4799
      %4839 = vmatprep.subr.mxu0 0.0
      %4840 = vmatpush1.msra.mxu0 %v4798
      %4841 = vmatprep.subr.mxu0 0.0
      %4842 = vmatpush1.msra.mxu0 %v4797
      %4843 = vmatprep.subr.mxu0 0.0
      %4844 = vmatpush2.msra.mxu0 0.0
      %4845 = vmatprep.subr.mxu0 0.0
      %4846 = vmatpush2.msra.mxu0 0.0
      %4847 = vmatprep.subr.mxu0 0.0
      %4848 = vmatpush2.msra.mxu0 0.0
      %4849 = vmatprep.subr.mxu0 0.0
      %4850 = vmatpush2.msra.mxu0 0.0
      %4851 = vmatprep.subr.mxu0 0.0
      %4852 = vmatpush2.msra.mxu0 0.0
      %4853 = vmatprep.subr.mxu0 0.0
      %4854 = vmatpush2.msra.mxu0 0.0
      %4855 = vmatprep.subr.mxu0 0.0
      %4856 = vmatpush2.msra.mxu0 0.0
      %4857 = vmatprep.subr.mxu0 0.0
      %4858 = vmatpush2.msra.mxu0 0.0
      %4859 = vmatprep.subr.mxu0 0.0
      %4860 = vmatpush2.msra.mxu0 0.0
      %4861 = vmatprep.subr.mxu0 0.0
      %4862 = vmatpush2.msra.mxu0 0.0
      %4863 = vmatprep.subr.mxu0 0.0
      %4864 = vmatpush2.msra.mxu0 0.0
      %4865 = vmatprep.subr.mxu0 0.0
      %4866 = vmatpush2.msra.mxu0 0.0
      %4867 = vmatprep.subr.mxu0 0.0
      %4868 = vmatpush2.msra.mxu0 0.0
      %4869 = vmatprep.subr.mxu0 0.0
      %4870 = vmatpush2.msra.mxu0 0.0
      %4871 = vmatprep.subr.mxu0 0.0
      %4872 = vmatpush2.msra.mxu0 0.0
      %4873 = vmatprep.subr.mxu0 0.0
      %4874 = vmatpush2.msra.mxu0 0.0
      %4875 = vmatprep.mubr.f32.mxu0 0.0
      %4876 = vmatmul.mubr.f32.gmra.mxu0 %v4809
      %v4877 = vpop.f32.mrf.mxu0
      %v4878 = vadd.f32 %v4806, %v4877
      %v4879 = vpop.f32.mrf.mxu0
      %4880 = vdwg.mxu0
      %s4881 = scalar_lea.vmem %s14, 128
      %v4882 = vld [vmem:[%s4881] sm:$0xff]
      %v4883 = vld [vmem:[%s4881 + $0x8] sm:$0xff]
      %v4884 = vld [vmem:[%s4881 + $0x10] sm:$0xff]
      %v4885 = vld [vmem:[%s4881 + $0x18] sm:$0xff]
      %s4886 = scalar_lea.vmem %s15, 4
      %v4887 = vld [vmem:[%s4886] sm:$0x1]
      %v4889 = vlaneseq
      %v4890 = vshrl.u32 %v4889, 7
      %v4891 = vsub.s32 0, %v4890
      %v4892 = vrot.slane %v4887, %v4891
      %4894 = vmatprep.subr.mxu0 0.0
      %4895 = vmatpush1.msra.mxu0 0.0
      %4896 = vmatprep.subr.mxu0 0.0
      %4897 = vmatpush1.msra.mxu0 0.0
      %4898 = vmatprep.subr.mxu0 0.0
      %4899 = vmatpush1.msra.mxu0 0.0
      %4900 = vmatprep.subr.mxu0 0.0
      %4901 = vmatpush1.msra.mxu0 0.0
      %4902 = vmatprep.subr.mxu0 0.0
      %4903 = vmatpush1.msra.mxu0 0.0
      %4904 = vmatprep.subr.mxu0 0.0
      %4905 = vmatpush1.msra.mxu0 0.0
      %4906 = vmatprep.subr.mxu0 0.0
      %4907 = vmatpush1.msra.mxu0 0.0
      %4908 = vmatprep.subr.mxu0 0.0
      %4909 = vmatpush1.msra.mxu0 0.0
      %4910 = vmatprep.subr.mxu0 0.0
      %4911 = vmatpush1.msra.mxu0 0.0
      %4912 = vmatprep.subr.mxu0 0.0
      %4913 = vmatpush1.msra.mxu0 0.0
      %4914 = vmatprep.subr.mxu0 0.0
      %4915 = vmatpush1.msra.mxu0 0.0
      %4916 = vmatprep.subr.mxu0 0.0
      %4917 = vmatpush1.msra.mxu0 0.0
      %4918 = vmatprep.subr.mxu0 0.0
      %4919 = vmatpush1.msra.mxu0 %v4885
      %4920 = vmatprep.subr.mxu0 0.0
      %4921 = vmatpush1.msra.mxu0 %v4884
      %4922 = vmatprep.subr.mxu0 0.0
      %4923 = vmatpush1.msra.mxu0 %v4883
      %4924 = vmatprep.subr.mxu0 0.0
      %4925 = vmatpush1.msra.mxu0 %v4882
      %4926 = vmatprep.subr.mxu0 0.0
      %4927 = vmatpush2.msra.mxu0 0.0
      %4928 = vmatprep.subr.mxu0 0.0
      %4929 = vmatpush2.msra.mxu0 0.0
      %4930 = vmatprep.subr.mxu0 0.0
      %4931 = vmatpush2.msra.mxu0 0.0
      %4932 = vmatprep.subr.mxu0 0.0
      %4933 = vmatpush2.msra.mxu0 0.0
      %4934 = vmatprep.subr.mxu0 0.0
      %4935 = vmatpush2.msra.mxu0 0.0
      %4936 = vmatprep.subr.mxu0 0.0
      %4937 = vmatpush2.msra.mxu0 0.0
      %4938 = vmatprep.subr.mxu0 0.0
      %4939 = vmatpush2.msra.mxu0 0.0
      %4940 = vmatprep.subr.mxu0 0.0
      %4941 = vmatpush2.msra.mxu0 0.0
      %4942 = vmatprep.subr.mxu0 0.0
      %4943 = vmatpush2.msra.mxu0 0.0
      %4944 = vmatprep.subr.mxu0 0.0
      %4945 = vmatpush2.msra.mxu0 0.0
      %4946 = vmatprep.subr.mxu0 0.0
      %4947 = vmatpush2.msra.mxu0 0.0
      %4948 = vmatprep.subr.mxu0 0.0
      %4949 = vmatpush2.msra.mxu0 0.0
      %4950 = vmatprep.subr.mxu0 0.0
      %4951 = vmatpush2.msra.mxu0 0.0
      %4952 = vmatprep.subr.mxu0 0.0
      %4953 = vmatpush2.msra.mxu0 0.0
      %4954 = vmatprep.subr.mxu0 0.0
      %4955 = vmatpush2.msra.mxu0 0.0
      %4956 = vmatprep.subr.mxu0 0.0
      %4957 = vmatpush2.msra.mxu0 0.0
      %4958 = vmatprep.mubr.f32.mxu0 0.0
      %4959 = vmatmul.mubr.f32.gmra.mxu0 %v4809
      %v4960 = vpop.f32.mrf.mxu0
      %v4961 = vadd.f32 %v4892, %v4960
      %v4962 = vpop.f32.mrf.mxu0
      %4963 = vdwg.mxu0
      %s4964 = scalar_lea.vmem %s14, 256
      %v4965 = vld [vmem:[%s4964] sm:$0xff]
      %v4966 = vld [vmem:[%s4964 + $0x8] sm:$0xff]
      %v4967 = vld [vmem:[%s4964 + $0x10] sm:$0xff]
      %v4968 = vld [vmem:[%s4964 + $0x18] sm:$0xff]
      %s4969 = scalar_lea.vmem %s15, 8
      %v4970 = vld [vmem:[%s4969] sm:$0x1]
      %v4972 = vlaneseq
      %v4973 = vshrl.u32 %v4972, 7
      %v4974 = vsub.s32 0, %v4973
      %v4975 = vrot.slane %v4970, %v4974
      %v4978 = vsel %vm626, %v4795, 0
      %4980 = vmatprep.subr.mxu0 0.0
      %4981 = vmatpush1.msra.mxu0 0.0
      %4982 = vmatprep.subr.mxu0 0.0
      %4983 = vmatpush1.msra.mxu0 0.0
      %4984 = vmatprep.subr.mxu0 0.0
      %4985 = vmatpush1.msra.mxu0 0.0
      %4986 = vmatprep.subr.mxu0 0.0
      %4987 = vmatpush1.msra.mxu0 0.0
      %4988 = vmatprep.subr.mxu0 0.0
      %4989 = vmatpush1.msra.mxu0 0.0
      %4990 = vmatprep.subr.mxu0 0.0
      %4991 = vmatpush1.msra.mxu0 0.0
      %4992 = vmatprep.subr.mxu0 0.0
      %4993 = vmatpush1.msra.mxu0 0.0
      %4994 = vmatprep.subr.mxu0 0.0
      %4995 = vmatpush1.msra.mxu0 0.0
      %4996 = vmatprep.subr.mxu0 0.0
      %4997 = vmatpush1.msra.mxu0 0.0
      %4998 = vmatprep.subr.mxu0 0.0
      %4999 = vmatpush1.msra.mxu0 0.0
      %5000 = vmatprep.subr.mxu0 0.0
      %5001 = vmatpush1.msra.mxu0 0.0
      %5002 = vmatprep.subr.mxu0 0.0
      %5003 = vmatpush1.msra.mxu0 0.0
      %5004 = vmatprep.subr.mxu0 0.0
      %5005 = vmatpush1.msra.mxu0 %v4968
      %5006 = vmatprep.subr.mxu0 0.0
      %5007 = vmatpush1.msra.mxu0 %v4967
      %5008 = vmatprep.subr.mxu0 0.0
      %5009 = vmatpush1.msra.mxu0 %v4966
      %5010 = vmatprep.subr.mxu0 0.0
      %5011 = vmatpush1.msra.mxu0 %v4965
      %5012 = vmatprep.subr.mxu0 0.0
      %5013 = vmatpush2.msra.mxu0 0.0
      %5014 = vmatprep.subr.mxu0 0.0
      %5015 = vmatpush2.msra.mxu0 0.0
      %5016 = vmatprep.subr.mxu0 0.0
      %5017 = vmatpush2.msra.mxu0 0.0
      %5018 = vmatprep.subr.mxu0 0.0
      %5019 = vmatpush2.msra.mxu0 0.0
      %5020 = vmatprep.subr.mxu0 0.0
      %5021 = vmatpush2.msra.mxu0 0.0
      %5022 = vmatprep.subr.mxu0 0.0
      %5023 = vmatpush2.msra.mxu0 0.0
      %5024 = vmatprep.subr.mxu0 0.0
      %5025 = vmatpush2.msra.mxu0 0.0
      %5026 = vmatprep.subr.mxu0 0.0
      %5027 = vmatpush2.msra.mxu0 0.0
      %5028 = vmatprep.subr.mxu0 0.0
      %5029 = vmatpush2.msra.mxu0 0.0
      %5030 = vmatprep.subr.mxu0 0.0
      %5031 = vmatpush2.msra.mxu0 0.0
      %5032 = vmatprep.subr.mxu0 0.0
      %5033 = vmatpush2.msra.mxu0 0.0
      %5034 = vmatprep.subr.mxu0 0.0
      %5035 = vmatpush2.msra.mxu0 0.0
      %5036 = vmatprep.subr.mxu0 0.0
      %5037 = vmatpush2.msra.mxu0 0.0
      %5038 = vmatprep.subr.mxu0 0.0
      %5039 = vmatpush2.msra.mxu0 0.0
      %5040 = vmatprep.subr.mxu0 0.0
      %5041 = vmatpush2.msra.mxu0 0.0
      %5042 = vmatprep.subr.mxu0 0.0
      %5043 = vmatpush2.msra.mxu0 0.0
      %5044 = vmatprep.mubr.f32.mxu0 0.0
      %5045 = vmatmul.mubr.f32.gmra.mxu0 %v4978
      %v5046 = vpop.f32.mrf.mxu0
      %v5047 = vadd.f32 %v4975, %v5046
      %v5048 = vpop.f32.mrf.mxu0
      %5049 = vdwg.mxu0
      %v5051 = vsel %vm1139, %v4878, 0
      %v5054 = vsel %vm1139, %v4961, 0
      %5056 = vmatprep.subr.mxu0 0.0
      %5057 = vmatpush1.xpose.msra.mxu0 0.0
      %5058 = vmatprep.subr.mxu0 0.0
      %5059 = vmatpush1.xpose.msra.mxu0 0.0
      %5060 = vmatprep.subr.mxu0 0.0
      %5061 = vmatpush1.xpose.msra.mxu0 0.0
      %5062 = vmatprep.subr.mxu0 0.0
      %5063 = vmatpush1.xpose.msra.mxu0 0.0
      %5064 = vmatprep.subr.mxu0 0.0
      %5065 = vmatpush1.xpose.msra.mxu0 0.0
      %5066 = vmatprep.subr.mxu0 0.0
      %5067 = vmatpush1.xpose.msra.mxu0 0.0
      %5068 = vmatprep.subr.mxu0 0.0
      %5069 = vmatpush1.xpose.msra.mxu0 0.0
      %5070 = vmatprep.subr.mxu0 0.0
      %5071 = vmatpush1.xpose.msra.mxu0 0.0
      %5072 = vmatprep.subr.mxu0 0.0
      %5073 = vmatpush1.xpose.msra.mxu0 0.0
      %5074 = vmatprep.subr.mxu0 0.0
      %5075 = vmatpush1.xpose.msra.mxu0 0.0
      %5076 = vmatprep.subr.mxu0 0.0
      %5077 = vmatpush1.xpose.msra.mxu0 0.0
      %5078 = vmatprep.subr.mxu0 0.0
      %5079 = vmatpush1.xpose.msra.mxu0 0.0
      %5080 = vmatprep.subr.mxu0 0.0
      %5081 = vmatpush1.xpose.msra.mxu0 0.0
      %5082 = vmatprep.subr.mxu0 0.0
      %5083 = vmatpush1.xpose.msra.mxu0 0.0
      %5084 = vmatprep.subr.mxu0 0.0
      %5085 = vmatpush1.xpose.msra.mxu0 0.0
      %5086 = vmatprep.subr.mxu0 0.0
      %5087 = vmatpush1.xpose.msra.mxu0 %v5054
      %5088 = vmatprep.subr.mxu0 0.0
      %5089 = vmatpush2.xpose.msra.mxu0 0.0
      %5090 = vmatprep.subr.mxu0 0.0
      %5091 = vmatpush2.xpose.msra.mxu0 0.0
      %5092 = vmatprep.subr.mxu0 0.0
      %5093 = vmatpush2.xpose.msra.mxu0 0.0
      %5094 = vmatprep.subr.mxu0 0.0
      %5095 = vmatpush2.xpose.msra.mxu0 0.0
      %5096 = vmatprep.subr.mxu0 0.0
      %5097 = vmatpush2.xpose.msra.mxu0 0.0
      %5098 = vmatprep.subr.mxu0 0.0
      %5099 = vmatpush2.xpose.msra.mxu0 0.0
      %5100 = vmatprep.subr.mxu0 0.0
      %5101 = vmatpush2.xpose.msra.mxu0 0.0
      %5102 = vmatprep.subr.mxu0 0.0
      %5103 = vmatpush2.xpose.msra.mxu0 0.0
      %5104 = vmatprep.subr.mxu0 0.0
      %5105 = vmatpush2.xpose.msra.mxu0 0.0
      %5106 = vmatprep.subr.mxu0 0.0
      %5107 = vmatpush2.xpose.msra.mxu0 0.0
      %5108 = vmatprep.subr.mxu0 0.0
      %5109 = vmatpush2.xpose.msra.mxu0 0.0
      %5110 = vmatprep.subr.mxu0 0.0
      %5111 = vmatpush2.xpose.msra.mxu0 0.0
      %5112 = vmatprep.subr.mxu0 0.0
      %5113 = vmatpush2.xpose.msra.mxu0 0.0
      %5114 = vmatprep.subr.mxu0 0.0
      %5115 = vmatpush2.xpose.msra.mxu0 0.0
      %5116 = vmatprep.subr.mxu0 0.0
      %5117 = vmatpush2.xpose.msra.mxu0 0.0
      %5118 = vmatprep.subr.mxu0 0.0
      %5119 = vmatpush2.xpose.msra.mxu0 0.0
      %5120 = vmatprep.mubr.f32.mxu0 0.0
      %5121 = vmatmul.mubr.f32.gmra.mxu0 %v5051
      %v5122 = vpop.f32.mrf.mxu0
      %v5123 = vadd.f32 0.0, %v5122
      %v5124 = vpop.f32.mrf.mxu0
      %5125 = vdwg.mxu0
      %v5126 = vmul.f32 %v5123, 0.35355338
      %v5127 = vsel %vm1139, %v5126, -inf
      %5128 = vmax.xlane.f32.xlu0 %v5127
      %v5129 = vpop.xlane.xlu0 %5128
      %v5130 = vsub.f32 %v5126, %v5129
      %v5131 = vmul.f32 %v5130, 1.442695
      %v5132 = vpow.pop %v5131
      %v5133 = vsel %vm1139, %v5132, 0.0
      %5134 = vadd.xlane.f32.xlu0 %v5133
      %v5135 = vpop.xlane.xlu0 %5134
      %v5136 = vrcp.pop %v5135
      %v5137 = vmul.f32 %v5132, %v5136
      %v5139 = vsel %vm1139, %v5137, 0
      %5141 = vmatprep.subr.mxu0 0.0
      %5142 = vmatpush1.msra.mxu0 0.0
      %5143 = vmatprep.subr.mxu0 0.0
      %5144 = vmatpush1.msra.mxu0 0.0
      %5145 = vmatprep.subr.mxu0 0.0
      %5146 = vmatpush1.msra.mxu0 0.0
      %5147 = vmatprep.subr.mxu0 0.0
      %5148 = vmatpush1.msra.mxu0 0.0
      %5149 = vmatprep.subr.mxu0 0.0
      %5150 = vmatpush1.msra.mxu0 0.0
      %5151 = vmatprep.subr.mxu0 0.0
      %5152 = vmatpush1.msra.mxu0 0.0
      %5153 = vmatprep.subr.mxu0 0.0
      %5154 = vmatpush1.msra.mxu0 0.0
      %5155 = vmatprep.subr.mxu0 0.0
      %5156 = vmatpush1.msra.mxu0 0.0
      %5157 = vmatprep.subr.mxu0 0.0
      %5158 = vmatpush1.msra.mxu0 0.0
      %5159 = vmatprep.subr.mxu0 0.0
      %5160 = vmatpush1.msra.mxu0 0.0
      %5161 = vmatprep.subr.mxu0 0.0
      %5162 = vmatpush1.msra.mxu0 0.0
      %5163 = vmatprep.subr.mxu0 0.0
      %5164 = vmatpush1.msra.mxu0 0.0
      %5165 = vmatprep.subr.mxu0 0.0
      %5166 = vmatpush1.msra.mxu0 0.0
      %5167 = vmatprep.subr.mxu0 0.0
      %5168 = vmatpush1.msra.mxu0 0.0
      %5169 = vmatprep.subr.mxu0 0.0
      %5170 = vmatpush1.msra.mxu0 0.0
      %5171 = vmatprep.subr.mxu0 0.0
      %5172 = vmatpush1.msra.mxu0 %v5047
      %5173 = vmatprep.subr.mxu0 0.0
      %5174 = vmatpush2.msra.mxu0 0.0
      %5175 = vmatprep.subr.mxu0 0.0
      %5176 = vmatpush2.msra.mxu0 0.0
      %5177 = vmatprep.subr.mxu0 0.0
      %5178 = vmatpush2.msra.mxu0 0.0
      %5179 = vmatprep.subr.mxu0 0.0
      %5180 = vmatpush2.msra.mxu0 0.0
      %5181 = vmatprep.subr.mxu0 0.0
      %5182 = vmatpush2.msra.mxu0 0.0
      %5183 = vmatprep.subr.mxu0 0.0
      %5184 = vmatpush2.msra.mxu0 0.0
      %5185 = vmatprep.subr.mxu0 0.0
      %5186 = vmatpush2.msra.mxu0 0.0
      %5187 = vmatprep.subr.mxu0 0.0
      %5188 = vmatpush2.msra.mxu0 0.0
      %5189 = vmatprep.subr.mxu0 0.0
      %5190 = vmatpush2.msra.mxu0 0.0
      %5191 = vmatprep.subr.mxu0 0.0
      %5192 = vmatpush2.msra.mxu0 0.0
      %5193 = vmatprep.subr.mxu0 0.0
      %5194 = vmatpush2.msra.mxu0 0.0
      %5195 = vmatprep.subr.mxu0 0.0
      %5196 = vmatpush2.msra.mxu0 0.0
      %5197 = vmatprep.subr.mxu0 0.0
      %5198 = vmatpush2.msra.mxu0 0.0
      %5199 = vmatprep.subr.mxu0 0.0
      %5200 = vmatpush2.msra.mxu0 0.0
      %5201 = vmatprep.subr.mxu0 0.0
      %5202 = vmatpush2.msra.mxu0 0.0
      %5203 = vmatprep.subr.mxu0 0.0
      %5204 = vmatpush2.msra.mxu0 0.0
      %5205 = vmatprep.mubr.f32.mxu0 0.0
      %5206 = vmatmul.mubr.f32.gmra.mxu0 %v5139
      %v5207 = vpop.f32.mrf.mxu0
      %v5208 = vadd.f32 0.0, %v5207
      %v5209 = vpop.f32.mrf.mxu0
      %5210 = vdwg.mxu0
      %s5211 = scalar_lea.vmem %s6, 64
      %v5212 = vld [vmem:[%s5211] sm:$0xff]
      %s5213 = scalar_lea.vmem %s14, 32
      %v5214 = vld [vmem:[%s5213] sm:$0xff]
      %v5215 = vld [vmem:[%s5213 + $0x8] sm:$0xff]
      %v5216 = vld [vmem:[%s5213 + $0x10] sm:$0xff]
      %v5217 = vld [vmem:[%s5213 + $0x18] sm:$0xff]
      %s5218 = scalar_lea.vmem %s15, 1
      %v5219 = vld [vmem:[%s5218] sm:$0x1]
      %v5221 = vlaneseq
      %v5222 = vshrl.u32 %v5221, 7
      %v5223 = vsub.s32 0, %v5222
      %v5224 = vrot.slane %v5219, %v5223
      %5226 = vmatprep.subr.mxu0 0.0
      %5227 = vmatpush1.msra.mxu0 0.0
      %5228 = vmatprep.subr.mxu0 0.0
      %5229 = vmatpush1.msra.mxu0 0.0
      %5230 = vmatprep.subr.mxu0 0.0
      %5231 = vmatpush1.msra.mxu0 0.0
      %5232 = vmatprep.subr.mxu0 0.0
      %5233 = vmatpush1.msra.mxu0 0.0
      %5234 = vmatprep.subr.mxu0 0.0
      %5235 = vmatpush1.msra.mxu0 0.0
      %5236 = vmatprep.subr.mxu0 0.0
      %5237 = vmatpush1.msra.mxu0 0.0
      %5238 = vmatprep.subr.mxu0 0.0
      %5239 = vmatpush1.msra.mxu0 0.0
      %5240 = vmatprep.subr.mxu0 0.0
      %5241 = vmatpush1.msra.mxu0 0.0
      %5242 = vmatprep.subr.mxu0 0.0
      %5243 = vmatpush1.msra.mxu0 0.0
      %5244 = vmatprep.subr.mxu0 0.0
      %5245 = vmatpush1.msra.mxu0 0.0
      %5246 = vmatprep.subr.mxu0 0.0
      %5247 = vmatpush1.msra.mxu0 0.0
      %5248 = vmatprep.subr.mxu0 0.0
      %5249 = vmatpush1.msra.mxu0 0.0
      %5250 = vmatprep.subr.mxu0 0.0
      %5251 = vmatpush1.msra.mxu0 %v5217
      %5252 = vmatprep.subr.mxu0 0.0
      %5253 = vmatpush1.msra.mxu0 %v5216
      %5254 = vmatprep.subr.mxu0 0.0
      %5255 = vmatpush1.msra.mxu0 %v5215
      %5256 = vmatprep.subr.mxu0 0.0
      %5257 = vmatpush1.msra.mxu0 %v5214
      %5258 = vmatprep.subr.mxu0 0.0
      %5259 = vmatpush2.msra.mxu0 0.0
      %5260 = vmatprep.subr.mxu0 0.0
      %5261 = vmatpush2.msra.mxu0 0.0
      %5262 = vmatprep.subr.mxu0 0.0
      %5263 = vmatpush2.msra.mxu0 0.0
      %5264 = vmatprep.subr.mxu0 0.0
      %5265 = vmatpush2.msra.mxu0 0.0
      %5266 = vmatprep.subr.mxu0 0.0
      %5267 = vmatpush2.msra.mxu0 0.0
      %5268 = vmatprep.subr.mxu0 0.0
      %5269 = vmatpush2.msra.mxu0 0.0
      %5270 = vmatprep.subr.mxu0 0.0
      %5271 = vmatpush2.msra.mxu0 0.0
      %5272 = vmatprep.subr.mxu0 0.0
      %5273 = vmatpush2.msra.mxu0 0.0
      %5274 = vmatprep.subr.mxu0 0.0
      %5275 = vmatpush2.msra.mxu0 0.0
      %5276 = vmatprep.subr.mxu0 0.0
      %5277 = vmatpush2.msra.mxu0 0.0
      %5278 = vmatprep.subr.mxu0 0.0
      %5279 = vmatpush2.msra.mxu0 0.0
      %5280 = vmatprep.subr.mxu0 0.0
      %5281 = vmatpush2.msra.mxu0 0.0
      %5282 = vmatprep.subr.mxu0 0.0
      %5283 = vmatpush2.msra.mxu0 0.0
      %5284 = vmatprep.subr.mxu0 0.0
      %5285 = vmatpush2.msra.mxu0 0.0
      %5286 = vmatprep.subr.mxu0 0.0
      %5287 = vmatpush2.msra.mxu0 0.0
      %5288 = vmatprep.subr.mxu0 0.0
      %5289 = vmatpush2.msra.mxu0 0.0
      %5290 = vmatprep.mubr.f32.mxu0 0.0
      %5291 = vmatmul.mubr.f32.gmra.mxu0 %v4809
      %v5292 = vpop.f32.mrf.mxu0
      %v5293 = vadd.f32 %v5224, %v5292
      %v5294 = vpop.f32.mrf.mxu0
      %5295 = vdwg.mxu0
      %s5296 = scalar_lea.vmem %s14, 160
      %v5297 = vld [vmem:[%s5296] sm:$0xff]
      %v5298 = vld [vmem:[%s5296 + $0x8] sm:$0xff]
      %v5299 = vld [vmem:[%s5296 + $0x10] sm:$0xff]
      %v5300 = vld [vmem:[%s5296 + $0x18] sm:$0xff]
      %s5301 = scalar_lea.vmem %s15, 5
      %v5302 = vld [vmem:[%s5301] sm:$0x1]
      %v5304 = vlaneseq
      %v5305 = vshrl.u32 %v5304, 7
      %v5306 = vsub.s32 0, %v5305
      %v5307 = vrot.slane %v5302, %v5306
      %5309 = vmatprep.subr.mxu0 0.0
      %5310 = vmatpush1.msra.mxu0 0.0
      %5311 = vmatprep.subr.mxu0 0.0
      %5312 = vmatpush1.msra.mxu0 0.0
      %5313 = vmatprep.subr.mxu0 0.0
      %5314 = vmatpush1.msra.mxu0 0.0
      %5315 = vmatprep.subr.mxu0 0.0
      %5316 = vmatpush1.msra.mxu0 0.0
      %5317 = vmatprep.subr.mxu0 0.0
      %5318 = vmatpush1.msra.mxu0 0.0
      %5319 = vmatprep.subr.mxu0 0.0
      %5320 = vmatpush1.msra.mxu0 0.0
      %5321 = vmatprep.subr.mxu0 0.0
      %5322 = vmatpush1.msra.mxu0 0.0
      %5323 = vmatprep.subr.mxu0 0.0
      %5324 = vmatpush1.msra.mxu0 0.0
      %5325 = vmatprep.subr.mxu0 0.0
      %5326 = vmatpush1.msra.mxu0 0.0
      %5327 = vmatprep.subr.mxu0 0.0
      %5328 = vmatpush1.msra.mxu0 0.0
      %5329 = vmatprep.subr.mxu0 0.0
      %5330 = vmatpush1.msra.mxu0 0.0
      %5331 = vmatprep.subr.mxu0 0.0
      %5332 = vmatpush1.msra.mxu0 0.0
      %5333 = vmatprep.subr.mxu0 0.0
      %5334 = vmatpush1.msra.mxu0 %v5300
      %5335 = vmatprep.subr.mxu0 0.0
      %5336 = vmatpush1.msra.mxu0 %v5299
      %5337 = vmatprep.subr.mxu0 0.0
      %5338 = vmatpush1.msra.mxu0 %v5298
      %5339 = vmatprep.subr.mxu0 0.0
      %5340 = vmatpush1.msra.mxu0 %v5297
      %5341 = vmatprep.subr.mxu0 0.0
      %5342 = vmatpush2.msra.mxu0 0.0
      %5343 = vmatprep.subr.mxu0 0.0
      %5344 = vmatpush2.msra.mxu0 0.0
      %5345 = vmatprep.subr.mxu0 0.0
      %5346 = vmatpush2.msra.mxu0 0.0
      %5347 = vmatprep.subr.mxu0 0.0
      %5348 = vmatpush2.msra.mxu0 0.0
      %5349 = vmatprep.subr.mxu0 0.0
      %5350 = vmatpush2.msra.mxu0 0.0
      %5351 = vmatprep.subr.mxu0 0.0
      %5352 = vmatpush2.msra.mxu0 0.0
      %5353 = vmatprep.subr.mxu0 0.0
      %5354 = vmatpush2.msra.mxu0 0.0
      %5355 = vmatprep.subr.mxu0 0.0
      %5356 = vmatpush2.msra.mxu0 0.0
      %5357 = vmatprep.subr.mxu0 0.0
      %5358 = vmatpush2.msra.mxu0 0.0
      %5359 = vmatprep.subr.mxu0 0.0
      %5360 = vmatpush2.msra.mxu0 0.0
      %5361 = vmatprep.subr.mxu0 0.0
      %5362 = vmatpush2.msra.mxu0 0.0
      %5363 = vmatprep.subr.mxu0 0.0
      %5364 = vmatpush2.msra.mxu0 0.0
      %5365 = vmatprep.subr.mxu0 0.0
      %5366 = vmatpush2.msra.mxu0 0.0
      %5367 = vmatprep.subr.mxu0 0.0
      %5368 = vmatpush2.msra.mxu0 0.0
      %5369 = vmatprep.subr.mxu0 0.0
      %5370 = vmatpush2.msra.mxu0 0.0
      %5371 = vmatprep.subr.mxu0 0.0
      %5372 = vmatpush2.msra.mxu0 0.0
      %5373 = vmatprep.mubr.f32.mxu0 0.0
      %5374 = vmatmul.mubr.f32.gmra.mxu0 %v4809
      %v5375 = vpop.f32.mrf.mxu0
      %v5376 = vadd.f32 %v5307, %v5375
      %v5377 = vpop.f32.mrf.mxu0
      %5378 = vdwg.mxu0
      %s5379 = scalar_lea.vmem %s14, 288
      %v5380 = vld [vmem:[%s5379] sm:$0xff]
      %v5381 = vld [vmem:[%s5379 + $0x8] sm:$0xff]
      %v5382 = vld [vmem:[%s5379 + $0x10] sm:$0xff]
      %v5383 = vld [vmem:[%s5379 + $0x18] sm:$0xff]
      %s5384 = scalar_lea.vmem %s15, 9
      %v5385 = vld [vmem:[%s5384] sm:$0x1]
      %v5387 = vlaneseq
      %v5388 = vshrl.u32 %v5387, 7
      %v5389 = vsub.s32 0, %v5388
      %v5390 = vrot.slane %v5385, %v5389
      %5392 = vmatprep.subr.mxu0 0.0
      %5393 = vmatpush1.msra.mxu0 0.0
      %5394 = vmatprep.subr.mxu0 0.0
      %5395 = vmatpush1.msra.mxu0 0.0
      %5396 = vmatprep.subr.mxu0 0.0
      %5397 = vmatpush1.msra.mxu0 0.0
      %5398 = vmatprep.subr.mxu0 0.0
      %5399 = vmatpush1.msra.mxu0 0.0
      %5400 = vmatprep.subr.mxu0 0.0
      %5401 = vmatpush1.msra.mxu0 0.0
      %5402 = vmatprep.subr.mxu0 0.0
      %5403 = vmatpush1.msra.mxu0 0.0
      %5404 = vmatprep.subr.mxu0 0.0
      %5405 = vmatpush1.msra.mxu0 0.0
      %5406 = vmatprep.subr.mxu0 0.0
      %5407 = vmatpush1.msra.mxu0 0.0
      %5408 = vmatprep.subr.mxu0 0.0
      %5409 = vmatpush1.msra.mxu0 0.0
      %5410 = vmatprep.subr.mxu0 0.0
      %5411 = vmatpush1.msra.mxu0 0.0
      %5412 = vmatprep.subr.mxu0 0.0
      %5413 = vmatpush1.msra.mxu0 0.0
      %5414 = vmatprep.subr.mxu0 0.0
      %5415 = vmatpush1.msra.mxu0 0.0
      %5416 = vmatprep.subr.mxu0 0.0
      %5417 = vmatpush1.msra.mxu0 %v5383
      %5418 = vmatprep.subr.mxu0 0.0
      %5419 = vmatpush1.msra.mxu0 %v5382
      %5420 = vmatprep.subr.mxu0 0.0
      %5421 = vmatpush1.msra.mxu0 %v5381
      %5422 = vmatprep.subr.mxu0 0.0
      %5423 = vmatpush1.msra.mxu0 %v5380
      %5424 = vmatprep.subr.mxu0 0.0
      %5425 = vmatpush2.msra.mxu0 0.0
      %5426 = vmatprep.subr.mxu0 0.0
      %5427 = vmatpush2.msra.mxu0 0.0
      %5428 = vmatprep.subr.mxu0 0.0
      %5429 = vmatpush2.msra.mxu0 0.0
      %5430 = vmatprep.subr.mxu0 0.0
      %5431 = vmatpush2.msra.mxu0 0.0
      %5432 = vmatprep.subr.mxu0 0.0
      %5433 = vmatpush2.msra.mxu0 0.0
      %5434 = vmatprep.subr.mxu0 0.0
      %5435 = vmatpush2.msra.mxu0 0.0
      %5436 = vmatprep.subr.mxu0 0.0
      %5437 = vmatpush2.msra.mxu0 0.0
      %5438 = vmatprep.subr.mxu0 0.0
      %5439 = vmatpush2.msra.mxu0 0.0
      %5440 = vmatprep.subr.mxu0 0.0
      %5441 = vmatpush2.msra.mxu0 0.0
      %5442 = vmatprep.subr.mxu0 0.0
      %5443 = vmatpush2.msra.mxu0 0.0
      %5444 = vmatprep.subr.mxu0 0.0
      %5445 = vmatpush2.msra.mxu0 0.0
      %5446 = vmatprep.subr.mxu0 0.0
      %5447 = vmatpush2.msra.mxu0 0.0
      %5448 = vmatprep.subr.mxu0 0.0
      %5449 = vmatpush2.msra.mxu0 0.0
      %5450 = vmatprep.subr.mxu0 0.0
      %5451 = vmatpush2.msra.mxu0 0.0
      %5452 = vmatprep.subr.mxu0 0.0
      %5453 = vmatpush2.msra.mxu0 0.0
      %5454 = vmatprep.subr.mxu0 0.0
      %5455 = vmatpush2.msra.mxu0 0.0
      %5456 = vmatprep.mubr.f32.mxu0 0.0
      %5457 = vmatmul.mubr.f32.gmra.mxu0 %v4978
      %v5458 = vpop.f32.mrf.mxu0
      %v5459 = vadd.f32 %v5390, %v5458
      %v5460 = vpop.f32.mrf.mxu0
      %5461 = vdwg.mxu0
      %v5463 = vsel %vm1139, %v5293, 0
      %v5466 = vsel %vm1139, %v5376, 0
      %5468 = vmatprep.subr.mxu0 0.0
      %5469 = vmatpush1.xpose.msra.mxu0 0.0
      %5470 = vmatprep.subr.mxu0 0.0
      %5471 = vmatpush1.xpose.msra.mxu0 0.0
      %5472 = vmatprep.subr.mxu0 0.0
      %5473 = vmatpush1.xpose.msra.mxu0 0.0
      %5474 = vmatprep.subr.mxu0 0.0
      %5475 = vmatpush1.xpose.msra.mxu0 0.0
      %5476 = vmatprep.subr.mxu0 0.0
      %5477 = vmatpush1.xpose.msra.mxu0 0.0
      %5478 = vmatprep.subr.mxu0 0.0
      %5479 = vmatpush1.xpose.msra.mxu0 0.0
      %5480 = vmatprep.subr.mxu0 0.0
      %5481 = vmatpush1.xpose.msra.mxu0 0.0
      %5482 = vmatprep.subr.mxu0 0.0
      %5483 = vmatpush1.xpose.msra.mxu0 0.0
      %5484 = vmatprep.subr.mxu0 0.0
      %5485 = vmatpush1.xpose.msra.mxu0 0.0
      %5486 = vmatprep.subr.mxu0 0.0
      %5487 = vmatpush1.xpose.msra.mxu0 0.0
      %5488 = vmatprep.subr.mxu0 0.0
      %5489 = vmatpush1.xpose.msra.mxu0 0.0
      %5490 = vmatprep.subr.mxu0 0.0
      %5491 = vmatpush1.xpose.msra.mxu0 0.0
      %5492 = vmatprep.subr.mxu0 0.0
      %5493 = vmatpush1.xpose.msra.mxu0 0.0
      %5494 = vmatprep.subr.mxu0 0.0
      %5495 = vmatpush1.xpose.msra.mxu0 0.0
      %5496 = vmatprep.subr.mxu0 0.0
      %5497 = vmatpush1.xpose.msra.mxu0 0.0
      %5498 = vmatprep.subr.mxu0 0.0
      %5499 = vmatpush1.xpose.msra.mxu0 %v5466
      %5500 = vmatprep.subr.mxu0 0.0
      %5501 = vmatpush2.xpose.msra.mxu0 0.0
      %5502 = vmatprep.subr.mxu0 0.0
      %5503 = vmatpush2.xpose.msra.mxu0 0.0
      %5504 = vmatprep.subr.mxu0 0.0
      %5505 = vmatpush2.xpose.msra.mxu0 0.0
      %5506 = vmatprep.subr.mxu0 0.0
      %5507 = vmatpush2.xpose.msra.mxu0 0.0
      %5508 = vmatprep.subr.mxu0 0.0
      %5509 = vmatpush2.xpose.msra.mxu0 0.0
      %5510 = vmatprep.subr.mxu0 0.0
      %5511 = vmatpush2.xpose.msra.mxu0 0.0
      %5512 = vmatprep.subr.mxu0 0.0
      %5513 = vmatpush2.xpose.msra.mxu0 0.0
      %5514 = vmatprep.subr.mxu0 0.0
      %5515 = vmatpush2.xpose.msra.mxu0 0.0
      %5516 = vmatprep.subr.mxu0 0.0
      %5517 = vmatpush2.xpose.msra.mxu0 0.0
      %5518 = vmatprep.subr.mxu0 0.0
      %5519 = vmatpush2.xpose.msra.mxu0 0.0
      %5520 = vmatprep.subr.mxu0 0.0
      %5521 = vmatpush2.xpose.msra.mxu0 0.0
      %5522 = vmatprep.subr.mxu0 0.0
      %5523 = vmatpush2.xpose.msra.mxu0 0.0
      %5524 = vmatprep.subr.mxu0 0.0
      %5525 = vmatpush2.xpose.msra.mxu0 0.0
      %5526 = vmatprep.subr.mxu0 0.0
      %5527 = vmatpush2.xpose.msra.mxu0 0.0
      %5528 = vmatprep.subr.mxu0 0.0
      %5529 = vmatpush2.xpose.msra.mxu0 0.0
      %5530 = vmatprep.subr.mxu0 0.0
      %5531 = vmatpush2.xpose.msra.mxu0 0.0
      %5532 = vmatprep.mubr.f32.mxu0 0.0
      %5533 = vmatmul.mubr.f32.gmra.mxu0 %v5463
      %v5534 = vpop.f32.mrf.mxu0
      %v5535 = vadd.f32 0.0, %v5534
      %v5536 = vpop.f32.mrf.mxu0
      %5537 = vdwg.mxu0
      %v5538 = vmul.f32 %v5535, 0.35355338
      %v5539 = vsel %vm1139, %v5538, -inf
      %5540 = vmax.xlane.f32.xlu0 %v5539
      %v5541 = vpop.xlane.xlu0 %5540
      %v5542 = vsub.f32 %v5538, %v5541
      %v5543 = vmul.f32 %v5542, 1.442695
      %v5544 = vpow.pop %v5543
      %v5545 = vsel %vm1139, %v5544, 0.0
      %5546 = vadd.xlane.f32.xlu0 %v5545
      %v5547 = vpop.xlane.xlu0 %5546
      %v5548 = vrcp.pop %v5547
      %v5549 = vmul.f32 %v5544, %v5548
      %v5551 = vsel %vm1139, %v5549, 0
      %5553 = vmatprep.subr.mxu0 0.0
      %5554 = vmatpush1.msra.mxu0 0.0
      %5555 = vmatprep.subr.mxu0 0.0
      %5556 = vmatpush1.msra.mxu0 0.0
      %5557 = vmatprep.subr.mxu0 0.0
      %5558 = vmatpush1.msra.mxu0 0.0
      %5559 = vmatprep.subr.mxu0 0.0
      %5560 = vmatpush1.msra.mxu0 0.0
      %5561 = vmatprep.subr.mxu0 0.0
      %5562 = vmatpush1.msra.mxu0 0.0
      %5563 = vmatprep.subr.mxu0 0.0
      %5564 = vmatpush1.msra.mxu0 0.0
      %5565 = vmatprep.subr.mxu0 0.0
      %5566 = vmatpush1.msra.mxu0 0.0
      %5567 = vmatprep.subr.mxu0 0.0
      %5568 = vmatpush1.msra.mxu0 0.0
      %5569 = vmatprep.subr.mxu0 0.0
      %5570 = vmatpush1.msra.mxu0 0.0
      %5571 = vmatprep.subr.mxu0 0.0
      %5572 = vmatpush1.msra.mxu0 0.0
      %5573 = vmatprep.subr.mxu0 0.0
      %5574 = vmatpush1.msra.mxu0 0.0
      %5575 = vmatprep.subr.mxu0 0.0
      %5576 = vmatpush1.msra.mxu0 0.0
      %5577 = vmatprep.subr.mxu0 0.0
      %5578 = vmatpush1.msra.mxu0 0.0
      %5579 = vmatprep.subr.mxu0 0.0
      %5580 = vmatpush1.msra.mxu0 0.0
      %5581 = vmatprep.subr.mxu0 0.0
      %5582 = vmatpush1.msra.mxu0 0.0
      %5583 = vmatprep.subr.mxu0 0.0
      %5584 = vmatpush1.msra.mxu0 %v5459
      %5585 = vmatprep.subr.mxu0 0.0
      %5586 = vmatpush2.msra.mxu0 0.0
      %5587 = vmatprep.subr.mxu0 0.0
      %5588 = vmatpush2.msra.mxu0 0.0
      %5589 = vmatprep.subr.mxu0 0.0
      %5590 = vmatpush2.msra.mxu0 0.0
      %5591 = vmatprep.subr.mxu0 0.0
      %5592 = vmatpush2.msra.mxu0 0.0
      %5593 = vmatprep.subr.mxu0 0.0
      %5594 = vmatpush2.msra.mxu0 0.0
      %5595 = vmatprep.subr.mxu0 0.0
      %5596 = vmatpush2.msra.mxu0 0.0
      %5597 = vmatprep.subr.mxu0 0.0
      %5598 = vmatpush2.msra.mxu0 0.0
      %5599 = vmatprep.subr.mxu0 0.0
      %5600 = vmatpush2.msra.mxu0 0.0
      %5601 = vmatprep.subr.mxu0 0.0
      %5602 = vmatpush2.msra.mxu0 0.0
      %5603 = vmatprep.subr.mxu0 0.0
      %5604 = vmatpush2.msra.mxu0 0.0
      %5605 = vmatprep.subr.mxu0 0.0
      %5606 = vmatpush2.msra.mxu0 0.0
      %5607 = vmatprep.subr.mxu0 0.0
      %5608 = vmatpush2.msra.mxu0 0.0
      %5609 = vmatprep.subr.mxu0 0.0
      %5610 = vmatpush2.msra.mxu0 0.0
      %5611 = vmatprep.subr.mxu0 0.0
      %5612 = vmatpush2.msra.mxu0 0.0
      %5613 = vmatprep.subr.mxu0 0.0
      %5614 = vmatpush2.msra.mxu0 0.0
      %5615 = vmatprep.subr.mxu0 0.0
      %5616 = vmatpush2.msra.mxu0 0.0
      %5617 = vmatprep.mubr.f32.mxu0 0.0
      %5618 = vmatmul.mubr.f32.gmra.mxu0 %v5551
      %v5619 = vpop.f32.mrf.mxu0
      %v5620 = vadd.f32 0.0, %v5619
      %v5621 = vpop.f32.mrf.mxu0
      %5622 = vdwg.mxu0
      %s5623 = scalar_lea.vmem %s6, 72
      %v5624 = vld [vmem:[%s5623] sm:$0xff]
      %v5626 = vsel %vm1139, %v5620, 0
      %5628 = vmatprep.subr.mxu0 0.0
      %5629 = vmatpush1.msra.mxu0 0.0
      %5630 = vmatprep.subr.mxu0 0.0
      %5631 = vmatpush1.msra.mxu0 0.0
      %5632 = vmatprep.subr.mxu0 0.0
      %5633 = vmatpush1.msra.mxu0 0.0
      %5634 = vmatprep.subr.mxu0 0.0
      %5635 = vmatpush1.msra.mxu0 0.0
      %5636 = vmatprep.subr.mxu0 0.0
      %5637 = vmatpush1.msra.mxu0 0.0
      %5638 = vmatprep.subr.mxu0 0.0
      %5639 = vmatpush1.msra.mxu0 0.0
      %5640 = vmatprep.subr.mxu0 0.0
      %5641 = vmatpush1.msra.mxu0 0.0
      %5642 = vmatprep.subr.mxu0 0.0
      %5643 = vmatpush1.msra.mxu0 0.0
      %5644 = vmatprep.subr.mxu0 0.0
      %5645 = vmatpush1.msra.mxu0 0.0
      %5646 = vmatprep.subr.mxu0 0.0
      %5647 = vmatpush1.msra.mxu0 0.0
      %5648 = vmatprep.subr.mxu0 0.0
      %5649 = vmatpush1.msra.mxu0 0.0
      %5650 = vmatprep.subr.mxu0 0.0
      %5651 = vmatpush1.msra.mxu0 0.0
      %5652 = vmatprep.subr.mxu0 0.0
      %5653 = vmatpush1.msra.mxu0 0.0
      %5654 = vmatprep.subr.mxu0 0.0
      %5655 = vmatpush1.msra.mxu0 0.0
      %5656 = vmatprep.subr.mxu0 0.0
      %5657 = vmatpush1.msra.mxu0 0.0
      %5658 = vmatprep.subr.mxu0 0.0
      %5659 = vmatpush1.msra.mxu0 %v5624
      %5660 = vmatprep.subr.mxu0 0.0
      %5661 = vmatpush2.msra.mxu0 0.0
      %5662 = vmatprep.subr.mxu0 0.0
      %5663 = vmatpush2.msra.mxu0 0.0
      %5664 = vmatprep.subr.mxu0 0.0
      %5665 = vmatpush2.msra.mxu0 0.0
      %5666 = vmatprep.subr.mxu0 0.0
      %5667 = vmatpush2.msra.mxu0 0.0
      %5668 = vmatprep.subr.mxu0 0.0
      %5669 = vmatpush2.msra.mxu0 0.0
      %5670 = vmatprep.subr.mxu0 0.0
      %5671 = vmatpush2.msra.mxu0 0.0
      %5672 = vmatprep.subr.mxu0 0.0
      %5673 = vmatpush2.msra.mxu0 0.0
      %5674 = vmatprep.subr.mxu0 0.0
      %5675 = vmatpush2.msra.mxu0 0.0
      %5676 = vmatprep.subr.mxu0 0.0
      %5677 = vmatpush2.msra.mxu0 0.0
      %5678 = vmatprep.subr.mxu0 0.0
      %5679 = vmatpush2.msra.mxu0 0.0
      %5680 = vmatprep.subr.mxu0 0.0
      %5681 = vmatpush2.msra.mxu0 0.0
      %5682 = vmatprep.subr.mxu0 0.0
      %5683 = vmatpush2.msra.mxu0 0.0
      %5684 = vmatprep.subr.mxu0 0.0
      %5685 = vmatpush2.msra.mxu0 0.0
      %5686 = vmatprep.subr.mxu0 0.0
      %5687 = vmatpush2.msra.mxu0 0.0
      %5688 = vmatprep.subr.mxu0 0.0
      %5689 = vmatpush2.msra.mxu0 0.0
      %5690 = vmatprep.subr.mxu0 0.0
      %5691 = vmatpush2.msra.mxu0 0.0
      %5692 = vmatprep.mubr.f32.mxu0 0.0
      %5693 = vmatmul.mubr.f32.gmra.mxu0 %v5626
      %v5694 = vpop.f32.mrf.mxu0
      %v5695 = vadd.f32 0.0, %v5694
      %v5696 = vpop.f32.mrf.mxu0
      %5697 = vdwg.mxu0
      %v5699 = vsel %vm1139, %v5208, 0
      %5701 = vmatprep.subr.mxu0 0.0
      %5702 = vmatpush1.msra.mxu0 0.0
      %5703 = vmatprep.subr.mxu0 0.0
      %5704 = vmatpush1.msra.mxu0 0.0
      %5705 = vmatprep.subr.mxu0 0.0
      %5706 = vmatpush1.msra.mxu0 0.0
      %5707 = vmatprep.subr.mxu0 0.0
      %5708 = vmatpush1.msra.mxu0 0.0
      %5709 = vmatprep.subr.mxu0 0.0
      %5710 = vmatpush1.msra.mxu0 0.0
      %5711 = vmatprep.subr.mxu0 0.0
      %5712 = vmatpush1.msra.mxu0 0.0
      %5713 = vmatprep.subr.mxu0 0.0
      %5714 = vmatpush1.msra.mxu0 0.0
      %5715 = vmatprep.subr.mxu0 0.0
      %5716 = vmatpush1.msra.mxu0 0.0
      %5717 = vmatprep.subr.mxu0 0.0
      %5718 = vmatpush1.msra.mxu0 0.0
      %5719 = vmatprep.subr.mxu0 0.0
      %5720 = vmatpush1.msra.mxu0 0.0
      %5721 = vmatprep.subr.mxu0 0.0
      %5722 = vmatpush1.msra.mxu0 0.0
      %5723 = vmatprep.subr.mxu0 0.0
      %5724 = vmatpush1.msra.mxu0 0.0
      %5725 = vmatprep.subr.mxu0 0.0
      %5726 = vmatpush1.msra.mxu0 0.0
      %5727 = vmatprep.subr.mxu0 0.0
      %5728 = vmatpush1.msra.mxu0 0.0
      %5729 = vmatprep.subr.mxu0 0.0
      %5730 = vmatpush1.msra.mxu0 0.0
      %5731 = vmatprep.subr.mxu0 0.0
      %5732 = vmatpush1.msra.mxu0 %v5212
      %5733 = vmatprep.subr.mxu0 0.0
      %5734 = vmatpush2.msra.mxu0 0.0
      %5735 = vmatprep.subr.mxu0 0.0
      %5736 = vmatpush2.msra.mxu0 0.0
      %5737 = vmatprep.subr.mxu0 0.0
      %5738 = vmatpush2.msra.mxu0 0.0
      %5739 = vmatprep.subr.mxu0 0.0
      %5740 = vmatpush2.msra.mxu0 0.0
      %5741 = vmatprep.subr.mxu0 0.0
      %5742 = vmatpush2.msra.mxu0 0.0
      %5743 = vmatprep.subr.mxu0 0.0
      %5744 = vmatpush2.msra.mxu0 0.0
      %5745 = vmatprep.subr.mxu0 0.0
      %5746 = vmatpush2.msra.mxu0 0.0
      %5747 = vmatprep.subr.mxu0 0.0
      %5748 = vmatpush2.msra.mxu0 0.0
      %5749 = vmatprep.subr.mxu0 0.0
      %5750 = vmatpush2.msra.mxu0 0.0
      %5751 = vmatprep.subr.mxu0 0.0
      %5752 = vmatpush2.msra.mxu0 0.0
      %5753 = vmatprep.subr.mxu0 0.0
      %5754 = vmatpush2.msra.mxu0 0.0
      %5755 = vmatprep.subr.mxu0 0.0
      %5756 = vmatpush2.msra.mxu0 0.0
      %5757 = vmatprep.subr.mxu0 0.0
      %5758 = vmatpush2.msra.mxu0 0.0
      %5759 = vmatprep.subr.mxu0 0.0
      %5760 = vmatpush2.msra.mxu0 0.0
      %5761 = vmatprep.subr.mxu0 0.0
      %5762 = vmatpush2.msra.mxu0 0.0
      %5763 = vmatprep.subr.mxu0 0.0
      %5764 = vmatpush2.msra.mxu0 0.0
      %5765 = vmatprep.mubr.f32.mxu0 0.0
      %5766 = vmatmul.mubr.f32.gmra.mxu0 %v5699
      %v5767 = vpop.f32.mrf.mxu0
      %v5768 = vadd.f32 %v5695, %v5767
      %v5769 = vpop.f32.mrf.mxu0
      %5770 = vdwg.mxu0
      %s5771 = scalar_lea.vmem %s14, 64
      %v5772 = vld [vmem:[%s5771] sm:$0xff]
      %v5773 = vld [vmem:[%s5771 + $0x8] sm:$0xff]
      %v5774 = vld [vmem:[%s5771 + $0x10] sm:$0xff]
      %v5775 = vld [vmem:[%s5771 + $0x18] sm:$0xff]
      %s5776 = scalar_lea.vmem %s15, 2
      %v5777 = vld [vmem:[%s5776] sm:$0x1]
      %v5779 = vlaneseq
      %v5780 = vshrl.u32 %v5779, 7
      %v5781 = vsub.s32 0, %v5780
      %v5782 = vrot.slane %v5777, %v5781
      %5784 = vmatprep.subr.mxu0 0.0
      %5785 = vmatpush1.msra.mxu0 0.0
      %5786 = vmatprep.subr.mxu0 0.0
      %5787 = vmatpush1.msra.mxu0 0.0
      %5788 = vmatprep.subr.mxu0 0.0
      %5789 = vmatpush1.msra.mxu0 0.0
      %5790 = vmatprep.subr.mxu0 0.0
      %5791 = vmatpush1.msra.mxu0 0.0
      %5792 = vmatprep.subr.mxu0 0.0
      %5793 = vmatpush1.msra.mxu0 0.0
      %5794 = vmatprep.subr.mxu0 0.0
      %5795 = vmatpush1.msra.mxu0 0.0
      %5796 = vmatprep.subr.mxu0 0.0
      %5797 = vmatpush1.msra.mxu0 0.0
      %5798 = vmatprep.subr.mxu0 0.0
      %5799 = vmatpush1.msra.mxu0 0.0
      %5800 = vmatprep.subr.mxu0 0.0
      %5801 = vmatpush1.msra.mxu0 0.0
      %5802 = vmatprep.subr.mxu0 0.0
      %5803 = vmatpush1.msra.mxu0 0.0
      %5804 = vmatprep.subr.mxu0 0.0
      %5805 = vmatpush1.msra.mxu0 0.0
      %5806 = vmatprep.subr.mxu0 0.0
      %5807 = vmatpush1.msra.mxu0 0.0
      %5808 = vmatprep.subr.mxu0 0.0
      %5809 = vmatpush1.msra.mxu0 %v5775
      %5810 = vmatprep.subr.mxu0 0.0
      %5811 = vmatpush1.msra.mxu0 %v5774
      %5812 = vmatprep.subr.mxu0 0.0
      %5813 = vmatpush1.msra.mxu0 %v5773
      %5814 = vmatprep.subr.mxu0 0.0
      %5815 = vmatpush1.msra.mxu0 %v5772
      %5816 = vmatprep.subr.mxu0 0.0
      %5817 = vmatpush2.msra.mxu0 0.0
      %5818 = vmatprep.subr.mxu0 0.0
      %5819 = vmatpush2.msra.mxu0 0.0
      %5820 = vmatprep.subr.mxu0 0.0
      %5821 = vmatpush2.msra.mxu0 0.0
      %5822 = vmatprep.subr.mxu0 0.0
      %5823 = vmatpush2.msra.mxu0 0.0
      %5824 = vmatprep.subr.mxu0 0.0
      %5825 = vmatpush2.msra.mxu0 0.0
      %5826 = vmatprep.subr.mxu0 0.0
      %5827 = vmatpush2.msra.mxu0 0.0
      %5828 = vmatprep.subr.mxu0 0.0
      %5829 = vmatpush2.msra.mxu0 0.0
      %5830 = vmatprep.subr.mxu0 0.0
      %5831 = vmatpush2.msra.mxu0 0.0
      %5832 = vmatprep.subr.mxu0 0.0
      %5833 = vmatpush2.msra.mxu0 0.0
      %5834 = vmatprep.subr.mxu0 0.0
      %5835 = vmatpush2.msra.mxu0 0.0
      %5836 = vmatprep.subr.mxu0 0.0
      %5837 = vmatpush2.msra.mxu0 0.0
      %5838 = vmatprep.subr.mxu0 0.0
      %5839 = vmatpush2.msra.mxu0 0.0
      %5840 = vmatprep.subr.mxu0 0.0
      %5841 = vmatpush2.msra.mxu0 0.0
      %5842 = vmatprep.subr.mxu0 0.0
      %5843 = vmatpush2.msra.mxu0 0.0
      %5844 = vmatprep.subr.mxu0 0.0
      %5845 = vmatpush2.msra.mxu0 0.0
      %5846 = vmatprep.subr.mxu0 0.0
      %5847 = vmatpush2.msra.mxu0 0.0
      %5848 = vmatprep.mubr.f32.mxu0 0.0
      %5849 = vmatmul.mubr.f32.gmra.mxu0 %v4809
      %v5850 = vpop.f32.mrf.mxu0
      %v5851 = vadd.f32 %v5782, %v5850
      %v5852 = vpop.f32.mrf.mxu0
      %5853 = vdwg.mxu0
      %s5854 = scalar_lea.vmem %s14, 192
      %v5855 = vld [vmem:[%s5854] sm:$0xff]
      %v5856 = vld [vmem:[%s5854 + $0x8] sm:$0xff]
      %v5857 = vld [vmem:[%s5854 + $0x10] sm:$0xff]
      %v5858 = vld [vmem:[%s5854 + $0x18] sm:$0xff]
      %s5859 = scalar_lea.vmem %s15, 6
      %v5860 = vld [vmem:[%s5859] sm:$0x1]
      %v5862 = vlaneseq
      %v5863 = vshrl.u32 %v5862, 7
      %v5864 = vsub.s32 0, %v5863
      %v5865 = vrot.slane %v5860, %v5864
      %5867 = vmatprep.subr.mxu0 0.0
      %5868 = vmatpush1.msra.mxu0 0.0
      %5869 = vmatprep.subr.mxu0 0.0
      %5870 = vmatpush1.msra.mxu0 0.0
      %5871 = vmatprep.subr.mxu0 0.0
      %5872 = vmatpush1.msra.mxu0 0.0
      %5873 = vmatprep.subr.mxu0 0.0
      %5874 = vmatpush1.msra.mxu0 0.0
      %5875 = vmatprep.subr.mxu0 0.0
      %5876 = vmatpush1.msra.mxu0 0.0
      %5877 = vmatprep.subr.mxu0 0.0
      %5878 = vmatpush1.msra.mxu0 0.0
      %5879 = vmatprep.subr.mxu0 0.0
      %5880 = vmatpush1.msra.mxu0 0.0
      %5881 = vmatprep.subr.mxu0 0.0
      %5882 = vmatpush1.msra.mxu0 0.0
      %5883 = vmatprep.subr.mxu0 0.0
      %5884 = vmatpush1.msra.mxu0 0.0
      %5885 = vmatprep.subr.mxu0 0.0
      %5886 = vmatpush1.msra.mxu0 0.0
      %5887 = vmatprep.subr.mxu0 0.0
      %5888 = vmatpush1.msra.mxu0 0.0
      %5889 = vmatprep.subr.mxu0 0.0
      %5890 = vmatpush1.msra.mxu0 0.0
      %5891 = vmatprep.subr.mxu0 0.0
      %5892 = vmatpush1.msra.mxu0 %v5858
      %5893 = vmatprep.subr.mxu0 0.0
      %5894 = vmatpush1.msra.mxu0 %v5857
      %5895 = vmatprep.subr.mxu0 0.0
      %5896 = vmatpush1.msra.mxu0 %v5856
      %5897 = vmatprep.subr.mxu0 0.0
      %5898 = vmatpush1.msra.mxu0 %v5855
      %5899 = vmatprep.subr.mxu0 0.0
      %5900 = vmatpush2.msra.mxu0 0.0
      %5901 = vmatprep.subr.mxu0 0.0
      %5902 = vmatpush2.msra.mxu0 0.0
      %5903 = vmatprep.subr.mxu0 0.0
      %5904 = vmatpush2.msra.mxu0 0.0
      %5905 = vmatprep.subr.mxu0 0.0
      %5906 = vmatpush2.msra.mxu0 0.0
      %5907 = vmatprep.subr.mxu0 0.0
      %5908 = vmatpush2.msra.mxu0 0.0
      %5909 = vmatprep.subr.mxu0 0.0
      %5910 = vmatpush2.msra.mxu0 0.0
      %5911 = vmatprep.subr.mxu0 0.0
      %5912 = vmatpush2.msra.mxu0 0.0
      %5913 = vmatprep.subr.mxu0 0.0
      %5914 = vmatpush2.msra.mxu0 0.0
      %5915 = vmatprep.subr.mxu0 0.0
      %5916 = vmatpush2.msra.mxu0 0.0
      %5917 = vmatprep.subr.mxu0 0.0
      %5918 = vmatpush2.msra.mxu0 0.0
      %5919 = vmatprep.subr.mxu0 0.0
      %5920 = vmatpush2.msra.mxu0 0.0
      %5921 = vmatprep.subr.mxu0 0.0
      %5922 = vmatpush2.msra.mxu0 0.0
      %5923 = vmatprep.subr.mxu0 0.0
      %5924 = vmatpush2.msra.mxu0 0.0
      %5925 = vmatprep.subr.mxu0 0.0
      %5926 = vmatpush2.msra.mxu0 0.0
      %5927 = vmatprep.subr.mxu0 0.0
      %5928 = vmatpush2.msra.mxu0 0.0
      %5929 = vmatprep.subr.mxu0 0.0
      %5930 = vmatpush2.msra.mxu0 0.0
      %5931 = vmatprep.mubr.f32.mxu0 0.0
      %5932 = vmatmul.mubr.f32.gmra.mxu0 %v4809
      %v5933 = vpop.f32.mrf.mxu0
      %v5934 = vadd.f32 %v5865, %v5933
      %v5935 = vpop.f32.mrf.mxu0
      %5936 = vdwg.mxu0
      %s5937 = scalar_lea.vmem %s14, 320
      %v5938 = vld [vmem:[%s5937] sm:$0xff]
      %v5939 = vld [vmem:[%s5937 + $0x8] sm:$0xff]
      %v5940 = vld [vmem:[%s5937 + $0x10] sm:$0xff]
      %v5941 = vld [vmem:[%s5937 + $0x18] sm:$0xff]
      %s5942 = scalar_lea.vmem %s15, 10
      %v5943 = vld [vmem:[%s5942] sm:$0x1]
      %v5945 = vlaneseq
      %v5946 = vshrl.u32 %v5945, 7
      %v5947 = vsub.s32 0, %v5946
      %v5948 = vrot.slane %v5943, %v5947
      %5950 = vmatprep.subr.mxu0 0.0
      %5951 = vmatpush1.msra.mxu0 0.0
      %5952 = vmatprep.subr.mxu0 0.0
      %5953 = vmatpush1.msra.mxu0 0.0
      %5954 = vmatprep.subr.mxu0 0.0
      %5955 = vmatpush1.msra.mxu0 0.0
      %5956 = vmatprep.subr.mxu0 0.0
      %5957 = vmatpush1.msra.mxu0 0.0
      %5958 = vmatprep.subr.mxu0 0.0
      %5959 = vmatpush1.msra.mxu0 0.0
      %5960 = vmatprep.subr.mxu0 0.0
      %5961 = vmatpush1.msra.mxu0 0.0
      %5962 = vmatprep.subr.mxu0 0.0
      %5963 = vmatpush1.msra.mxu0 0.0
      %5964 = vmatprep.subr.mxu0 0.0
      %5965 = vmatpush1.msra.mxu0 0.0
      %5966 = vmatprep.subr.mxu0 0.0
      %5967 = vmatpush1.msra.mxu0 0.0
      %5968 = vmatprep.subr.mxu0 0.0
      %5969 = vmatpush1.msra.mxu0 0.0
      %5970 = vmatprep.subr.mxu0 0.0
      %5971 = vmatpush1.msra.mxu0 0.0
      %5972 = vmatprep.subr.mxu0 0.0
      %5973 = vmatpush1.msra.mxu0 0.0
      %5974 = vmatprep.subr.mxu0 0.0
      %5975 = vmatpush1.msra.mxu0 %v5941
      %5976 = vmatprep.subr.mxu0 0.0
      %5977 = vmatpush1.msra.mxu0 %v5940
      %5978 = vmatprep.subr.mxu0 0.0
      %5979 = vmatpush1.msra.mxu0 %v5939
      %5980 = vmatprep.subr.mxu0 0.0
      %5981 = vmatpush1.msra.mxu0 %v5938
      %5982 = vmatprep.subr.mxu0 0.0
      %5983 = vmatpush2.msra.mxu0 0.0
      %5984 = vmatprep.subr.mxu0 0.0
      %5985 = vmatpush2.msra.mxu0 0.0
      %5986 = vmatprep.subr.mxu0 0.0
      %5987 = vmatpush2.msra.mxu0 0.0
      %5988 = vmatprep.subr.mxu0 0.0
      %5989 = vmatpush2.msra.mxu0 0.0
      %5990 = vmatprep.subr.mxu0 0.0
      %5991 = vmatpush2.msra.mxu0 0.0
      %5992 = vmatprep.subr.mxu0 0.0
      %5993 = vmatpush2.msra.mxu0 0.0
      %5994 = vmatprep.subr.mxu0 0.0
      %5995 = vmatpush2.msra.mxu0 0.0
      %5996 = vmatprep.subr.mxu0 0.0
      %5997 = vmatpush2.msra.mxu0 0.0
      %5998 = vmatprep.subr.mxu0 0.0
      %5999 = vmatpush2.msra.mxu0 0.0
      %6000 = vmatprep.subr.mxu0 0.0
      %6001 = vmatpush2.msra.mxu0 0.0
      %6002 = vmatprep.subr.mxu0 0.0
      %6003 = vmatpush2.msra.mxu0 0.0
      %6004 = vmatprep.subr.mxu0 0.0
      %6005 = vmatpush2.msra.mxu0 0.0
      %6006 = vmatprep.subr.mxu0 0.0
      %6007 = vmatpush2.msra.mxu0 0.0
      %6008 = vmatprep.subr.mxu0 0.0
      %6009 = vmatpush2.msra.mxu0 0.0
      %6010 = vmatprep.subr.mxu0 0.0
      %6011 = vmatpush2.msra.mxu0 0.0
      %6012 = vmatprep.subr.mxu0 0.0
      %6013 = vmatpush2.msra.mxu0 0.0
      %6014 = vmatprep.mubr.f32.mxu0 0.0
      %6015 = vmatmul.mubr.f32.gmra.mxu0 %v4978
      %v6016 = vpop.f32.mrf.mxu0
      %v6017 = vadd.f32 %v5948, %v6016
      %v6018 = vpop.f32.mrf.mxu0
      %6019 = vdwg.mxu0
      %v6021 = vsel %vm1139, %v5851, 0
      %v6024 = vsel %vm1139, %v5934, 0
      %6026 = vmatprep.subr.mxu0 0.0
      %6027 = vmatpush1.xpose.msra.mxu0 0.0
      %6028 = vmatprep.subr.mxu0 0.0
      %6029 = vmatpush1.xpose.msra.mxu0 0.0
      %6030 = vmatprep.subr.mxu0 0.0
      %6031 = vmatpush1.xpose.msra.mxu0 0.0
      %6032 = vmatprep.subr.mxu0 0.0
      %6033 = vmatpush1.xpose.msra.mxu0 0.0
      %6034 = vmatprep.subr.mxu0 0.0
      %6035 = vmatpush1.xpose.msra.mxu0 0.0
      %6036 = vmatprep.subr.mxu0 0.0
      %6037 = vmatpush1.xpose.msra.mxu0 0.0
      %6038 = vmatprep.subr.mxu0 0.0
      %6039 = vmatpush1.xpose.msra.mxu0 0.0
      %6040 = vmatprep.subr.mxu0 0.0
      %6041 = vmatpush1.xpose.msra.mxu0 0.0
      %6042 = vmatprep.subr.mxu0 0.0
      %6043 = vmatpush1.xpose.msra.mxu0 0.0
      %6044 = vmatprep.subr.mxu0 0.0
      %6045 = vmatpush1.xpose.msra.mxu0 0.0
      %6046 = vmatprep.subr.mxu0 0.0
      %6047 = vmatpush1.xpose.msra.mxu0 0.0
      %6048 = vmatprep.subr.mxu0 0.0
      %6049 = vmatpush1.xpose.msra.mxu0 0.0
      %6050 = vmatprep.subr.mxu0 0.0
      %6051 = vmatpush1.xpose.msra.mxu0 0.0
      %6052 = vmatprep.subr.mxu0 0.0
      %6053 = vmatpush1.xpose.msra.mxu0 0.0
      %6054 = vmatprep.subr.mxu0 0.0
      %6055 = vmatpush1.xpose.msra.mxu0 0.0
      %6056 = vmatprep.subr.mxu0 0.0
      %6057 = vmatpush1.xpose.msra.mxu0 %v6024
      %6058 = vmatprep.subr.mxu0 0.0
      %6059 = vmatpush2.xpose.msra.mxu0 0.0
      %6060 = vmatprep.subr.mxu0 0.0
      %6061 = vmatpush2.xpose.msra.mxu0 0.0
      %6062 = vmatprep.subr.mxu0 0.0
      %6063 = vmatpush2.xpose.msra.mxu0 0.0
      %6064 = vmatprep.subr.mxu0 0.0
      %6065 = vmatpush2.xpose.msra.mxu0 0.0
      %6066 = vmatprep.subr.mxu0 0.0
      %6067 = vmatpush2.xpose.msra.mxu0 0.0
      %6068 = vmatprep.subr.mxu0 0.0
      %6069 = vmatpush2.xpose.msra.mxu0 0.0
      %6070 = vmatprep.subr.mxu0 0.0
      %6071 = vmatpush2.xpose.msra.mxu0 0.0
      %6072 = vmatprep.subr.mxu0 0.0
      %6073 = vmatpush2.xpose.msra.mxu0 0.0
      %6074 = vmatprep.subr.mxu0 0.0
      %6075 = vmatpush2.xpose.msra.mxu0 0.0
      %6076 = vmatprep.subr.mxu0 0.0
      %6077 = vmatpush2.xpose.msra.mxu0 0.0
      %6078 = vmatprep.subr.mxu0 0.0
      %6079 = vmatpush2.xpose.msra.mxu0 0.0
      %6080 = vmatprep.subr.mxu0 0.0
      %6081 = vmatpush2.xpose.msra.mxu0 0.0
      %6082 = vmatprep.subr.mxu0 0.0
      %6083 = vmatpush2.xpose.msra.mxu0 0.0
      %6084 = vmatprep.subr.mxu0 0.0
      %6085 = vmatpush2.xpose.msra.mxu0 0.0
      %6086 = vmatprep.subr.mxu0 0.0
      %6087 = vmatpush2.xpose.msra.mxu0 0.0
      %6088 = vmatprep.subr.mxu0 0.0
      %6089 = vmatpush2.xpose.msra.mxu0 0.0
      %6090 = vmatprep.mubr.f32.mxu0 0.0
      %6091 = vmatmul.mubr.f32.gmra.mxu0 %v6021
      %v6092 = vpop.f32.mrf.mxu0
      %v6093 = vadd.f32 0.0, %v6092
      %v6094 = vpop.f32.mrf.mxu0
      %6095 = vdwg.mxu0
      %v6096 = vmul.f32 %v6093, 0.35355338
      %v6097 = vsel %vm1139, %v6096, -inf
      %6098 = vmax.xlane.f32.xlu0 %v6097
      %v6099 = vpop.xlane.xlu0 %6098
      %v6100 = vsub.f32 %v6096, %v6099
      %v6101 = vmul.f32 %v6100, 1.442695
      %v6102 = vpow.pop %v6101
      %v6103 = vsel %vm1139, %v6102, 0.0
      %6104 = vadd.xlane.f32.xlu0 %v6103
      %v6105 = vpop.xlane.xlu0 %6104
      %v6106 = vrcp.pop %v6105
      %v6107 = vmul.f32 %v6102, %v6106
      %v6109 = vsel %vm1139, %v6107, 0
      %6111 = vmatprep.subr.mxu0 0.0
      %6112 = vmatpush1.msra.mxu0 0.0
      %6113 = vmatprep.subr.mxu0 0.0
      %6114 = vmatpush1.msra.mxu0 0.0
      %6115 = vmatprep.subr.mxu0 0.0
      %6116 = vmatpush1.msra.mxu0 0.0
      %6117 = vmatprep.subr.mxu0 0.0
      %6118 = vmatpush1.msra.mxu0 0.0
      %6119 = vmatprep.subr.mxu0 0.0
      %6120 = vmatpush1.msra.mxu0 0.0
      %6121 = vmatprep.subr.mxu0 0.0
      %6122 = vmatpush1.msra.mxu0 0.0
      %6123 = vmatprep.subr.mxu0 0.0
      %6124 = vmatpush1.msra.mxu0 0.0
      %6125 = vmatprep.subr.mxu0 0.0
      %6126 = vmatpush1.msra.mxu0 0.0
      %6127 = vmatprep.subr.mxu0 0.0
      %6128 = vmatpush1.msra.mxu0 0.0
      %6129 = vmatprep.subr.mxu0 0.0
      %6130 = vmatpush1.msra.mxu0 0.0
      %6131 = vmatprep.subr.mxu0 0.0
      %6132 = vmatpush1.msra.mxu0 0.0
      %6133 = vmatprep.subr.mxu0 0.0
      %6134 = vmatpush1.msra.mxu0 0.0
      %6135 = vmatprep.subr.mxu0 0.0
      %6136 = vmatpush1.msra.mxu0 0.0
      %6137 = vmatprep.subr.mxu0 0.0
      %6138 = vmatpush1.msra.mxu0 0.0
      %6139 = vmatprep.subr.mxu0 0.0
      %6140 = vmatpush1.msra.mxu0 0.0
      %6141 = vmatprep.subr.mxu0 0.0
      %6142 = vmatpush1.msra.mxu0 %v6017
      %6143 = vmatprep.subr.mxu0 0.0
      %6144 = vmatpush2.msra.mxu0 0.0
      %6145 = vmatprep.subr.mxu0 0.0
      %6146 = vmatpush2.msra.mxu0 0.0
      %6147 = vmatprep.subr.mxu0 0.0
      %6148 = vmatpush2.msra.mxu0 0.0
      %6149 = vmatprep.subr.mxu0 0.0
      %6150 = vmatpush2.msra.mxu0 0.0
      %6151 = vmatprep.subr.mxu0 0.0
      %6152 = vmatpush2.msra.mxu0 0.0
      %6153 = vmatprep.subr.mxu0 0.0
      %6154 = vmatpush2.msra.mxu0 0.0
      %6155 = vmatprep.subr.mxu0 0.0
      %6156 = vmatpush2.msra.mxu0 0.0
      %6157 = vmatprep.subr.mxu0 0.0
      %6158 = vmatpush2.msra.mxu0 0.0
      %6159 = vmatprep.subr.mxu0 0.0
      %6160 = vmatpush2.msra.mxu0 0.0
      %6161 = vmatprep.subr.mxu0 0.0
      %6162 = vmatpush2.msra.mxu0 0.0
      %6163 = vmatprep.subr.mxu0 0.0
      %6164 = vmatpush2.msra.mxu0 0.0
      %6165 = vmatprep.subr.mxu0 0.0
      %6166 = vmatpush2.msra.mxu0 0.0
      %6167 = vmatprep.subr.mxu0 0.0
      %6168 = vmatpush2.msra.mxu0 0.0
      %6169 = vmatprep.subr.mxu0 0.0
      %6170 = vmatpush2.msra.mxu0 0.0
      %6171 = vmatprep.subr.mxu0 0.0
      %6172 = vmatpush2.msra.mxu0 0.0
      %6173 = vmatprep.subr.mxu0 0.0
      %6174 = vmatpush2.msra.mxu0 0.0
      %6175 = vmatprep.mubr.f32.mxu0 0.0
      %6176 = vmatmul.mubr.f32.gmra.mxu0 %v6109
      %v6177 = vpop.f32.mrf.mxu0
      %v6178 = vadd.f32 0.0, %v6177
      %v6179 = vpop.f32.mrf.mxu0
      %6180 = vdwg.mxu0
      %s6181 = scalar_lea.vmem %s6, 80
      %v6182 = vld [vmem:[%s6181] sm:$0xff]
      %v6184 = vsel %vm1139, %v6178, 0
      %6186 = vmatprep.subr.mxu0 0.0
      %6187 = vmatpush1.msra.mxu0 0.0
      %6188 = vmatprep.subr.mxu0 0.0
      %6189 = vmatpush1.msra.mxu0 0.0
      %6190 = vmatprep.subr.mxu0 0.0
      %6191 = vmatpush1.msra.mxu0 0.0
      %6192 = vmatprep.subr.mxu0 0.0
      %6193 = vmatpush1.msra.mxu0 0.0
      %6194 = vmatprep.subr.mxu0 0.0
      %6195 = vmatpush1.msra.mxu0 0.0
      %6196 = vmatprep.subr.mxu0 0.0
      %6197 = vmatpush1.msra.mxu0 0.0
      %6198 = vmatprep.subr.mxu0 0.0
      %6199 = vmatpush1.msra.mxu0 0.0
      %6200 = vmatprep.subr.mxu0 0.0
      %6201 = vmatpush1.msra.mxu0 0.0
      %6202 = vmatprep.subr.mxu0 0.0
      %6203 = vmatpush1.msra.mxu0 0.0
      %6204 = vmatprep.subr.mxu0 0.0
      %6205 = vmatpush1.msra.mxu0 0.0
      %6206 = vmatprep.subr.mxu0 0.0
      %6207 = vmatpush1.msra.mxu0 0.0
      %6208 = vmatprep.subr.mxu0 0.0
      %6209 = vmatpush1.msra.mxu0 0.0
      %6210 = vmatprep.subr.mxu0 0.0
      %6211 = vmatpush1.msra.mxu0 0.0
      %6212 = vmatprep.subr.mxu0 0.0
      %6213 = vmatpush1.msra.mxu0 0.0
      %6214 = vmatprep.subr.mxu0 0.0
      %6215 = vmatpush1.msra.mxu0 0.0
      %6216 = vmatprep.subr.mxu0 0.0
      %6217 = vmatpush1.msra.mxu0 %v6182
      %6218 = vmatprep.subr.mxu0 0.0
      %6219 = vmatpush2.msra.mxu0 0.0
      %6220 = vmatprep.subr.mxu0 0.0
      %6221 = vmatpush2.msra.mxu0 0.0
      %6222 = vmatprep.subr.mxu0 0.0
      %6223 = vmatpush2.msra.mxu0 0.0
      %6224 = vmatprep.subr.mxu0 0.0
      %6225 = vmatpush2.msra.mxu0 0.0
      %6226 = vmatprep.subr.mxu0 0.0
      %6227 = vmatpush2.msra.mxu0 0.0
      %6228 = vmatprep.subr.mxu0 0.0
      %6229 = vmatpush2.msra.mxu0 0.0
      %6230 = vmatprep.subr.mxu0 0.0
      %6231 = vmatpush2.msra.mxu0 0.0
      %6232 = vmatprep.subr.mxu0 0.0
      %6233 = vmatpush2.msra.mxu0 0.0
      %6234 = vmatprep.subr.mxu0 0.0
      %6235 = vmatpush2.msra.mxu0 0.0
      %6236 = vmatprep.subr.mxu0 0.0
      %6237 = vmatpush2.msra.mxu0 0.0
      %6238 = vmatprep.subr.mxu0 0.0
      %6239 = vmatpush2.msra.mxu0 0.0
      %6240 = vmatprep.subr.mxu0 0.0
      %6241 = vmatpush2.msra.mxu0 0.0
      %6242 = vmatprep.subr.mxu0 0.0
      %6243 = vmatpush2.msra.mxu0 0.0
      %6244 = vmatprep.subr.mxu0 0.0
      %6245 = vmatpush2.msra.mxu0 0.0
      %6246 = vmatprep.subr.mxu0 0.0
      %6247 = vmatpush2.msra.mxu0 0.0
      %6248 = vmatprep.subr.mxu0 0.0
      %6249 = vmatpush2.msra.mxu0 0.0
      %6250 = vmatprep.mubr.f32.mxu0 0.0
      %6251 = vmatmul.mubr.f32.gmra.mxu0 %v6184
      %v6252 = vpop.f32.mrf.mxu0
      %v6253 = vadd.f32 0.0, %v6252
      %v6254 = vpop.f32.mrf.mxu0
      %6255 = vdwg.mxu0
      %v6256 = vadd.f32 %v5768, %v6253
      %s6257 = scalar_lea.vmem %s14, 96
      %v6258 = vld [vmem:[%s6257] sm:$0xff]
      %v6259 = vld [vmem:[%s6257 + $0x8] sm:$0xff]
      %v6260 = vld [vmem:[%s6257 + $0x10] sm:$0xff]
      %v6261 = vld [vmem:[%s6257 + $0x18] sm:$0xff]
      %s6262 = scalar_lea.vmem %s15, 3
      %v6263 = vld [vmem:[%s6262] sm:$0x1]
      %v6265 = vlaneseq
      %v6266 = vshrl.u32 %v6265, 7
      %v6267 = vsub.s32 0, %v6266
      %v6268 = vrot.slane %v6263, %v6267
      %6270 = vmatprep.subr.mxu0 0.0
      %6271 = vmatpush1.msra.mxu0 0.0
      %6272 = vmatprep.subr.mxu0 0.0
      %6273 = vmatpush1.msra.mxu0 0.0
      %6274 = vmatprep.subr.mxu0 0.0
      %6275 = vmatpush1.msra.mxu0 0.0
      %6276 = vmatprep.subr.mxu0 0.0
      %6277 = vmatpush1.msra.mxu0 0.0
      %6278 = vmatprep.subr.mxu0 0.0
      %6279 = vmatpush1.msra.mxu0 0.0
      %6280 = vmatprep.subr.mxu0 0.0
      %6281 = vmatpush1.msra.mxu0 0.0
      %6282 = vmatprep.subr.mxu0 0.0
      %6283 = vmatpush1.msra.mxu0 0.0
      %6284 = vmatprep.subr.mxu0 0.0
      %6285 = vmatpush1.msra.mxu0 0.0
      %6286 = vmatprep.subr.mxu0 0.0
      %6287 = vmatpush1.msra.mxu0 0.0
      %6288 = vmatprep.subr.mxu0 0.0
      %6289 = vmatpush1.msra.mxu0 0.0
      %6290 = vmatprep.subr.mxu0 0.0
      %6291 = vmatpush1.msra.mxu0 0.0
      %6292 = vmatprep.subr.mxu0 0.0
      %6293 = vmatpush1.msra.mxu0 0.0
      %6294 = vmatprep.subr.mxu0 0.0
      %6295 = vmatpush1.msra.mxu0 %v6261
      %6296 = vmatprep.subr.mxu0 0.0
      %6297 = vmatpush1.msra.mxu0 %v6260
      %6298 = vmatprep.subr.mxu0 0.0
      %6299 = vmatpush1.msra.mxu0 %v6259
      %6300 = vmatprep.subr.mxu0 0.0
      %6301 = vmatpush1.msra.mxu0 %v6258
      %6302 = vmatprep.subr.mxu0 0.0
      %6303 = vmatpush2.msra.mxu0 0.0
      %6304 = vmatprep.subr.mxu0 0.0
      %6305 = vmatpush2.msra.mxu0 0.0
      %6306 = vmatprep.subr.mxu0 0.0
      %6307 = vmatpush2.msra.mxu0 0.0
      %6308 = vmatprep.subr.mxu0 0.0
      %6309 = vmatpush2.msra.mxu0 0.0
      %6310 = vmatprep.subr.mxu0 0.0
      %6311 = vmatpush2.msra.mxu0 0.0
      %6312 = vmatprep.subr.mxu0 0.0
      %6313 = vmatpush2.msra.mxu0 0.0
      %6314 = vmatprep.subr.mxu0 0.0
      %6315 = vmatpush2.msra.mxu0 0.0
      %6316 = vmatprep.subr.mxu0 0.0
      %6317 = vmatpush2.msra.mxu0 0.0
      %6318 = vmatprep.subr.mxu0 0.0
      %6319 = vmatpush2.msra.mxu0 0.0
      %6320 = vmatprep.subr.mxu0 0.0
      %6321 = vmatpush2.msra.mxu0 0.0
      %6322 = vmatprep.subr.mxu0 0.0
      %6323 = vmatpush2.msra.mxu0 0.0
      %6324 = vmatprep.subr.mxu0 0.0
      %6325 = vmatpush2.msra.mxu0 0.0
      %6326 = vmatprep.subr.mxu0 0.0
      %6327 = vmatpush2.msra.mxu0 0.0
      %6328 = vmatprep.subr.mxu0 0.0
      %6329 = vmatpush2.msra.mxu0 0.0
      %6330 = vmatprep.subr.mxu0 0.0
      %6331 = vmatpush2.msra.mxu0 0.0
      %6332 = vmatprep.subr.mxu0 0.0
      %6333 = vmatpush2.msra.mxu0 0.0
      %6334 = vmatprep.mubr.f32.mxu0 0.0
      %6335 = vmatmul.mubr.f32.gmra.mxu0 %v4809
      %v6336 = vpop.f32.mrf.mxu0
      %v6337 = vadd.f32 %v6268, %v6336
      %v6338 = vpop.f32.mrf.mxu0
      %6339 = vdwg.mxu0
      %s6340 = scalar_lea.vmem %s14, 224
      %v6341 = vld [vmem:[%s6340] sm:$0xff]
      %v6342 = vld [vmem:[%s6340 + $0x8] sm:$0xff]
      %v6343 = vld [vmem:[%s6340 + $0x10] sm:$0xff]
      %v6344 = vld [vmem:[%s6340 + $0x18] sm:$0xff]
      %s6345 = scalar_lea.vmem %s15, 7
      %v6346 = vld [vmem:[%s6345] sm:$0x1]
      %v6348 = vlaneseq
      %v6349 = vshrl.u32 %v6348, 7
      %v6350 = vsub.s32 0, %v6349
      %v6351 = vrot.slane %v6346, %v6350
      %6353 = vmatprep.subr.mxu0 0.0
      %6354 = vmatpush1.msra.mxu0 0.0
      %6355 = vmatprep.subr.mxu0 0.0
      %6356 = vmatpush1.msra.mxu0 0.0
      %6357 = vmatprep.subr.mxu0 0.0
      %6358 = vmatpush1.msra.mxu0 0.0
      %6359 = vmatprep.subr.mxu0 0.0
      %6360 = vmatpush1.msra.mxu0 0.0
      %6361 = vmatprep.subr.mxu0 0.0
      %6362 = vmatpush1.msra.mxu0 0.0
      %6363 = vmatprep.subr.mxu0 0.0
      %6364 = vmatpush1.msra.mxu0 0.0
      %6365 = vmatprep.subr.mxu0 0.0
      %6366 = vmatpush1.msra.mxu0 0.0
      %6367 = vmatprep.subr.mxu0 0.0
      %6368 = vmatpush1.msra.mxu0 0.0
      %6369 = vmatprep.subr.mxu0 0.0
      %6370 = vmatpush1.msra.mxu0 0.0
      %6371 = vmatprep.subr.mxu0 0.0
      %6372 = vmatpush1.msra.mxu0 0.0
      %6373 = vmatprep.subr.mxu0 0.0
      %6374 = vmatpush1.msra.mxu0 0.0
      %6375 = vmatprep.subr.mxu0 0.0
      %6376 = vmatpush1.msra.mxu0 0.0
      %6377 = vmatprep.subr.mxu0 0.0
      %6378 = vmatpush1.msra.mxu0 %v6344
      %6379 = vmatprep.subr.mxu0 0.0
      %6380 = vmatpush1.msra.mxu0 %v6343
      %6381 = vmatprep.subr.mxu0 0.0
      %6382 = vmatpush1.msra.mxu0 %v6342
      %6383 = vmatprep.subr.mxu0 0.0
      %6384 = vmatpush1.msra.mxu0 %v6341
      %6385 = vmatprep.subr.mxu0 0.0
      %6386 = vmatpush2.msra.mxu0 0.0
      %6387 = vmatprep.subr.mxu0 0.0
      %6388 = vmatpush2.msra.mxu0 0.0
      %6389 = vmatprep.subr.mxu0 0.0
      %6390 = vmatpush2.msra.mxu0 0.0
      %6391 = vmatprep.subr.mxu0 0.0
      %6392 = vmatpush2.msra.mxu0 0.0
      %6393 = vmatprep.subr.mxu0 0.0
      %6394 = vmatpush2.msra.mxu0 0.0
      %6395 = vmatprep.subr.mxu0 0.0
      %6396 = vmatpush2.msra.mxu0 0.0
      %6397 = vmatprep.subr.mxu0 0.0
      %6398 = vmatpush2.msra.mxu0 0.0
      %6399 = vmatprep.subr.mxu0 0.0
      %6400 = vmatpush2.msra.mxu0 0.0
      %6401 = vmatprep.subr.mxu0 0.0
      %6402 = vmatpush2.msra.mxu0 0.0
      %6403 = vmatprep.subr.mxu0 0.0
      %6404 = vmatpush2.msra.mxu0 0.0
      %6405 = vmatprep.subr.mxu0 0.0
      %6406 = vmatpush2.msra.mxu0 0.0
      %6407 = vmatprep.subr.mxu0 0.0
      %6408 = vmatpush2.msra.mxu0 0.0
      %6409 = vmatprep.subr.mxu0 0.0
      %6410 = vmatpush2.msra.mxu0 0.0
      %6411 = vmatprep.subr.mxu0 0.0
      %6412 = vmatpush2.msra.mxu0 0.0
      %6413 = vmatprep.subr.mxu0 0.0
      %6414 = vmatpush2.msra.mxu0 0.0
      %6415 = vmatprep.subr.mxu0 0.0
      %6416 = vmatpush2.msra.mxu0 0.0
      %6417 = vmatprep.mubr.f32.mxu0 0.0
      %6418 = vmatmul.mubr.f32.gmra.mxu0 %v4809
      %v6419 = vpop.f32.mrf.mxu0
      %v6420 = vadd.f32 %v6351, %v6419
      %v6421 = vpop.f32.mrf.mxu0
      %6422 = vdwg.mxu0
      %s6423 = scalar_lea.vmem %s14, 352
      %v6424 = vld [vmem:[%s6423] sm:$0xff]
      %v6425 = vld [vmem:[%s6423 + $0x8] sm:$0xff]
      %v6426 = vld [vmem:[%s6423 + $0x10] sm:$0xff]
      %v6427 = vld [vmem:[%s6423 + $0x18] sm:$0xff]
      %s6428 = scalar_lea.vmem %s15, 11
      %v6429 = vld [vmem:[%s6428] sm:$0x1]
      %v6431 = vlaneseq
      %v6432 = vshrl.u32 %v6431, 7
      %v6433 = vsub.s32 0, %v6432
      %v6434 = vrot.slane %v6429, %v6433
      %6436 = vmatprep.subr.mxu0 0.0
      %6437 = vmatpush1.msra.mxu0 0.0
      %6438 = vmatprep.subr.mxu0 0.0
      %6439 = vmatpush1.msra.mxu0 0.0
      %6440 = vmatprep.subr.mxu0 0.0
      %6441 = vmatpush1.msra.mxu0 0.0
      %6442 = vmatprep.subr.mxu0 0.0
      %6443 = vmatpush1.msra.mxu0 0.0
      %6444 = vmatprep.subr.mxu0 0.0
      %6445 = vmatpush1.msra.mxu0 0.0
      %6446 = vmatprep.subr.mxu0 0.0
      %6447 = vmatpush1.msra.mxu0 0.0
      %6448 = vmatprep.subr.mxu0 0.0
      %6449 = vmatpush1.msra.mxu0 0.0
      %6450 = vmatprep.subr.mxu0 0.0
      %6451 = vmatpush1.msra.mxu0 0.0
      %6452 = vmatprep.subr.mxu0 0.0
      %6453 = vmatpush1.msra.mxu0 0.0
      %6454 = vmatprep.subr.mxu0 0.0
      %6455 = vmatpush1.msra.mxu0 0.0
      %6456 = vmatprep.subr.mxu0 0.0
      %6457 = vmatpush1.msra.mxu0 0.0
      %6458 = vmatprep.subr.mxu0 0.0
      %6459 = vmatpush1.msra.mxu0 0.0
      %6460 = vmatprep.subr.mxu0 0.0
      %6461 = vmatpush1.msra.mxu0 %v6427
      %6462 = vmatprep.subr.mxu0 0.0
      %6463 = vmatpush1.msra.mxu0 %v6426
      %6464 = vmatprep.subr.mxu0 0.0
      %6465 = vmatpush1.msra.mxu0 %v6425
      %6466 = vmatprep.subr.mxu0 0.0
      %6467 = vmatpush1.msra.mxu0 %v6424
      %6468 = vmatprep.subr.mxu0 0.0
      %6469 = vmatpush2.msra.mxu0 0.0
      %6470 = vmatprep.subr.mxu0 0.0
      %6471 = vmatpush2.msra.mxu0 0.0
      %6472 = vmatprep.subr.mxu0 0.0
      %6473 = vmatpush2.msra.mxu0 0.0
      %6474 = vmatprep.subr.mxu0 0.0
      %6475 = vmatpush2.msra.mxu0 0.0
      %6476 = vmatprep.subr.mxu0 0.0
      %6477 = vmatpush2.msra.mxu0 0.0
      %6478 = vmatprep.subr.mxu0 0.0
      %6479 = vmatpush2.msra.mxu0 0.0
      %6480 = vmatprep.subr.mxu0 0.0
      %6481 = vmatpush2.msra.mxu0 0.0
      %6482 = vmatprep.subr.mxu0 0.0
      %6483 = vmatpush2.msra.mxu0 0.0
      %6484 = vmatprep.subr.mxu0 0.0
      %6485 = vmatpush2.msra.mxu0 0.0
      %6486 = vmatprep.subr.mxu0 0.0
      %6487 = vmatpush2.msra.mxu0 0.0
      %6488 = vmatprep.subr.mxu0 0.0
      %6489 = vmatpush2.msra.mxu0 0.0
      %6490 = vmatprep.subr.mxu0 0.0
      %6491 = vmatpush2.msra.mxu0 0.0
      %6492 = vmatprep.subr.mxu0 0.0
      %6493 = vmatpush2.msra.mxu0 0.0
      %6494 = vmatprep.subr.mxu0 0.0
      %6495 = vmatpush2.msra.mxu0 0.0
      %6496 = vmatprep.subr.mxu0 0.0
      %6497 = vmatpush2.msra.mxu0 0.0
      %6498 = vmatprep.subr.mxu0 0.0
      %6499 = vmatpush2.msra.mxu0 0.0
      %6500 = vmatprep.mubr.f32.mxu0 0.0
      %6501 = vmatmul.mubr.f32.gmra.mxu0 %v4978
      %v6502 = vpop.f32.mrf.mxu0
      %v6503 = vadd.f32 %v6434, %v6502
      %v6504 = vpop.f32.mrf.mxu0
      %6505 = vdwg.mxu0
      %v6507 = vsel %vm1139, %v6337, 0
      %v6510 = vsel %vm1139, %v6420, 0
      %6512 = vmatprep.subr.mxu0 0.0
      %6513 = vmatpush1.xpose.msra.mxu0 0.0
      %6514 = vmatprep.subr.mxu0 0.0
      %6515 = vmatpush1.xpose.msra.mxu0 0.0
      %6516 = vmatprep.subr.mxu0 0.0
      %6517 = vmatpush1.xpose.msra.mxu0 0.0
      %6518 = vmatprep.subr.mxu0 0.0
      %6519 = vmatpush1.xpose.msra.mxu0 0.0
      %6520 = vmatprep.subr.mxu0 0.0
      %6521 = vmatpush1.xpose.msra.mxu0 0.0
      %6522 = vmatprep.subr.mxu0 0.0
      %6523 = vmatpush1.xpose.msra.mxu0 0.0
      %6524 = vmatprep.subr.mxu0 0.0
      %6525 = vmatpush1.xpose.msra.mxu0 0.0
      %6526 = vmatprep.subr.mxu0 0.0
      %6527 = vmatpush1.xpose.msra.mxu0 0.0
      %6528 = vmatprep.subr.mxu0 0.0
      %6529 = vmatpush1.xpose.msra.mxu0 0.0
      %6530 = vmatprep.subr.mxu0 0.0
      %6531 = vmatpush1.xpose.msra.mxu0 0.0
      %6532 = vmatprep.subr.mxu0 0.0
      %6533 = vmatpush1.xpose.msra.mxu0 0.0
      %6534 = vmatprep.subr.mxu0 0.0
      %6535 = vmatpush1.xpose.msra.mxu0 0.0
      %6536 = vmatprep.subr.mxu0 0.0
      %6537 = vmatpush1.xpose.msra.mxu0 0.0
      %6538 = vmatprep.subr.mxu0 0.0
      %6539 = vmatpush1.xpose.msra.mxu0 0.0
      %6540 = vmatprep.subr.mxu0 0.0
      %6541 = vmatpush1.xpose.msra.mxu0 0.0
      %6542 = vmatprep.subr.mxu0 0.0
      %6543 = vmatpush1.xpose.msra.mxu0 %v6510
      %6544 = vmatprep.subr.mxu0 0.0
      %6545 = vmatpush2.xpose.msra.mxu0 0.0
      %6546 = vmatprep.subr.mxu0 0.0
      %6547 = vmatpush2.xpose.msra.mxu0 0.0
      %6548 = vmatprep.subr.mxu0 0.0
      %6549 = vmatpush2.xpose.msra.mxu0 0.0
      %6550 = vmatprep.subr.mxu0 0.0
      %6551 = vmatpush2.xpose.msra.mxu0 0.0
      %6552 = vmatprep.subr.mxu0 0.0
      %6553 = vmatpush2.xpose.msra.mxu0 0.0
      %6554 = vmatprep.subr.mxu0 0.0
      %6555 = vmatpush2.xpose.msra.mxu0 0.0
      %6556 = vmatprep.subr.mxu0 0.0
      %6557 = vmatpush2.xpose.msra.mxu0 0.0
      %6558 = vmatprep.subr.mxu0 0.0
      %6559 = vmatpush2.xpose.msra.mxu0 0.0
      %6560 = vmatprep.subr.mxu0 0.0
      %6561 = vmatpush2.xpose.msra.mxu0 0.0
      %6562 = vmatprep.subr.mxu0 0.0
      %6563 = vmatpush2.xpose.msra.mxu0 0.0
      %6564 = vmatprep.subr.mxu0 0.0
      %6565 = vmatpush2.xpose.msra.mxu0 0.0
      %6566 = vmatprep.subr.mxu0 0.0
      %6567 = vmatpush2.xpose.msra.mxu0 0.0
      %6568 = vmatprep.subr.mxu0 0.0
      %6569 = vmatpush2.xpose.msra.mxu0 0.0
      %6570 = vmatprep.subr.mxu0 0.0
      %6571 = vmatpush2.xpose.msra.mxu0 0.0
      %6572 = vmatprep.subr.mxu0 0.0
      %6573 = vmatpush2.xpose.msra.mxu0 0.0
      %6574 = vmatprep.subr.mxu0 0.0
      %6575 = vmatpush2.xpose.msra.mxu0 0.0
      %6576 = vmatprep.mubr.f32.mxu0 0.0
      %6577 = vmatmul.mubr.f32.gmra.mxu0 %v6507
      %v6578 = vpop.f32.mrf.mxu0
      %v6579 = vadd.f32 0.0, %v6578
      %v6580 = vpop.f32.mrf.mxu0
      %6581 = vdwg.mxu0
      %v6582 = vmul.f32 %v6579, 0.35355338
      %v6583 = vsel %vm1139, %v6582, -inf
      %6584 = vmax.xlane.f32.xlu0 %v6583
      %v6585 = vpop.xlane.xlu0 %6584
      %v6586 = vsub.f32 %v6582, %v6585
      %v6587 = vmul.f32 %v6586, 1.442695
      %v6588 = vpow.pop %v6587
      %v6589 = vsel %vm1139, %v6588, 0.0
      %6590 = vadd.xlane.f32.xlu0 %v6589
      %v6591 = vpop.xlane.xlu0 %6590
      %v6592 = vrcp.pop %v6591
      %v6593 = vmul.f32 %v6588, %v6592
      %v6595 = vsel %vm1139, %v6593, 0
      %6597 = vmatprep.subr.mxu0 0.0
      %6598 = vmatpush1.msra.mxu0 0.0
      %6599 = vmatprep.subr.mxu0 0.0
      %6600 = vmatpush1.msra.mxu0 0.0
      %6601 = vmatprep.subr.mxu0 0.0
      %6602 = vmatpush1.msra.mxu0 0.0
      %6603 = vmatprep.subr.mxu0 0.0
      %6604 = vmatpush1.msra.mxu0 0.0
      %6605 = vmatprep.subr.mxu0 0.0
      %6606 = vmatpush1.msra.mxu0 0.0
      %6607 = vmatprep.subr.mxu0 0.0
      %6608 = vmatpush1.msra.mxu0 0.0
      %6609 = vmatprep.subr.mxu0 0.0
      %6610 = vmatpush1.msra.mxu0 0.0
      %6611 = vmatprep.subr.mxu0 0.0
      %6612 = vmatpush1.msra.mxu0 0.0
      %6613 = vmatprep.subr.mxu0 0.0
      %6614 = vmatpush1.msra.mxu0 0.0
      %6615 = vmatprep.subr.mxu0 0.0
      %6616 = vmatpush1.msra.mxu0 0.0
      %6617 = vmatprep.subr.mxu0 0.0
      %6618 = vmatpush1.msra.mxu0 0.0
      %6619 = vmatprep.subr.mxu0 0.0
      %6620 = vmatpush1.msra.mxu0 0.0
      %6621 = vmatprep.subr.mxu0 0.0
      %6622 = vmatpush1.msra.mxu0 0.0
      %6623 = vmatprep.subr.mxu0 0.0
      %6624 = vmatpush1.msra.mxu0 0.0
      %6625 = vmatprep.subr.mxu0 0.0
      %6626 = vmatpush1.msra.mxu0 0.0
      %6627 = vmatprep.subr.mxu0 0.0
      %6628 = vmatpush1.msra.mxu0 %v6503
      %6629 = vmatprep.subr.mxu0 0.0
      %6630 = vmatpush2.msra.mxu0 0.0
      %6631 = vmatprep.subr.mxu0 0.0
      %6632 = vmatpush2.msra.mxu0 0.0
      %6633 = vmatprep.subr.mxu0 0.0
      %6634 = vmatpush2.msra.mxu0 0.0
      %6635 = vmatprep.subr.mxu0 0.0
      %6636 = vmatpush2.msra.mxu0 0.0
      %6637 = vmatprep.subr.mxu0 0.0
      %6638 = vmatpush2.msra.mxu0 0.0
      %6639 = vmatprep.subr.mxu0 0.0
      %6640 = vmatpush2.msra.mxu0 0.0
      %6641 = vmatprep.subr.mxu0 0.0
      %6642 = vmatpush2.msra.mxu0 0.0
      %6643 = vmatprep.subr.mxu0 0.0
      %6644 = vmatpush2.msra.mxu0 0.0
      %6645 = vmatprep.subr.mxu0 0.0
      %6646 = vmatpush2.msra.mxu0 0.0
      %6647 = vmatprep.subr.mxu0 0.0
      %6648 = vmatpush2.msra.mxu0 0.0
      %6649 = vmatprep.subr.mxu0 0.0
      %6650 = vmatpush2.msra.mxu0 0.0
      %6651 = vmatprep.subr.mxu0 0.0
      %6652 = vmatpush2.msra.mxu0 0.0
      %6653 = vmatprep.subr.mxu0 0.0
      %6654 = vmatpush2.msra.mxu0 0.0
      %6655 = vmatprep.subr.mxu0 0.0
      %6656 = vmatpush2.msra.mxu0 0.0
      %6657 = vmatprep.subr.mxu0 0.0
      %6658 = vmatpush2.msra.mxu0 0.0
      %6659 = vmatprep.subr.mxu0 0.0
      %6660 = vmatpush2.msra.mxu0 0.0
      %6661 = vmatprep.mubr.f32.mxu0 0.0
      %6662 = vmatmul.mubr.f32.gmra.mxu0 %v6595
      %v6663 = vpop.f32.mrf.mxu0
      %v6664 = vadd.f32 0.0, %v6663
      %v6665 = vpop.f32.mrf.mxu0
      %6666 = vdwg.mxu0
      %s6667 = scalar_lea.vmem %s6, 88
      %v6668 = vld [vmem:[%s6667] sm:$0xff]
      %v6670 = vsel %vm1139, %v6664, 0
      %6672 = vmatprep.subr.mxu0 0.0
      %6673 = vmatpush1.msra.mxu0 0.0
      %6674 = vmatprep.subr.mxu0 0.0
      %6675 = vmatpush1.msra.mxu0 0.0
      %6676 = vmatprep.subr.mxu0 0.0
      %6677 = vmatpush1.msra.mxu0 0.0
      %6678 = vmatprep.subr.mxu0 0.0
      %6679 = vmatpush1.msra.mxu0 0.0
      %6680 = vmatprep.subr.mxu0 0.0
      %6681 = vmatpush1.msra.mxu0 0.0
      %6682 = vmatprep.subr.mxu0 0.0
      %6683 = vmatpush1.msra.mxu0 0.0
      %6684 = vmatprep.subr.mxu0 0.0
      %6685 = vmatpush1.msra.mxu0 0.0
      %6686 = vmatprep.subr.mxu0 0.0
      %6687 = vmatpush1.msra.mxu0 0.0
      %6688 = vmatprep.subr.mxu0 0.0
      %6689 = vmatpush1.msra.mxu0 0.0
      %6690 = vmatprep.subr.mxu0 0.0
      %6691 = vmatpush1.msra.mxu0 0.0
      %6692 = vmatprep.subr.mxu0 0.0
      %6693 = vmatpush1.msra.mxu0 0.0
      %6694 = vmatprep.subr.mxu0 0.0
      %6695 = vmatpush1.msra.mxu0 0.0
      %6696 = vmatprep.subr.mxu0 0.0
      %6697 = vmatpush1.msra.mxu0 0.0
      %6698 = vmatprep.subr.mxu0 0.0
      %6699 = vmatpush1.msra.mxu0 0.0
      %6700 = vmatprep.subr.mxu0 0.0
      %6701 = vmatpush1.msra.mxu0 0.0
      %6702 = vmatprep.subr.mxu0 0.0
      %6703 = vmatpush1.msra.mxu0 %v6668
      %6704 = vmatprep.subr.mxu0 0.0
      %6705 = vmatpush2.msra.mxu0 0.0
      %6706 = vmatprep.subr.mxu0 0.0
      %6707 = vmatpush2.msra.mxu0 0.0
      %6708 = vmatprep.subr.mxu0 0.0
      %6709 = vmatpush2.msra.mxu0 0.0
      %6710 = vmatprep.subr.mxu0 0.0
      %6711 = vmatpush2.msra.mxu0 0.0
      %6712 = vmatprep.subr.mxu0 0.0
      %6713 = vmatpush2.msra.mxu0 0.0
      %6714 = vmatprep.subr.mxu0 0.0
      %6715 = vmatpush2.msra.mxu0 0.0
      %6716 = vmatprep.subr.mxu0 0.0
      %6717 = vmatpush2.msra.mxu0 0.0
      %6718 = vmatprep.subr.mxu0 0.0
      %6719 = vmatpush2.msra.mxu0 0.0
      %6720 = vmatprep.subr.mxu0 0.0
      %6721 = vmatpush2.msra.mxu0 0.0
      %6722 = vmatprep.subr.mxu0 0.0
      %6723 = vmatpush2.msra.mxu0 0.0
      %6724 = vmatprep.subr.mxu0 0.0
      %6725 = vmatpush2.msra.mxu0 0.0
      %6726 = vmatprep.subr.mxu0 0.0
      %6727 = vmatpush2.msra.mxu0 0.0
      %6728 = vmatprep.subr.mxu0 0.0
      %6729 = vmatpush2.msra.mxu0 0.0
      %6730 = vmatprep.subr.mxu0 0.0
      %6731 = vmatpush2.msra.mxu0 0.0
      %6732 = vmatprep.subr.mxu0 0.0
      %6733 = vmatpush2.msra.mxu0 0.0
      %6734 = vmatprep.subr.mxu0 0.0
      %6735 = vmatpush2.msra.mxu0 0.0
      %6736 = vmatprep.mubr.f32.mxu0 0.0
      %6737 = vmatmul.mubr.f32.gmra.mxu0 %v6670
      %v6738 = vpop.f32.mrf.mxu0
      %v6739 = vadd.f32 0.0, %v6738
      %v6740 = vpop.f32.mrf.mxu0
      %6741 = vdwg.mxu0
      %v6742 = vadd.f32 %v6256, %v6739
      %s6743 = scalar_lea.vmem %s7, 2
      %v6744 = vld [vmem:[%s6743] sm:$0x1]
      %v6746 = vlaneseq
      %v6747 = vshrl.u32 %v6746, 7
      %v6748 = vsub.s32 0, %v6747
      %v6749 = vrot.slane %v6744, %v6748
      %v6751 = vadd.f32 %v6742, %v6749
      %v6752 = vadd.f32 %v4795, %v6751
      %s6753 = scalar_lea.vmem %s12, 4
      %v6754 = vld [vmem:[%s6753] sm:$0x1]
      %s6755 = scalar_lea.vmem %s13, 4
      %v6756 = vld [vmem:[%s6755] sm:$0x1]
      %v6757 = vsel %vm626, %v6752, 0.0
      %6758 = vadd.xlane.f32.xlu0 %v6757
      %v6759 = vpop.xlane.xlu0 %6758
      %v6760 = vmul.f32 %v6759, %v4246
      %v6761 = vsub.f32 %v6752, %v6760
      %v6762 = vmul.f32 %v6761, %v6761
      %v6763 = vsel %vm626, %v6762, 0.0
      %6764 = vadd.xlane.f32.xlu0 %v6763
      %v6765 = vpop.xlane.xlu0 %6764
      %v6766 = vmul.f32 %v6765, %v4246
      %v6767 = vadd.f32 %v6766, 1e-05
      %v6768 = vrsqrt.pop %v6767
      %v6769 = vmul.f32 %v6761, %v6768
      %v6771 = vlaneseq
      %v6772 = vshrl.u32 %v6771, 7
      %v6773 = vsub.s32 0, %v6772
      %v6774 = vrot.slane %v6754, %v6773
      %v6776 = vmul.f32 %v6769, %v6774
      %v6778 = vlaneseq
      %v6779 = vshrl.u32 %v6778, 7
      %v6780 = vsub.s32 0, %v6779
      %v6781 = vrot.slane %v6756, %v6780
      %v6783 = vadd.f32 %v6776, %v6781
      %6784 = vst.msk [vmem:[%s603] sm:$0xff] %vm626, %v4672
      %6785 = vst.msk [vmem:[%s603 + $0x8] sm:$0xff] %vm626, %v4673
      %6786 = vst.msk [vmem:[%s607] sm:$0xff] %vm626, %v6783
      %p6787 = scmp.lt.s32.totalorder %s29, 1
      %s6788 = scalar_select %p6787, %s29, 1
      %s6789 = smul.addr %s6788, 2
      %s6790 = smul.addr %s6789, 8
      %s6791 = scalar_lea.vmem %s16, %s6790
      %p6792 = scmp.lt.s32.totalorder %s29, 1
      %s6793 = scalar_select %p6792, %s29, 1
      %s6794 = smul.addr %s6793, 8
      %s6795 = scalar_lea.vmem %s17, %s6794
      // Predicated region
      $region85: #{self_cross_attention.2} parent=83 // pred_check
        %p6796 = pneg %p403
      $region86: #{self_cross_attention.2} parent=83 // pred_check_branch
        %6798 = sbr.rel (%p6796) target = $region88
      $region87: #{self_cross_attention.2} parent=83 // pred_region
        _
      $region88: #{self_cross_attention.2} parent=83 // pred_fallthru
        _
      // Predicated region
      $region89: #{self_cross_attention.2} parent=83 // pred_check
        %p6799 = pneg %p429
      $region90: #{self_cross_attention.2} parent=83 // pred_check_branch
        %6801 = sbr.rel (%p6799) target = $region92
      $region91: #{self_cross_attention.2} parent=83 // pred_region
        _
      $region92: #{self_cross_attention.2} parent=83 // pred_fallthru
        _
    $region84: #{self_cross_attention.2} parent=5 // pred_fallthru
      _
    %p6802 = scmp.le.s32.totalorder 2, %s24
    // Predicated region
    $region93: #{self_cross_attention.2} parent=5 // pred_check
      %p6803 = pneg %p6802
    $region94: #{self_cross_attention.2} parent=5 // pred_check_branch
      %6805 = sbr.rel (%p6803) target = $region96
    $region95: #{self_cross_attention.2} parent=5 // pred_region
      %s6806 = ssub.s32 %s24, 2
      // Predicated region
      $region97: #{self_cross_attention.2} parent=95 // pred_check
        %p6807 = pneg %p409
      $region98: #{self_cross_attention.2} parent=95 // pred_check_branch
        %6809 = sbr.rel (%p6807) target = $region100
      $region99: #{self_cross_attention.2} parent=95 // pred_region
        %p6810 = scmp.lt.s32.totalorder %s30, 1
        %s6811 = scalar_select %p6810, %s30, 1
        %s6812 = smul.addr %s6811, 2
        %s6813 = smul.addr %s6812, 8
        %s6814 = scalar_lea.vmem %s16, %s6813
      $region100: #{self_cross_attention.2} parent=95 // pred_fallthru
        _
      // Predicated region
      $region101: #{self_cross_attention.2} parent=95 // pred_check
        %p6815 = pneg %p435
      $region102: #{self_cross_attention.2} parent=95 // pred_check_branch
        %6817 = sbr.rel (%p6815) target = $region104
      $region103: #{self_cross_attention.2} parent=95 // pred_region
        %p6818 = scmp.lt.s32.totalorder %s30, 1
        %s6819 = scalar_select %p6818, %s30, 1
        %s6820 = smul.addr %s6819, 8
        %s6821 = scalar_lea.vmem %s17, %s6820
      $region104: #{self_cross_attention.2} parent=95 // pred_fallthru
        _
    $region96: #{self_cross_attention.2} parent=5 // pred_fallthru
      _
  $region6: #{self_cross_attention.2} parent=0 // loop_footer
    %s28 = sadd.s32 1, %s24
  $region7: #{self_cross_attention.2} parent=0 // loop_footer_branch
    %23 = sbr.rel target = $region3
  $region8: #{self_cross_attention.2} parent=0 // loop_exit
    _

</llo_original>
